<compile_context>
chip_gen: v7x
topology: tpu7x:2x2x1
jax: 0.10.0
libtpu: 0.0.40
codegen_flags: <defaults>
</compile_context>

<pallas_src>
import math

import jax
import jax.numpy as jnp
from jax.experimental import pallas as pl
from jax.experimental.pallas import tpu as pltpu

# ---------------- small, deterministic config ----------------
B        = 2
IN_LEN   = 8
OUT_LEN  = 4
NUM_ALL  = 8     # NUM_ALL_FEATURES
NUM_CTRL = 4     # NUM_CONTROL_FEATURES
NUM_PRED = 6     # NUM_PRED_FEATURES
D_MODEL  = 32
N_HEADS  = 4
D_HEAD   = D_MODEL // N_HEADS
D_FF     = 64
E_LAYERS = 2
SEQ_LEN  = IN_LEN + OUT_LEN            # spec is concatenated along the sequence axis
LN_EPS   = 1e-5

S_ALL  = B * SEQ_LEN                   # 24 rows: (batch, seq) flattened into the matmul M dim
F_ALL  = N_HEADS * S_ALL               # 96 score columns: (head, key-row)
ACT_W  = 16                            # packed activation width: 8 inp + 4 spec + 2 bias cols + pad
OUT_W  = OUT_LEN * NUM_PRED + D_MODEL  # 24 + 32 = 56: merged output slab
PACK_W = 96                            # lane width of the packed parameter slab

_VMEM = pl.BlockSpec(memory_space=pltpu.MemorySpace.VMEM)

# kernel row order: [batch0 inputs(8), batch1 inputs(8), batch0 spec(4), batch1 spec(4)].
# Attention and mean-pooling are order-invariant within a batch, so this aligned 2-piece
# layout avoids any sublane-misaligned interleave; batch membership / positions are encoded
# in the constant masks / PE / pooling matrix below.
_BATCH_OF_ROW = [0] * IN_LEN + [1] * IN_LEN + [0] * OUT_LEN + [1] * OUT_LEN
_POS_OF_ROW = list(range(IN_LEN)) * B + [IN_LEN + s for s in range(OUT_LEN)] * B


# ---------------- static layout of the single packed parameter slab ----------------
def _ceil8(n):
    return (n + 7) // 8 * 8


def _build_layout():
    items = [
        ('w_emb', ACT_W, D_MODEL),          # embedding weights (+ bias rows)
        ('pe', S_ALL, D_MODEL),             # positional encoding, per kernel row
        ('head_mask', F_ALL, D_MODEL),      # 0/1 block-diagonal head selector
        ('bmask', S_ALL, F_ALL),            # additive 0 / -1e30 cross-batch mask
        ('pool', B, S_ALL),                 # per-batch mean-pool matrix (1/SEQ_LEN entries)
        ('genw', D_MODEL, OUT_LEN * NUM_PRED),
        ('genb', 1, OUT_LEN * NUM_PRED),
        ('g_enc', 1, D_MODEL),
        ('b_enc', 1, D_MODEL),
    ]
    for l in range(E_LAYERS):
        items += [
            (f'wqkv{l}', D_MODEL, 3 * D_MODEL),
            (f'wo{l}', D_MODEL, D_MODEL),
            (f'w1{l}', D_MODEL, D_FF),
            (f'w2{l}', D_FF, D_MODEL),
            (f'bqkv{l}', 1, 3 * D_MODEL),
            (f'bo{l}', 1, D_MODEL),
            (f'g1{l}', 1, D_MODEL),
            (f'be1{l}', 1, D_MODEL),
            (f'b1{l}', 1, D_FF),
            (f'b2{l}', 1, D_MODEL),
            (f'g2{l}', 1, D_MODEL),
            (f'be2{l}', 1, D_MODEL),
        ]
    offs, r = {}, 0
    for name, rows, cols in items:
        offs[name] = (r, rows, cols)
        r += _ceil8(rows)                   # keep every block sublane (8-row) aligned
    return offs, r


_OFFS, _PACK_ROWS = _build_layout()


def _layer_norm(x, gamma, beta, eps=LN_EPS):
    mu = jnp.mean(x, axis=-1, keepdims=True)
    var = jnp.mean((x - mu) ** 2, axis=-1, keepdims=True)
    return (x - mu) * jax.lax.rsqrt(var + eps) * gamma + beta


# ---------------- the single fused kernel ----------------
def fused_forward_kernel(acts_ref, pack_ref, out_ref):
    f32 = jnp.float32

    def blk(name):
        r, rows, cols = _OFFS[name]
        return pack_ref[r:r + rows, 0:cols]

    # ---- embedding + biases + positional encoding: ONE matmul, register-resident ----
    x = jnp.dot(acts_ref[...], blk('w_emb'), preferred_element_type=f32) + blk('pe')   # (24,32)

    head_mask = blk('head_mask')        # (96,32)  0/1 block-diagonal head selector
    bmask = blk('bmask')                # (24,96)  additive 0 / -1e30 cross-batch mask

    # ---- transformer encoder layers (post-norm), fully unrolled, all 2-D matmuls ----
    for l in range(E_LAYERS):
        # fused QKV projection (Wq/bq pre-scaled by 1/sqrt(dh)); split ONCE into q/k/v
        qkv = jnp.dot(x, blk(f'wqkv{l}'), preferred_element_type=f32) + blk(f'bqkv{l}')  # (24,96)
        q_all = qkv[:, 0:D_MODEL]
        k_all = qkv[:, D_MODEL:2 * D_MODEL]
        v_all = qkv[:, 2 * D_MODEL:3 * D_MODEL]

        # block-diagonal (over heads) K / V:  row f = head*S_ALL + key_row
        k_bd = jnp.concatenate([k_all] * N_HEADS, axis=0) * head_mask   # (96,32)
        v_bd = jnp.concatenate([v_all] * N_HEADS, axis=0) * head_mask   # (96,32)

        # all (batch, head) attention scores in one matmul; cross-batch keys masked out.
        s = jnp.einsum('rd,fd->rf', q_all, k_bd, preferred_element_type=f32) + bmask    # (24,96)
        # global row max: exact (softmax is shift-invariant per head block) and stable
        # for this model's score ranges; avoids any per-head lane slicing / relayout.
        p = jnp.exp(s - jnp.max(s, axis=-1, keepdims=True))
        ctx = jnp.dot(p, v_bd, preferred_element_type=f32)              # (24,32) unnormalized
        denom = jnp.dot(p, head_mask, preferred_element_type=f32)       # per-(row, head) sums
        ctx = ctx / denom                                               # exact softmax division

        attn = jnp.dot(ctx, blk(f'wo{l}'), preferred_element_type=f32) + blk(f'bo{l}')
        x = _layer_norm(x + attn, blk(f'g1{l}'), blk(f'be1{l}'))        # dropout1 = identity

        ff = jnp.dot(x, blk(f'w1{l}'), preferred_element_type=f32) + blk(f'b1{l}')
        ff = jnp.dot(jnp.maximum(ff, 0.0), blk(f'w2{l}'),
                     preferred_element_type=f32) + blk(f'b2{l}')
        x = _layer_norm(x + ff, blk(f'g2{l}'), blk(f'be2{l}'))          # dropout2 = identity

    # ---- final encoder norm, per-batch mean pool, fused generators ----
    x = _layer_norm(x, blk('g_enc'), blk('b_enc'))
    xm = jnp.dot(blk('pool'), x, preferred_element_type=f32)            # (B, D) per-batch mean

    # generators share the normalization statistics of xm; per-generator affine + Linear
    # were folded into genw/genb at pack time -> one lane-dense matmul.
    mu = jnp.mean(xm, axis=-1, keepdims=True)
    var = jnp.mean((xm - mu) ** 2, axis=-1, keepdims=True)
    xhat = (xm - mu) * jax.lax.rsqrt(var + LN_EPS)
    xfinal = jnp.dot(xhat, blk('genw'), preferred_element_type=f32) + blk('genb')       # (B,24)

    # single lane-contiguous output slab: [x_final_flat | x_pooled]
    out_ref[...] = jnp.concatenate([xfinal, xm], axis=1)


# ---------------- plain-JAX glue: PE, params, packing, wrapper ----------------
def positional_encoding(max_len, d_model):
    position = jnp.arange(max_len, dtype=jnp.float32)[:, None]
    div_term = jnp.exp(jnp.arange(0, d_model, 2, dtype=jnp.float32)
                       * -(math.log(10000.0) / d_model))
    pe = jnp.zeros((max_len, d_model), dtype=jnp.float32)
    pe = pe.at[:, 0::2].set(jnp.sin(position * div_term))
    pe = pe.at[:, 1::2].set(jnp.cos(position * div_term))
    return pe


def init_params(key):
    def nrm(k, shape, scale=0.02):
        return (scale * jax.random.normal(k, shape)).astype(jnp.float32)

    def gamma(k, shape):
        return (1.0 + 0.1 * jax.random.normal(k, shape)).astype(jnp.float32)

    def beta(k, shape):
        return (0.1 * jax.random.normal(k, shape)).astype(jnp.float32)

    keys = iter(jax.random.split(key, 80))
    p = {}
    p['w_in'] = nrm(next(keys), (NUM_ALL, D_MODEL));  p['b_in'] = beta(next(keys), (D_MODEL,))
    p['w_sp'] = nrm(next(keys), (NUM_CTRL, D_MODEL)); p['b_sp'] = beta(next(keys), (D_MODEL,))
    p['layers'] = []
    for _ in range(E_LAYERS):
        lp = dict(
            wq=nrm(next(keys), (D_MODEL, D_MODEL)), bq=beta(next(keys), (D_MODEL,)),
            wk=nrm(next(keys), (D_MODEL, D_MODEL)), bk=beta(next(keys), (D_MODEL,)),
            wv=nrm(next(keys), (D_MODEL, D_MODEL)), bv=beta(next(keys), (D_MODEL,)),
            wo=nrm(next(keys), (D_MODEL, D_MODEL)), bo=beta(next(keys), (D_MODEL,)),
            g1=gamma(next(keys), (D_MODEL,)),       be1=beta(next(keys), (D_MODEL,)),
            w1=nrm(next(keys), (D_MODEL, D_FF)),    b1=beta(next(keys), (D_FF,)),
            w2=nrm(next(keys), (D_FF, D_MODEL)),    b2=beta(next(keys), (D_MODEL,)),
            g2=gamma(next(keys), (D_MODEL,)),       be2=beta(next(keys), (D_MODEL,)),
        )
        p['layers'].append(lp)
    p['g_enc'] = gamma(next(keys), (D_MODEL,)); p['b_enc'] = beta(next(keys), (D_MODEL,))
    p['gen_g'] = gamma(next(keys), (OUT_LEN, D_MODEL))
    p['gen_b'] = beta(next(keys), (OUT_LEN, D_MODEL))
    p['gen_w'] = nrm(next(keys), (OUT_LEN, D_MODEL, NUM_PRED))
    p['gen_bias'] = beta(next(keys), (OUT_LEN, NUM_PRED))
    return p


def pack_params(params):
    """One-time packing of all parameters + constants into a single (rows, 96) f32 slab."""
    f32 = jnp.float32
    scale = 1.0 / math.sqrt(D_HEAD)
    pe = positional_encoding(SEQ_LEN, D_MODEL)

    blocks = {}
    # fused embedding: acts(24,16) @ w_emb(16,32); rows 12/13 carry the biases
    w_emb = jnp.zeros((ACT_W, D_MODEL), f32)
    w_emb = w_emb.at[0:NUM_ALL].set(params['w_in'])
    w_emb = w_emb.at[NUM_ALL:NUM_ALL + NUM_CTRL].set(params['w_sp'])
    w_emb = w_emb.at[NUM_ALL + NUM_CTRL].set(params['b_in'])
    w_emb = w_emb.at[NUM_ALL + NUM_CTRL + 1].set(params['b_sp'])
    blocks['w_emb'] = w_emb

    batch_row = jnp.asarray(_BATCH_OF_ROW, jnp.int32)
    pos_row = jnp.asarray(_POS_OF_ROW, jnp.int32)
    blocks['pe'] = pe[pos_row]                                           # (24, 32)

    blocks['head_mask'] = (jnp.arange(F_ALL)[:, None] // S_ALL
                           == jnp.arange(D_MODEL)[None, :] // D_HEAD).astype(f32)   # (96,32)

    same_batch = batch_row[:, None] == batch_row[None, :]                # (24,24)
    blocks['bmask'] = jnp.where(jnp.tile(same_batch, (1, N_HEADS)), 0.0, -1e30).astype(f32)

    blocks['pool'] = (batch_row[None, :] == jnp.arange(B)[:, None]).astype(f32) / SEQ_LEN

    # generators: LayerNorm_o affine + Linear_o folded into one (D, OUT_LEN*P) matmul
    blocks['genw'] = jnp.einsum('od,odp->dop', params['gen_g'], params['gen_w']
                                ).reshape(D_MODEL, OUT_LEN * NUM_PRED)
    blocks['genb'] = (jnp.einsum('od,odp->op', params['gen_b'], params['gen_w'])
                      + params['gen_bias']).reshape(1, OUT_LEN * NUM_PRED)
    blocks['g_enc'] = params['g_enc'][None, :]
    blocks['b_enc'] = params['b_enc'][None, :]

    for l, lp in enumerate(params['layers']):
        blocks[f'wqkv{l}'] = jnp.concatenate([lp['wq'] * scale, lp['wk'], lp['wv']], axis=1)
        blocks[f'bqkv{l}'] = jnp.concatenate([lp['bq'] * scale, lp['bk'], lp['bv']])[None, :]
        blocks[f'wo{l}'] = lp['wo'];            blocks[f'bo{l}'] = lp['bo'][None, :]
        blocks[f'g1{l}'] = lp['g1'][None, :];   blocks[f'be1{l}'] = lp['be1'][None, :]
        blocks[f'w1{l}'] = lp['w1'];            blocks[f'b1{l}'] = lp['b1'][None, :]
        blocks[f'w2{l}'] = lp['w2'];            blocks[f'b2{l}'] = lp['b2'][None, :]
        blocks[f'g2{l}'] = lp['g2'][None, :];   blocks[f'be2{l}'] = lp['be2'][None, :]

    pack = jnp.zeros((_PACK_ROWS, PACK_W), f32)
    for name, (r, rows, cols) in _OFFS.items():
        a = jnp.asarray(blocks[name], f32)
        assert a.shape == (rows, cols), (name, a.shape, (rows, cols))
        pack = pack.at[r:r + rows, 0:cols].set(a)
    return pack


def base_transformer_forward(pack, inp, spec):
    f32 = jnp.float32
    inp2d = inp.reshape(B * IN_LEN, NUM_ALL).astype(f32)
    spec2d = spec.reshape(B * OUT_LEN, NUM_CTRL).astype(f32)

    # packed activations: [inp feats | spec feats | 1(inp rows) | 1(spec rows) | pad]
    acts = jnp.concatenate([
        jnp.concatenate([inp2d,
                         jnp.zeros((B * IN_LEN, NUM_CTRL), f32),
                         jnp.ones((B * IN_LEN, 1), f32),
                         jnp.zeros((B * IN_LEN, ACT_W - NUM_ALL - NUM_CTRL - 1), f32)], axis=1),
        jnp.concatenate([jnp.zeros((B * OUT_LEN, NUM_ALL), f32),
                         spec2d,
                         jnp.zeros((B * OUT_LEN, 1), f32),
                         jnp.ones((B * OUT_LEN, 1), f32),
                         jnp.zeros((B * OUT_LEN, ACT_W - NUM_ALL - NUM_CTRL - 2), f32)], axis=1),
    ], axis=0)                                                            # (24, 16)

    out = pl.pallas_call(
        fused_forward_kernel,
        out_shape=jax.ShapeDtypeStruct((B, OUT_W), f32),
        in_specs=[_VMEM, _VMEM],
        out_specs=_VMEM,
        compiler_params=pltpu.CompilerParams(vmem_limit_bytes=16 * 1024 * 1024),
        cost_estimate=pl.CostEstimate(
            flops=1_800_000,
            transcendentals=5_000,
            bytes_accessed=_PACK_ROWS * PACK_W * 4 + S_ALL * ACT_W * 4 + B * OUT_W * 4),
    )(acts, pack)

    x_final = out[:, 0:OUT_LEN * NUM_PRED].reshape(B, OUT_LEN, NUM_PRED)
    x_pooled = out[:, OUT_LEN * NUM_PRED:OUT_W]
    return x_final, x_pooled


# ---------------- pure-JAX reference (eval-mode semantics of the PyTorch module) ----------------
def reference_forward(params, inp, spec):
    scale = 1.0 / math.sqrt(D_HEAD)
    pe = positional_encoding(SEQ_LEN, D_MODEL)

    def ln(v, g, b):
        mu = v.mean(axis=-1, keepdims=True)
        var = ((v - mu) ** 2).mean(axis=-1, keepdims=True)
        return (v - mu) * jax.lax.rsqrt(var + LN_EPS) * g + b

    x = inp @ params['w_in'] + params['b_in']
    sp = spec @ params['w_sp'] + params['b_sp']
    x = jnp.concatenate([x, sp], axis=1) + pe[None, :, :]
    for lp in params['layers']:
        q = ((x @ lp['wq'] + lp['bq']) * scale).reshape(B, SEQ_LEN, N_HEADS, D_HEAD)
        k = (x @ lp['wk'] + lp['bk']).reshape(B, SEQ_LEN, N_HEADS, D_HEAD)
        v = (x @ lp['wv'] + lp['bv']).reshape(B, SEQ_LEN, N_HEADS, D_HEAD)
        s = jnp.einsum('bqhd,bkhd->bhqk', q, k)
        p = jax.nn.softmax(s, axis=-1)
        ctx = jnp.einsum('bhqk,bkhd->bqhd', p, v).reshape(B, SEQ_LEN, D_MODEL)
        x = ln(x + ctx @ lp['wo'] + lp['bo'], lp['g1'], lp['be1'])
        ff = jax.nn.relu(x @ lp['w1'] + lp['b1']) @ lp['w2'] + lp['b2']
        x = ln(x + ff, lp['g2'], lp['be2'])
    x = ln(x, params['g_enc'], params['b_enc'])
    pooled = x.mean(axis=1)
    outs = []
    for o in range(OUT_LEN):
        h = ln(pooled, params['gen_g'][o], params['gen_b'][o])
        outs.append(h @ params['gen_w'][o] + params['gen_bias'][o])
    return jnp.stack(outs, axis=1), pooled


if __name__ == "__main__":
    jax.config.update("jax_default_matmul_precision", "highest")

    key = jax.random.PRNGKey(0)
    k_inp, k_spec, k_par = jax.random.split(key, 3)
    inp = jax.random.normal(k_inp, (B, IN_LEN, NUM_ALL), dtype=jnp.float32)
    spec = jax.random.normal(k_spec, (B, OUT_LEN, NUM_CTRL), dtype=jnp.float32)
    params = init_params(k_par)

    pack = pack_params(params)                       # one-time packing: kernel has 2 input operands
    fwd = jax.jit(base_transformer_forward)
    x_final, x_pooled = fwd(pack, inp, spec)
    jax.block_until_ready((x_final, x_pooled))

    assert x_final.shape == (B, OUT_LEN, NUM_PRED)
    assert x_pooled.shape == (B, D_MODEL)
    assert jnp.all(jnp.isfinite(x_final)) and jnp.all(jnp.isfinite(x_pooled))

    ref_final, ref_pooled = reference_forward(params, inp, spec)
    assert jnp.allclose(x_final, ref_final, rtol=5e-3, atol=5e-4), \
        float(jnp.max(jnp.abs(x_final - ref_final)))
    assert jnp.allclose(x_pooled, ref_pooled, rtol=5e-3, atol=5e-4), \
        float(jnp.max(jnp.abs(x_pooled - ref_pooled)))

    print("KERNEL_OK")
</pallas_src>

<mosaic_0001>
module attributes {stable_mosaic.version = 11 : i64} {
  func.func @fused_forward_kernel(%arg0: memref<24x16xf32, #tpu.memory_space<vmem>>, %arg1: memref<672x96xf32, #tpu.memory_space<vmem>>, %arg2: memref<2x56xf32, #tpu.memory_space<vmem>>) attributes {dimension_semantics = [], scalar_prefetch = 0 : i64, scratch_operands = 0 : i64, tpu.core_type = #tpu.core_type<tc>} {
    %c0 = arith.constant 0 : index
    %c0_0 = arith.constant 0 : index
    %0 = vector.load %arg0[%c0, %c0_0] : memref<24x16xf32, #tpu.memory_space<vmem>>, vector<24x16xf32>
    %c0_1 = arith.constant 0 : index
    %c0_2 = arith.constant 0 : index
    %1 = vector.load %arg1[%c0_1, %c0_2] : memref<672x96xf32, #tpu.memory_space<vmem>>, vector<16x32xf32>
    %cst = arith.constant dense<0.000000e+00> : vector<24x32xf32>
    %2 = tpu.matmul %0, %1, %cst {dimension_numbers = #tpu.dot_dimension_numbers<[1], [0], [0], [1], [0, 0, 1, 1], [], []>, precision = #tpu.contract_precision<fp32>} : vector<24x16xf32>, vector<16x32xf32>, vector<24x32xf32> -> vector<24x32xf32>
    %c16 = arith.constant 16 : index
    %c0_3 = arith.constant 0 : index
    %3 = vector.load %arg1[%c16, %c0_3] : memref<672x96xf32, #tpu.memory_space<vmem>>, vector<24x32xf32>
    %4 = arith.addf %2, %3 : vector<24x32xf32>
    %c40 = arith.constant 40 : index
    %c0_4 = arith.constant 0 : index
    %5 = vector.load %arg1[%c40, %c0_4] : memref<672x96xf32, #tpu.memory_space<vmem>>, vector<96x32xf32>
    %c136 = arith.constant 136 : index
    %c0_5 = arith.constant 0 : index
    %6 = vector.load %arg1[%c136, %c0_5] : memref<672x96xf32, #tpu.memory_space<vmem>>, vector<24x96xf32>
    %c224 = arith.constant 224 : index
    %c0_6 = arith.constant 0 : index
    %7 = vector.load %arg1[%c224, %c0_6] : memref<672x96xf32, #tpu.memory_space<vmem>>, vector<32x96xf32>
    %cst_7 = arith.constant dense<0.000000e+00> : vector<24x96xf32>
    %8 = tpu.matmul %4, %7, %cst_7 {dimension_numbers = #tpu.dot_dimension_numbers<[1], [0], [0], [1], [0, 0, 1, 1], [], []>, precision = #tpu.contract_precision<fp32>} : vector<24x32xf32>, vector<32x96xf32>, vector<24x96xf32> -> vector<24x96xf32>
    %c384 = arith.constant 384 : index
    %c0_8 = arith.constant 0 : index
    %9 = vector.load %arg1[%c384, %c0_8] : memref<672x96xf32, #tpu.memory_space<vmem>>, vector<1x96xf32>
    %10 = vector.broadcast %9 : vector<1x96xf32> to vector<24x96xf32>
    %11 = arith.addf %8, %10 : vector<24x96xf32>
    %12 = vector.extract_strided_slice %11 {offsets = [0, 0], sizes = [24, 32], strides = [1, 1]} : vector<24x96xf32> to vector<24x32xf32>
    %13 = vector.extract_strided_slice %11 {offsets = [0, 32], sizes = [24, 32], strides = [1, 1]} : vector<24x96xf32> to vector<24x32xf32>
    %14 = vector.extract_strided_slice %11 {offsets = [0, 64], sizes = [24, 32], strides = [1, 1]} : vector<24x96xf32> to vector<24x32xf32>
    %15 = tpu.concatenate %13, %13, %13, %13 in 0 : vector<24x32xf32>, vector<24x32xf32>, vector<24x32xf32>, vector<24x32xf32> -> vector<96x32xf32>
    %16 = arith.mulf %15, %5 : vector<96x32xf32>
    %17 = tpu.concatenate %14, %14, %14, %14 in 0 : vector<24x32xf32>, vector<24x32xf32>, vector<24x32xf32>, vector<24x32xf32> -> vector<96x32xf32>
    %18 = arith.mulf %17, %5 : vector<96x32xf32>
    "tpu.trace_start"() <{level = 10 : i32, message = "rd,fd->rf"}> : () -> ()
    %cst_9 = arith.constant dense<0.000000e+00> : vector<24x96xf32>
    %19 = tpu.matmul %12, %16, %cst_9 {dimension_numbers = #tpu.dot_dimension_numbers<[1], [1], [0], [0], [0, 0, 1, 0], [], []>, precision = #tpu.contract_precision<fp32>} : vector<24x32xf32>, vector<96x32xf32>, vector<24x96xf32> -> vector<24x96xf32>
    "tpu.trace_stop"() : () -> ()
    %20 = arith.addf %19, %6 : vector<24x96xf32>
    %cst_10 = arith.constant dense<0xFF800000> : vector<24xf32>
    %21 = vector.multi_reduction <maximumf>, %20, %cst_10 [1] : vector<24x96xf32> to vector<24xf32>
    %22 = vector.shape_cast %21 : vector<24xf32> to vector<24x1xf32>
    %23 = vector.broadcast %22 : vector<24x1xf32> to vector<24x96xf32>
    %24 = arith.subf %20, %23 : vector<24x96xf32>
    %25 = math.exp %24 : vector<24x96xf32>
    %cst_11 = arith.constant dense<0.000000e+00> : vector<24x32xf32>
    %26 = tpu.matmul %25, %18, %cst_11 {dimension_numbers = #tpu.dot_dimension_numbers<[1], [0], [0], [1], [0, 0, 1, 1], [], []>, precision = #tpu.contract_precision<fp32>} : vector<24x96xf32>, vector<96x32xf32>, vector<24x32xf32> -> vector<24x32xf32>
    %cst_12 = arith.constant dense<0.000000e+00> : vector<24x32xf32>
    %27 = tpu.matmul %25, %5, %cst_12 {dimension_numbers = #tpu.dot_dimension_numbers<[1], [0], [0], [1], [0, 0, 1, 1], [], []>, precision = #tpu.contract_precision<fp32>} : vector<24x96xf32>, vector<96x32xf32>, vector<24x32xf32> -> vector<24x32xf32>
    %28 = arith.divf %26, %27 : vector<24x32xf32>
    %c256 = arith.constant 256 : index
    %c0_13 = arith.constant 0 : index
    %29 = vector.load %arg1[%c256, %c0_13] : memref<672x96xf32, #tpu.memory_space<vmem>>, vector<32x32xf32>
    %cst_14 = arith.constant dense<0.000000e+00> : vector<24x32xf32>
    %30 = tpu.matmul %28, %29, %cst_14 {dimension_numbers = #tpu.dot_dimension_numbers<[1], [0], [0], [1], [0, 0, 1, 1], [], []>, precision = #tpu.contract_precision<fp32>} : vector<24x32xf32>, vector<32x32xf32>, vector<24x32xf32> -> vector<24x32xf32>
    %c392 = arith.constant 392 : index
    %c0_15 = arith.constant 0 : index
    %31 = vector.load %arg1[%c392, %c0_15] : memref<672x96xf32, #tpu.memory_space<vmem>>, vector<1x32xf32>
    %32 = vector.broadcast %31 : vector<1x32xf32> to vector<24x32xf32>
    %33 = arith.addf %30, %32 : vector<24x32xf32>
    %34 = arith.addf %4, %33 : vector<24x32xf32>
    %c400 = arith.constant 400 : index
    %c0_16 = arith.constant 0 : index
    %35 = vector.load %arg1[%c400, %c0_16] : memref<672x96xf32, #tpu.memory_space<vmem>>, vector<1x32xf32>
    %c408 = arith.constant 408 : index
    %c0_17 = arith.constant 0 : index
    %36 = vector.load %arg1[%c408, %c0_17] : memref<672x96xf32, #tpu.memory_space<vmem>>, vector<1x32xf32>
    %cst_18 = arith.constant dense<0.000000e+00> : vector<24xf32>
    %37 = vector.multi_reduction <add>, %34, %cst_18 [1] : vector<24x32xf32> to vector<24xf32>
    %38 = vector.shape_cast %37 : vector<24xf32> to vector<24x1xf32>
    %cst_19 = arith.constant 3.200000e+01 : f32
    %39 = vector.broadcast %cst_19 : f32 to vector<24x1xf32>
    %40 = arith.divf %38, %39 : vector<24x1xf32>
    %41 = vector.broadcast %40 : vector<24x1xf32> to vector<24x32xf32>
    %42 = arith.subf %34, %41 : vector<24x32xf32>
    %43 = arith.mulf %42, %42 : vector<24x32xf32>
    %cst_20 = arith.constant dense<0.000000e+00> : vector<24xf32>
    %44 = vector.multi_reduction <add>, %43, %cst_20 [1] : vector<24x32xf32> to vector<24xf32>
    %45 = vector.shape_cast %44 : vector<24xf32> to vector<24x1xf32>
    %cst_21 = arith.constant 3.200000e+01 : f32
    %46 = vector.broadcast %cst_21 : f32 to vector<24x1xf32>
    %47 = arith.divf %45, %46 : vector<24x1xf32>
    %48 = vector.broadcast %40 : vector<24x1xf32> to vector<24x32xf32>
    %49 = arith.subf %34, %48 : vector<24x32xf32>
    %cst_22 = arith.constant 9.99999974E-6 : f32
    %50 = vector.broadcast %cst_22 : f32 to vector<24x1xf32>
    %51 = arith.addf %47, %50 : vector<24x1xf32>
    %52 = math.rsqrt %51 : vector<24x1xf32>
    %53 = vector.broadcast %52 : vector<24x1xf32> to vector<24x32xf32>
    %54 = arith.mulf %49, %53 : vector<24x32xf32>
    %55 = vector.broadcast %35 : vector<1x32xf32> to vector<24x32xf32>
    %56 = arith.mulf %54, %55 : vector<24x32xf32>
    %57 = vector.broadcast %36 : vector<1x32xf32> to vector<24x32xf32>
    %58 = arith.addf %56, %57 : vector<24x32xf32>
    %c288 = arith.constant 288 : index
    %c0_23 = arith.constant 0 : index
    %59 = vector.load %arg1[%c288, %c0_23] : memref<672x96xf32, #tpu.memory_space<vmem>>, vector<32x64xf32>
    %cst_24 = arith.constant dense<0.000000e+00> : vector<24x64xf32>
    %60 = tpu.matmul %58, %59, %cst_24 {dimension_numbers = #tpu.dot_dimension_numbers<[1], [0], [0], [1], [0, 0, 1, 1], [], []>, precision = #tpu.contract_precision<fp32>} : vector<24x32xf32>, vector<32x64xf32>, vector<24x64xf32> -> vector<24x64xf32>
    %c416 = arith.constant 416 : index
    %c0_25 = arith.constant 0 : index
    %61 = vector.load %arg1[%c416, %c0_25] : memref<672x96xf32, #tpu.memory_space<vmem>>, vector<1x64xf32>
    %62 = vector.broadcast %61 : vector<1x64xf32> to vector<24x64xf32>
    %63 = arith.addf %60, %62 : vector<24x64xf32>
    %cst_26 = arith.constant 0.000000e+00 : f32
    %64 = vector.broadcast %cst_26 : f32 to vector<24x64xf32>
    %65 = arith.maximumf %63, %64 : vector<24x64xf32>
    %c320 = arith.constant 320 : index
    %c0_27 = arith.constant 0 : index
    %66 = vector.load %arg1[%c320, %c0_27] : memref<672x96xf32, #tpu.memory_space<vmem>>, vector<64x32xf32>
    %cst_28 = arith.constant dense<0.000000e+00> : vector<24x32xf32>
    %67 = tpu.matmul %65, %66, %cst_28 {dimension_numbers = #tpu.dot_dimension_numbers<[1], [0], [0], [1], [0, 0, 1, 1], [], []>, precision = #tpu.contract_precision<fp32>} : vector<24x64xf32>, vector<64x32xf32>, vector<24x32xf32> -> vector<24x32xf32>
    %c424 = arith.constant 424 : index
    %c0_29 = arith.constant 0 : index
    %68 = vector.load %arg1[%c424, %c0_29] : memref<672x96xf32, #tpu.memory_space<vmem>>, vector<1x32xf32>
    %69 = vector.broadcast %68 : vector<1x32xf32> to vector<24x32xf32>
    %70 = arith.addf %67, %69 : vector<24x32xf32>
    %71 = arith.addf %58, %70 : vector<24x32xf32>
    %c432 = arith.constant 432 : index
    %c0_30 = arith.constant 0 : index
    %72 = vector.load %arg1[%c432, %c0_30] : memref<672x96xf32, #tpu.memory_space<vmem>>, vector<1x32xf32>
    %c440 = arith.constant 440 : index
    %c0_31 = arith.constant 0 : index
    %73 = vector.load %arg1[%c440, %c0_31] : memref<672x96xf32, #tpu.memory_space<vmem>>, vector<1x32xf32>
    %cst_32 = arith.constant dense<0.000000e+00> : vector<24xf32>
    %74 = vector.multi_reduction <add>, %71, %cst_32 [1] : vector<24x32xf32> to vector<24xf32>
    %75 = vector.shape_cast %74 : vector<24xf32> to vector<24x1xf32>
    %cst_33 = arith.constant 3.200000e+01 : f32
    %76 = vector.broadcast %cst_33 : f32 to vector<24x1xf32>
    %77 = arith.divf %75, %76 : vector<24x1xf32>
    %78 = vector.broadcast %77 : vector<24x1xf32> to vector<24x32xf32>
    %79 = arith.subf %71, %78 : vector<24x32xf32>
    %80 = arith.mulf %79, %79 : vector<24x32xf32>
    %cst_34 = arith.constant dense<0.000000e+00> : vector<24xf32>
    %81 = vector.multi_reduction <add>, %80, %cst_34 [1] : vector<24x32xf32> to vector<24xf32>
    %82 = vector.shape_cast %81 : vector<24xf32> to vector<24x1xf32>
    %cst_35 = arith.constant 3.200000e+01 : f32
    %83 = vector.broadcast %cst_35 : f32 to vector<24x1xf32>
    %84 = arith.divf %82, %83 : vector<24x1xf32>
    %85 = vector.broadcast %77 : vector<24x1xf32> to vector<24x32xf32>
    %86 = arith.subf %71, %85 : vector<24x32xf32>
    %cst_36 = arith.constant 9.99999974E-6 : f32
    %87 = vector.broadcast %cst_36 : f32 to vector<24x1xf32>
    %88 = arith.addf %84, %87 : vector<24x1xf32>
    %89 = math.rsqrt %88 : vector<24x1xf32>
    %90 = vector.broadcast %89 : vector<24x1xf32> to vector<24x32xf32>
    %91 = arith.mulf %86, %90 : vector<24x32xf32>
    %92 = vector.broadcast %72 : vector<1x32xf32> to vector<24x32xf32>
    %93 = arith.mulf %91, %92 : vector<24x32xf32>
    %94 = vector.broadcast %73 : vector<1x32xf32> to vector<24x32xf32>
    %95 = arith.addf %93, %94 : vector<24x32xf32>
    %c448 = arith.constant 448 : index
    %c0_37 = arith.constant 0 : index
    %96 = vector.load %arg1[%c448, %c0_37] : memref<672x96xf32, #tpu.memory_space<vmem>>, vector<32x96xf32>
    %cst_38 = arith.constant dense<0.000000e+00> : vector<24x96xf32>
    %97 = tpu.matmul %95, %96, %cst_38 {dimension_numbers = #tpu.dot_dimension_numbers<[1], [0], [0], [1], [0, 0, 1, 1], [], []>, precision = #tpu.contract_precision<fp32>} : vector<24x32xf32>, vector<32x96xf32>, vector<24x96xf32> -> vector<24x96xf32>
    %c608 = arith.constant 608 : index
    %c0_39 = arith.constant 0 : index
    %98 = vector.load %arg1[%c608, %c0_39] : memref<672x96xf32, #tpu.memory_space<vmem>>, vector<1x96xf32>
    %99 = vector.broadcast %98 : vector<1x96xf32> to vector<24x96xf32>
    %100 = arith.addf %97, %99 : vector<24x96xf32>
    %101 = vector.extract_strided_slice %100 {offsets = [0, 0], sizes = [24, 32], strides = [1, 1]} : vector<24x96xf32> to vector<24x32xf32>
    %102 = vector.extract_strided_slice %100 {offsets = [0, 32], sizes = [24, 32], strides = [1, 1]} : vector<24x96xf32> to vector<24x32xf32>
    %103 = vector.extract_strided_slice %100 {offsets = [0, 64], sizes = [24, 32], strides = [1, 1]} : vector<24x96xf32> to vector<24x32xf32>
    %104 = tpu.concatenate %102, %102, %102, %102 in 0 : vector<24x32xf32>, vector<24x32xf32>, vector<24x32xf32>, vector<24x32xf32> -> vector<96x32xf32>
    %105 = arith.mulf %104, %5 : vector<96x32xf32>
    %106 = tpu.concatenate %103, %103, %103, %103 in 0 : vector<24x32xf32>, vector<24x32xf32>, vector<24x32xf32>, vector<24x32xf32> -> vector<96x32xf32>
    %107 = arith.mulf %106, %5 : vector<96x32xf32>
    "tpu.trace_start"() <{level = 10 : i32, message = "rd,fd->rf"}> : () -> ()
    %cst_40 = arith.constant dense<0.000000e+00> : vector<24x96xf32>
    %108 = tpu.matmul %101, %105, %cst_40 {dimension_numbers = #tpu.dot_dimension_numbers<[1], [1], [0], [0], [0, 0, 1, 0], [], []>, precision = #tpu.contract_precision<fp32>} : vector<24x32xf32>, vector<96x32xf32>, vector<24x96xf32> -> vector<24x96xf32>
    "tpu.trace_stop"() : () -> ()
    %109 = arith.addf %108, %6 : vector<24x96xf32>
    %cst_41 = arith.constant dense<0xFF800000> : vector<24xf32>
    %110 = vector.multi_reduction <maximumf>, %109, %cst_41 [1] : vector<24x96xf32> to vector<24xf32>
    %111 = vector.shape_cast %110 : vector<24xf32> to vector<24x1xf32>
    %112 = vector.broadcast %111 : vector<24x1xf32> to vector<24x96xf32>
    %113 = arith.subf %109, %112 : vector<24x96xf32>
    %114 = math.exp %113 : vector<24x96xf32>
    %cst_42 = arith.constant dense<0.000000e+00> : vector<24x32xf32>
    %115 = tpu.matmul %114, %107, %cst_42 {dimension_numbers = #tpu.dot_dimension_numbers<[1], [0], [0], [1], [0, 0, 1, 1], [], []>, precision = #tpu.contract_precision<fp32>} : vector<24x96xf32>, vector<96x32xf32>, vector<24x32xf32> -> vector<24x32xf32>
    %cst_43 = arith.constant dense<0.000000e+00> : vector<24x32xf32>
    %116 = tpu.matmul %114, %5, %cst_43 {dimension_numbers = #tpu.dot_dimension_numbers<[1], [0], [0], [1], [0, 0, 1, 1], [], []>, precision = #tpu.contract_precision<fp32>} : vector<24x96xf32>, vector<96x32xf32>, vector<24x32xf32> -> vector<24x32xf32>
    %117 = arith.divf %115, %116 : vector<24x32xf32>
    %c480 = arith.constant 480 : index
    %c0_44 = arith.constant 0 : index
    %118 = vector.load %arg1[%c480, %c0_44] : memref<672x96xf32, #tpu.memory_space<vmem>>, vector<32x32xf32>
    %cst_45 = arith.constant dense<0.000000e+00> : vector<24x32xf32>
    %119 = tpu.matmul %117, %118, %cst_45 {dimension_numbers = #tpu.dot_dimension_numbers<[1], [0], [0], [1], [0, 0, 1, 1], [], []>, precision = #tpu.contract_precision<fp32>} : vector<24x32xf32>, vector<32x32xf32>, vector<24x32xf32> -> vector<24x32xf32>
    %c616 = arith.constant 616 : index
    %c0_46 = arith.constant 0 : index
    %120 = vector.load %arg1[%c616, %c0_46] : memref<672x96xf32, #tpu.memory_space<vmem>>, vector<1x32xf32>
    %121 = vector.broadcast %120 : vector<1x32xf32> to vector<24x32xf32>
    %122 = arith.addf %119, %121 : vector<24x32xf32>
    %123 = arith.addf %95, %122 : vector<24x32xf32>
    %c624 = arith.constant 624 : index
    %c0_47 = arith.constant 0 : index
    %124 = vector.load %arg1[%c624, %c0_47] : memref<672x96xf32, #tpu.memory_space<vmem>>, vector<1x32xf32>
    %c632 = arith.constant 632 : index
    %c0_48 = arith.constant 0 : index
    %125 = vector.load %arg1[%c632, %c0_48] : memref<672x96xf32, #tpu.memory_space<vmem>>, vector<1x32xf32>
    %cst_49 = arith.constant dense<0.000000e+00> : vector<24xf32>
    %126 = vector.multi_reduction <add>, %123, %cst_49 [1] : vector<24x32xf32> to vector<24xf32>
    %127 = vector.shape_cast %126 : vector<24xf32> to vector<24x1xf32>
    %cst_50 = arith.constant 3.200000e+01 : f32
    %128 = vector.broadcast %cst_50 : f32 to vector<24x1xf32>
    %129 = arith.divf %127, %128 : vector<24x1xf32>
    %130 = vector.broadcast %129 : vector<24x1xf32> to vector<24x32xf32>
    %131 = arith.subf %123, %130 : vector<24x32xf32>
    %132 = arith.mulf %131, %131 : vector<24x32xf32>
    %cst_51 = arith.constant dense<0.000000e+00> : vector<24xf32>
    %133 = vector.multi_reduction <add>, %132, %cst_51 [1] : vector<24x32xf32> to vector<24xf32>
    %134 = vector.shape_cast %133 : vector<24xf32> to vector<24x1xf32>
    %cst_52 = arith.constant 3.200000e+01 : f32
    %135 = vector.broadcast %cst_52 : f32 to vector<24x1xf32>
    %136 = arith.divf %134, %135 : vector<24x1xf32>
    %137 = vector.broadcast %129 : vector<24x1xf32> to vector<24x32xf32>
    %138 = arith.subf %123, %137 : vector<24x32xf32>
    %cst_53 = arith.constant 9.99999974E-6 : f32
    %139 = vector.broadcast %cst_53 : f32 to vector<24x1xf32>
    %140 = arith.addf %136, %139 : vector<24x1xf32>
    %141 = math.rsqrt %140 : vector<24x1xf32>
    %142 = vector.broadcast %141 : vector<24x1xf32> to vector<24x32xf32>
    %143 = arith.mulf %138, %142 : vector<24x32xf32>
    %144 = vector.broadcast %124 : vector<1x32xf32> to vector<24x32xf32>
    %145 = arith.mulf %143, %144 : vector<24x32xf32>
    %146 = vector.broadcast %125 : vector<1x32xf32> to vector<24x32xf32>
    %147 = arith.addf %145, %146 : vector<24x32xf32>
    %c512 = arith.constant 512 : index
    %c0_54 = arith.constant 0 : index
    %148 = vector.load %arg1[%c512, %c0_54] : memref<672x96xf32, #tpu.memory_space<vmem>>, vector<32x64xf32>
    %cst_55 = arith.constant dense<0.000000e+00> : vector<24x64xf32>
    %149 = tpu.matmul %147, %148, %cst_55 {dimension_numbers = #tpu.dot_dimension_numbers<[1], [0], [0], [1], [0, 0, 1, 1], [], []>, precision = #tpu.contract_precision<fp32>} : vector<24x32xf32>, vector<32x64xf32>, vector<24x64xf32> -> vector<24x64xf32>
    %c640 = arith.constant 640 : index
    %c0_56 = arith.constant 0 : index
    %150 = vector.load %arg1[%c640, %c0_56] : memref<672x96xf32, #tpu.memory_space<vmem>>, vector<1x64xf32>
    %151 = vector.broadcast %150 : vector<1x64xf32> to vector<24x64xf32>
    %152 = arith.addf %149, %151 : vector<24x64xf32>
    %cst_57 = arith.constant 0.000000e+00 : f32
    %153 = vector.broadcast %cst_57 : f32 to vector<24x64xf32>
    %154 = arith.maximumf %152, %153 : vector<24x64xf32>
    %c544 = arith.constant 544 : index
    %c0_58 = arith.constant 0 : index
    %155 = vector.load %arg1[%c544, %c0_58] : memref<672x96xf32, #tpu.memory_space<vmem>>, vector<64x32xf32>
    %cst_59 = arith.constant dense<0.000000e+00> : vector<24x32xf32>
    %156 = tpu.matmul %154, %155, %cst_59 {dimension_numbers = #tpu.dot_dimension_numbers<[1], [0], [0], [1], [0, 0, 1, 1], [], []>, precision = #tpu.contract_precision<fp32>} : vector<24x64xf32>, vector<64x32xf32>, vector<24x32xf32> -> vector<24x32xf32>
    %c648 = arith.constant 648 : index
    %c0_60 = arith.constant 0 : index
    %157 = vector.load %arg1[%c648, %c0_60] : memref<672x96xf32, #tpu.memory_space<vmem>>, vector<1x32xf32>
    %158 = vector.broadcast %157 : vector<1x32xf32> to vector<24x32xf32>
    %159 = arith.addf %156, %158 : vector<24x32xf32>
    %160 = arith.addf %147, %159 : vector<24x32xf32>
    %c656 = arith.constant 656 : index
    %c0_61 = arith.constant 0 : index
    %161 = vector.load %arg1[%c656, %c0_61] : memref<672x96xf32, #tpu.memory_space<vmem>>, vector<1x32xf32>
    %c664 = arith.constant 664 : index
    %c0_62 = arith.constant 0 : index
    %162 = vector.load %arg1[%c664, %c0_62] : memref<672x96xf32, #tpu.memory_space<vmem>>, vector<1x32xf32>
    %cst_63 = arith.constant dense<0.000000e+00> : vector<24xf32>
    %163 = vector.multi_reduction <add>, %160, %cst_63 [1] : vector<24x32xf32> to vector<24xf32>
    %164 = vector.shape_cast %163 : vector<24xf32> to vector<24x1xf32>
    %cst_64 = arith.constant 3.200000e+01 : f32
    %165 = vector.broadcast %cst_64 : f32 to vector<24x1xf32>
    %166 = arith.divf %164, %165 : vector<24x1xf32>
    %167 = vector.broadcast %166 : vector<24x1xf32> to vector<24x32xf32>
    %168 = arith.subf %160, %167 : vector<24x32xf32>
    %169 = arith.mulf %168, %168 : vector<24x32xf32>
    %cst_65 = arith.constant dense<0.000000e+00> : vector<24xf32>
    %170 = vector.multi_reduction <add>, %169, %cst_65 [1] : vector<24x32xf32> to vector<24xf32>
    %171 = vector.shape_cast %170 : vector<24xf32> to vector<24x1xf32>
    %cst_66 = arith.constant 3.200000e+01 : f32
    %172 = vector.broadcast %cst_66 : f32 to vector<24x1xf32>
    %173 = arith.divf %171, %172 : vector<24x1xf32>
    %174 = vector.broadcast %166 : vector<24x1xf32> to vector<24x32xf32>
    %175 = arith.subf %160, %174 : vector<24x32xf32>
    %cst_67 = arith.constant 9.99999974E-6 : f32
    %176 = vector.broadcast %cst_67 : f32 to vector<24x1xf32>
    %177 = arith.addf %173, %176 : vector<24x1xf32>
    %178 = math.rsqrt %177 : vector<24x1xf32>
    %179 = vector.broadcast %178 : vector<24x1xf32> to vector<24x32xf32>
    %180 = arith.mulf %175, %179 : vector<24x32xf32>
    %181 = vector.broadcast %161 : vector<1x32xf32> to vector<24x32xf32>
    %182 = arith.mulf %180, %181 : vector<24x32xf32>
    %183 = vector.broadcast %162 : vector<1x32xf32> to vector<24x32xf32>
    %184 = arith.addf %182, %183 : vector<24x32xf32>
    %c208 = arith.constant 208 : index
    %c0_68 = arith.constant 0 : index
    %185 = vector.load %arg1[%c208, %c0_68] : memref<672x96xf32, #tpu.memory_space<vmem>>, vector<1x32xf32>
    %c216 = arith.constant 216 : index
    %c0_69 = arith.constant 0 : index
    %186 = vector.load %arg1[%c216, %c0_69] : memref<672x96xf32, #tpu.memory_space<vmem>>, vector<1x32xf32>
    %cst_70 = arith.constant dense<0.000000e+00> : vector<24xf32>
    %187 = vector.multi_reduction <add>, %184, %cst_70 [1] : vector<24x32xf32> to vector<24xf32>
    %188 = vector.shape_cast %187 : vector<24xf32> to vector<24x1xf32>
    %cst_71 = arith.constant 3.200000e+01 : f32
    %189 = vector.broadcast %cst_71 : f32 to vector<24x1xf32>
    %190 = arith.divf %188, %189 : vector<24x1xf32>
    %191 = vector.broadcast %190 : vector<24x1xf32> to vector<24x32xf32>
    %192 = arith.subf %184, %191 : vector<24x32xf32>
    %193 = arith.mulf %192, %192 : vector<24x32xf32>
    %cst_72 = arith.constant dense<0.000000e+00> : vector<24xf32>
    %194 = vector.multi_reduction <add>, %193, %cst_72 [1] : vector<24x32xf32> to vector<24xf32>
    %195 = vector.shape_cast %194 : vector<24xf32> to vector<24x1xf32>
    %cst_73 = arith.constant 3.200000e+01 : f32
    %196 = vector.broadcast %cst_73 : f32 to vector<24x1xf32>
    %197 = arith.divf %195, %196 : vector<24x1xf32>
    %198 = vector.broadcast %190 : vector<24x1xf32> to vector<24x32xf32>
    %199 = arith.subf %184, %198 : vector<24x32xf32>
    %cst_74 = arith.constant 9.99999974E-6 : f32
    %200 = vector.broadcast %cst_74 : f32 to vector<24x1xf32>
    %201 = arith.addf %197, %200 : vector<24x1xf32>
    %202 = math.rsqrt %201 : vector<24x1xf32>
    %203 = vector.broadcast %202 : vector<24x1xf32> to vector<24x32xf32>
    %204 = arith.mulf %199, %203 : vector<24x32xf32>
    %205 = vector.broadcast %185 : vector<1x32xf32> to vector<24x32xf32>
    %206 = arith.mulf %204, %205 : vector<24x32xf32>
    %207 = vector.broadcast %186 : vector<1x32xf32> to vector<24x32xf32>
    %208 = arith.addf %206, %207 : vector<24x32xf32>
    %c160 = arith.constant 160 : index
    %c0_75 = arith.constant 0 : index
    %209 = vector.load %arg1[%c160, %c0_75] : memref<672x96xf32, #tpu.memory_space<vmem>>, vector<2x24xf32>
    %cst_76 = arith.constant dense<0.000000e+00> : vector<2x32xf32>
    %210 = tpu.matmul %209, %208, %cst_76 {dimension_numbers = #tpu.dot_dimension_numbers<[1], [0], [0], [1], [0, 0, 1, 1], [], []>, precision = #tpu.contract_precision<fp32>} : vector<2x24xf32>, vector<24x32xf32>, vector<2x32xf32> -> vector<2x32xf32>
    %cst_77 = arith.constant dense<0.000000e+00> : vector<2xf32>
    %211 = vector.multi_reduction <add>, %210, %cst_77 [1] : vector<2x32xf32> to vector<2xf32>
    %212 = vector.shape_cast %211 : vector<2xf32> to vector<2x1xf32>
    %cst_78 = arith.constant 3.200000e+01 : f32
    %213 = vector.broadcast %cst_78 : f32 to vector<2x1xf32>
    %214 = arith.divf %212, %213 : vector<2x1xf32>
    %215 = vector.broadcast %214 : vector<2x1xf32> to vector<2x32xf32>
    %216 = arith.subf %210, %215 : vector<2x32xf32>
    %217 = arith.mulf %216, %216 : vector<2x32xf32>
    %cst_79 = arith.constant dense<0.000000e+00> : vector<2xf32>
    %218 = vector.multi_reduction <add>, %217, %cst_79 [1] : vector<2x32xf32> to vector<2xf32>
    %219 = vector.shape_cast %218 : vector<2xf32> to vector<2x1xf32>
    %cst_80 = arith.constant 3.200000e+01 : f32
    %220 = vector.broadcast %cst_80 : f32 to vector<2x1xf32>
    %221 = arith.divf %219, %220 : vector<2x1xf32>
    %222 = vector.broadcast %214 : vector<2x1xf32> to vector<2x32xf32>
    %223 = arith.subf %210, %222 : vector<2x32xf32>
    %cst_81 = arith.constant 9.99999974E-6 : f32
    %224 = vector.broadcast %cst_81 : f32 to vector<2x1xf32>
    %225 = arith.addf %221, %224 : vector<2x1xf32>
    %226 = math.rsqrt %225 : vector<2x1xf32>
    %227 = vector.broadcast %226 : vector<2x1xf32> to vector<2x32xf32>
    %228 = arith.mulf %223, %227 : vector<2x32xf32>
    %c168 = arith.constant 168 : index
    %c0_82 = arith.constant 0 : index
    %229 = vector.load %arg1[%c168, %c0_82] : memref<672x96xf32, #tpu.memory_space<vmem>>, vector<32x24xf32>
    %cst_83 = arith.constant dense<0.000000e+00> : vector<2x24xf32>
    %230 = tpu.matmul %228, %229, %cst_83 {dimension_numbers = #tpu.dot_dimension_numbers<[1], [0], [0], [1], [0, 0, 1, 1], [], []>, precision = #tpu.contract_precision<fp32>} : vector<2x32xf32>, vector<32x24xf32>, vector<2x24xf32> -> vector<2x24xf32>
    %c200 = arith.constant 200 : index
    %c0_84 = arith.constant 0 : index
    %231 = vector.load %arg1[%c200, %c0_84] : memref<672x96xf32, #tpu.memory_space<vmem>>, vector<1x24xf32>
    %232 = vector.broadcast %231 : vector<1x24xf32> to vector<2x24xf32>
    %233 = arith.addf %230, %232 : vector<2x24xf32>
    %234 = tpu.concatenate %233, %210 in 1 : vector<2x24xf32>, vector<2x32xf32> -> vector<2x56xf32>
    %c0_85 = arith.constant 0 : index
    %c0_86 = arith.constant 0 : index
    %235 = vector.load %arg2[%c0_85, %c0_86] : memref<2x56xf32, #tpu.memory_space<vmem>>, vector<2x56xf32>
    tpu.vector_store %arg2[%c0_85, %c0_86], %234 {strides = array<i32>} : memref<2x56xf32, #tpu.memory_space<vmem>>, vector<2x56xf32>,
    return
  }
}

</mosaic_0001>

<llo_original>
// kernel: base_transformer_forward.1
$region0: #{base_transformer_forward.1}
  #allocation0 [shape = 'u32[]', space=smem, size = 0x4, offset = 0x4, fixed_abs, tag = 'smem constant byte address 0x4 - core index']
  #allocation1 [shape = 'u32[144,128]{1,0:T(1,128)}', space=vmem, size = 0x12000, scoped, tag = 'internal scratch']
  %s0 = inlined_call_operand.vmem [shape: f32[24,16], index: 0, kind: input, shape index: {}]
  %s1 = inlined_call_operand.vmem [shape: f32[672,96], index: 1, kind: input, shape index: {}]
  %s2 = inlined_call_operand.vmem [shape: f32[2,56], index: 2, kind: output, shape index: {}]
  %s3 = sld [smem:[#allocation0]]
  $region18: #{base_transformer_forward.1} parent=0
    _
  %s5 = ssub.s32 1, %s3
  %s6 = scalar_select 0, %s5, %s3
  // Predicated region
  $region2: #{base_transformer_forward.1} parent=0 // pred_check
    _
  $region3: #{base_transformer_forward.1} parent=0 // pred_check_branch
    %8 = sbr.rel (0) target = $region5
  $region4: #{base_transformer_forward.1} parent=0 // pred_region
    _
  $region5: #{base_transformer_forward.1} parent=0 // pred_fallthru
    _
  // Predicated region
  $region6: #{base_transformer_forward.1} parent=0 // pred_check
    _
  $region7: #{base_transformer_forward.1} parent=0 // pred_check_branch
    %10 = sbr.rel (0) target = $region9
  $region8: #{base_transformer_forward.1} parent=0 // pred_region
    _
  $region9: #{base_transformer_forward.1} parent=0 // pred_fallthru
    _
  %v11 = vld [vmem:[%s0] sm:$0xff]
  %v12 = vld [vmem:[%s0 + $0x8] sm:$0xff]
  %v13 = vld [vmem:[%s0 + $0x10] sm:$0xff]
  %v14 = vld [vmem:[%s1] sm:$0xff]
  %v15 = vld [vmem:[%s1 + $0x8] sm:$0xff]
  %v16 = vld [vmem:[%s1 + $0x10] sm:$0xff]
  %v17 = vld [vmem:[%s1 + $0x18] sm:$0xff]
  %v18 = vld [vmem:[%s1 + $0x20] sm:$0xff]
  %vm19 = vcmask 130048
  %v21 = vsel %vm19, %v11, 0
  %v24 = vsel %vm19, %v12, 0
  %v27 = vsel %vm19, %v13, 0
  %29 = vmatprep.subr.mxu0 0.0
  %v30 = vand.u32 %v14, 4294901760
  %31 = vmatpush1.msra.mxu0 %v30
  %32 = vmatprep.subr.mxu0 0.0
  %v33 = vand.u32 %v15, 4294901760
  %34 = vmatpush1.msra.mxu0 %v33
  %35 = vmatprep.subr.mxu0 0.0
  %36 = vmatpush1.msra.mxu0 0.0
  %37 = vmatprep.subr.mxu0 0.0
  %38 = vmatpush1.msra.mxu0 0.0
  %39 = vmatprep.subr.mxu0 0.0
  %40 = vmatpush1.msra.mxu0 0.0
  %41 = vmatprep.subr.mxu0 0.0
  %42 = vmatpush1.msra.mxu0 0.0
  %43 = vmatprep.subr.mxu0 0.0
  %44 = vmatpush1.msra.mxu0 0.0
  %45 = vmatprep.subr.mxu0 0.0
  %46 = vmatpush1.msra.mxu0 0.0
  %47 = vmatprep.subr.mxu0 0.0
  %48 = vmatpush1.msra.mxu0 0.0
  %49 = vmatprep.subr.mxu0 0.0
  %50 = vmatpush1.msra.mxu0 0.0
  %51 = vmatprep.subr.mxu0 0.0
  %52 = vmatpush1.msra.mxu0 0.0
  %53 = vmatprep.subr.mxu0 0.0
  %54 = vmatpush1.msra.mxu0 0.0
  %55 = vmatprep.subr.mxu0 0.0
  %56 = vmatpush1.msra.mxu0 0.0
  %57 = vmatprep.subr.mxu0 0.0
  %58 = vmatpush1.msra.mxu0 0.0
  %59 = vmatprep.subr.mxu0 0.0
  %60 = vmatpush1.msra.mxu0 0.0
  %61 = vmatprep.subr.mxu0 0.0
  %62 = vmatpush1.msra.mxu0 0.0
  %63 = vmatprep.subr.mxu0 0.0
  %64 = vmatpush1.msra.mxu0 0.0
  %65 = vmatprep.subr.mxu0 0.0
  %66 = vmatpush1.msra.mxu0 0.0
  %67 = vmatprep.subr.mxu0 0.0
  %68 = vmatpush1.msra.mxu0 0.0
  %69 = vmatprep.subr.mxu0 0.0
  %70 = vmatpush1.msra.mxu0 0.0
  %71 = vmatprep.subr.mxu0 0.0
  %72 = vmatpush1.msra.mxu0 0.0
  %73 = vmatprep.subr.mxu0 0.0
  %74 = vmatpush1.msra.mxu0 0.0
  %75 = vmatprep.subr.mxu0 0.0
  %76 = vmatpush1.msra.mxu0 0.0
  %77 = vmatprep.subr.mxu0 0.0
  %78 = vmatpush1.msra.mxu0 0.0
  %79 = vmatprep.subr.mxu0 0.0
  %80 = vmatpush1.msra.mxu0 0.0
  %81 = vmatprep.subr.mxu0 0.0
  %82 = vmatpush1.msra.mxu0 0.0
  %83 = vmatprep.subr.mxu0 0.0
  %84 = vmatpush1.msra.mxu0 0.0
  %85 = vmatprep.subr.mxu0 0.0
  %86 = vmatpush1.msra.mxu0 0.0
  %87 = vmatprep.subr.mxu0 0.0
  %88 = vmatpush1.msra.mxu0 0.0
  %89 = vmatprep.subr.mxu0 0.0
  %90 = vmatpush1.msra.mxu0 0.0
  %91 = vmatprep.subr.mxu0 0.0
  %92 = vmatpush1.msra.mxu0 0.0
  %93 = vmatprep.subr.mxu0 0.0
  %94 = vmatpush1.msra.mxu0 0.0
  %95 = vmatprep.mubr.f32.mxu0 0.0
  %v96 = vand.u32 %v21, 4294901760
  %v97 = vsub.f32 %v21, %v96
  %v98 = vand.u32 %v97, 4294901760
  %v99 = vsub.f32 %v97, %v98
  %v100 = vand.u32 %v99, 4294901760
  %101 = vmatmul.mubr.f32.gmra.mrb[0].mxu0 %v100
  %v102 = vpop.f32.mrb[0].mxu0
  %v103 = vadd.f32 %v16, %v102
  %v104 = vpop.f32.mrb[0].mxu0
  %105 = vmatprep.mubr.f32.mxu0 0.0
  %v106 = vand.u32 %v24, 4294901760
  %v107 = vsub.f32 %v24, %v106
  %v108 = vand.u32 %v107, 4294901760
  %v109 = vsub.f32 %v107, %v108
  %v110 = vand.u32 %v109, 4294901760
  %111 = vmatmul.mubr.f32.gmra.mrb[0].mxu0 %v110
  %v112 = vpop.f32.mrb[0].mxu0
  %v113 = vadd.f32 %v17, %v112
  %v114 = vpop.f32.mrb[0].mxu0
  %115 = vmatprep.mubr.f32.mxu0 0.0
  %v116 = vand.u32 %v27, 4294901760
  %v117 = vsub.f32 %v27, %v116
  %v118 = vand.u32 %v117, 4294901760
  %v119 = vsub.f32 %v117, %v118
  %v120 = vand.u32 %v119, 4294901760
  %121 = vmatmul.mubr.f32.gmra.mrb[0].mxu0 %v120
  %v122 = vpop.f32.mrb[0].mxu0
  %v123 = vadd.f32 %v18, %v122
  %v124 = vpop.f32.mrb[0].mxu0
  %125 = vdwg.mxu0
  %126 = vmatprep.subr.mxu0 0.0
  %v127 = vand.u32 %v14, 4294901760
  %v128 = vsub.f32 %v14, %v127
  %v129 = vand.u32 %v128, 4294901760
  %v130 = vsub.f32 %v128, %v129
  %v131 = vand.u32 %v130, 4294901760
  %132 = vmatpush1.msra.mxu0 %v131
  %133 = vmatprep.subr.mxu0 0.0
  %v134 = vand.u32 %v15, 4294901760
  %v135 = vsub.f32 %v15, %v134
  %v136 = vand.u32 %v135, 4294901760
  %v137 = vsub.f32 %v135, %v136
  %v138 = vand.u32 %v137, 4294901760
  %139 = vmatpush1.msra.mxu0 %v138
  %140 = vmatprep.subr.mxu0 0.0
  %141 = vmatpush1.msra.mxu0 0.0
  %142 = vmatprep.subr.mxu0 0.0
  %143 = vmatpush1.msra.mxu0 0.0
  %144 = vmatprep.subr.mxu0 0.0
  %145 = vmatpush1.msra.mxu0 0.0
  %146 = vmatprep.subr.mxu0 0.0
  %147 = vmatpush1.msra.mxu0 0.0
  %148 = vmatprep.subr.mxu0 0.0
  %149 = vmatpush1.msra.mxu0 0.0
  %150 = vmatprep.subr.mxu0 0.0
  %151 = vmatpush1.msra.mxu0 0.0
  %152 = vmatprep.subr.mxu0 0.0
  %153 = vmatpush1.msra.mxu0 0.0
  %154 = vmatprep.subr.mxu0 0.0
  %155 = vmatpush1.msra.mxu0 0.0
  %156 = vmatprep.subr.mxu0 0.0
  %157 = vmatpush1.msra.mxu0 0.0
  %158 = vmatprep.subr.mxu0 0.0
  %159 = vmatpush1.msra.mxu0 0.0
  %160 = vmatprep.subr.mxu0 0.0
  %161 = vmatpush1.msra.mxu0 0.0
  %162 = vmatprep.subr.mxu0 0.0
  %163 = vmatpush1.msra.mxu0 0.0
  %164 = vmatprep.subr.mxu0 0.0
  %165 = vmatpush1.msra.mxu0 0.0
  %166 = vmatprep.subr.mxu0 0.0
  %167 = vmatpush1.msra.mxu0 0.0
  %168 = vmatprep.subr.mxu0 0.0
  %169 = vmatpush1.msra.mxu0 0.0
  %170 = vmatprep.subr.mxu0 0.0
  %171 = vmatpush1.msra.mxu0 0.0
  %172 = vmatprep.subr.mxu0 0.0
  %173 = vmatpush1.msra.mxu0 0.0
  %174 = vmatprep.subr.mxu0 0.0
  %175 = vmatpush1.msra.mxu0 0.0
  %176 = vmatprep.subr.mxu0 0.0
  %177 = vmatpush1.msra.mxu0 0.0
  %178 = vmatprep.subr.mxu0 0.0
  %179 = vmatpush1.msra.mxu0 0.0
  %180 = vmatprep.subr.mxu0 0.0
  %181 = vmatpush1.msra.mxu0 0.0
  %182 = vmatprep.subr.mxu0 0.0
  %183 = vmatpush1.msra.mxu0 0.0
  %184 = vmatprep.subr.mxu0 0.0
  %185 = vmatpush1.msra.mxu0 0.0
  %186 = vmatprep.subr.mxu0 0.0
  %187 = vmatpush1.msra.mxu0 0.0
  %188 = vmatprep.subr.mxu0 0.0
  %189 = vmatpush1.msra.mxu0 0.0
  %190 = vmatprep.subr.mxu0 0.0
  %191 = vmatpush1.msra.mxu0 0.0
  %192 = vmatprep.subr.mxu0 0.0
  %193 = vmatpush1.msra.mxu0 0.0
  %194 = vmatprep.subr.mxu0 0.0
  %195 = vmatpush1.msra.mxu0 0.0
  %196 = vmatprep.subr.mxu0 0.0
  %197 = vmatpush1.msra.mxu0 0.0
  %198 = vmatprep.subr.mxu0 0.0
  %199 = vmatpush1.msra.mxu0 0.0
  %200 = vmatprep.mubr.f32.mxu0 0.0
  %v201 = vand.u32 %v21, 4294901760
  %202 = vmatmul.mubr.f32.gmra.mrb[0].mxu0 %v201
  %v203 = vpop.f32.mrb[0].mxu0
  %v204 = vadd.f32 %v103, %v203
  %v205 = vpop.f32.mrb[0].mxu0
  %206 = vmatprep.mubr.f32.mxu0 0.0
  %v207 = vand.u32 %v24, 4294901760
  %208 = vmatmul.mubr.f32.gmra.mrb[0].mxu0 %v207
  %v209 = vpop.f32.mrb[0].mxu0
  %v210 = vadd.f32 %v113, %v209
  %v211 = vpop.f32.mrb[0].mxu0
  %212 = vmatprep.mubr.f32.mxu0 0.0
  %v213 = vand.u32 %v27, 4294901760
  %214 = vmatmul.mubr.f32.gmra.mrb[0].mxu0 %v213
  %v215 = vpop.f32.mrb[0].mxu0
  %v216 = vadd.f32 %v123, %v215
  %v217 = vpop.f32.mrb[0].mxu0
  %218 = vdwg.mxu0
  %219 = vmatprep.subr.mxu0 0.0
  %v220 = vand.u32 %v14, 4294901760
  %v221 = vsub.f32 %v14, %v220
  %222 = vmatpush1.msra.mxu0 %v221
  %223 = vmatprep.subr.mxu0 0.0
  %v224 = vand.u32 %v15, 4294901760
  %v225 = vsub.f32 %v15, %v224
  %226 = vmatpush1.msra.mxu0 %v225
  %227 = vmatprep.subr.mxu0 0.0
  %228 = vmatpush1.msra.mxu0 0.0
  %229 = vmatprep.subr.mxu0 0.0
  %230 = vmatpush1.msra.mxu0 0.0
  %231 = vmatprep.subr.mxu0 0.0
  %232 = vmatpush1.msra.mxu0 0.0
  %233 = vmatprep.subr.mxu0 0.0
  %234 = vmatpush1.msra.mxu0 0.0
  %235 = vmatprep.subr.mxu0 0.0
  %236 = vmatpush1.msra.mxu0 0.0
  %237 = vmatprep.subr.mxu0 0.0
  %238 = vmatpush1.msra.mxu0 0.0
  %239 = vmatprep.subr.mxu0 0.0
  %240 = vmatpush1.msra.mxu0 0.0
  %241 = vmatprep.subr.mxu0 0.0
  %242 = vmatpush1.msra.mxu0 0.0
  %243 = vmatprep.subr.mxu0 0.0
  %244 = vmatpush1.msra.mxu0 0.0
  %245 = vmatprep.subr.mxu0 0.0
  %246 = vmatpush1.msra.mxu0 0.0
  %247 = vmatprep.subr.mxu0 0.0
  %248 = vmatpush1.msra.mxu0 0.0
  %249 = vmatprep.subr.mxu0 0.0
  %250 = vmatpush1.msra.mxu0 0.0
  %251 = vmatprep.subr.mxu0 0.0
  %252 = vmatpush1.msra.mxu0 0.0
  %253 = vmatprep.subr.mxu0 0.0
  %254 = vmatpush1.msra.mxu0 0.0
  %255 = vmatprep.subr.mxu0 0.0
  %256 = vmatpush1.msra.mxu0 0.0
  %257 = vmatprep.subr.mxu0 0.0
  %258 = vmatpush1.msra.mxu0 0.0
  %259 = vmatprep.subr.mxu0 0.0
  %260 = vmatpush1.msra.mxu0 0.0
  %261 = vmatprep.subr.mxu0 0.0
  %262 = vmatpush1.msra.mxu0 0.0
  %263 = vmatprep.subr.mxu0 0.0
  %264 = vmatpush1.msra.mxu0 0.0
  %265 = vmatprep.subr.mxu0 0.0
  %266 = vmatpush1.msra.mxu0 0.0
  %267 = vmatprep.subr.mxu0 0.0
  %268 = vmatpush1.msra.mxu0 0.0
  %269 = vmatprep.subr.mxu0 0.0
  %270 = vmatpush1.msra.mxu0 0.0
  %271 = vmatprep.subr.mxu0 0.0
  %272 = vmatpush1.msra.mxu0 0.0
  %273 = vmatprep.subr.mxu0 0.0
  %274 = vmatpush1.msra.mxu0 0.0
  %275 = vmatprep.subr.mxu0 0.0
  %276 = vmatpush1.msra.mxu0 0.0
  %277 = vmatprep.subr.mxu0 0.0
  %278 = vmatpush1.msra.mxu0 0.0
  %279 = vmatprep.subr.mxu0 0.0
  %280 = vmatpush1.msra.mxu0 0.0
  %281 = vmatprep.subr.mxu0 0.0
  %282 = vmatpush1.msra.mxu0 0.0
  %283 = vmatprep.subr.mxu0 0.0
  %284 = vmatpush1.msra.mxu0 0.0
  %285 = vmatprep.subr.mxu0 0.0
  %286 = vmatpush1.msra.mxu0 0.0
  %287 = vmatprep.mubr.f32.mxu0 0.0
  %v288 = vand.u32 %v21, 4294901760
  %v289 = vsub.f32 %v21, %v288
  %290 = vmatmul.mubr.f32.gmra.mrb[0].mxu0 %v289
  %v291 = vpop.f32.mrb[0].mxu0
  %v292 = vadd.f32 %v204, %v291
  %v293 = vpop.f32.mrb[0].mxu0
  %294 = vmatprep.mubr.f32.mxu0 0.0
  %v295 = vand.u32 %v24, 4294901760
  %v296 = vsub.f32 %v24, %v295
  %297 = vmatmul.mubr.f32.gmra.mrb[0].mxu0 %v296
  %v298 = vpop.f32.mrb[0].mxu0
  %v299 = vadd.f32 %v210, %v298
  %v300 = vpop.f32.mrb[0].mxu0
  %301 = vmatprep.mubr.f32.mxu0 0.0
  %v302 = vand.u32 %v27, 4294901760
  %v303 = vsub.f32 %v27, %v302
  %304 = vmatmul.mubr.f32.gmra.mrb[0].mxu0 %v303
  %v305 = vpop.f32.mrb[0].mxu0
  %v306 = vadd.f32 %v216, %v305
  %v307 = vpop.f32.mrb[0].mxu0
  %308 = vdwg.mxu0
  %309 = vmatprep.subr.mxu0 0.0
  %v310 = vand.u32 %v14, 4294901760
  %311 = vmatpush1.msra.mxu0 %v310
  %312 = vmatprep.subr.mxu0 0.0
  %v313 = vand.u32 %v15, 4294901760
  %314 = vmatpush1.msra.mxu0 %v313
  %315 = vmatprep.subr.mxu0 0.0
  %316 = vmatpush1.msra.mxu0 0.0
  %317 = vmatprep.subr.mxu0 0.0
  %318 = vmatpush1.msra.mxu0 0.0
  %319 = vmatprep.subr.mxu0 0.0
  %320 = vmatpush1.msra.mxu0 0.0
  %321 = vmatprep.subr.mxu0 0.0
  %322 = vmatpush1.msra.mxu0 0.0
  %323 = vmatprep.subr.mxu0 0.0
  %324 = vmatpush1.msra.mxu0 0.0
  %325 = vmatprep.subr.mxu0 0.0
  %326 = vmatpush1.msra.mxu0 0.0
  %327 = vmatprep.subr.mxu0 0.0
  %328 = vmatpush1.msra.mxu0 0.0
  %329 = vmatprep.subr.mxu0 0.0
  %330 = vmatpush1.msra.mxu0 0.0
  %331 = vmatprep.subr.mxu0 0.0
  %332 = vmatpush1.msra.mxu0 0.0
  %333 = vmatprep.subr.mxu0 0.0
  %334 = vmatpush1.msra.mxu0 0.0
  %335 = vmatprep.subr.mxu0 0.0
  %336 = vmatpush1.msra.mxu0 0.0
  %337 = vmatprep.subr.mxu0 0.0
  %338 = vmatpush1.msra.mxu0 0.0
  %339 = vmatprep.subr.mxu0 0.0
  %340 = vmatpush1.msra.mxu0 0.0
  %341 = vmatprep.subr.mxu0 0.0
  %342 = vmatpush1.msra.mxu0 0.0
  %343 = vmatprep.subr.mxu0 0.0
  %344 = vmatpush1.msra.mxu0 0.0
  %345 = vmatprep.subr.mxu0 0.0
  %346 = vmatpush1.msra.mxu0 0.0
  %347 = vmatprep.subr.mxu0 0.0
  %348 = vmatpush1.msra.mxu0 0.0
  %349 = vmatprep.subr.mxu0 0.0
  %350 = vmatpush1.msra.mxu0 0.0
  %351 = vmatprep.subr.mxu0 0.0
  %352 = vmatpush1.msra.mxu0 0.0
  %353 = vmatprep.subr.mxu0 0.0
  %354 = vmatpush1.msra.mxu0 0.0
  %355 = vmatprep.subr.mxu0 0.0
  %356 = vmatpush1.msra.mxu0 0.0
  %357 = vmatprep.subr.mxu0 0.0
  %358 = vmatpush1.msra.mxu0 0.0
  %359 = vmatprep.subr.mxu0 0.0
  %360 = vmatpush1.msra.mxu0 0.0
  %361 = vmatprep.subr.mxu0 0.0
  %362 = vmatpush1.msra.mxu0 0.0
  %363 = vmatprep.subr.mxu0 0.0
  %364 = vmatpush1.msra.mxu0 0.0
  %365 = vmatprep.subr.mxu0 0.0
  %366 = vmatpush1.msra.mxu0 0.0
  %367 = vmatprep.subr.mxu0 0.0
  %368 = vmatpush1.msra.mxu0 0.0
  %369 = vmatprep.subr.mxu0 0.0
  %370 = vmatpush1.msra.mxu0 0.0
  %371 = vmatprep.subr.mxu0 0.0
  %372 = vmatpush1.msra.mxu0 0.0
  %373 = vmatprep.subr.mxu0 0.0
  %374 = vmatpush1.msra.mxu0 0.0
  %375 = vmatprep.mubr.f32.mxu0 0.0
  %v376 = vand.u32 %v21, 4294901760
  %v377 = vsub.f32 %v21, %v376
  %v378 = vand.u32 %v377, 4294901760
  %379 = vmatmul.mubr.f32.gmra.mrb[0].mxu0 %v378
  %v380 = vpop.f32.mrb[0].mxu0
  %v381 = vadd.f32 %v292, %v380
  %v382 = vpop.f32.mrb[0].mxu0
  %383 = vmatprep.mubr.f32.mxu0 0.0
  %v384 = vand.u32 %v24, 4294901760
  %v385 = vsub.f32 %v24, %v384
  %v386 = vand.u32 %v385, 4294901760
  %387 = vmatmul.mubr.f32.gmra.mrb[0].mxu0 %v386
  %v388 = vpop.f32.mrb[0].mxu0
  %v389 = vadd.f32 %v299, %v388
  %v390 = vpop.f32.mrb[0].mxu0
  %391 = vmatprep.mubr.f32.mxu0 0.0
  %v392 = vand.u32 %v27, 4294901760
  %v393 = vsub.f32 %v27, %v392
  %v394 = vand.u32 %v393, 4294901760
  %395 = vmatmul.mubr.f32.gmra.mrb[0].mxu0 %v394
  %v396 = vpop.f32.mrb[0].mxu0
  %v397 = vadd.f32 %v306, %v396
  %v398 = vpop.f32.mrb[0].mxu0
  %399 = vdwg.mxu0
  %400 = vmatprep.subr.mxu0 0.0
  %v401 = vand.u32 %v14, 4294901760
  %v402 = vsub.f32 %v14, %v401
  %v403 = vand.u32 %v402, 4294901760
  %404 = vmatpush1.msra.mxu0 %v403
  %405 = vmatprep.subr.mxu0 0.0
  %v406 = vand.u32 %v15, 4294901760
  %v407 = vsub.f32 %v15, %v406
  %v408 = vand.u32 %v407, 4294901760
  %409 = vmatpush1.msra.mxu0 %v408
  %410 = vmatprep.subr.mxu0 0.0
  %411 = vmatpush1.msra.mxu0 0.0
  %412 = vmatprep.subr.mxu0 0.0
  %413 = vmatpush1.msra.mxu0 0.0
  %414 = vmatprep.subr.mxu0 0.0
  %415 = vmatpush1.msra.mxu0 0.0
  %416 = vmatprep.subr.mxu0 0.0
  %417 = vmatpush1.msra.mxu0 0.0
  %418 = vmatprep.subr.mxu0 0.0
  %419 = vmatpush1.msra.mxu0 0.0
  %420 = vmatprep.subr.mxu0 0.0
  %421 = vmatpush1.msra.mxu0 0.0
  %422 = vmatprep.subr.mxu0 0.0
  %423 = vmatpush1.msra.mxu0 0.0
  %424 = vmatprep.subr.mxu0 0.0
  %425 = vmatpush1.msra.mxu0 0.0
  %426 = vmatprep.subr.mxu0 0.0
  %427 = vmatpush1.msra.mxu0 0.0
  %428 = vmatprep.subr.mxu0 0.0
  %429 = vmatpush1.msra.mxu0 0.0
  %430 = vmatprep.subr.mxu0 0.0
  %431 = vmatpush1.msra.mxu0 0.0
  %432 = vmatprep.subr.mxu0 0.0
  %433 = vmatpush1.msra.mxu0 0.0
  %434 = vmatprep.subr.mxu0 0.0
  %435 = vmatpush1.msra.mxu0 0.0
  %436 = vmatprep.subr.mxu0 0.0
  %437 = vmatpush1.msra.mxu0 0.0
  %438 = vmatprep.subr.mxu0 0.0
  %439 = vmatpush1.msra.mxu0 0.0
  %440 = vmatprep.subr.mxu0 0.0
  %441 = vmatpush1.msra.mxu0 0.0
  %442 = vmatprep.subr.mxu0 0.0
  %443 = vmatpush1.msra.mxu0 0.0
  %444 = vmatprep.subr.mxu0 0.0
  %445 = vmatpush1.msra.mxu0 0.0
  %446 = vmatprep.subr.mxu0 0.0
  %447 = vmatpush1.msra.mxu0 0.0
  %448 = vmatprep.subr.mxu0 0.0
  %449 = vmatpush1.msra.mxu0 0.0
  %450 = vmatprep.subr.mxu0 0.0
  %451 = vmatpush1.msra.mxu0 0.0
  %452 = vmatprep.subr.mxu0 0.0
  %453 = vmatpush1.msra.mxu0 0.0
  %454 = vmatprep.subr.mxu0 0.0
  %455 = vmatpush1.msra.mxu0 0.0
  %456 = vmatprep.subr.mxu0 0.0
  %457 = vmatpush1.msra.mxu0 0.0
  %458 = vmatprep.subr.mxu0 0.0
  %459 = vmatpush1.msra.mxu0 0.0
  %460 = vmatprep.subr.mxu0 0.0
  %461 = vmatpush1.msra.mxu0 0.0
  %462 = vmatprep.subr.mxu0 0.0
  %463 = vmatpush1.msra.mxu0 0.0
  %464 = vmatprep.subr.mxu0 0.0
  %465 = vmatpush1.msra.mxu0 0.0
  %466 = vmatprep.subr.mxu0 0.0
  %467 = vmatpush1.msra.mxu0 0.0
  %468 = vmatprep.subr.mxu0 0.0
  %469 = vmatpush1.msra.mxu0 0.0
  %470 = vmatprep.mubr.f32.mxu0 0.0
  %v471 = vand.u32 %v21, 4294901760
  %472 = vmatmul.mubr.f32.gmra.mrb[0].mxu0 %v471
  %v473 = vpop.f32.mrb[0].mxu0
  %v474 = vadd.f32 %v381, %v473
  %v475 = vpop.f32.mrb[0].mxu0
  %476 = vmatprep.mubr.f32.mxu0 0.0
  %v477 = vand.u32 %v24, 4294901760
  %478 = vmatmul.mubr.f32.gmra.mrb[0].mxu0 %v477
  %v479 = vpop.f32.mrb[0].mxu0
  %v480 = vadd.f32 %v389, %v479
  %v481 = vpop.f32.mrb[0].mxu0
  %482 = vmatprep.mubr.f32.mxu0 0.0
  %v483 = vand.u32 %v27, 4294901760
  %484 = vmatmul.mubr.f32.gmra.mrb[0].mxu0 %v483
  %v485 = vpop.f32.mrb[0].mxu0
  %v486 = vadd.f32 %v397, %v485
  %v487 = vpop.f32.mrb[0].mxu0
  %488 = vdwg.mxu0
  %489 = vmatprep.subr.mxu0 0.0
  %v490 = vand.u32 %v14, 4294901760
  %491 = vmatpush1.msra.mxu0 %v490
  %492 = vmatprep.subr.mxu0 0.0
  %v493 = vand.u32 %v15, 4294901760
  %494 = vmatpush1.msra.mxu0 %v493
  %495 = vmatprep.subr.mxu0 0.0
  %496 = vmatpush1.msra.mxu0 0.0
  %497 = vmatprep.subr.mxu0 0.0
  %498 = vmatpush1.msra.mxu0 0.0
  %499 = vmatprep.subr.mxu0 0.0
  %500 = vmatpush1.msra.mxu0 0.0
  %501 = vmatprep.subr.mxu0 0.0
  %502 = vmatpush1.msra.mxu0 0.0
  %503 = vmatprep.subr.mxu0 0.0
  %504 = vmatpush1.msra.mxu0 0.0
  %505 = vmatprep.subr.mxu0 0.0
  %506 = vmatpush1.msra.mxu0 0.0
  %507 = vmatprep.subr.mxu0 0.0
  %508 = vmatpush1.msra.mxu0 0.0
  %509 = vmatprep.subr.mxu0 0.0
  %510 = vmatpush1.msra.mxu0 0.0
  %511 = vmatprep.subr.mxu0 0.0
  %512 = vmatpush1.msra.mxu0 0.0
  %513 = vmatprep.subr.mxu0 0.0
  %514 = vmatpush1.msra.mxu0 0.0
  %515 = vmatprep.subr.mxu0 0.0
  %516 = vmatpush1.msra.mxu0 0.0
  %517 = vmatprep.subr.mxu0 0.0
  %518 = vmatpush1.msra.mxu0 0.0
  %519 = vmatprep.subr.mxu0 0.0
  %520 = vmatpush1.msra.mxu0 0.0
  %521 = vmatprep.subr.mxu0 0.0
  %522 = vmatpush1.msra.mxu0 0.0
  %523 = vmatprep.subr.mxu0 0.0
  %524 = vmatpush1.msra.mxu0 0.0
  %525 = vmatprep.subr.mxu0 0.0
  %526 = vmatpush1.msra.mxu0 0.0
  %527 = vmatprep.subr.mxu0 0.0
  %528 = vmatpush1.msra.mxu0 0.0
  %529 = vmatprep.subr.mxu0 0.0
  %530 = vmatpush1.msra.mxu0 0.0
  %531 = vmatprep.subr.mxu0 0.0
  %532 = vmatpush1.msra.mxu0 0.0
  %533 = vmatprep.subr.mxu0 0.0
  %534 = vmatpush1.msra.mxu0 0.0
  %535 = vmatprep.subr.mxu0 0.0
  %536 = vmatpush1.msra.mxu0 0.0
  %537 = vmatprep.subr.mxu0 0.0
  %538 = vmatpush1.msra.mxu0 0.0
  %539 = vmatprep.subr.mxu0 0.0
  %540 = vmatpush1.msra.mxu0 0.0
  %541 = vmatprep.subr.mxu0 0.0
  %542 = vmatpush1.msra.mxu0 0.0
  %543 = vmatprep.subr.mxu0 0.0
  %544 = vmatpush1.msra.mxu0 0.0
  %545 = vmatprep.subr.mxu0 0.0
  %546 = vmatpush1.msra.mxu0 0.0
  %547 = vmatprep.subr.mxu0 0.0
  %548 = vmatpush1.msra.mxu0 0.0
  %549 = vmatprep.subr.mxu0 0.0
  %550 = vmatpush1.msra.mxu0 0.0
  %551 = vmatprep.subr.mxu0 0.0
  %552 = vmatpush1.msra.mxu0 0.0
  %553 = vmatprep.subr.mxu0 0.0
  %554 = vmatpush1.msra.mxu0 0.0
  %555 = vmatprep.mubr.f32.mxu0 0.0
  %v556 = vand.u32 %v21, 4294901760
  %557 = vmatmul.mubr.f32.gmra.mrb[0].mxu0 %v556
  %v558 = vpop.f32.mrb[0].mxu0
  %v559 = vadd.f32 %v474, %v558
  %v560 = vpop.f32.mrb[0].mxu0
  %561 = vmatprep.mubr.f32.mxu0 0.0
  %v562 = vand.u32 %v24, 4294901760
  %563 = vmatmul.mubr.f32.gmra.mrb[0].mxu0 %v562
  %v564 = vpop.f32.mrb[0].mxu0
  %v565 = vadd.f32 %v480, %v564
  %v566 = vpop.f32.mrb[0].mxu0
  %567 = vmatprep.mubr.f32.mxu0 0.0
  %v568 = vand.u32 %v27, 4294901760
  %569 = vmatmul.mubr.f32.gmra.mrb[0].mxu0 %v568
  %v570 = vpop.f32.mrb[0].mxu0
  %v571 = vadd.f32 %v486, %v570
  %v572 = vpop.f32.mrb[0].mxu0
  %573 = vdwg.mxu0
  %v574 = vld [vmem:[%s1 + $0x28] sm:$0xff]
  %v575 = vld [vmem:[%s1 + $0x30] sm:$0xff]
  %v576 = vld [vmem:[%s1 + $0x38] sm:$0xff]
  %v577 = vld [vmem:[%s1 + $0x40] sm:$0xff]
  %v578 = vld [vmem:[%s1 + $0x48] sm:$0xff]
  %v579 = vld [vmem:[%s1 + $0x50] sm:$0xff]
  %v580 = vld [vmem:[%s1 + $0x58] sm:$0xff]
  %v581 = vld [vmem:[%s1 + $0x60] sm:$0xff]
  %v582 = vld [vmem:[%s1 + $0x68] sm:$0xff]
  %v583 = vld [vmem:[%s1 + $0x70] sm:$0xff]
  %v584 = vld [vmem:[%s1 + $0x78] sm:$0xff]
  %v585 = vld [vmem:[%s1 + $0x80] sm:$0xff]
  %v586 = vld [vmem:[%s1 + $0x88] sm:$0xff]
  %v587 = vld [vmem:[%s1 + $0x90] sm:$0xff]
  %v588 = vld [vmem:[%s1 + $0x98] sm:$0xff]
  %v589 = vld [vmem:[%s1 + $0xe0] sm:$0xff]
  %v590 = vld [vmem:[%s1 + $0xe8] sm:$0xff]
  %v591 = vld [vmem:[%s1 + $0xf0] sm:$0xff]
  %v592 = vld [vmem:[%s1 + $0xf8] sm:$0xff]
  %v593 = vld [vmem:[%s1 + $0x180] sm:$0x1]
  %v594 = vlaneseq
  %v595 = vshrl.u32 %v594, 7
  %v596 = vsub.s32 0, %v595
  %v597 = vrot.slane %v593, %v596
  %vm598 = vcmask 261120
  %v600 = vsel %vm598, %v559, 0
  %v603 = vsel %vm598, %v565, 0
  %v606 = vsel %vm598, %v571, 0
  %608 = vmatprep.subr.mxu0 0.0
  %v609 = vand.u32 %v589, 4294901760
  %610 = vmatpush1.msra.mxu0 %v609
  %611 = vmatprep.subr.mxu0 0.0
  %v612 = vand.u32 %v590, 4294901760
  %613 = vmatpush1.msra.mxu0 %v612
  %614 = vmatprep.subr.mxu0 0.0
  %v615 = vand.u32 %v591, 4294901760
  %616 = vmatpush1.msra.mxu0 %v615
  %617 = vmatprep.subr.mxu0 0.0
  %v618 = vand.u32 %v592, 4294901760
  %619 = vmatpush1.msra.mxu0 %v618
  %620 = vmatprep.subr.mxu0 0.0
  %621 = vmatpush1.msra.mxu0 0.0
  %622 = vmatprep.subr.mxu0 0.0
  %623 = vmatpush1.msra.mxu0 0.0
  %624 = vmatprep.subr.mxu0 0.0
  %625 = vmatpush1.msra.mxu0 0.0
  %626 = vmatprep.subr.mxu0 0.0
  %627 = vmatpush1.msra.mxu0 0.0
  %628 = vmatprep.subr.mxu0 0.0
  %629 = vmatpush1.msra.mxu0 0.0
  %630 = vmatprep.subr.mxu0 0.0
  %631 = vmatpush1.msra.mxu0 0.0
  %632 = vmatprep.subr.mxu0 0.0
  %633 = vmatpush1.msra.mxu0 0.0
  %634 = vmatprep.subr.mxu0 0.0
  %635 = vmatpush1.msra.mxu0 0.0
  %636 = vmatprep.subr.mxu0 0.0
  %637 = vmatpush1.msra.mxu0 0.0
  %638 = vmatprep.subr.mxu0 0.0
  %639 = vmatpush1.msra.mxu0 0.0
  %640 = vmatprep.subr.mxu0 0.0
  %641 = vmatpush1.msra.mxu0 0.0
  %642 = vmatprep.subr.mxu0 0.0
  %643 = vmatpush1.msra.mxu0 0.0
  %644 = vmatprep.subr.mxu0 0.0
  %645 = vmatpush1.msra.mxu0 0.0
  %646 = vmatprep.subr.mxu0 0.0
  %647 = vmatpush1.msra.mxu0 0.0
  %648 = vmatprep.subr.mxu0 0.0
  %649 = vmatpush1.msra.mxu0 0.0
  %650 = vmatprep.subr.mxu0 0.0
  %651 = vmatpush1.msra.mxu0 0.0
  %652 = vmatprep.subr.mxu0 0.0
  %653 = vmatpush1.msra.mxu0 0.0
  %654 = vmatprep.subr.mxu0 0.0
  %655 = vmatpush1.msra.mxu0 0.0
  %656 = vmatprep.subr.mxu0 0.0
  %657 = vmatpush1.msra.mxu0 0.0
  %658 = vmatprep.subr.mxu0 0.0
  %659 = vmatpush1.msra.mxu0 0.0
  %660 = vmatprep.subr.mxu0 0.0
  %661 = vmatpush1.msra.mxu0 0.0
  %662 = vmatprep.subr.mxu0 0.0
  %663 = vmatpush1.msra.mxu0 0.0
  %664 = vmatprep.subr.mxu0 0.0
  %665 = vmatpush1.msra.mxu0 0.0
  %666 = vmatprep.subr.mxu0 0.0
  %667 = vmatpush1.msra.mxu0 0.0
  %668 = vmatprep.subr.mxu0 0.0
  %669 = vmatpush1.msra.mxu0 0.0
  %670 = vmatprep.subr.mxu0 0.0
  %671 = vmatpush1.msra.mxu0 0.0
  %672 = vmatprep.subr.mxu0 0.0
  %673 = vmatpush1.msra.mxu0 0.0
  %674 = vmatprep.subr.mxu0 0.0
  %675 = vmatpush1.msra.mxu0 0.0
  %676 = vmatprep.mubr.f32.mxu0 0.0
  %v677 = vand.u32 %v600, 4294901760
  %v678 = vsub.f32 %v600, %v677
  %v679 = vand.u32 %v678, 4294901760
  %v680 = vsub.f32 %v678, %v679
  %v681 = vand.u32 %v680, 4294901760
  %682 = vmatmul.mubr.f32.gmra.mrb[0].mxu0 %v681
  %v683 = vpop.f32.mrb[0].mxu0
  %v684 = vadd.f32 %v597, %v683
  %v685 = vpop.f32.mrb[0].mxu0
  %686 = vmatprep.mubr.f32.mxu0 0.0
  %v687 = vand.u32 %v603, 4294901760
  %v688 = vsub.f32 %v603, %v687
  %v689 = vand.u32 %v688, 4294901760
  %v690 = vsub.f32 %v688, %v689
  %v691 = vand.u32 %v690, 4294901760
  %692 = vmatmul.mubr.f32.gmra.mrb[0].mxu0 %v691
  %v693 = vpop.f32.mrb[0].mxu0
  %v694 = vadd.f32 %v597, %v693
  %v695 = vpop.f32.mrb[0].mxu0
  %696 = vmatprep.mubr.f32.mxu0 0.0
  %v697 = vand.u32 %v606, 4294901760
  %v698 = vsub.f32 %v606, %v697
  %v699 = vand.u32 %v698, 4294901760
  %v700 = vsub.f32 %v698, %v699
  %v701 = vand.u32 %v700, 4294901760
  %702 = vmatmul.mubr.f32.gmra.mrb[0].mxu0 %v701
  %v703 = vpop.f32.mrb[0].mxu0
  %v704 = vadd.f32 %v597, %v703
  %v705 = vpop.f32.mrb[0].mxu0
  %706 = vdwg.mxu0
  %707 = vmatprep.subr.mxu0 0.0
  %v708 = vand.u32 %v589, 4294901760
  %v709 = vsub.f32 %v589, %v708
  %v710 = vand.u32 %v709, 4294901760
  %v711 = vsub.f32 %v709, %v710
  %v712 = vand.u32 %v711, 4294901760
  %713 = vmatpush1.msra.mxu0 %v712
  %714 = vmatprep.subr.mxu0 0.0
  %v715 = vand.u32 %v590, 4294901760
  %v716 = vsub.f32 %v590, %v715
  %v717 = vand.u32 %v716, 4294901760
  %v718 = vsub.f32 %v716, %v717
  %v719 = vand.u32 %v718, 4294901760
  %720 = vmatpush1.msra.mxu0 %v719
  %721 = vmatprep.subr.mxu0 0.0
  %v722 = vand.u32 %v591, 4294901760
  %v723 = vsub.f32 %v591, %v722
  %v724 = vand.u32 %v723, 4294901760
  %v725 = vsub.f32 %v723, %v724
  %v726 = vand.u32 %v725, 4294901760
  %727 = vmatpush1.msra.mxu0 %v726
  %728 = vmatprep.subr.mxu0 0.0
  %v729 = vand.u32 %v592, 4294901760
  %v730 = vsub.f32 %v592, %v729
  %v731 = vand.u32 %v730, 4294901760
  %v732 = vsub.f32 %v730, %v731
  %v733 = vand.u32 %v732, 4294901760
  %734 = vmatpush1.msra.mxu0 %v733
  %735 = vmatprep.subr.mxu0 0.0
  %736 = vmatpush1.msra.mxu0 0.0
  %737 = vmatprep.subr.mxu0 0.0
  %738 = vmatpush1.msra.mxu0 0.0
  %739 = vmatprep.subr.mxu0 0.0
  %740 = vmatpush1.msra.mxu0 0.0
  %741 = vmatprep.subr.mxu0 0.0
  %742 = vmatpush1.msra.mxu0 0.0
  %743 = vmatprep.subr.mxu0 0.0
  %744 = vmatpush1.msra.mxu0 0.0
  %745 = vmatprep.subr.mxu0 0.0
  %746 = vmatpush1.msra.mxu0 0.0
  %747 = vmatprep.subr.mxu0 0.0
  %748 = vmatpush1.msra.mxu0 0.0
  %749 = vmatprep.subr.mxu0 0.0
  %750 = vmatpush1.msra.mxu0 0.0
  %751 = vmatprep.subr.mxu0 0.0
  %752 = vmatpush1.msra.mxu0 0.0
  %753 = vmatprep.subr.mxu0 0.0
  %754 = vmatpush1.msra.mxu0 0.0
  %755 = vmatprep.subr.mxu0 0.0
  %756 = vmatpush1.msra.mxu0 0.0
  %757 = vmatprep.subr.mxu0 0.0
  %758 = vmatpush1.msra.mxu0 0.0
  %759 = vmatprep.subr.mxu0 0.0
  %760 = vmatpush1.msra.mxu0 0.0
  %761 = vmatprep.subr.mxu0 0.0
  %762 = vmatpush1.msra.mxu0 0.0
  %763 = vmatprep.subr.mxu0 0.0
  %764 = vmatpush1.msra.mxu0 0.0
  %765 = vmatprep.subr.mxu0 0.0
  %766 = vmatpush1.msra.mxu0 0.0
  %767 = vmatprep.subr.mxu0 0.0
  %768 = vmatpush1.msra.mxu0 0.0
  %769 = vmatprep.subr.mxu0 0.0
  %770 = vmatpush1.msra.mxu0 0.0
  %771 = vmatprep.subr.mxu0 0.0
  %772 = vmatpush1.msra.mxu0 0.0
  %773 = vmatprep.subr.mxu0 0.0
  %774 = vmatpush1.msra.mxu0 0.0
  %775 = vmatprep.subr.mxu0 0.0
  %776 = vmatpush1.msra.mxu0 0.0
  %777 = vmatprep.subr.mxu0 0.0
  %778 = vmatpush1.msra.mxu0 0.0
  %779 = vmatprep.subr.mxu0 0.0
  %780 = vmatpush1.msra.mxu0 0.0
  %781 = vmatprep.subr.mxu0 0.0
  %782 = vmatpush1.msra.mxu0 0.0
  %783 = vmatprep.subr.mxu0 0.0
  %784 = vmatpush1.msra.mxu0 0.0
  %785 = vmatprep.subr.mxu0 0.0
  %786 = vmatpush1.msra.mxu0 0.0
  %787 = vmatprep.subr.mxu0 0.0
  %788 = vmatpush1.msra.mxu0 0.0
  %789 = vmatprep.subr.mxu0 0.0
  %790 = vmatpush1.msra.mxu0 0.0
  %791 = vmatprep.mubr.f32.mxu0 0.0
  %v792 = vand.u32 %v600, 4294901760
  %793 = vmatmul.mubr.f32.gmra.mrb[0].mxu0 %v792
  %v794 = vpop.f32.mrb[0].mxu0
  %v795 = vadd.f32 %v684, %v794
  %v796 = vpop.f32.mrb[0].mxu0
  %797 = vmatprep.mubr.f32.mxu0 0.0
  %v798 = vand.u32 %v603, 4294901760
  %799 = vmatmul.mubr.f32.gmra.mrb[0].mxu0 %v798
  %v800 = vpop.f32.mrb[0].mxu0
  %v801 = vadd.f32 %v694, %v800
  %v802 = vpop.f32.mrb[0].mxu0
  %803 = vmatprep.mubr.f32.mxu0 0.0
  %v804 = vand.u32 %v606, 4294901760
  %805 = vmatmul.mubr.f32.gmra.mrb[0].mxu0 %v804
  %v806 = vpop.f32.mrb[0].mxu0
  %v807 = vadd.f32 %v704, %v806
  %v808 = vpop.f32.mrb[0].mxu0
  %809 = vdwg.mxu0
  %810 = vmatprep.subr.mxu0 0.0
  %v811 = vand.u32 %v589, 4294901760
  %v812 = vsub.f32 %v589, %v811
  %813 = vmatpush1.msra.mxu0 %v812
  %814 = vmatprep.subr.mxu0 0.0
  %v815 = vand.u32 %v590, 4294901760
  %v816 = vsub.f32 %v590, %v815
  %817 = vmatpush1.msra.mxu0 %v816
  %818 = vmatprep.subr.mxu0 0.0
  %v819 = vand.u32 %v591, 4294901760
  %v820 = vsub.f32 %v591, %v819
  %821 = vmatpush1.msra.mxu0 %v820
  %822 = vmatprep.subr.mxu0 0.0
  %v823 = vand.u32 %v592, 4294901760
  %v824 = vsub.f32 %v592, %v823
  %825 = vmatpush1.msra.mxu0 %v824
  %826 = vmatprep.subr.mxu0 0.0
  %827 = vmatpush1.msra.mxu0 0.0
  %828 = vmatprep.subr.mxu0 0.0
  %829 = vmatpush1.msra.mxu0 0.0
  %830 = vmatprep.subr.mxu0 0.0
  %831 = vmatpush1.msra.mxu0 0.0
  %832 = vmatprep.subr.mxu0 0.0
  %833 = vmatpush1.msra.mxu0 0.0
  %834 = vmatprep.subr.mxu0 0.0
  %835 = vmatpush1.msra.mxu0 0.0
  %836 = vmatprep.subr.mxu0 0.0
  %837 = vmatpush1.msra.mxu0 0.0
  %838 = vmatprep.subr.mxu0 0.0
  %839 = vmatpush1.msra.mxu0 0.0
  %840 = vmatprep.subr.mxu0 0.0
  %841 = vmatpush1.msra.mxu0 0.0
  %842 = vmatprep.subr.mxu0 0.0
  %843 = vmatpush1.msra.mxu0 0.0
  %844 = vmatprep.subr.mxu0 0.0
  %845 = vmatpush1.msra.mxu0 0.0
  %846 = vmatprep.subr.mxu0 0.0
  %847 = vmatpush1.msra.mxu0 0.0
  %848 = vmatprep.subr.mxu0 0.0
  %849 = vmatpush1.msra.mxu0 0.0
  %850 = vmatprep.subr.mxu0 0.0
  %851 = vmatpush1.msra.mxu0 0.0
  %852 = vmatprep.subr.mxu0 0.0
  %853 = vmatpush1.msra.mxu0 0.0
  %854 = vmatprep.subr.mxu0 0.0
  %855 = vmatpush1.msra.mxu0 0.0
  %856 = vmatprep.subr.mxu0 0.0
  %857 = vmatpush1.msra.mxu0 0.0
  %858 = vmatprep.subr.mxu0 0.0
  %859 = vmatpush1.msra.mxu0 0.0
  %860 = vmatprep.subr.mxu0 0.0
  %861 = vmatpush1.msra.mxu0 0.0
  %862 = vmatprep.subr.mxu0 0.0
  %863 = vmatpush1.msra.mxu0 0.0
  %864 = vmatprep.subr.mxu0 0.0
  %865 = vmatpush1.msra.mxu0 0.0
  %866 = vmatprep.subr.mxu0 0.0
  %867 = vmatpush1.msra.mxu0 0.0
  %868 = vmatprep.subr.mxu0 0.0
  %869 = vmatpush1.msra.mxu0 0.0
  %870 = vmatprep.subr.mxu0 0.0
  %871 = vmatpush1.msra.mxu0 0.0
  %872 = vmatprep.subr.mxu0 0.0
  %873 = vmatpush1.msra.mxu0 0.0
  %874 = vmatprep.subr.mxu0 0.0
  %875 = vmatpush1.msra.mxu0 0.0
  %876 = vmatprep.subr.mxu0 0.0
  %877 = vmatpush1.msra.mxu0 0.0
  %878 = vmatprep.subr.mxu0 0.0
  %879 = vmatpush1.msra.mxu0 0.0
  %880 = vmatprep.subr.mxu0 0.0
  %881 = vmatpush1.msra.mxu0 0.0
  %882 = vmatprep.mubr.f32.mxu0 0.0
  %v883 = vand.u32 %v600, 4294901760
  %v884 = vsub.f32 %v600, %v883
  %885 = vmatmul.mubr.f32.gmra.mrb[0].mxu0 %v884
  %v886 = vpop.f32.mrb[0].mxu0
  %v887 = vadd.f32 %v795, %v886
  %v888 = vpop.f32.mrb[0].mxu0
  %889 = vmatprep.mubr.f32.mxu0 0.0
  %v890 = vand.u32 %v603, 4294901760
  %v891 = vsub.f32 %v603, %v890
  %892 = vmatmul.mubr.f32.gmra.mrb[0].mxu0 %v891
  %v893 = vpop.f32.mrb[0].mxu0
  %v894 = vadd.f32 %v801, %v893
  %v895 = vpop.f32.mrb[0].mxu0
  %896 = vmatprep.mubr.f32.mxu0 0.0
  %v897 = vand.u32 %v606, 4294901760
  %v898 = vsub.f32 %v606, %v897
  %899 = vmatmul.mubr.f32.gmra.mrb[0].mxu0 %v898
  %v900 = vpop.f32.mrb[0].mxu0
  %v901 = vadd.f32 %v807, %v900
  %v902 = vpop.f32.mrb[0].mxu0
  %903 = vdwg.mxu0
  %904 = vmatprep.subr.mxu0 0.0
  %v905 = vand.u32 %v589, 4294901760
  %906 = vmatpush1.msra.mxu0 %v905
  %907 = vmatprep.subr.mxu0 0.0
  %v908 = vand.u32 %v590, 4294901760
  %909 = vmatpush1.msra.mxu0 %v908
  %910 = vmatprep.subr.mxu0 0.0
  %v911 = vand.u32 %v591, 4294901760
  %912 = vmatpush1.msra.mxu0 %v911
  %913 = vmatprep.subr.mxu0 0.0
  %v914 = vand.u32 %v592, 4294901760
  %915 = vmatpush1.msra.mxu0 %v914
  %916 = vmatprep.subr.mxu0 0.0
  %917 = vmatpush1.msra.mxu0 0.0
  %918 = vmatprep.subr.mxu0 0.0
  %919 = vmatpush1.msra.mxu0 0.0
  %920 = vmatprep.subr.mxu0 0.0
  %921 = vmatpush1.msra.mxu0 0.0
  %922 = vmatprep.subr.mxu0 0.0
  %923 = vmatpush1.msra.mxu0 0.0
  %924 = vmatprep.subr.mxu0 0.0
  %925 = vmatpush1.msra.mxu0 0.0
  %926 = vmatprep.subr.mxu0 0.0
  %927 = vmatpush1.msra.mxu0 0.0
  %928 = vmatprep.subr.mxu0 0.0
  %929 = vmatpush1.msra.mxu0 0.0
  %930 = vmatprep.subr.mxu0 0.0
  %931 = vmatpush1.msra.mxu0 0.0
  %932 = vmatprep.subr.mxu0 0.0
  %933 = vmatpush1.msra.mxu0 0.0
  %934 = vmatprep.subr.mxu0 0.0
  %935 = vmatpush1.msra.mxu0 0.0
  %936 = vmatprep.subr.mxu0 0.0
  %937 = vmatpush1.msra.mxu0 0.0
  %938 = vmatprep.subr.mxu0 0.0
  %939 = vmatpush1.msra.mxu0 0.0
  %940 = vmatprep.subr.mxu0 0.0
  %941 = vmatpush1.msra.mxu0 0.0
  %942 = vmatprep.subr.mxu0 0.0
  %943 = vmatpush1.msra.mxu0 0.0
  %944 = vmatprep.subr.mxu0 0.0
  %945 = vmatpush1.msra.mxu0 0.0
  %946 = vmatprep.subr.mxu0 0.0
  %947 = vmatpush1.msra.mxu0 0.0
  %948 = vmatprep.subr.mxu0 0.0
  %949 = vmatpush1.msra.mxu0 0.0
  %950 = vmatprep.subr.mxu0 0.0
  %951 = vmatpush1.msra.mxu0 0.0
  %952 = vmatprep.subr.mxu0 0.0
  %953 = vmatpush1.msra.mxu0 0.0
  %954 = vmatprep.subr.mxu0 0.0
  %955 = vmatpush1.msra.mxu0 0.0
  %956 = vmatprep.subr.mxu0 0.0
  %957 = vmatpush1.msra.mxu0 0.0
  %958 = vmatprep.subr.mxu0 0.0
  %959 = vmatpush1.msra.mxu0 0.0
  %960 = vmatprep.subr.mxu0 0.0
  %961 = vmatpush1.msra.mxu0 0.0
  %962 = vmatprep.subr.mxu0 0.0
  %963 = vmatpush1.msra.mxu0 0.0
  %964 = vmatprep.subr.mxu0 0.0
  %965 = vmatpush1.msra.mxu0 0.0
  %966 = vmatprep.subr.mxu0 0.0
  %967 = vmatpush1.msra.mxu0 0.0
  %968 = vmatprep.subr.mxu0 0.0
  %969 = vmatpush1.msra.mxu0 0.0
  %970 = vmatprep.subr.mxu0 0.0
  %971 = vmatpush1.msra.mxu0 0.0
  %972 = vmatprep.mubr.f32.mxu0 0.0
  %v973 = vand.u32 %v600, 4294901760
  %v974 = vsub.f32 %v600, %v973
  %v975 = vand.u32 %v974, 4294901760
  %976 = vmatmul.mubr.f32.gmra.mrb[0].mxu0 %v975
  %v977 = vpop.f32.mrb[0].mxu0
  %v978 = vadd.f32 %v887, %v977
  %v979 = vpop.f32.mrb[0].mxu0
  %980 = vmatprep.mubr.f32.mxu0 0.0
  %v981 = vand.u32 %v603, 4294901760
  %v982 = vsub.f32 %v603, %v981
  %v983 = vand.u32 %v982, 4294901760
  %984 = vmatmul.mubr.f32.gmra.mrb[0].mxu0 %v983
  %v985 = vpop.f32.mrb[0].mxu0
  %v986 = vadd.f32 %v894, %v985
  %v987 = vpop.f32.mrb[0].mxu0
  %988 = vmatprep.mubr.f32.mxu0 0.0
  %v989 = vand.u32 %v606, 4294901760
  %v990 = vsub.f32 %v606, %v989
  %v991 = vand.u32 %v990, 4294901760
  %992 = vmatmul.mubr.f32.gmra.mrb[0].mxu0 %v991
  %v993 = vpop.f32.mrb[0].mxu0
  %v994 = vadd.f32 %v901, %v993
  %v995 = vpop.f32.mrb[0].mxu0
  %996 = vdwg.mxu0
  %997 = vmatprep.subr.mxu0 0.0
  %v998 = vand.u32 %v589, 4294901760
  %v999 = vsub.f32 %v589, %v998
  %v1000 = vand.u32 %v999, 4294901760
  %1001 = vmatpush1.msra.mxu0 %v1000
  %1002 = vmatprep.subr.mxu0 0.0
  %v1003 = vand.u32 %v590, 4294901760
  %v1004 = vsub.f32 %v590, %v1003
  %v1005 = vand.u32 %v1004, 4294901760
  %1006 = vmatpush1.msra.mxu0 %v1005
  %1007 = vmatprep.subr.mxu0 0.0
  %v1008 = vand.u32 %v591, 4294901760
  %v1009 = vsub.f32 %v591, %v1008
  %v1010 = vand.u32 %v1009, 4294901760
  %1011 = vmatpush1.msra.mxu0 %v1010
  %1012 = vmatprep.subr.mxu0 0.0
  %v1013 = vand.u32 %v592, 4294901760
  %v1014 = vsub.f32 %v592, %v1013
  %v1015 = vand.u32 %v1014, 4294901760
  %1016 = vmatpush1.msra.mxu0 %v1015
  %1017 = vmatprep.subr.mxu0 0.0
  %1018 = vmatpush1.msra.mxu0 0.0
  %1019 = vmatprep.subr.mxu0 0.0
  %1020 = vmatpush1.msra.mxu0 0.0
  %1021 = vmatprep.subr.mxu0 0.0
  %1022 = vmatpush1.msra.mxu0 0.0
  %1023 = vmatprep.subr.mxu0 0.0
  %1024 = vmatpush1.msra.mxu0 0.0
  %1025 = vmatprep.subr.mxu0 0.0
  %1026 = vmatpush1.msra.mxu0 0.0
  %1027 = vmatprep.subr.mxu0 0.0
  %1028 = vmatpush1.msra.mxu0 0.0
  %1029 = vmatprep.subr.mxu0 0.0
  %1030 = vmatpush1.msra.mxu0 0.0
  %1031 = vmatprep.subr.mxu0 0.0
  %1032 = vmatpush1.msra.mxu0 0.0
  %1033 = vmatprep.subr.mxu0 0.0
  %1034 = vmatpush1.msra.mxu0 0.0
  %1035 = vmatprep.subr.mxu0 0.0
  %1036 = vmatpush1.msra.mxu0 0.0
  %1037 = vmatprep.subr.mxu0 0.0
  %1038 = vmatpush1.msra.mxu0 0.0
  %1039 = vmatprep.subr.mxu0 0.0
  %1040 = vmatpush1.msra.mxu0 0.0
  %1041 = vmatprep.subr.mxu0 0.0
  %1042 = vmatpush1.msra.mxu0 0.0
  %1043 = vmatprep.subr.mxu0 0.0
  %1044 = vmatpush1.msra.mxu0 0.0
  %1045 = vmatprep.subr.mxu0 0.0
  %1046 = vmatpush1.msra.mxu0 0.0
  %1047 = vmatprep.subr.mxu0 0.0
  %1048 = vmatpush1.msra.mxu0 0.0
  %1049 = vmatprep.subr.mxu0 0.0
  %1050 = vmatpush1.msra.mxu0 0.0
  %1051 = vmatprep.subr.mxu0 0.0
  %1052 = vmatpush1.msra.mxu0 0.0
  %1053 = vmatprep.subr.mxu0 0.0
  %1054 = vmatpush1.msra.mxu0 0.0
  %1055 = vmatprep.subr.mxu0 0.0
  %1056 = vmatpush1.msra.mxu0 0.0
  %1057 = vmatprep.subr.mxu0 0.0
  %1058 = vmatpush1.msra.mxu0 0.0
  %1059 = vmatprep.subr.mxu0 0.0
  %1060 = vmatpush1.msra.mxu0 0.0
  %1061 = vmatprep.subr.mxu0 0.0
  %1062 = vmatpush1.msra.mxu0 0.0
  %1063 = vmatprep.subr.mxu0 0.0
  %1064 = vmatpush1.msra.mxu0 0.0
  %1065 = vmatprep.subr.mxu0 0.0
  %1066 = vmatpush1.msra.mxu0 0.0
  %1067 = vmatprep.subr.mxu0 0.0
  %1068 = vmatpush1.msra.mxu0 0.0
  %1069 = vmatprep.subr.mxu0 0.0
  %1070 = vmatpush1.msra.mxu0 0.0
  %1071 = vmatprep.subr.mxu0 0.0
  %1072 = vmatpush1.msra.mxu0 0.0
  %1073 = vmatprep.mubr.f32.mxu0 0.0
  %v1074 = vand.u32 %v600, 4294901760
  %1075 = vmatmul.mubr.f32.gmra.mrb[0].mxu0 %v1074
  %v1076 = vpop.f32.mrb[0].mxu0
  %v1077 = vadd.f32 %v978, %v1076
  %v1078 = vpop.f32.mrb[0].mxu0
  %1079 = vmatprep.mubr.f32.mxu0 0.0
  %v1080 = vand.u32 %v603, 4294901760
  %1081 = vmatmul.mubr.f32.gmra.mrb[0].mxu0 %v1080
  %v1082 = vpop.f32.mrb[0].mxu0
  %v1083 = vadd.f32 %v986, %v1082
  %v1084 = vpop.f32.mrb[0].mxu0
  %1085 = vmatprep.mubr.f32.mxu0 0.0
  %v1086 = vand.u32 %v606, 4294901760
  %1087 = vmatmul.mubr.f32.gmra.mrb[0].mxu0 %v1086
  %v1088 = vpop.f32.mrb[0].mxu0
  %v1089 = vadd.f32 %v994, %v1088
  %v1090 = vpop.f32.mrb[0].mxu0
  %1091 = vdwg.mxu0
  %1092 = vmatprep.subr.mxu0 0.0
  %v1093 = vand.u32 %v589, 4294901760
  %1094 = vmatpush1.msra.mxu0 %v1093
  %1095 = vmatprep.subr.mxu0 0.0
  %v1096 = vand.u32 %v590, 4294901760
  %1097 = vmatpush1.msra.mxu0 %v1096
  %1098 = vmatprep.subr.mxu0 0.0
  %v1099 = vand.u32 %v591, 4294901760
  %1100 = vmatpush1.msra.mxu0 %v1099
  %1101 = vmatprep.subr.mxu0 0.0
  %v1102 = vand.u32 %v592, 4294901760
  %1103 = vmatpush1.msra.mxu0 %v1102
  %1104 = vmatprep.subr.mxu0 0.0
  %1105 = vmatpush1.msra.mxu0 0.0
  %1106 = vmatprep.subr.mxu0 0.0
  %1107 = vmatpush1.msra.mxu0 0.0
  %1108 = vmatprep.subr.mxu0 0.0
  %1109 = vmatpush1.msra.mxu0 0.0
  %1110 = vmatprep.subr.mxu0 0.0
  %1111 = vmatpush1.msra.mxu0 0.0
  %1112 = vmatprep.subr.mxu0 0.0
  %1113 = vmatpush1.msra.mxu0 0.0
  %1114 = vmatprep.subr.mxu0 0.0
  %1115 = vmatpush1.msra.mxu0 0.0
  %1116 = vmatprep.subr.mxu0 0.0
  %1117 = vmatpush1.msra.mxu0 0.0
  %1118 = vmatprep.subr.mxu0 0.0
  %1119 = vmatpush1.msra.mxu0 0.0
  %1120 = vmatprep.subr.mxu0 0.0
  %1121 = vmatpush1.msra.mxu0 0.0
  %1122 = vmatprep.subr.mxu0 0.0
  %1123 = vmatpush1.msra.mxu0 0.0
  %1124 = vmatprep.subr.mxu0 0.0
  %1125 = vmatpush1.msra.mxu0 0.0
  %1126 = vmatprep.subr.mxu0 0.0
  %1127 = vmatpush1.msra.mxu0 0.0
  %1128 = vmatprep.subr.mxu0 0.0
  %1129 = vmatpush1.msra.mxu0 0.0
  %1130 = vmatprep.subr.mxu0 0.0
  %1131 = vmatpush1.msra.mxu0 0.0
  %1132 = vmatprep.subr.mxu0 0.0
  %1133 = vmatpush1.msra.mxu0 0.0
  %1134 = vmatprep.subr.mxu0 0.0
  %1135 = vmatpush1.msra.mxu0 0.0
  %1136 = vmatprep.subr.mxu0 0.0
  %1137 = vmatpush1.msra.mxu0 0.0
  %1138 = vmatprep.subr.mxu0 0.0
  %1139 = vmatpush1.msra.mxu0 0.0
  %1140 = vmatprep.subr.mxu0 0.0
  %1141 = vmatpush1.msra.mxu0 0.0
  %1142 = vmatprep.subr.mxu0 0.0
  %1143 = vmatpush1.msra.mxu0 0.0
  %1144 = vmatprep.subr.mxu0 0.0
  %1145 = vmatpush1.msra.mxu0 0.0
  %1146 = vmatprep.subr.mxu0 0.0
  %1147 = vmatpush1.msra.mxu0 0.0
  %1148 = vmatprep.subr.mxu0 0.0
  %1149 = vmatpush1.msra.mxu0 0.0
  %1150 = vmatprep.subr.mxu0 0.0
  %1151 = vmatpush1.msra.mxu0 0.0
  %1152 = vmatprep.subr.mxu0 0.0
  %1153 = vmatpush1.msra.mxu0 0.0
  %1154 = vmatprep.subr.mxu0 0.0
  %1155 = vmatpush1.msra.mxu0 0.0
  %1156 = vmatprep.subr.mxu0 0.0
  %1157 = vmatpush1.msra.mxu0 0.0
  %1158 = vmatprep.subr.mxu0 0.0
  %1159 = vmatpush1.msra.mxu0 0.0
  %1160 = vmatprep.mubr.f32.mxu0 0.0
  %v1161 = vand.u32 %v600, 4294901760
  %1162 = vmatmul.mubr.f32.gmra.mrb[0].mxu0 %v1161
  %v1163 = vpop.f32.mrb[0].mxu0
  %v1164 = vadd.f32 %v1077, %v1163
  %v1165 = vpop.f32.mrb[0].mxu0
  %1166 = vmatprep.mubr.f32.mxu0 0.0
  %v1167 = vand.u32 %v603, 4294901760
  %1168 = vmatmul.mubr.f32.gmra.mrb[0].mxu0 %v1167
  %v1169 = vpop.f32.mrb[0].mxu0
  %v1170 = vadd.f32 %v1083, %v1169
  %v1171 = vpop.f32.mrb[0].mxu0
  %1172 = vmatprep.mubr.f32.mxu0 0.0
  %v1173 = vand.u32 %v606, 4294901760
  %1174 = vmatmul.mubr.f32.gmra.mrb[0].mxu0 %v1173
  %v1175 = vpop.f32.mrb[0].mxu0
  %v1176 = vadd.f32 %v1089, %v1175
  %v1177 = vpop.f32.mrb[0].mxu0
  %1178 = vdwg.mxu0
  %1191 = vrot.lane.b32.xlu0 %v574, 32
  %v1192 = vpop.permute.xlu0 %1191
  %1193 = vrot.lane.b32.xlu0 %v575, 32
  %v1194 = vpop.permute.xlu0 %1193
  %1195 = vrot.lane.b32.xlu0 %v576, 32
  %v1196 = vpop.permute.xlu0 %1195
  %1197 = vrot.lane.b32.xlu0 %v577, 32
  %v1198 = vpop.permute.xlu0 %1197
  %1199 = vrot.lane.b32.xlu0 %v578, 32
  %v1200 = vpop.permute.xlu0 %1199
  %1201 = vrot.lane.b32.xlu0 %v579, 32
  %v1202 = vpop.permute.xlu0 %1201
  %1203 = vrot.lane.b32.xlu0 %v580, 32
  %v1204 = vpop.permute.xlu0 %1203
  %1205 = vrot.lane.b32.xlu0 %v581, 32
  %v1206 = vpop.permute.xlu0 %1205
  %1207 = vrot.lane.b32.xlu0 %v582, 32
  %v1208 = vpop.permute.xlu0 %1207
  %1209 = vrot.lane.b32.xlu0 %v583, 32
  %v1210 = vpop.permute.xlu0 %1209
  %1211 = vrot.lane.b32.xlu0 %v584, 32
  %v1212 = vpop.permute.xlu0 %1211
  %1213 = vrot.lane.b32.xlu0 %v585, 32
  %v1214 = vpop.permute.xlu0 %1213
  %v1227 = vmul.f32 %v1164, %v1192
  %v1228 = vmul.f32 %v1170, %v1194
  %v1229 = vmul.f32 %v1176, %v1196
  %v1230 = vmul.f32 %v1164, %v1198
  %v1231 = vmul.f32 %v1170, %v1200
  %v1232 = vmul.f32 %v1176, %v1202
  %v1233 = vmul.f32 %v1164, %v1204
  %v1234 = vmul.f32 %v1170, %v1206
  %v1235 = vmul.f32 %v1176, %v1208
  %v1236 = vmul.f32 %v1164, %v1210
  %v1237 = vmul.f32 %v1170, %v1212
  %v1238 = vmul.f32 %v1176, %v1214
  %1239 = vrot.lane.b32.xlu0 %v574, 64
  %v1240 = vpop.permute.xlu0 %1239
  %1241 = vrot.lane.b32.xlu0 %v575, 64
  %v1242 = vpop.permute.xlu0 %1241
  %1243 = vrot.lane.b32.xlu0 %v576, 64
  %v1244 = vpop.permute.xlu0 %1243
  %1245 = vrot.lane.b32.xlu0 %v577, 64
  %v1246 = vpop.permute.xlu0 %1245
  %1247 = vrot.lane.b32.xlu0 %v578, 64
  %v1248 = vpop.permute.xlu0 %1247
  %1249 = vrot.lane.b32.xlu0 %v579, 64
  %v1250 = vpop.permute.xlu0 %1249
  %1251 = vrot.lane.b32.xlu0 %v580, 64
  %v1252 = vpop.permute.xlu0 %1251
  %1253 = vrot.lane.b32.xlu0 %v581, 64
  %v1254 = vpop.permute.xlu0 %1253
  %1255 = vrot.lane.b32.xlu0 %v582, 64
  %v1256 = vpop.permute.xlu0 %1255
  %1257 = vrot.lane.b32.xlu0 %v583, 64
  %v1258 = vpop.permute.xlu0 %1257
  %1259 = vrot.lane.b32.xlu0 %v584, 64
  %v1260 = vpop.permute.xlu0 %1259
  %1261 = vrot.lane.b32.xlu0 %v585, 64
  %v1262 = vpop.permute.xlu0 %1261
  %v1275 = vmul.f32 %v1164, %v1240
  %v1276 = vmul.f32 %v1170, %v1242
  %v1277 = vmul.f32 %v1176, %v1244
  %v1278 = vmul.f32 %v1164, %v1246
  %v1279 = vmul.f32 %v1170, %v1248
  %v1280 = vmul.f32 %v1176, %v1250
  %v1281 = vmul.f32 %v1164, %v1252
  %v1282 = vmul.f32 %v1170, %v1254
  %v1283 = vmul.f32 %v1176, %v1256
  %v1284 = vmul.f32 %v1164, %v1258
  %v1285 = vmul.f32 %v1170, %v1260
  %v1286 = vmul.f32 %v1176, %v1262
  %1299 = vrot.lane.b32.xlu0 %v1227, 96
  %v1300 = vpop.permute.xlu0 %1299
  %1301 = vrot.lane.b32.xlu0 %v1228, 96
  %v1302 = vpop.permute.xlu0 %1301
  %1303 = vrot.lane.b32.xlu0 %v1229, 96
  %v1304 = vpop.permute.xlu0 %1303
  %1305 = vrot.lane.b32.xlu0 %v1230, 96
  %v1306 = vpop.permute.xlu0 %1305
  %1307 = vrot.lane.b32.xlu0 %v1231, 96
  %v1308 = vpop.permute.xlu0 %1307
  %1309 = vrot.lane.b32.xlu0 %v1232, 96
  %v1310 = vpop.permute.xlu0 %1309
  %1311 = vrot.lane.b32.xlu0 %v1233, 96
  %v1312 = vpop.permute.xlu0 %1311
  %1313 = vrot.lane.b32.xlu0 %v1234, 96
  %v1314 = vpop.permute.xlu0 %1313
  %1315 = vrot.lane.b32.xlu0 %v1235, 96
  %v1316 = vpop.permute.xlu0 %1315
  %1317 = vrot.lane.b32.xlu0 %v1236, 96
  %v1318 = vpop.permute.xlu0 %1317
  %1319 = vrot.lane.b32.xlu0 %v1237, 96
  %v1320 = vpop.permute.xlu0 %1319
  %1321 = vrot.lane.b32.xlu0 %v1238, 96
  %v1322 = vpop.permute.xlu0 %1321
  %v1324 = vsel %vm598, %v1164, 0
  %v1327 = vsel %vm598, %v1170, 0
  %v1330 = vsel %vm598, %v1176, 0
  %v1332 = vsel %vm598, %v1300, 0
  %v1334 = vsel %vm598, %v1302, 0
  %v1336 = vsel %vm598, %v1304, 0
  %v1338 = vsel %vm598, %v1306, 0
  %v1340 = vsel %vm598, %v1308, 0
  %v1342 = vsel %vm598, %v1310, 0
  %v1344 = vsel %vm598, %v1312, 0
  %v1346 = vsel %vm598, %v1314, 0
  %v1348 = vsel %vm598, %v1316, 0
  %v1350 = vsel %vm598, %v1318, 0
  %v1352 = vsel %vm598, %v1320, 0
  %v1354 = vsel %vm598, %v1322, 0
  %1356 = vmatprep.subr.mxu0 0.0
  %v1357 = vand.u32 %v1332, 4294901760
  %1358 = vmatpush1.xpose.msra.mxu0 %v1357
  %1359 = vmatprep.subr.mxu0 0.0
  %v1360 = vand.u32 %v1334, 4294901760
  %1361 = vmatpush1.xpose.msra.mxu0 %v1360
  %1362 = vmatprep.subr.mxu0 0.0
  %v1363 = vand.u32 %v1336, 4294901760
  %1364 = vmatpush1.xpose.msra.mxu0 %v1363
  %1365 = vmatprep.subr.mxu0 0.0
  %v1366 = vand.u32 %v1338, 4294901760
  %1367 = vmatpush1.xpose.msra.mxu0 %v1366
  %1368 = vmatprep.subr.mxu0 0.0
  %v1369 = vand.u32 %v1340, 4294901760
  %1370 = vmatpush1.xpose.msra.mxu0 %v1369
  %1371 = vmatprep.subr.mxu0 0.0
  %v1372 = vand.u32 %v1342, 4294901760
  %1373 = vmatpush1.xpose.msra.mxu0 %v1372
  %1374 = vmatprep.subr.mxu0 0.0
  %v1375 = vand.u32 %v1344, 4294901760
  %1376 = vmatpush1.xpose.msra.mxu0 %v1375
  %1377 = vmatprep.subr.mxu0 0.0
  %v1378 = vand.u32 %v1346, 4294901760
  %1379 = vmatpush1.xpose.msra.mxu0 %v1378
  %1380 = vmatprep.subr.mxu0 0.0
  %v1381 = vand.u32 %v1348, 4294901760
  %1382 = vmatpush1.xpose.msra.mxu0 %v1381
  %1383 = vmatprep.subr.mxu0 0.0
  %v1384 = vand.u32 %v1350, 4294901760
  %1385 = vmatpush1.xpose.msra.mxu0 %v1384
  %1386 = vmatprep.subr.mxu0 0.0
  %v1387 = vand.u32 %v1352, 4294901760
  %1388 = vmatpush1.xpose.msra.mxu0 %v1387
  %1389 = vmatprep.subr.mxu0 0.0
  %v1390 = vand.u32 %v1354, 4294901760
  %1391 = vmatpush1.xpose.msra.mxu0 %v1390
  %1392 = vmatprep.subr.mxu0 0.0
  %1393 = vmatpush1.xpose.msra.mxu0 0.0
  %1394 = vmatprep.subr.mxu0 0.0
  %1395 = vmatpush1.xpose.msra.mxu0 0.0
  %1396 = vmatprep.subr.mxu0 0.0
  %1397 = vmatpush1.xpose.msra.mxu0 0.0
  %1398 = vmatprep.subr.mxu0 0.0
  %1399 = vmatpush1.xpose.msra.mxu0 0.0
  %1400 = vmatprep.subr.mxu0 0.0
  %1401 = vmatpush1.xpose.msra.mxu0 0.0
  %1402 = vmatprep.subr.mxu0 0.0
  %1403 = vmatpush1.xpose.msra.mxu0 0.0
  %1404 = vmatprep.subr.mxu0 0.0
  %1405 = vmatpush1.xpose.msra.mxu0 0.0
  %1406 = vmatprep.subr.mxu0 0.0
  %1407 = vmatpush1.xpose.msra.mxu0 0.0
  %1408 = vmatprep.subr.mxu0 0.0
  %1409 = vmatpush1.xpose.msra.mxu0 0.0
  %1410 = vmatprep.subr.mxu0 0.0
  %1411 = vmatpush1.xpose.msra.mxu0 0.0
  %1412 = vmatprep.subr.mxu0 0.0
  %1413 = vmatpush1.xpose.msra.mxu0 0.0
  %1414 = vmatprep.subr.mxu0 0.0
  %1415 = vmatpush1.xpose.msra.mxu0 0.0
  %1416 = vmatprep.subr.mxu0 0.0
  %1417 = vmatpush1.xpose.msra.mxu0 0.0
  %1418 = vmatprep.subr.mxu0 0.0
  %1419 = vmatpush1.xpose.msra.mxu0 0.0
  %1420 = vmatprep.subr.mxu0 0.0
  %1421 = vmatpush1.xpose.msra.mxu0 0.0
  %1422 = vmatprep.subr.mxu0 0.0
  %1423 = vmatpush1.xpose.msra.mxu0 0.0
  %1424 = vmatprep.subr.mxu0 0.0
  %1425 = vmatpush1.xpose.msra.mxu0 0.0
  %1426 = vmatprep.subr.mxu0 0.0
  %1427 = vmatpush1.xpose.msra.mxu0 0.0
  %1428 = vmatprep.subr.mxu0 0.0
  %1429 = vmatpush1.xpose.msra.mxu0 0.0
  %1430 = vmatprep.subr.mxu0 0.0
  %1431 = vmatpush1.xpose.msra.mxu0 0.0
  %1432 = vmatprep.mubr.f32.mxu0 0.0
  %v1433 = vand.u32 %v1324, 4294901760
  %v1434 = vsub.f32 %v1324, %v1433
  %v1435 = vand.u32 %v1434, 4294901760
  %v1436 = vsub.f32 %v1434, %v1435
  %v1437 = vand.u32 %v1436, 4294901760
  %1438 = vmatmul.mubr.f32.gmra.mrb[0].mxu0 %v1437
  %v1439 = vpop.f32.mrb[0].mxu0
  %v1440 = vadd.f32 %v586, %v1439
  %v1441 = vpop.f32.mrb[0].mxu0
  %1442 = vmatprep.mubr.f32.mxu0 0.0
  %v1443 = vand.u32 %v1327, 4294901760
  %v1444 = vsub.f32 %v1327, %v1443
  %v1445 = vand.u32 %v1444, 4294901760
  %v1446 = vsub.f32 %v1444, %v1445
  %v1447 = vand.u32 %v1446, 4294901760
  %1448 = vmatmul.mubr.f32.gmra.mrb[0].mxu0 %v1447
  %v1449 = vpop.f32.mrb[0].mxu0
  %v1450 = vadd.f32 %v587, %v1449
  %v1451 = vpop.f32.mrb[0].mxu0
  %1452 = vmatprep.mubr.f32.mxu0 0.0
  %v1453 = vand.u32 %v1330, 4294901760
  %v1454 = vsub.f32 %v1330, %v1453
  %v1455 = vand.u32 %v1454, 4294901760
  %v1456 = vsub.f32 %v1454, %v1455
  %v1457 = vand.u32 %v1456, 4294901760
  %1458 = vmatmul.mubr.f32.gmra.mrb[0].mxu0 %v1457
  %v1459 = vpop.f32.mrb[0].mxu0
  %v1460 = vadd.f32 %v588, %v1459
  %v1461 = vpop.f32.mrb[0].mxu0
  %1462 = vdwg.mxu0
  %1463 = vmatprep.subr.mxu0 0.0
  %v1464 = vand.u32 %v1332, 4294901760
  %v1465 = vsub.f32 %v1332, %v1464
  %v1466 = vand.u32 %v1465, 4294901760
  %v1467 = vsub.f32 %v1465, %v1466
  %v1468 = vand.u32 %v1467, 4294901760
  %1469 = vmatpush1.xpose.msra.mxu0 %v1468
  %1470 = vmatprep.subr.mxu0 0.0
  %v1471 = vand.u32 %v1334, 4294901760
  %v1472 = vsub.f32 %v1334, %v1471
  %v1473 = vand.u32 %v1472, 4294901760
  %v1474 = vsub.f32 %v1472, %v1473
  %v1475 = vand.u32 %v1474, 4294901760
  %1476 = vmatpush1.xpose.msra.mxu0 %v1475
  %1477 = vmatprep.subr.mxu0 0.0
  %v1478 = vand.u32 %v1336, 4294901760
  %v1479 = vsub.f32 %v1336, %v1478
  %v1480 = vand.u32 %v1479, 4294901760
  %v1481 = vsub.f32 %v1479, %v1480
  %v1482 = vand.u32 %v1481, 4294901760
  %1483 = vmatpush1.xpose.msra.mxu0 %v1482
  %1484 = vmatprep.subr.mxu0 0.0
  %v1485 = vand.u32 %v1338, 4294901760
  %v1486 = vsub.f32 %v1338, %v1485
  %v1487 = vand.u32 %v1486, 4294901760
  %v1488 = vsub.f32 %v1486, %v1487
  %v1489 = vand.u32 %v1488, 4294901760
  %1490 = vmatpush1.xpose.msra.mxu0 %v1489
  %1491 = vmatprep.subr.mxu0 0.0
  %v1492 = vand.u32 %v1340, 4294901760
  %v1493 = vsub.f32 %v1340, %v1492
  %v1494 = vand.u32 %v1493, 4294901760
  %v1495 = vsub.f32 %v1493, %v1494
  %v1496 = vand.u32 %v1495, 4294901760
  %1497 = vmatpush1.xpose.msra.mxu0 %v1496
  %1498 = vmatprep.subr.mxu0 0.0
  %v1499 = vand.u32 %v1342, 4294901760
  %v1500 = vsub.f32 %v1342, %v1499
  %v1501 = vand.u32 %v1500, 4294901760
  %v1502 = vsub.f32 %v1500, %v1501
  %v1503 = vand.u32 %v1502, 4294901760
  %1504 = vmatpush1.xpose.msra.mxu0 %v1503
  %1505 = vmatprep.subr.mxu0 0.0
  %v1506 = vand.u32 %v1344, 4294901760
  %v1507 = vsub.f32 %v1344, %v1506
  %v1508 = vand.u32 %v1507, 4294901760
  %v1509 = vsub.f32 %v1507, %v1508
  %v1510 = vand.u32 %v1509, 4294901760
  %1511 = vmatpush1.xpose.msra.mxu0 %v1510
  %1512 = vmatprep.subr.mxu0 0.0
  %v1513 = vand.u32 %v1346, 4294901760
  %v1514 = vsub.f32 %v1346, %v1513
  %v1515 = vand.u32 %v1514, 4294901760
  %v1516 = vsub.f32 %v1514, %v1515
  %v1517 = vand.u32 %v1516, 4294901760
  %1518 = vmatpush1.xpose.msra.mxu0 %v1517
  %1519 = vmatprep.subr.mxu0 0.0
  %v1520 = vand.u32 %v1348, 4294901760
  %v1521 = vsub.f32 %v1348, %v1520
  %v1522 = vand.u32 %v1521, 4294901760
  %v1523 = vsub.f32 %v1521, %v1522
  %v1524 = vand.u32 %v1523, 4294901760
  %1525 = vmatpush1.xpose.msra.mxu0 %v1524
  %1526 = vmatprep.subr.mxu0 0.0
  %v1527 = vand.u32 %v1350, 4294901760
  %v1528 = vsub.f32 %v1350, %v1527
  %v1529 = vand.u32 %v1528, 4294901760
  %v1530 = vsub.f32 %v1528, %v1529
  %v1531 = vand.u32 %v1530, 4294901760
  %1532 = vmatpush1.xpose.msra.mxu0 %v1531
  %1533 = vmatprep.subr.mxu0 0.0
  %v1534 = vand.u32 %v1352, 4294901760
  %v1535 = vsub.f32 %v1352, %v1534
  %v1536 = vand.u32 %v1535, 4294901760
  %v1537 = vsub.f32 %v1535, %v1536
  %v1538 = vand.u32 %v1537, 4294901760
  %1539 = vmatpush1.xpose.msra.mxu0 %v1538
  %1540 = vmatprep.subr.mxu0 0.0
  %v1541 = vand.u32 %v1354, 4294901760
  %v1542 = vsub.f32 %v1354, %v1541
  %v1543 = vand.u32 %v1542, 4294901760
  %v1544 = vsub.f32 %v1542, %v1543
  %v1545 = vand.u32 %v1544, 4294901760
  %1546 = vmatpush1.xpose.msra.mxu0 %v1545
  %1547 = vmatprep.subr.mxu0 0.0
  %1548 = vmatpush1.xpose.msra.mxu0 0.0
  %1549 = vmatprep.subr.mxu0 0.0
  %1550 = vmatpush1.xpose.msra.mxu0 0.0
  %1551 = vmatprep.subr.mxu0 0.0
  %1552 = vmatpush1.xpose.msra.mxu0 0.0
  %1553 = vmatprep.subr.mxu0 0.0
  %1554 = vmatpush1.xpose.msra.mxu0 0.0
  %1555 = vmatprep.subr.mxu0 0.0
  %1556 = vmatpush1.xpose.msra.mxu0 0.0
  %1557 = vmatprep.subr.mxu0 0.0
  %1558 = vmatpush1.xpose.msra.mxu0 0.0
  %1559 = vmatprep.subr.mxu0 0.0
  %1560 = vmatpush1.xpose.msra.mxu0 0.0
  %1561 = vmatprep.subr.mxu0 0.0
  %1562 = vmatpush1.xpose.msra.mxu0 0.0
  %1563 = vmatprep.subr.mxu0 0.0
  %1564 = vmatpush1.xpose.msra.mxu0 0.0
  %1565 = vmatprep.subr.mxu0 0.0
  %1566 = vmatpush1.xpose.msra.mxu0 0.0
  %1567 = vmatprep.subr.mxu0 0.0
  %1568 = vmatpush1.xpose.msra.mxu0 0.0
  %1569 = vmatprep.subr.mxu0 0.0
  %1570 = vmatpush1.xpose.msra.mxu0 0.0
  %1571 = vmatprep.subr.mxu0 0.0
  %1572 = vmatpush1.xpose.msra.mxu0 0.0
  %1573 = vmatprep.subr.mxu0 0.0
  %1574 = vmatpush1.xpose.msra.mxu0 0.0
  %1575 = vmatprep.subr.mxu0 0.0
  %1576 = vmatpush1.xpose.msra.mxu0 0.0
  %1577 = vmatprep.subr.mxu0 0.0
  %1578 = vmatpush1.xpose.msra.mxu0 0.0
  %1579 = vmatprep.subr.mxu0 0.0
  %1580 = vmatpush1.xpose.msra.mxu0 0.0
  %1581 = vmatprep.subr.mxu0 0.0
  %1582 = vmatpush1.xpose.msra.mxu0 0.0
  %1583 = vmatprep.subr.mxu0 0.0
  %1584 = vmatpush1.xpose.msra.mxu0 0.0
  %1585 = vmatprep.subr.mxu0 0.0
  %1586 = vmatpush1.xpose.msra.mxu0 0.0
  %1587 = vmatprep.mubr.f32.mxu0 0.0
  %v1588 = vand.u32 %v1324, 4294901760
  %1589 = vmatmul.mubr.f32.gmra.mrb[0].mxu0 %v1588
  %v1590 = vpop.f32.mrb[0].mxu0
  %v1591 = vadd.f32 %v1440, %v1590
  %v1592 = vpop.f32.mrb[0].mxu0
  %1593 = vmatprep.mubr.f32.mxu0 0.0
  %v1594 = vand.u32 %v1327, 4294901760
  %1595 = vmatmul.mubr.f32.gmra.mrb[0].mxu0 %v1594
  %v1596 = vpop.f32.mrb[0].mxu0
  %v1597 = vadd.f32 %v1450, %v1596
  %v1598 = vpop.f32.mrb[0].mxu0
  %1599 = vmatprep.mubr.f32.mxu0 0.0
  %v1600 = vand.u32 %v1330, 4294901760
  %1601 = vmatmul.mubr.f32.gmra.mrb[0].mxu0 %v1600
  %v1602 = vpop.f32.mrb[0].mxu0
  %v1603 = vadd.f32 %v1460, %v1602
  %v1604 = vpop.f32.mrb[0].mxu0
  %1605 = vdwg.mxu0
  %1606 = vmatprep.subr.mxu0 0.0
  %v1607 = vand.u32 %v1332, 4294901760
  %v1608 = vsub.f32 %v1332, %v1607
  %1609 = vmatpush1.xpose.msra.mxu0 %v1608
  %1610 = vmatprep.subr.mxu0 0.0
  %v1611 = vand.u32 %v1334, 4294901760
  %v1612 = vsub.f32 %v1334, %v1611
  %1613 = vmatpush1.xpose.msra.mxu0 %v1612
  %1614 = vmatprep.subr.mxu0 0.0
  %v1615 = vand.u32 %v1336, 4294901760
  %v1616 = vsub.f32 %v1336, %v1615
  %1617 = vmatpush1.xpose.msra.mxu0 %v1616
  %1618 = vmatprep.subr.mxu0 0.0
  %v1619 = vand.u32 %v1338, 4294901760
  %v1620 = vsub.f32 %v1338, %v1619
  %1621 = vmatpush1.xpose.msra.mxu0 %v1620
  %1622 = vmatprep.subr.mxu0 0.0
  %v1623 = vand.u32 %v1340, 4294901760
  %v1624 = vsub.f32 %v1340, %v1623
  %1625 = vmatpush1.xpose.msra.mxu0 %v1624
  %1626 = vmatprep.subr.mxu0 0.0
  %v1627 = vand.u32 %v1342, 4294901760
  %v1628 = vsub.f32 %v1342, %v1627
  %1629 = vmatpush1.xpose.msra.mxu0 %v1628
  %1630 = vmatprep.subr.mxu0 0.0
  %v1631 = vand.u32 %v1344, 4294901760
  %v1632 = vsub.f32 %v1344, %v1631
  %1633 = vmatpush1.xpose.msra.mxu0 %v1632
  %1634 = vmatprep.subr.mxu0 0.0
  %v1635 = vand.u32 %v1346, 4294901760
  %v1636 = vsub.f32 %v1346, %v1635
  %1637 = vmatpush1.xpose.msra.mxu0 %v1636
  %1638 = vmatprep.subr.mxu0 0.0
  %v1639 = vand.u32 %v1348, 4294901760
  %v1640 = vsub.f32 %v1348, %v1639
  %1641 = vmatpush1.xpose.msra.mxu0 %v1640
  %1642 = vmatprep.subr.mxu0 0.0
  %v1643 = vand.u32 %v1350, 4294901760
  %v1644 = vsub.f32 %v1350, %v1643
  %1645 = vmatpush1.xpose.msra.mxu0 %v1644
  %1646 = vmatprep.subr.mxu0 0.0
  %v1647 = vand.u32 %v1352, 4294901760
  %v1648 = vsub.f32 %v1352, %v1647
  %1649 = vmatpush1.xpose.msra.mxu0 %v1648
  %1650 = vmatprep.subr.mxu0 0.0
  %v1651 = vand.u32 %v1354, 4294901760
  %v1652 = vsub.f32 %v1354, %v1651
  %1653 = vmatpush1.xpose.msra.mxu0 %v1652
  %1654 = vmatprep.subr.mxu0 0.0
  %1655 = vmatpush1.xpose.msra.mxu0 0.0
  %1656 = vmatprep.subr.mxu0 0.0
  %1657 = vmatpush1.xpose.msra.mxu0 0.0
  %1658 = vmatprep.subr.mxu0 0.0
  %1659 = vmatpush1.xpose.msra.mxu0 0.0
  %1660 = vmatprep.subr.mxu0 0.0
  %1661 = vmatpush1.xpose.msra.mxu0 0.0
  %1662 = vmatprep.subr.mxu0 0.0
  %1663 = vmatpush1.xpose.msra.mxu0 0.0
  %1664 = vmatprep.subr.mxu0 0.0
  %1665 = vmatpush1.xpose.msra.mxu0 0.0
  %1666 = vmatprep.subr.mxu0 0.0
  %1667 = vmatpush1.xpose.msra.mxu0 0.0
  %1668 = vmatprep.subr.mxu0 0.0
  %1669 = vmatpush1.xpose.msra.mxu0 0.0
  %1670 = vmatprep.subr.mxu0 0.0
  %1671 = vmatpush1.xpose.msra.mxu0 0.0
  %1672 = vmatprep.subr.mxu0 0.0
  %1673 = vmatpush1.xpose.msra.mxu0 0.0
  %1674 = vmatprep.subr.mxu0 0.0
  %1675 = vmatpush1.xpose.msra.mxu0 0.0
  %1676 = vmatprep.subr.mxu0 0.0
  %1677 = vmatpush1.xpose.msra.mxu0 0.0
  %1678 = vmatprep.subr.mxu0 0.0
  %1679 = vmatpush1.xpose.msra.mxu0 0.0
  %1680 = vmatprep.subr.mxu0 0.0
  %1681 = vmatpush1.xpose.msra.mxu0 0.0
  %1682 = vmatprep.subr.mxu0 0.0
  %1683 = vmatpush1.xpose.msra.mxu0 0.0
  %1684 = vmatprep.subr.mxu0 0.0
  %1685 = vmatpush1.xpose.msra.mxu0 0.0
  %1686 = vmatprep.subr.mxu0 0.0
  %1687 = vmatpush1.xpose.msra.mxu0 0.0
  %1688 = vmatprep.subr.mxu0 0.0
  %1689 = vmatpush1.xpose.msra.mxu0 0.0
  %1690 = vmatprep.subr.mxu0 0.0
  %1691 = vmatpush1.xpose.msra.mxu0 0.0
  %1692 = vmatprep.subr.mxu0 0.0
  %1693 = vmatpush1.xpose.msra.mxu0 0.0
  %1694 = vmatprep.mubr.f32.mxu0 0.0
  %v1695 = vand.u32 %v1324, 4294901760
  %v1696 = vsub.f32 %v1324, %v1695
  %1697 = vmatmul.mubr.f32.gmra.mrb[0].mxu0 %v1696
  %v1698 = vpop.f32.mrb[0].mxu0
  %v1699 = vadd.f32 %v1591, %v1698
  %v1700 = vpop.f32.mrb[0].mxu0
  %1701 = vmatprep.mubr.f32.mxu0 0.0
  %v1702 = vand.u32 %v1327, 4294901760
  %v1703 = vsub.f32 %v1327, %v1702
  %1704 = vmatmul.mubr.f32.gmra.mrb[0].mxu0 %v1703
  %v1705 = vpop.f32.mrb[0].mxu0
  %v1706 = vadd.f32 %v1597, %v1705
  %v1707 = vpop.f32.mrb[0].mxu0
  %1708 = vmatprep.mubr.f32.mxu0 0.0
  %v1709 = vand.u32 %v1330, 4294901760
  %v1710 = vsub.f32 %v1330, %v1709
  %1711 = vmatmul.mubr.f32.gmra.mrb[0].mxu0 %v1710
  %v1712 = vpop.f32.mrb[0].mxu0
  %v1713 = vadd.f32 %v1603, %v1712
  %v1714 = vpop.f32.mrb[0].mxu0
  %1715 = vdwg.mxu0
  %1716 = vmatprep.subr.mxu0 0.0
  %v1717 = vand.u32 %v1332, 4294901760
  %1718 = vmatpush1.xpose.msra.mxu0 %v1717
  %1719 = vmatprep.subr.mxu0 0.0
  %v1720 = vand.u32 %v1334, 4294901760
  %1721 = vmatpush1.xpose.msra.mxu0 %v1720
  %1722 = vmatprep.subr.mxu0 0.0
  %v1723 = vand.u32 %v1336, 4294901760
  %1724 = vmatpush1.xpose.msra.mxu0 %v1723
  %1725 = vmatprep.subr.mxu0 0.0
  %v1726 = vand.u32 %v1338, 4294901760
  %1727 = vmatpush1.xpose.msra.mxu0 %v1726
  %1728 = vmatprep.subr.mxu0 0.0
  %v1729 = vand.u32 %v1340, 4294901760
  %1730 = vmatpush1.xpose.msra.mxu0 %v1729
  %1731 = vmatprep.subr.mxu0 0.0
  %v1732 = vand.u32 %v1342, 4294901760
  %1733 = vmatpush1.xpose.msra.mxu0 %v1732
  %1734 = vmatprep.subr.mxu0 0.0
  %v1735 = vand.u32 %v1344, 4294901760
  %1736 = vmatpush1.xpose.msra.mxu0 %v1735
  %1737 = vmatprep.subr.mxu0 0.0
  %v1738 = vand.u32 %v1346, 4294901760
  %1739 = vmatpush1.xpose.msra.mxu0 %v1738
  %1740 = vmatprep.subr.mxu0 0.0
  %v1741 = vand.u32 %v1348, 4294901760
  %1742 = vmatpush1.xpose.msra.mxu0 %v1741
  %1743 = vmatprep.subr.mxu0 0.0
  %v1744 = vand.u32 %v1350, 4294901760
  %1745 = vmatpush1.xpose.msra.mxu0 %v1744
  %1746 = vmatprep.subr.mxu0 0.0
  %v1747 = vand.u32 %v1352, 4294901760
  %1748 = vmatpush1.xpose.msra.mxu0 %v1747
  %1749 = vmatprep.subr.mxu0 0.0
  %v1750 = vand.u32 %v1354, 4294901760
  %1751 = vmatpush1.xpose.msra.mxu0 %v1750
  %1752 = vmatprep.subr.mxu0 0.0
  %1753 = vmatpush1.xpose.msra.mxu0 0.0
  %1754 = vmatprep.subr.mxu0 0.0
  %1755 = vmatpush1.xpose.msra.mxu0 0.0
  %1756 = vmatprep.subr.mxu0 0.0
  %1757 = vmatpush1.xpose.msra.mxu0 0.0
  %1758 = vmatprep.subr.mxu0 0.0
  %1759 = vmatpush1.xpose.msra.mxu0 0.0
  %1760 = vmatprep.subr.mxu0 0.0
  %1761 = vmatpush1.xpose.msra.mxu0 0.0
  %1762 = vmatprep.subr.mxu0 0.0
  %1763 = vmatpush1.xpose.msra.mxu0 0.0
  %1764 = vmatprep.subr.mxu0 0.0
  %1765 = vmatpush1.xpose.msra.mxu0 0.0
  %1766 = vmatprep.subr.mxu0 0.0
  %1767 = vmatpush1.xpose.msra.mxu0 0.0
  %1768 = vmatprep.subr.mxu0 0.0
  %1769 = vmatpush1.xpose.msra.mxu0 0.0
  %1770 = vmatprep.subr.mxu0 0.0
  %1771 = vmatpush1.xpose.msra.mxu0 0.0
  %1772 = vmatprep.subr.mxu0 0.0
  %1773 = vmatpush1.xpose.msra.mxu0 0.0
  %1774 = vmatprep.subr.mxu0 0.0
  %1775 = vmatpush1.xpose.msra.mxu0 0.0
  %1776 = vmatprep.subr.mxu0 0.0
  %1777 = vmatpush1.xpose.msra.mxu0 0.0
  %1778 = vmatprep.subr.mxu0 0.0
  %1779 = vmatpush1.xpose.msra.mxu0 0.0
  %1780 = vmatprep.subr.mxu0 0.0
  %1781 = vmatpush1.xpose.msra.mxu0 0.0
  %1782 = vmatprep.subr.mxu0 0.0
  %1783 = vmatpush1.xpose.msra.mxu0 0.0
  %1784 = vmatprep.subr.mxu0 0.0
  %1785 = vmatpush1.xpose.msra.mxu0 0.0
  %1786 = vmatprep.subr.mxu0 0.0
  %1787 = vmatpush1.xpose.msra.mxu0 0.0
  %1788 = vmatprep.subr.mxu0 0.0
  %1789 = vmatpush1.xpose.msra.mxu0 0.0
  %1790 = vmatprep.subr.mxu0 0.0
  %1791 = vmatpush1.xpose.msra.mxu0 0.0
  %1792 = vmatprep.mubr.f32.mxu0 0.0
  %v1793 = vand.u32 %v1324, 4294901760
  %v1794 = vsub.f32 %v1324, %v1793
  %v1795 = vand.u32 %v1794, 4294901760
  %1796 = vmatmul.mubr.f32.gmra.mrb[0].mxu0 %v1795
  %v1797 = vpop.f32.mrb[0].mxu0
  %v1798 = vadd.f32 %v1699, %v1797
  %v1799 = vpop.f32.mrb[0].mxu0
  %1800 = vmatprep.mubr.f32.mxu0 0.0
  %v1801 = vand.u32 %v1327, 4294901760
  %v1802 = vsub.f32 %v1327, %v1801
  %v1803 = vand.u32 %v1802, 4294901760
  %1804 = vmatmul.mubr.f32.gmra.mrb[0].mxu0 %v1803
  %v1805 = vpop.f32.mrb[0].mxu0
  %v1806 = vadd.f32 %v1706, %v1805
  %v1807 = vpop.f32.mrb[0].mxu0
  %1808 = vmatprep.mubr.f32.mxu0 0.0
  %v1809 = vand.u32 %v1330, 4294901760
  %v1810 = vsub.f32 %v1330, %v1809
  %v1811 = vand.u32 %v1810, 4294901760
  %1812 = vmatmul.mubr.f32.gmra.mrb[0].mxu0 %v1811
  %v1813 = vpop.f32.mrb[0].mxu0
  %v1814 = vadd.f32 %v1713, %v1813
  %v1815 = vpop.f32.mrb[0].mxu0
  %1816 = vdwg.mxu0
  %1817 = vmatprep.subr.mxu0 0.0
  %v1818 = vand.u32 %v1332, 4294901760
  %v1819 = vsub.f32 %v1332, %v1818
  %v1820 = vand.u32 %v1819, 4294901760
  %1821 = vmatpush1.xpose.msra.mxu0 %v1820
  %1822 = vmatprep.subr.mxu0 0.0
  %v1823 = vand.u32 %v1334, 4294901760
  %v1824 = vsub.f32 %v1334, %v1823
  %v1825 = vand.u32 %v1824, 4294901760
  %1826 = vmatpush1.xpose.msra.mxu0 %v1825
  %1827 = vmatprep.subr.mxu0 0.0
  %v1828 = vand.u32 %v1336, 4294901760
  %v1829 = vsub.f32 %v1336, %v1828
  %v1830 = vand.u32 %v1829, 4294901760
  %1831 = vmatpush1.xpose.msra.mxu0 %v1830
  %1832 = vmatprep.subr.mxu0 0.0
  %v1833 = vand.u32 %v1338, 4294901760
  %v1834 = vsub.f32 %v1338, %v1833
  %v1835 = vand.u32 %v1834, 4294901760
  %1836 = vmatpush1.xpose.msra.mxu0 %v1835
  %1837 = vmatprep.subr.mxu0 0.0
  %v1838 = vand.u32 %v1340, 4294901760
  %v1839 = vsub.f32 %v1340, %v1838
  %v1840 = vand.u32 %v1839, 4294901760
  %1841 = vmatpush1.xpose.msra.mxu0 %v1840
  %1842 = vmatprep.subr.mxu0 0.0
  %v1843 = vand.u32 %v1342, 4294901760
  %v1844 = vsub.f32 %v1342, %v1843
  %v1845 = vand.u32 %v1844, 4294901760
  %1846 = vmatpush1.xpose.msra.mxu0 %v1845
  %1847 = vmatprep.subr.mxu0 0.0
  %v1848 = vand.u32 %v1344, 4294901760
  %v1849 = vsub.f32 %v1344, %v1848
  %v1850 = vand.u32 %v1849, 4294901760
  %1851 = vmatpush1.xpose.msra.mxu0 %v1850
  %1852 = vmatprep.subr.mxu0 0.0
  %v1853 = vand.u32 %v1346, 4294901760
  %v1854 = vsub.f32 %v1346, %v1853
  %v1855 = vand.u32 %v1854, 4294901760
  %1856 = vmatpush1.xpose.msra.mxu0 %v1855
  %1857 = vmatprep.subr.mxu0 0.0
  %v1858 = vand.u32 %v1348, 4294901760
  %v1859 = vsub.f32 %v1348, %v1858
  %v1860 = vand.u32 %v1859, 4294901760
  %1861 = vmatpush1.xpose.msra.mxu0 %v1860
  %1862 = vmatprep.subr.mxu0 0.0
  %v1863 = vand.u32 %v1350, 4294901760
  %v1864 = vsub.f32 %v1350, %v1863
  %v1865 = vand.u32 %v1864, 4294901760
  %1866 = vmatpush1.xpose.msra.mxu0 %v1865
  %1867 = vmatprep.subr.mxu0 0.0
  %v1868 = vand.u32 %v1352, 4294901760
  %v1869 = vsub.f32 %v1352, %v1868
  %v1870 = vand.u32 %v1869, 4294901760
  %1871 = vmatpush1.xpose.msra.mxu0 %v1870
  %1872 = vmatprep.subr.mxu0 0.0
  %v1873 = vand.u32 %v1354, 4294901760
  %v1874 = vsub.f32 %v1354, %v1873
  %v1875 = vand.u32 %v1874, 4294901760
  %1876 = vmatpush1.xpose.msra.mxu0 %v1875
  %1877 = vmatprep.subr.mxu0 0.0
  %1878 = vmatpush1.xpose.msra.mxu0 0.0
  %1879 = vmatprep.subr.mxu0 0.0
  %1880 = vmatpush1.xpose.msra.mxu0 0.0
  %1881 = vmatprep.subr.mxu0 0.0
  %1882 = vmatpush1.xpose.msra.mxu0 0.0
  %1883 = vmatprep.subr.mxu0 0.0
  %1884 = vmatpush1.xpose.msra.mxu0 0.0
  %1885 = vmatprep.subr.mxu0 0.0
  %1886 = vmatpush1.xpose.msra.mxu0 0.0
  %1887 = vmatprep.subr.mxu0 0.0
  %1888 = vmatpush1.xpose.msra.mxu0 0.0
  %1889 = vmatprep.subr.mxu0 0.0
  %1890 = vmatpush1.xpose.msra.mxu0 0.0
  %1891 = vmatprep.subr.mxu0 0.0
  %1892 = vmatpush1.xpose.msra.mxu0 0.0
  %1893 = vmatprep.subr.mxu0 0.0
  %1894 = vmatpush1.xpose.msra.mxu0 0.0
  %1895 = vmatprep.subr.mxu0 0.0
  %1896 = vmatpush1.xpose.msra.mxu0 0.0
  %1897 = vmatprep.subr.mxu0 0.0
  %1898 = vmatpush1.xpose.msra.mxu0 0.0
  %1899 = vmatprep.subr.mxu0 0.0
  %1900 = vmatpush1.xpose.msra.mxu0 0.0
  %1901 = vmatprep.subr.mxu0 0.0
  %1902 = vmatpush1.xpose.msra.mxu0 0.0
  %1903 = vmatprep.subr.mxu0 0.0
  %1904 = vmatpush1.xpose.msra.mxu0 0.0
  %1905 = vmatprep.subr.mxu0 0.0
  %1906 = vmatpush1.xpose.msra.mxu0 0.0
  %1907 = vmatprep.subr.mxu0 0.0
  %1908 = vmatpush1.xpose.msra.mxu0 0.0
  %1909 = vmatprep.subr.mxu0 0.0
  %1910 = vmatpush1.xpose.msra.mxu0 0.0
  %1911 = vmatprep.subr.mxu0 0.0
  %1912 = vmatpush1.xpose.msra.mxu0 0.0
  %1913 = vmatprep.subr.mxu0 0.0
  %1914 = vmatpush1.xpose.msra.mxu0 0.0
  %1915 = vmatprep.subr.mxu0 0.0
  %1916 = vmatpush1.xpose.msra.mxu0 0.0
  %1917 = vmatprep.mubr.f32.mxu0 0.0
  %v1918 = vand.u32 %v1324, 4294901760
  %1919 = vmatmul.mubr.f32.gmra.mrb[0].mxu0 %v1918
  %v1920 = vpop.f32.mrb[0].mxu0
  %v1921 = vadd.f32 %v1798, %v1920
  %v1922 = vpop.f32.mrb[0].mxu0
  %1923 = vmatprep.mubr.f32.mxu0 0.0
  %v1924 = vand.u32 %v1327, 4294901760
  %1925 = vmatmul.mubr.f32.gmra.mrb[0].mxu0 %v1924
  %v1926 = vpop.f32.mrb[0].mxu0
  %v1927 = vadd.f32 %v1806, %v1926
  %v1928 = vpop.f32.mrb[0].mxu0
  %1929 = vmatprep.mubr.f32.mxu0 0.0
  %v1930 = vand.u32 %v1330, 4294901760
  %1931 = vmatmul.mubr.f32.gmra.mrb[0].mxu0 %v1930
  %v1932 = vpop.f32.mrb[0].mxu0
  %v1933 = vadd.f32 %v1814, %v1932
  %v1934 = vpop.f32.mrb[0].mxu0
  %1935 = vdwg.mxu0
  %1936 = vmatprep.subr.mxu0 0.0
  %v1937 = vand.u32 %v1332, 4294901760
  %1938 = vmatpush1.xpose.msra.mxu0 %v1937
  %1939 = vmatprep.subr.mxu0 0.0
  %v1940 = vand.u32 %v1334, 4294901760
  %1941 = vmatpush1.xpose.msra.mxu0 %v1940
  %1942 = vmatprep.subr.mxu0 0.0
  %v1943 = vand.u32 %v1336, 4294901760
  %1944 = vmatpush1.xpose.msra.mxu0 %v1943
  %1945 = vmatprep.subr.mxu0 0.0
  %v1946 = vand.u32 %v1338, 4294901760
  %1947 = vmatpush1.xpose.msra.mxu0 %v1946
  %1948 = vmatprep.subr.mxu0 0.0
  %v1949 = vand.u32 %v1340, 4294901760
  %1950 = vmatpush1.xpose.msra.mxu0 %v1949
  %1951 = vmatprep.subr.mxu0 0.0
  %v1952 = vand.u32 %v1342, 4294901760
  %1953 = vmatpush1.xpose.msra.mxu0 %v1952
  %1954 = vmatprep.subr.mxu0 0.0
  %v1955 = vand.u32 %v1344, 4294901760
  %1956 = vmatpush1.xpose.msra.mxu0 %v1955
  %1957 = vmatprep.subr.mxu0 0.0
  %v1958 = vand.u32 %v1346, 4294901760
  %1959 = vmatpush1.xpose.msra.mxu0 %v1958
  %1960 = vmatprep.subr.mxu0 0.0
  %v1961 = vand.u32 %v1348, 4294901760
  %1962 = vmatpush1.xpose.msra.mxu0 %v1961
  %1963 = vmatprep.subr.mxu0 0.0
  %v1964 = vand.u32 %v1350, 4294901760
  %1965 = vmatpush1.xpose.msra.mxu0 %v1964
  %1966 = vmatprep.subr.mxu0 0.0
  %v1967 = vand.u32 %v1352, 4294901760
  %1968 = vmatpush1.xpose.msra.mxu0 %v1967
  %1969 = vmatprep.subr.mxu0 0.0
  %v1970 = vand.u32 %v1354, 4294901760
  %1971 = vmatpush1.xpose.msra.mxu0 %v1970
  %1972 = vmatprep.subr.mxu0 0.0
  %1973 = vmatpush1.xpose.msra.mxu0 0.0
  %1974 = vmatprep.subr.mxu0 0.0
  %1975 = vmatpush1.xpose.msra.mxu0 0.0
  %1976 = vmatprep.subr.mxu0 0.0
  %1977 = vmatpush1.xpose.msra.mxu0 0.0
  %1978 = vmatprep.subr.mxu0 0.0
  %1979 = vmatpush1.xpose.msra.mxu0 0.0
  %1980 = vmatprep.subr.mxu0 0.0
  %1981 = vmatpush1.xpose.msra.mxu0 0.0
  %1982 = vmatprep.subr.mxu0 0.0
  %1983 = vmatpush1.xpose.msra.mxu0 0.0
  %1984 = vmatprep.subr.mxu0 0.0
  %1985 = vmatpush1.xpose.msra.mxu0 0.0
  %1986 = vmatprep.subr.mxu0 0.0
  %1987 = vmatpush1.xpose.msra.mxu0 0.0
  %1988 = vmatprep.subr.mxu0 0.0
  %1989 = vmatpush1.xpose.msra.mxu0 0.0
  %1990 = vmatprep.subr.mxu0 0.0
  %1991 = vmatpush1.xpose.msra.mxu0 0.0
  %1992 = vmatprep.subr.mxu0 0.0
  %1993 = vmatpush1.xpose.msra.mxu0 0.0
  %1994 = vmatprep.subr.mxu0 0.0
  %1995 = vmatpush1.xpose.msra.mxu0 0.0
  %1996 = vmatprep.subr.mxu0 0.0
  %1997 = vmatpush1.xpose.msra.mxu0 0.0
  %1998 = vmatprep.subr.mxu0 0.0
  %1999 = vmatpush1.xpose.msra.mxu0 0.0
  %2000 = vmatprep.subr.mxu0 0.0
  %2001 = vmatpush1.xpose.msra.mxu0 0.0
  %2002 = vmatprep.subr.mxu0 0.0
  %2003 = vmatpush1.xpose.msra.mxu0 0.0
  %2004 = vmatprep.subr.mxu0 0.0
  %2005 = vmatpush1.xpose.msra.mxu0 0.0
  %2006 = vmatprep.subr.mxu0 0.0
  %2007 = vmatpush1.xpose.msra.mxu0 0.0
  %2008 = vmatprep.subr.mxu0 0.0
  %2009 = vmatpush1.xpose.msra.mxu0 0.0
  %2010 = vmatprep.subr.mxu0 0.0
  %2011 = vmatpush1.xpose.msra.mxu0 0.0
  %2012 = vmatprep.mubr.f32.mxu0 0.0
  %v2013 = vand.u32 %v1324, 4294901760
  %2014 = vmatmul.mubr.f32.gmra.mrb[0].mxu0 %v2013
  %v2015 = vpop.f32.mrb[0].mxu0
  %v2016 = vadd.f32 %v1921, %v2015
  %v2017 = vpop.f32.mrb[0].mxu0
  %2018 = vmatprep.mubr.f32.mxu0 0.0
  %v2019 = vand.u32 %v1327, 4294901760
  %2020 = vmatmul.mubr.f32.gmra.mrb[0].mxu0 %v2019
  %v2021 = vpop.f32.mrb[0].mxu0
  %v2022 = vadd.f32 %v1927, %v2021
  %v2023 = vpop.f32.mrb[0].mxu0
  %2024 = vmatprep.mubr.f32.mxu0 0.0
  %v2025 = vand.u32 %v1330, 4294901760
  %2026 = vmatmul.mubr.f32.gmra.mrb[0].mxu0 %v2025
  %v2027 = vpop.f32.mrb[0].mxu0
  %v2028 = vadd.f32 %v1933, %v2027
  %v2029 = vpop.f32.mrb[0].mxu0
  %2030 = vdwg.mxu0
  %vm2031 = vcmask 785408
  %v2032 = vsel %vm2031, %v2016, -inf
  %2033 = vmax.xlane.f32.xlu0 %v2032
  %v2034 = vpop.xlane.xlu0 %2033
  %v2035 = vsel %vm2031, %v2022, -inf
  %2036 = vmax.xlane.f32.xlu0 %v2035
  %v2037 = vpop.xlane.xlu0 %2036
  %v2038 = vsel %vm2031, %v2028, -inf
  %2039 = vmax.xlane.f32.xlu0 %v2038
  %v2040 = vpop.xlane.xlu0 %2039
  %v2041 = vsub.f32 %v2016, %v2034
  %v2042 = vsub.f32 %v2022, %v2037
  %v2043 = vsub.f32 %v2028, %v2040
  %v2044 = vmul.f32 %v2041, 1.442695
  %v2045 = vpow.pop %v2044
  %v2046 = vmul.f32 %v2042, 1.442695
  %v2047 = vpow.pop %v2046
  %v2048 = vmul.f32 %v2043, 1.442695
  %v2049 = vpow.pop %v2048
  %2062 = vrot.lane.b32.xlu0 %v1275, 64
  %v2063 = vpop.permute.xlu0 %2062
  %2064 = vrot.lane.b32.xlu0 %v1276, 64
  %v2065 = vpop.permute.xlu0 %2064
  %2066 = vrot.lane.b32.xlu0 %v1277, 64
  %v2067 = vpop.permute.xlu0 %2066
  %2068 = vrot.lane.b32.xlu0 %v1278, 64
  %v2069 = vpop.permute.xlu0 %2068
  %2070 = vrot.lane.b32.xlu0 %v1279, 64
  %v2071 = vpop.permute.xlu0 %2070
  %2072 = vrot.lane.b32.xlu0 %v1280, 64
  %v2073 = vpop.permute.xlu0 %2072
  %2074 = vrot.lane.b32.xlu0 %v1281, 64
  %v2075 = vpop.permute.xlu0 %2074
  %2076 = vrot.lane.b32.xlu0 %v1282, 64
  %v2077 = vpop.permute.xlu0 %2076
  %2078 = vrot.lane.b32.xlu0 %v1283, 64
  %v2079 = vpop.permute.xlu0 %2078
  %2080 = vrot.lane.b32.xlu0 %v1284, 64
  %v2081 = vpop.permute.xlu0 %2080
  %2082 = vrot.lane.b32.xlu0 %v1285, 64
  %v2083 = vpop.permute.xlu0 %2082
  %2084 = vrot.lane.b32.xlu0 %v1286, 64
  %v2085 = vpop.permute.xlu0 %2084
  %v2099 = vsel %vm2031, %v2045, 0
  %v2102 = vsel %vm2031, %v2047, 0
  %v2105 = vsel %vm2031, %v2049, 0
  %2107 = vmatprep.subr.mxu0 0.0
  %v2108 = vand.u32 %v2063, 4294901760
  %2109 = vmatpush1.msra.mxu0 %v2108
  %2110 = vmatprep.subr.mxu0 0.0
  %v2111 = vand.u32 %v2065, 4294901760
  %2112 = vmatpush1.msra.mxu0 %v2111
  %2113 = vmatprep.subr.mxu0 0.0
  %v2114 = vand.u32 %v2067, 4294901760
  %2115 = vmatpush1.msra.mxu0 %v2114
  %2116 = vmatprep.subr.mxu0 0.0
  %v2117 = vand.u32 %v2069, 4294901760
  %2118 = vmatpush1.msra.mxu0 %v2117
  %2119 = vmatprep.subr.mxu0 0.0
  %v2120 = vand.u32 %v2071, 4294901760
  %2121 = vmatpush1.msra.mxu0 %v2120
  %2122 = vmatprep.subr.mxu0 0.0
  %v2123 = vand.u32 %v2073, 4294901760
  %2124 = vmatpush1.msra.mxu0 %v2123
  %2125 = vmatprep.subr.mxu0 0.0
  %v2126 = vand.u32 %v2075, 4294901760
  %2127 = vmatpush1.msra.mxu0 %v2126
  %2128 = vmatprep.subr.mxu0 0.0
  %v2129 = vand.u32 %v2077, 4294901760
  %2130 = vmatpush1.msra.mxu0 %v2129
  %2131 = vmatprep.subr.mxu0 0.0
  %v2132 = vand.u32 %v2079, 4294901760
  %2133 = vmatpush1.msra.mxu0 %v2132
  %2134 = vmatprep.subr.mxu0 0.0
  %v2135 = vand.u32 %v2081, 4294901760
  %2136 = vmatpush1.msra.mxu0 %v2135
  %2137 = vmatprep.subr.mxu0 0.0
  %v2138 = vand.u32 %v2083, 4294901760
  %2139 = vmatpush1.msra.mxu0 %v2138
  %2140 = vmatprep.subr.mxu0 0.0
  %v2141 = vand.u32 %v2085, 4294901760
  %2142 = vmatpush1.msra.mxu0 %v2141
  %2143 = vmatprep.subr.mxu0 0.0
  %2144 = vmatpush1.msra.mxu0 0.0
  %2145 = vmatprep.subr.mxu0 0.0
  %2146 = vmatpush1.msra.mxu0 0.0
  %2147 = vmatprep.subr.mxu0 0.0
  %2148 = vmatpush1.msra.mxu0 0.0
  %2149 = vmatprep.subr.mxu0 0.0
  %2150 = vmatpush1.msra.mxu0 0.0
  %2151 = vmatprep.subr.mxu0 0.0
  %2152 = vmatpush1.msra.mxu0 0.0
  %2153 = vmatprep.subr.mxu0 0.0
  %2154 = vmatpush1.msra.mxu0 0.0
  %2155 = vmatprep.subr.mxu0 0.0
  %2156 = vmatpush1.msra.mxu0 0.0
  %2157 = vmatprep.subr.mxu0 0.0
  %2158 = vmatpush1.msra.mxu0 0.0
  %2159 = vmatprep.subr.mxu0 0.0
  %2160 = vmatpush1.msra.mxu0 0.0
  %2161 = vmatprep.subr.mxu0 0.0
  %2162 = vmatpush1.msra.mxu0 0.0
  %2163 = vmatprep.subr.mxu0 0.0
  %2164 = vmatpush1.msra.mxu0 0.0
  %2165 = vmatprep.subr.mxu0 0.0
  %2166 = vmatpush1.msra.mxu0 0.0
  %2167 = vmatprep.subr.mxu0 0.0
  %2168 = vmatpush1.msra.mxu0 0.0
  %2169 = vmatprep.subr.mxu0 0.0
  %2170 = vmatpush1.msra.mxu0 0.0
  %2171 = vmatprep.subr.mxu0 0.0
  %2172 = vmatpush1.msra.mxu0 0.0
  %2173 = vmatprep.subr.mxu0 0.0
  %2174 = vmatpush1.msra.mxu0 0.0
  %2175 = vmatprep.subr.mxu0 0.0
  %2176 = vmatpush1.msra.mxu0 0.0
  %2177 = vmatprep.subr.mxu0 0.0
  %2178 = vmatpush1.msra.mxu0 0.0
  %2179 = vmatprep.subr.mxu0 0.0
  %2180 = vmatpush1.msra.mxu0 0.0
  %2181 = vmatprep.subr.mxu0 0.0
  %2182 = vmatpush1.msra.mxu0 0.0
  %2183 = vmatprep.mubr.f32.mxu0 0.0
  %v2184 = vand.u32 %v2099, 4294901760
  %v2185 = vsub.f32 %v2099, %v2184
  %v2186 = vand.u32 %v2185, 4294901760
  %v2187 = vsub.f32 %v2185, %v2186
  %v2188 = vand.u32 %v2187, 4294901760
  %2189 = vmatmul.mubr.f32.gmra.mrb[0].mxu0 %v2188
  %v2190 = vpop.f32.mrb[0].mxu0
  %v2191 = vadd.f32 0.0, %v2190
  %v2192 = vpop.f32.mrb[0].mxu0
  %2193 = vmatprep.mubr.f32.mxu0 0.0
  %v2194 = vand.u32 %v2102, 4294901760
  %v2195 = vsub.f32 %v2102, %v2194
  %v2196 = vand.u32 %v2195, 4294901760
  %v2197 = vsub.f32 %v2195, %v2196
  %v2198 = vand.u32 %v2197, 4294901760
  %2199 = vmatmul.mubr.f32.gmra.mrb[0].mxu0 %v2198
  %v2200 = vpop.f32.mrb[0].mxu0
  %v2201 = vadd.f32 0.0, %v2200
  %v2202 = vpop.f32.mrb[0].mxu0
  %2203 = vmatprep.mubr.f32.mxu0 0.0
  %v2204 = vand.u32 %v2105, 4294901760
  %v2205 = vsub.f32 %v2105, %v2204
  %v2206 = vand.u32 %v2205, 4294901760
  %v2207 = vsub.f32 %v2205, %v2206
  %v2208 = vand.u32 %v2207, 4294901760
  %2209 = vmatmul.mubr.f32.gmra.mrb[0].mxu0 %v2208
  %v2210 = vpop.f32.mrb[0].mxu0
  %v2211 = vadd.f32 0.0, %v2210
  %v2212 = vpop.f32.mrb[0].mxu0
  %2213 = vdwg.mxu0
  %2214 = vmatprep.subr.mxu0 0.0
  %v2215 = vand.u32 %v2063, 4294901760
  %v2216 = vsub.f32 %v2063, %v2215
  %v2217 = vand.u32 %v2216, 4294901760
  %v2218 = vsub.f32 %v2216, %v2217
  %v2219 = vand.u32 %v2218, 4294901760
  %2220 = vmatpush1.msra.mxu0 %v2219
  %2221 = vmatprep.subr.mxu0 0.0
  %v2222 = vand.u32 %v2065, 4294901760
  %v2223 = vsub.f32 %v2065, %v2222
  %v2224 = vand.u32 %v2223, 4294901760
  %v2225 = vsub.f32 %v2223, %v2224
  %v2226 = vand.u32 %v2225, 4294901760
  %2227 = vmatpush1.msra.mxu0 %v2226
  %2228 = vmatprep.subr.mxu0 0.0
  %v2229 = vand.u32 %v2067, 4294901760
  %v2230 = vsub.f32 %v2067, %v2229
  %v2231 = vand.u32 %v2230, 4294901760
  %v2232 = vsub.f32 %v2230, %v2231
  %v2233 = vand.u32 %v2232, 4294901760
  %2234 = vmatpush1.msra.mxu0 %v2233
  %2235 = vmatprep.subr.mxu0 0.0
  %v2236 = vand.u32 %v2069, 4294901760
  %v2237 = vsub.f32 %v2069, %v2236
  %v2238 = vand.u32 %v2237, 4294901760
  %v2239 = vsub.f32 %v2237, %v2238
  %v2240 = vand.u32 %v2239, 4294901760
  %2241 = vmatpush1.msra.mxu0 %v2240
  %2242 = vmatprep.subr.mxu0 0.0
  %v2243 = vand.u32 %v2071, 4294901760
  %v2244 = vsub.f32 %v2071, %v2243
  %v2245 = vand.u32 %v2244, 4294901760
  %v2246 = vsub.f32 %v2244, %v2245
  %v2247 = vand.u32 %v2246, 4294901760
  %2248 = vmatpush1.msra.mxu0 %v2247
  %2249 = vmatprep.subr.mxu0 0.0
  %v2250 = vand.u32 %v2073, 4294901760
  %v2251 = vsub.f32 %v2073, %v2250
  %v2252 = vand.u32 %v2251, 4294901760
  %v2253 = vsub.f32 %v2251, %v2252
  %v2254 = vand.u32 %v2253, 4294901760
  %2255 = vmatpush1.msra.mxu0 %v2254
  %2256 = vmatprep.subr.mxu0 0.0
  %v2257 = vand.u32 %v2075, 4294901760
  %v2258 = vsub.f32 %v2075, %v2257
  %v2259 = vand.u32 %v2258, 4294901760
  %v2260 = vsub.f32 %v2258, %v2259
  %v2261 = vand.u32 %v2260, 4294901760
  %2262 = vmatpush1.msra.mxu0 %v2261
  %2263 = vmatprep.subr.mxu0 0.0
  %v2264 = vand.u32 %v2077, 4294901760
  %v2265 = vsub.f32 %v2077, %v2264
  %v2266 = vand.u32 %v2265, 4294901760
  %v2267 = vsub.f32 %v2265, %v2266
  %v2268 = vand.u32 %v2267, 4294901760
  %2269 = vmatpush1.msra.mxu0 %v2268
  %2270 = vmatprep.subr.mxu0 0.0
  %v2271 = vand.u32 %v2079, 4294901760
  %v2272 = vsub.f32 %v2079, %v2271
  %v2273 = vand.u32 %v2272, 4294901760
  %v2274 = vsub.f32 %v2272, %v2273
  %v2275 = vand.u32 %v2274, 4294901760
  %2276 = vmatpush1.msra.mxu0 %v2275
  %2277 = vmatprep.subr.mxu0 0.0
  %v2278 = vand.u32 %v2081, 4294901760
  %v2279 = vsub.f32 %v2081, %v2278
  %v2280 = vand.u32 %v2279, 4294901760
  %v2281 = vsub.f32 %v2279, %v2280
  %v2282 = vand.u32 %v2281, 4294901760
  %2283 = vmatpush1.msra.mxu0 %v2282
  %2284 = vmatprep.subr.mxu0 0.0
  %v2285 = vand.u32 %v2083, 4294901760
  %v2286 = vsub.f32 %v2083, %v2285
  %v2287 = vand.u32 %v2286, 4294901760
  %v2288 = vsub.f32 %v2286, %v2287
  %v2289 = vand.u32 %v2288, 4294901760
  %2290 = vmatpush1.msra.mxu0 %v2289
  %2291 = vmatprep.subr.mxu0 0.0
  %v2292 = vand.u32 %v2085, 4294901760
  %v2293 = vsub.f32 %v2085, %v2292
  %v2294 = vand.u32 %v2293, 4294901760
  %v2295 = vsub.f32 %v2293, %v2294
  %v2296 = vand.u32 %v2295, 4294901760
  %2297 = vmatpush1.msra.mxu0 %v2296
  %2298 = vmatprep.subr.mxu0 0.0
  %2299 = vmatpush1.msra.mxu0 0.0
  %2300 = vmatprep.subr.mxu0 0.0
  %2301 = vmatpush1.msra.mxu0 0.0
  %2302 = vmatprep.subr.mxu0 0.0
  %2303 = vmatpush1.msra.mxu0 0.0
  %2304 = vmatprep.subr.mxu0 0.0
  %2305 = vmatpush1.msra.mxu0 0.0
  %2306 = vmatprep.subr.mxu0 0.0
  %2307 = vmatpush1.msra.mxu0 0.0
  %2308 = vmatprep.subr.mxu0 0.0
  %2309 = vmatpush1.msra.mxu0 0.0
  %2310 = vmatprep.subr.mxu0 0.0
  %2311 = vmatpush1.msra.mxu0 0.0
  %2312 = vmatprep.subr.mxu0 0.0
  %2313 = vmatpush1.msra.mxu0 0.0
  %2314 = vmatprep.subr.mxu0 0.0
  %2315 = vmatpush1.msra.mxu0 0.0
  %2316 = vmatprep.subr.mxu0 0.0
  %2317 = vmatpush1.msra.mxu0 0.0
  %2318 = vmatprep.subr.mxu0 0.0
  %2319 = vmatpush1.msra.mxu0 0.0
  %2320 = vmatprep.subr.mxu0 0.0
  %2321 = vmatpush1.msra.mxu0 0.0
  %2322 = vmatprep.subr.mxu0 0.0
  %2323 = vmatpush1.msra.mxu0 0.0
  %2324 = vmatprep.subr.mxu0 0.0
  %2325 = vmatpush1.msra.mxu0 0.0
  %2326 = vmatprep.subr.mxu0 0.0
  %2327 = vmatpush1.msra.mxu0 0.0
  %2328 = vmatprep.subr.mxu0 0.0
  %2329 = vmatpush1.msra.mxu0 0.0
  %2330 = vmatprep.subr.mxu0 0.0
  %2331 = vmatpush1.msra.mxu0 0.0
  %2332 = vmatprep.subr.mxu0 0.0
  %2333 = vmatpush1.msra.mxu0 0.0
  %2334 = vmatprep.subr.mxu0 0.0
  %2335 = vmatpush1.msra.mxu0 0.0
  %2336 = vmatprep.subr.mxu0 0.0
  %2337 = vmatpush1.msra.mxu0 0.0
  %2338 = vmatprep.mubr.f32.mxu0 0.0
  %v2339 = vand.u32 %v2099, 4294901760
  %2340 = vmatmul.mubr.f32.gmra.mrb[0].mxu0 %v2339
  %v2341 = vpop.f32.mrb[0].mxu0
  %v2342 = vadd.f32 %v2191, %v2341
  %v2343 = vpop.f32.mrb[0].mxu0
  %2344 = vmatprep.mubr.f32.mxu0 0.0
  %v2345 = vand.u32 %v2102, 4294901760
  %2346 = vmatmul.mubr.f32.gmra.mrb[0].mxu0 %v2345
  %v2347 = vpop.f32.mrb[0].mxu0
  %v2348 = vadd.f32 %v2201, %v2347
  %v2349 = vpop.f32.mrb[0].mxu0
  %2350 = vmatprep.mubr.f32.mxu0 0.0
  %v2351 = vand.u32 %v2105, 4294901760
  %2352 = vmatmul.mubr.f32.gmra.mrb[0].mxu0 %v2351
  %v2353 = vpop.f32.mrb[0].mxu0
  %v2354 = vadd.f32 %v2211, %v2353
  %v2355 = vpop.f32.mrb[0].mxu0
  %2356 = vdwg.mxu0
  %2357 = vmatprep.subr.mxu0 0.0
  %v2358 = vand.u32 %v2063, 4294901760
  %v2359 = vsub.f32 %v2063, %v2358
  %2360 = vmatpush1.msra.mxu0 %v2359
  %2361 = vmatprep.subr.mxu0 0.0
  %v2362 = vand.u32 %v2065, 4294901760
  %v2363 = vsub.f32 %v2065, %v2362
  %2364 = vmatpush1.msra.mxu0 %v2363
  %2365 = vmatprep.subr.mxu0 0.0
  %v2366 = vand.u32 %v2067, 4294901760
  %v2367 = vsub.f32 %v2067, %v2366
  %2368 = vmatpush1.msra.mxu0 %v2367
  %2369 = vmatprep.subr.mxu0 0.0
  %v2370 = vand.u32 %v2069, 4294901760
  %v2371 = vsub.f32 %v2069, %v2370
  %2372 = vmatpush1.msra.mxu0 %v2371
  %2373 = vmatprep.subr.mxu0 0.0
  %v2374 = vand.u32 %v2071, 4294901760
  %v2375 = vsub.f32 %v2071, %v2374
  %2376 = vmatpush1.msra.mxu0 %v2375
  %2377 = vmatprep.subr.mxu0 0.0
  %v2378 = vand.u32 %v2073, 4294901760
  %v2379 = vsub.f32 %v2073, %v2378
  %2380 = vmatpush1.msra.mxu0 %v2379
  %2381 = vmatprep.subr.mxu0 0.0
  %v2382 = vand.u32 %v2075, 4294901760
  %v2383 = vsub.f32 %v2075, %v2382
  %2384 = vmatpush1.msra.mxu0 %v2383
  %2385 = vmatprep.subr.mxu0 0.0
  %v2386 = vand.u32 %v2077, 4294901760
  %v2387 = vsub.f32 %v2077, %v2386
  %2388 = vmatpush1.msra.mxu0 %v2387
  %2389 = vmatprep.subr.mxu0 0.0
  %v2390 = vand.u32 %v2079, 4294901760
  %v2391 = vsub.f32 %v2079, %v2390
  %2392 = vmatpush1.msra.mxu0 %v2391
  %2393 = vmatprep.subr.mxu0 0.0
  %v2394 = vand.u32 %v2081, 4294901760
  %v2395 = vsub.f32 %v2081, %v2394
  %2396 = vmatpush1.msra.mxu0 %v2395
  %2397 = vmatprep.subr.mxu0 0.0
  %v2398 = vand.u32 %v2083, 4294901760
  %v2399 = vsub.f32 %v2083, %v2398
  %2400 = vmatpush1.msra.mxu0 %v2399
  %2401 = vmatprep.subr.mxu0 0.0
  %v2402 = vand.u32 %v2085, 4294901760
  %v2403 = vsub.f32 %v2085, %v2402
  %2404 = vmatpush1.msra.mxu0 %v2403
  %2405 = vmatprep.subr.mxu0 0.0
  %2406 = vmatpush1.msra.mxu0 0.0
  %2407 = vmatprep.subr.mxu0 0.0
  %2408 = vmatpush1.msra.mxu0 0.0
  %2409 = vmatprep.subr.mxu0 0.0
  %2410 = vmatpush1.msra.mxu0 0.0
  %2411 = vmatprep.subr.mxu0 0.0
  %2412 = vmatpush1.msra.mxu0 0.0
  %2413 = vmatprep.subr.mxu0 0.0
  %2414 = vmatpush1.msra.mxu0 0.0
  %2415 = vmatprep.subr.mxu0 0.0
  %2416 = vmatpush1.msra.mxu0 0.0
  %2417 = vmatprep.subr.mxu0 0.0
  %2418 = vmatpush1.msra.mxu0 0.0
  %2419 = vmatprep.subr.mxu0 0.0
  %2420 = vmatpush1.msra.mxu0 0.0
  %2421 = vmatprep.subr.mxu0 0.0
  %2422 = vmatpush1.msra.mxu0 0.0
  %2423 = vmatprep.subr.mxu0 0.0
  %2424 = vmatpush1.msra.mxu0 0.0
  %2425 = vmatprep.subr.mxu0 0.0
  %2426 = vmatpush1.msra.mxu0 0.0
  %2427 = vmatprep.subr.mxu0 0.0
  %2428 = vmatpush1.msra.mxu0 0.0
  %2429 = vmatprep.subr.mxu0 0.0
  %2430 = vmatpush1.msra.mxu0 0.0
  %2431 = vmatprep.subr.mxu0 0.0
  %2432 = vmatpush1.msra.mxu0 0.0
  %2433 = vmatprep.subr.mxu0 0.0
  %2434 = vmatpush1.msra.mxu0 0.0
  %2435 = vmatprep.subr.mxu0 0.0
  %2436 = vmatpush1.msra.mxu0 0.0
  %2437 = vmatprep.subr.mxu0 0.0
  %2438 = vmatpush1.msra.mxu0 0.0
  %2439 = vmatprep.subr.mxu0 0.0
  %2440 = vmatpush1.msra.mxu0 0.0
  %2441 = vmatprep.subr.mxu0 0.0
  %2442 = vmatpush1.msra.mxu0 0.0
  %2443 = vmatprep.subr.mxu0 0.0
  %2444 = vmatpush1.msra.mxu0 0.0
  %2445 = vmatprep.mubr.f32.mxu0 0.0
  %v2446 = vand.u32 %v2099, 4294901760
  %v2447 = vsub.f32 %v2099, %v2446
  %2448 = vmatmul.mubr.f32.gmra.mrb[0].mxu0 %v2447
  %v2449 = vpop.f32.mrb[0].mxu0
  %v2450 = vadd.f32 %v2342, %v2449
  %v2451 = vpop.f32.mrb[0].mxu0
  %2452 = vmatprep.mubr.f32.mxu0 0.0
  %v2453 = vand.u32 %v2102, 4294901760
  %v2454 = vsub.f32 %v2102, %v2453
  %2455 = vmatmul.mubr.f32.gmra.mrb[0].mxu0 %v2454
  %v2456 = vpop.f32.mrb[0].mxu0
  %v2457 = vadd.f32 %v2348, %v2456
  %v2458 = vpop.f32.mrb[0].mxu0
  %2459 = vmatprep.mubr.f32.mxu0 0.0
  %v2460 = vand.u32 %v2105, 4294901760
  %v2461 = vsub.f32 %v2105, %v2460
  %2462 = vmatmul.mubr.f32.gmra.mrb[0].mxu0 %v2461
  %v2463 = vpop.f32.mrb[0].mxu0
  %v2464 = vadd.f32 %v2354, %v2463
  %v2465 = vpop.f32.mrb[0].mxu0
  %2466 = vdwg.mxu0
  %2467 = vmatprep.subr.mxu0 0.0
  %v2468 = vand.u32 %v2063, 4294901760
  %2469 = vmatpush1.msra.mxu0 %v2468
  %2470 = vmatprep.subr.mxu0 0.0
  %v2471 = vand.u32 %v2065, 4294901760
  %2472 = vmatpush1.msra.mxu0 %v2471
  %2473 = vmatprep.subr.mxu0 0.0
  %v2474 = vand.u32 %v2067, 4294901760
  %2475 = vmatpush1.msra.mxu0 %v2474
  %2476 = vmatprep.subr.mxu0 0.0
  %v2477 = vand.u32 %v2069, 4294901760
  %2478 = vmatpush1.msra.mxu0 %v2477
  %2479 = vmatprep.subr.mxu0 0.0
  %v2480 = vand.u32 %v2071, 4294901760
  %2481 = vmatpush1.msra.mxu0 %v2480
  %2482 = vmatprep.subr.mxu0 0.0
  %v2483 = vand.u32 %v2073, 4294901760
  %2484 = vmatpush1.msra.mxu0 %v2483
  %2485 = vmatprep.subr.mxu0 0.0
  %v2486 = vand.u32 %v2075, 4294901760
  %2487 = vmatpush1.msra.mxu0 %v2486
  %2488 = vmatprep.subr.mxu0 0.0
  %v2489 = vand.u32 %v2077, 4294901760
  %2490 = vmatpush1.msra.mxu0 %v2489
  %2491 = vmatprep.subr.mxu0 0.0
  %v2492 = vand.u32 %v2079, 4294901760
  %2493 = vmatpush1.msra.mxu0 %v2492
  %2494 = vmatprep.subr.mxu0 0.0
  %v2495 = vand.u32 %v2081, 4294901760
  %2496 = vmatpush1.msra.mxu0 %v2495
  %2497 = vmatprep.subr.mxu0 0.0
  %v2498 = vand.u32 %v2083, 4294901760
  %2499 = vmatpush1.msra.mxu0 %v2498
  %2500 = vmatprep.subr.mxu0 0.0
  %v2501 = vand.u32 %v2085, 4294901760
  %2502 = vmatpush1.msra.mxu0 %v2501
  %2503 = vmatprep.subr.mxu0 0.0
  %2504 = vmatpush1.msra.mxu0 0.0
  %2505 = vmatprep.subr.mxu0 0.0
  %2506 = vmatpush1.msra.mxu0 0.0
  %2507 = vmatprep.subr.mxu0 0.0
  %2508 = vmatpush1.msra.mxu0 0.0
  %2509 = vmatprep.subr.mxu0 0.0
  %2510 = vmatpush1.msra.mxu0 0.0
  %2511 = vmatprep.subr.mxu0 0.0
  %2512 = vmatpush1.msra.mxu0 0.0
  %2513 = vmatprep.subr.mxu0 0.0
  %2514 = vmatpush1.msra.mxu0 0.0
  %2515 = vmatprep.subr.mxu0 0.0
  %2516 = vmatpush1.msra.mxu0 0.0
  %2517 = vmatprep.subr.mxu0 0.0
  %2518 = vmatpush1.msra.mxu0 0.0
  %2519 = vmatprep.subr.mxu0 0.0
  %2520 = vmatpush1.msra.mxu0 0.0
  %2521 = vmatprep.subr.mxu0 0.0
  %2522 = vmatpush1.msra.mxu0 0.0
  %2523 = vmatprep.subr.mxu0 0.0
  %2524 = vmatpush1.msra.mxu0 0.0
  %2525 = vmatprep.subr.mxu0 0.0
  %2526 = vmatpush1.msra.mxu0 0.0
  %2527 = vmatprep.subr.mxu0 0.0
  %2528 = vmatpush1.msra.mxu0 0.0
  %2529 = vmatprep.subr.mxu0 0.0
  %2530 = vmatpush1.msra.mxu0 0.0
  %2531 = vmatprep.subr.mxu0 0.0
  %2532 = vmatpush1.msra.mxu0 0.0
  %2533 = vmatprep.subr.mxu0 0.0
  %2534 = vmatpush1.msra.mxu0 0.0
  %2535 = vmatprep.subr.mxu0 0.0
  %2536 = vmatpush1.msra.mxu0 0.0
  %2537 = vmatprep.subr.mxu0 0.0
  %2538 = vmatpush1.msra.mxu0 0.0
  %2539 = vmatprep.subr.mxu0 0.0
  %2540 = vmatpush1.msra.mxu0 0.0
  %2541 = vmatprep.subr.mxu0 0.0
  %2542 = vmatpush1.msra.mxu0 0.0
  %2543 = vmatprep.mubr.f32.mxu0 0.0
  %v2544 = vand.u32 %v2099, 4294901760
  %v2545 = vsub.f32 %v2099, %v2544
  %v2546 = vand.u32 %v2545, 4294901760
  %2547 = vmatmul.mubr.f32.gmra.mrb[0].mxu0 %v2546
  %v2548 = vpop.f32.mrb[0].mxu0
  %v2549 = vadd.f32 %v2450, %v2548
  %v2550 = vpop.f32.mrb[0].mxu0
  %2551 = vmatprep.mubr.f32.mxu0 0.0
  %v2552 = vand.u32 %v2102, 4294901760
  %v2553 = vsub.f32 %v2102, %v2552
  %v2554 = vand.u32 %v2553, 4294901760
  %2555 = vmatmul.mubr.f32.gmra.mrb[0].mxu0 %v2554
  %v2556 = vpop.f32.mrb[0].mxu0
  %v2557 = vadd.f32 %v2457, %v2556
  %v2558 = vpop.f32.mrb[0].mxu0
  %2559 = vmatprep.mubr.f32.mxu0 0.0
  %v2560 = vand.u32 %v2105, 4294901760
  %v2561 = vsub.f32 %v2105, %v2560
  %v2562 = vand.u32 %v2561, 4294901760
  %2563 = vmatmul.mubr.f32.gmra.mrb[0].mxu0 %v2562
  %v2564 = vpop.f32.mrb[0].mxu0
  %v2565 = vadd.f32 %v2464, %v2564
  %v2566 = vpop.f32.mrb[0].mxu0
  %2567 = vdwg.mxu0
  %2568 = vmatprep.subr.mxu0 0.0
  %v2569 = vand.u32 %v2063, 4294901760
  %v2570 = vsub.f32 %v2063, %v2569
  %v2571 = vand.u32 %v2570, 4294901760
  %2572 = vmatpush1.msra.mxu0 %v2571
  %2573 = vmatprep.subr.mxu0 0.0
  %v2574 = vand.u32 %v2065, 4294901760
  %v2575 = vsub.f32 %v2065, %v2574
  %v2576 = vand.u32 %v2575, 4294901760
  %2577 = vmatpush1.msra.mxu0 %v2576
  %2578 = vmatprep.subr.mxu0 0.0
  %v2579 = vand.u32 %v2067, 4294901760
  %v2580 = vsub.f32 %v2067, %v2579
  %v2581 = vand.u32 %v2580, 4294901760
  %2582 = vmatpush1.msra.mxu0 %v2581
  %2583 = vmatprep.subr.mxu0 0.0
  %v2584 = vand.u32 %v2069, 4294901760
  %v2585 = vsub.f32 %v2069, %v2584
  %v2586 = vand.u32 %v2585, 4294901760
  %2587 = vmatpush1.msra.mxu0 %v2586
  %2588 = vmatprep.subr.mxu0 0.0
  %v2589 = vand.u32 %v2071, 4294901760
  %v2590 = vsub.f32 %v2071, %v2589
  %v2591 = vand.u32 %v2590, 4294901760
  %2592 = vmatpush1.msra.mxu0 %v2591
  %2593 = vmatprep.subr.mxu0 0.0
  %v2594 = vand.u32 %v2073, 4294901760
  %v2595 = vsub.f32 %v2073, %v2594
  %v2596 = vand.u32 %v2595, 4294901760
  %2597 = vmatpush1.msra.mxu0 %v2596
  %2598 = vmatprep.subr.mxu0 0.0
  %v2599 = vand.u32 %v2075, 4294901760
  %v2600 = vsub.f32 %v2075, %v2599
  %v2601 = vand.u32 %v2600, 4294901760
  %2602 = vmatpush1.msra.mxu0 %v2601
  %2603 = vmatprep.subr.mxu0 0.0
  %v2604 = vand.u32 %v2077, 4294901760
  %v2605 = vsub.f32 %v2077, %v2604
  %v2606 = vand.u32 %v2605, 4294901760
  %2607 = vmatpush1.msra.mxu0 %v2606
  %2608 = vmatprep.subr.mxu0 0.0
  %v2609 = vand.u32 %v2079, 4294901760
  %v2610 = vsub.f32 %v2079, %v2609
  %v2611 = vand.u32 %v2610, 4294901760
  %2612 = vmatpush1.msra.mxu0 %v2611
  %2613 = vmatprep.subr.mxu0 0.0
  %v2614 = vand.u32 %v2081, 4294901760
  %v2615 = vsub.f32 %v2081, %v2614
  %v2616 = vand.u32 %v2615, 4294901760
  %2617 = vmatpush1.msra.mxu0 %v2616
  %2618 = vmatprep.subr.mxu0 0.0
  %v2619 = vand.u32 %v2083, 4294901760
  %v2620 = vsub.f32 %v2083, %v2619
  %v2621 = vand.u32 %v2620, 4294901760
  %2622 = vmatpush1.msra.mxu0 %v2621
  %2623 = vmatprep.subr.mxu0 0.0
  %v2624 = vand.u32 %v2085, 4294901760
  %v2625 = vsub.f32 %v2085, %v2624
  %v2626 = vand.u32 %v2625, 4294901760
  %2627 = vmatpush1.msra.mxu0 %v2626
  %2628 = vmatprep.subr.mxu0 0.0
  %2629 = vmatpush1.msra.mxu0 0.0
  %2630 = vmatprep.subr.mxu0 0.0
  %2631 = vmatpush1.msra.mxu0 0.0
  %2632 = vmatprep.subr.mxu0 0.0
  %2633 = vmatpush1.msra.mxu0 0.0
  %2634 = vmatprep.subr.mxu0 0.0
  %2635 = vmatpush1.msra.mxu0 0.0
  %2636 = vmatprep.subr.mxu0 0.0
  %2637 = vmatpush1.msra.mxu0 0.0
  %2638 = vmatprep.subr.mxu0 0.0
  %2639 = vmatpush1.msra.mxu0 0.0
  %2640 = vmatprep.subr.mxu0 0.0
  %2641 = vmatpush1.msra.mxu0 0.0
  %2642 = vmatprep.subr.mxu0 0.0
  %2643 = vmatpush1.msra.mxu0 0.0
  %2644 = vmatprep.subr.mxu0 0.0
  %2645 = vmatpush1.msra.mxu0 0.0
  %2646 = vmatprep.subr.mxu0 0.0
  %2647 = vmatpush1.msra.mxu0 0.0
  %2648 = vmatprep.subr.mxu0 0.0
  %2649 = vmatpush1.msra.mxu0 0.0
  %2650 = vmatprep.subr.mxu0 0.0
  %2651 = vmatpush1.msra.mxu0 0.0
  %2652 = vmatprep.subr.mxu0 0.0
  %2653 = vmatpush1.msra.mxu0 0.0
  %2654 = vmatprep.subr.mxu0 0.0
  %2655 = vmatpush1.msra.mxu0 0.0
  %2656 = vmatprep.subr.mxu0 0.0
  %2657 = vmatpush1.msra.mxu0 0.0
  %2658 = vmatprep.subr.mxu0 0.0
  %2659 = vmatpush1.msra.mxu0 0.0
  %2660 = vmatprep.subr.mxu0 0.0
  %2661 = vmatpush1.msra.mxu0 0.0
  %2662 = vmatprep.subr.mxu0 0.0
  %2663 = vmatpush1.msra.mxu0 0.0
  %2664 = vmatprep.subr.mxu0 0.0
  %2665 = vmatpush1.msra.mxu0 0.0
  %2666 = vmatprep.subr.mxu0 0.0
  %2667 = vmatpush1.msra.mxu0 0.0
  %2668 = vmatprep.mubr.f32.mxu0 0.0
  %v2669 = vand.u32 %v2099, 4294901760
  %2670 = vmatmul.mubr.f32.gmra.mrb[0].mxu0 %v2669
  %v2671 = vpop.f32.mrb[0].mxu0
  %v2672 = vadd.f32 %v2549, %v2671
  %v2673 = vpop.f32.mrb[0].mxu0
  %2674 = vmatprep.mubr.f32.mxu0 0.0
  %v2675 = vand.u32 %v2102, 4294901760
  %2676 = vmatmul.mubr.f32.gmra.mrb[0].mxu0 %v2675
  %v2677 = vpop.f32.mrb[0].mxu0
  %v2678 = vadd.f32 %v2557, %v2677
  %v2679 = vpop.f32.mrb[0].mxu0
  %2680 = vmatprep.mubr.f32.mxu0 0.0
  %v2681 = vand.u32 %v2105, 4294901760
  %2682 = vmatmul.mubr.f32.gmra.mrb[0].mxu0 %v2681
  %v2683 = vpop.f32.mrb[0].mxu0
  %v2684 = vadd.f32 %v2565, %v2683
  %v2685 = vpop.f32.mrb[0].mxu0
  %2686 = vdwg.mxu0
  %2687 = vmatprep.subr.mxu0 0.0
  %v2688 = vand.u32 %v2063, 4294901760
  %2689 = vmatpush1.msra.mxu0 %v2688
  %2690 = vmatprep.subr.mxu0 0.0
  %v2691 = vand.u32 %v2065, 4294901760
  %2692 = vmatpush1.msra.mxu0 %v2691
  %2693 = vmatprep.subr.mxu0 0.0
  %v2694 = vand.u32 %v2067, 4294901760
  %2695 = vmatpush1.msra.mxu0 %v2694
  %2696 = vmatprep.subr.mxu0 0.0
  %v2697 = vand.u32 %v2069, 4294901760
  %2698 = vmatpush1.msra.mxu0 %v2697
  %2699 = vmatprep.subr.mxu0 0.0
  %v2700 = vand.u32 %v2071, 4294901760
  %2701 = vmatpush1.msra.mxu0 %v2700
  %2702 = vmatprep.subr.mxu0 0.0
  %v2703 = vand.u32 %v2073, 4294901760
  %2704 = vmatpush1.msra.mxu0 %v2703
  %2705 = vmatprep.subr.mxu0 0.0
  %v2706 = vand.u32 %v2075, 4294901760
  %2707 = vmatpush1.msra.mxu0 %v2706
  %2708 = vmatprep.subr.mxu0 0.0
  %v2709 = vand.u32 %v2077, 4294901760
  %2710 = vmatpush1.msra.mxu0 %v2709
  %2711 = vmatprep.subr.mxu0 0.0
  %v2712 = vand.u32 %v2079, 4294901760
  %2713 = vmatpush1.msra.mxu0 %v2712
  %2714 = vmatprep.subr.mxu0 0.0
  %v2715 = vand.u32 %v2081, 4294901760
  %2716 = vmatpush1.msra.mxu0 %v2715
  %2717 = vmatprep.subr.mxu0 0.0
  %v2718 = vand.u32 %v2083, 4294901760
  %2719 = vmatpush1.msra.mxu0 %v2718
  %2720 = vmatprep.subr.mxu0 0.0
  %v2721 = vand.u32 %v2085, 4294901760
  %2722 = vmatpush1.msra.mxu0 %v2721
  %2723 = vmatprep.subr.mxu0 0.0
  %2724 = vmatpush1.msra.mxu0 0.0
  %2725 = vmatprep.subr.mxu0 0.0
  %2726 = vmatpush1.msra.mxu0 0.0
  %2727 = vmatprep.subr.mxu0 0.0
  %2728 = vmatpush1.msra.mxu0 0.0
  %2729 = vmatprep.subr.mxu0 0.0
  %2730 = vmatpush1.msra.mxu0 0.0
  %2731 = vmatprep.subr.mxu0 0.0
  %2732 = vmatpush1.msra.mxu0 0.0
  %2733 = vmatprep.subr.mxu0 0.0
  %2734 = vmatpush1.msra.mxu0 0.0
  %2735 = vmatprep.subr.mxu0 0.0
  %2736 = vmatpush1.msra.mxu0 0.0
  %2737 = vmatprep.subr.mxu0 0.0
  %2738 = vmatpush1.msra.mxu0 0.0
  %2739 = vmatprep.subr.mxu0 0.0
  %2740 = vmatpush1.msra.mxu0 0.0
  %2741 = vmatprep.subr.mxu0 0.0
  %2742 = vmatpush1.msra.mxu0 0.0
  %2743 = vmatprep.subr.mxu0 0.0
  %2744 = vmatpush1.msra.mxu0 0.0
  %2745 = vmatprep.subr.mxu0 0.0
  %2746 = vmatpush1.msra.mxu0 0.0
  %2747 = vmatprep.subr.mxu0 0.0
  %2748 = vmatpush1.msra.mxu0 0.0
  %2749 = vmatprep.subr.mxu0 0.0
  %2750 = vmatpush1.msra.mxu0 0.0
  %2751 = vmatprep.subr.mxu0 0.0
  %2752 = vmatpush1.msra.mxu0 0.0
  %2753 = vmatprep.subr.mxu0 0.0
  %2754 = vmatpush1.msra.mxu0 0.0
  %2755 = vmatprep.subr.mxu0 0.0
  %2756 = vmatpush1.msra.mxu0 0.0
  %2757 = vmatprep.subr.mxu0 0.0
  %2758 = vmatpush1.msra.mxu0 0.0
  %2759 = vmatprep.subr.mxu0 0.0
  %2760 = vmatpush1.msra.mxu0 0.0
  %2761 = vmatprep.subr.mxu0 0.0
  %2762 = vmatpush1.msra.mxu0 0.0
  %2763 = vmatprep.mubr.f32.mxu0 0.0
  %v2764 = vand.u32 %v2099, 4294901760
  %2765 = vmatmul.mubr.f32.gmra.mrb[0].mxu0 %v2764
  %v2766 = vpop.f32.mrb[0].mxu0
  %v2767 = vadd.f32 %v2672, %v2766
  %v2768 = vpop.f32.mrb[0].mxu0
  %2769 = vmatprep.mubr.f32.mxu0 0.0
  %v2770 = vand.u32 %v2102, 4294901760
  %2771 = vmatmul.mubr.f32.gmra.mrb[0].mxu0 %v2770
  %v2772 = vpop.f32.mrb[0].mxu0
  %v2773 = vadd.f32 %v2678, %v2772
  %v2774 = vpop.f32.mrb[0].mxu0
  %2775 = vmatprep.mubr.f32.mxu0 0.0
  %v2776 = vand.u32 %v2105, 4294901760
  %2777 = vmatmul.mubr.f32.gmra.mrb[0].mxu0 %v2776
  %v2778 = vpop.f32.mrb[0].mxu0
  %v2779 = vadd.f32 %v2684, %v2778
  %v2780 = vpop.f32.mrb[0].mxu0
  %2781 = vdwg.mxu0
  %2782 = vmatprep.subr.mxu0 0.0
  %v2783 = vand.u32 %v574, 4294901760
  %2784 = vmatpush1.msra.mxu0 %v2783
  %2785 = vmatprep.subr.mxu0 0.0
  %v2786 = vand.u32 %v575, 4294901760
  %2787 = vmatpush1.msra.mxu0 %v2786
  %2788 = vmatprep.subr.mxu0 0.0
  %v2789 = vand.u32 %v576, 4294901760
  %2790 = vmatpush1.msra.mxu0 %v2789
  %2791 = vmatprep.subr.mxu0 0.0
  %v2792 = vand.u32 %v577, 4294901760
  %2793 = vmatpush1.msra.mxu0 %v2792
  %2794 = vmatprep.subr.mxu0 0.0
  %v2795 = vand.u32 %v578, 4294901760
  %2796 = vmatpush1.msra.mxu0 %v2795
  %2797 = vmatprep.subr.mxu0 0.0
  %v2798 = vand.u32 %v579, 4294901760
  %2799 = vmatpush1.msra.mxu0 %v2798
  %2800 = vmatprep.subr.mxu0 0.0
  %v2801 = vand.u32 %v580, 4294901760
  %2802 = vmatpush1.msra.mxu0 %v2801
  %2803 = vmatprep.subr.mxu0 0.0
  %v2804 = vand.u32 %v581, 4294901760
  %2805 = vmatpush1.msra.mxu0 %v2804
  %2806 = vmatprep.subr.mxu0 0.0
  %v2807 = vand.u32 %v582, 4294901760
  %2808 = vmatpush1.msra.mxu0 %v2807
  %2809 = vmatprep.subr.mxu0 0.0
  %v2810 = vand.u32 %v583, 4294901760
  %2811 = vmatpush1.msra.mxu0 %v2810
  %2812 = vmatprep.subr.mxu0 0.0
  %v2813 = vand.u32 %v584, 4294901760
  %2814 = vmatpush1.msra.mxu0 %v2813
  %2815 = vmatprep.subr.mxu0 0.0
  %v2816 = vand.u32 %v585, 4294901760
  %2817 = vmatpush1.msra.mxu0 %v2816
  %2818 = vmatprep.subr.mxu0 0.0
  %2819 = vmatpush1.msra.mxu0 0.0
  %2820 = vmatprep.subr.mxu0 0.0
  %2821 = vmatpush1.msra.mxu0 0.0
  %2822 = vmatprep.subr.mxu0 0.0
  %2823 = vmatpush1.msra.mxu0 0.0
  %2824 = vmatprep.subr.mxu0 0.0
  %2825 = vmatpush1.msra.mxu0 0.0
  %2826 = vmatprep.subr.mxu0 0.0
  %2827 = vmatpush1.msra.mxu0 0.0
  %2828 = vmatprep.subr.mxu0 0.0
  %2829 = vmatpush1.msra.mxu0 0.0
  %2830 = vmatprep.subr.mxu0 0.0
  %2831 = vmatpush1.msra.mxu0 0.0
  %2832 = vmatprep.subr.mxu0 0.0
  %2833 = vmatpush1.msra.mxu0 0.0
  %2834 = vmatprep.subr.mxu0 0.0
  %2835 = vmatpush1.msra.mxu0 0.0
  %2836 = vmatprep.subr.mxu0 0.0
  %2837 = vmatpush1.msra.mxu0 0.0
  %2838 = vmatprep.subr.mxu0 0.0
  %2839 = vmatpush1.msra.mxu0 0.0
  %2840 = vmatprep.subr.mxu0 0.0
  %2841 = vmatpush1.msra.mxu0 0.0
  %2842 = vmatprep.subr.mxu0 0.0
  %2843 = vmatpush1.msra.mxu0 0.0
  %2844 = vmatprep.subr.mxu0 0.0
  %2845 = vmatpush1.msra.mxu0 0.0
  %2846 = vmatprep.subr.mxu0 0.0
  %2847 = vmatpush1.msra.mxu0 0.0
  %2848 = vmatprep.subr.mxu0 0.0
  %2849 = vmatpush1.msra.mxu0 0.0
  %2850 = vmatprep.subr.mxu0 0.0
  %2851 = vmatpush1.msra.mxu0 0.0
  %2852 = vmatprep.subr.mxu0 0.0
  %2853 = vmatpush1.msra.mxu0 0.0
  %2854 = vmatprep.subr.mxu0 0.0
  %2855 = vmatpush1.msra.mxu0 0.0
  %2856 = vmatprep.subr.mxu0 0.0
  %2857 = vmatpush1.msra.mxu0 0.0
  %2858 = vmatprep.mubr.f32.mxu0 0.0
  %v2859 = vand.u32 %v2099, 4294901760
  %v2860 = vsub.f32 %v2099, %v2859
  %v2861 = vand.u32 %v2860, 4294901760
  %v2862 = vsub.f32 %v2860, %v2861
  %v2863 = vand.u32 %v2862, 4294901760
  %2864 = vmatmul.mubr.f32.gmra.mrb[0].mxu0 %v2863
  %v2865 = vpop.f32.mrb[0].mxu0
  %v2866 = vadd.f32 0.0, %v2865
  %v2867 = vpop.f32.mrb[0].mxu0
  %2868 = vmatprep.mubr.f32.mxu0 0.0
  %v2869 = vand.u32 %v2102, 4294901760
  %v2870 = vsub.f32 %v2102, %v2869
  %v2871 = vand.u32 %v2870, 4294901760
  %v2872 = vsub.f32 %v2870, %v2871
  %v2873 = vand.u32 %v2872, 4294901760
  %2874 = vmatmul.mubr.f32.gmra.mrb[0].mxu0 %v2873
  %v2875 = vpop.f32.mrb[0].mxu0
  %v2876 = vadd.f32 0.0, %v2875
  %v2877 = vpop.f32.mrb[0].mxu0
  %2878 = vmatprep.mubr.f32.mxu0 0.0
  %v2879 = vand.u32 %v2105, 4294901760
  %v2880 = vsub.f32 %v2105, %v2879
  %v2881 = vand.u32 %v2880, 4294901760
  %v2882 = vsub.f32 %v2880, %v2881
  %v2883 = vand.u32 %v2882, 4294901760
  %2884 = vmatmul.mubr.f32.gmra.mrb[0].mxu0 %v2883
  %v2885 = vpop.f32.mrb[0].mxu0
  %v2886 = vadd.f32 0.0, %v2885
  %v2887 = vpop.f32.mrb[0].mxu0
  %2888 = vdwg.mxu0
  %2889 = vmatprep.subr.mxu0 0.0
  %v2890 = vand.u32 %v574, 4294901760
  %v2891 = vsub.f32 %v574, %v2890
  %v2892 = vand.u32 %v2891, 4294901760
  %v2893 = vsub.f32 %v2891, %v2892
  %v2894 = vand.u32 %v2893, 4294901760
  %2895 = vmatpush1.msra.mxu0 %v2894
  %2896 = vmatprep.subr.mxu0 0.0
  %v2897 = vand.u32 %v575, 4294901760
  %v2898 = vsub.f32 %v575, %v2897
  %v2899 = vand.u32 %v2898, 4294901760
  %v2900 = vsub.f32 %v2898, %v2899
  %v2901 = vand.u32 %v2900, 4294901760
  %2902 = vmatpush1.msra.mxu0 %v2901
  %2903 = vmatprep.subr.mxu0 0.0
  %v2904 = vand.u32 %v576, 4294901760
  %v2905 = vsub.f32 %v576, %v2904
  %v2906 = vand.u32 %v2905, 4294901760
  %v2907 = vsub.f32 %v2905, %v2906
  %v2908 = vand.u32 %v2907, 4294901760
  %2909 = vmatpush1.msra.mxu0 %v2908
  %2910 = vmatprep.subr.mxu0 0.0
  %v2911 = vand.u32 %v577, 4294901760
  %v2912 = vsub.f32 %v577, %v2911
  %v2913 = vand.u32 %v2912, 4294901760
  %v2914 = vsub.f32 %v2912, %v2913
  %v2915 = vand.u32 %v2914, 4294901760
  %2916 = vmatpush1.msra.mxu0 %v2915
  %2917 = vmatprep.subr.mxu0 0.0
  %v2918 = vand.u32 %v578, 4294901760
  %v2919 = vsub.f32 %v578, %v2918
  %v2920 = vand.u32 %v2919, 4294901760
  %v2921 = vsub.f32 %v2919, %v2920
  %v2922 = vand.u32 %v2921, 4294901760
  %2923 = vmatpush1.msra.mxu0 %v2922
  %2924 = vmatprep.subr.mxu0 0.0
  %v2925 = vand.u32 %v579, 4294901760
  %v2926 = vsub.f32 %v579, %v2925
  %v2927 = vand.u32 %v2926, 4294901760
  %v2928 = vsub.f32 %v2926, %v2927
  %v2929 = vand.u32 %v2928, 4294901760
  %2930 = vmatpush1.msra.mxu0 %v2929
  %2931 = vmatprep.subr.mxu0 0.0
  %v2932 = vand.u32 %v580, 4294901760
  %v2933 = vsub.f32 %v580, %v2932
  %v2934 = vand.u32 %v2933, 4294901760
  %v2935 = vsub.f32 %v2933, %v2934
  %v2936 = vand.u32 %v2935, 4294901760
  %2937 = vmatpush1.msra.mxu0 %v2936
  %2938 = vmatprep.subr.mxu0 0.0
  %v2939 = vand.u32 %v581, 4294901760
  %v2940 = vsub.f32 %v581, %v2939
  %v2941 = vand.u32 %v2940, 4294901760
  %v2942 = vsub.f32 %v2940, %v2941
  %v2943 = vand.u32 %v2942, 4294901760
  %2944 = vmatpush1.msra.mxu0 %v2943
  %2945 = vmatprep.subr.mxu0 0.0
  %v2946 = vand.u32 %v582, 4294901760
  %v2947 = vsub.f32 %v582, %v2946
  %v2948 = vand.u32 %v2947, 4294901760
  %v2949 = vsub.f32 %v2947, %v2948
  %v2950 = vand.u32 %v2949, 4294901760
  %2951 = vmatpush1.msra.mxu0 %v2950
  %2952 = vmatprep.subr.mxu0 0.0
  %v2953 = vand.u32 %v583, 4294901760
  %v2954 = vsub.f32 %v583, %v2953
  %v2955 = vand.u32 %v2954, 4294901760
  %v2956 = vsub.f32 %v2954, %v2955
  %v2957 = vand.u32 %v2956, 4294901760
  %2958 = vmatpush1.msra.mxu0 %v2957
  %2959 = vmatprep.subr.mxu0 0.0
  %v2960 = vand.u32 %v584, 4294901760
  %v2961 = vsub.f32 %v584, %v2960
  %v2962 = vand.u32 %v2961, 4294901760
  %v2963 = vsub.f32 %v2961, %v2962
  %v2964 = vand.u32 %v2963, 4294901760
  %2965 = vmatpush1.msra.mxu0 %v2964
  %2966 = vmatprep.subr.mxu0 0.0
  %v2967 = vand.u32 %v585, 4294901760
  %v2968 = vsub.f32 %v585, %v2967
  %v2969 = vand.u32 %v2968, 4294901760
  %v2970 = vsub.f32 %v2968, %v2969
  %v2971 = vand.u32 %v2970, 4294901760
  %2972 = vmatpush1.msra.mxu0 %v2971
  %2973 = vmatprep.subr.mxu0 0.0
  %2974 = vmatpush1.msra.mxu0 0.0
  %2975 = vmatprep.subr.mxu0 0.0
  %2976 = vmatpush1.msra.mxu0 0.0
  %2977 = vmatprep.subr.mxu0 0.0
  %2978 = vmatpush1.msra.mxu0 0.0
  %2979 = vmatprep.subr.mxu0 0.0
  %2980 = vmatpush1.msra.mxu0 0.0
  %2981 = vmatprep.subr.mxu0 0.0
  %2982 = vmatpush1.msra.mxu0 0.0
  %2983 = vmatprep.subr.mxu0 0.0
  %2984 = vmatpush1.msra.mxu0 0.0
  %2985 = vmatprep.subr.mxu0 0.0
  %2986 = vmatpush1.msra.mxu0 0.0
  %2987 = vmatprep.subr.mxu0 0.0
  %2988 = vmatpush1.msra.mxu0 0.0
  %2989 = vmatprep.subr.mxu0 0.0
  %2990 = vmatpush1.msra.mxu0 0.0
  %2991 = vmatprep.subr.mxu0 0.0
  %2992 = vmatpush1.msra.mxu0 0.0
  %2993 = vmatprep.subr.mxu0 0.0
  %2994 = vmatpush1.msra.mxu0 0.0
  %2995 = vmatprep.subr.mxu0 0.0
  %2996 = vmatpush1.msra.mxu0 0.0
  %2997 = vmatprep.subr.mxu0 0.0
  %2998 = vmatpush1.msra.mxu0 0.0
  %2999 = vmatprep.subr.mxu0 0.0
  %3000 = vmatpush1.msra.mxu0 0.0
  %3001 = vmatprep.subr.mxu0 0.0
  %3002 = vmatpush1.msra.mxu0 0.0
  %3003 = vmatprep.subr.mxu0 0.0
  %3004 = vmatpush1.msra.mxu0 0.0
  %3005 = vmatprep.subr.mxu0 0.0
  %3006 = vmatpush1.msra.mxu0 0.0
  %3007 = vmatprep.subr.mxu0 0.0
  %3008 = vmatpush1.msra.mxu0 0.0
  %3009 = vmatprep.subr.mxu0 0.0
  %3010 = vmatpush1.msra.mxu0 0.0
  %3011 = vmatprep.subr.mxu0 0.0
  %3012 = vmatpush1.msra.mxu0 0.0
  %3013 = vmatprep.mubr.f32.mxu0 0.0
  %v3014 = vand.u32 %v2099, 4294901760
  %3015 = vmatmul.mubr.f32.gmra.mrb[0].mxu0 %v3014
  %v3016 = vpop.f32.mrb[0].mxu0
  %v3017 = vadd.f32 %v2866, %v3016
  %v3018 = vpop.f32.mrb[0].mxu0
  %3019 = vmatprep.mubr.f32.mxu0 0.0
  %v3020 = vand.u32 %v2102, 4294901760
  %3021 = vmatmul.mubr.f32.gmra.mrb[0].mxu0 %v3020
  %v3022 = vpop.f32.mrb[0].mxu0
  %v3023 = vadd.f32 %v2876, %v3022
  %v3024 = vpop.f32.mrb[0].mxu0
  %3025 = vmatprep.mubr.f32.mxu0 0.0
  %v3026 = vand.u32 %v2105, 4294901760
  %3027 = vmatmul.mubr.f32.gmra.mrb[0].mxu0 %v3026
  %v3028 = vpop.f32.mrb[0].mxu0
  %v3029 = vadd.f32 %v2886, %v3028
  %v3030 = vpop.f32.mrb[0].mxu0
  %3031 = vdwg.mxu0
  %3032 = vmatprep.subr.mxu0 0.0
  %v3033 = vand.u32 %v574, 4294901760
  %v3034 = vsub.f32 %v574, %v3033
  %3035 = vmatpush1.msra.mxu0 %v3034
  %3036 = vmatprep.subr.mxu0 0.0
  %v3037 = vand.u32 %v575, 4294901760
  %v3038 = vsub.f32 %v575, %v3037
  %3039 = vmatpush1.msra.mxu0 %v3038
  %3040 = vmatprep.subr.mxu0 0.0
  %v3041 = vand.u32 %v576, 4294901760
  %v3042 = vsub.f32 %v576, %v3041
  %3043 = vmatpush1.msra.mxu0 %v3042
  %3044 = vmatprep.subr.mxu0 0.0
  %v3045 = vand.u32 %v577, 4294901760
  %v3046 = vsub.f32 %v577, %v3045
  %3047 = vmatpush1.msra.mxu0 %v3046
  %3048 = vmatprep.subr.mxu0 0.0
  %v3049 = vand.u32 %v578, 4294901760
  %v3050 = vsub.f32 %v578, %v3049
  %3051 = vmatpush1.msra.mxu0 %v3050
  %3052 = vmatprep.subr.mxu0 0.0
  %v3053 = vand.u32 %v579, 4294901760
  %v3054 = vsub.f32 %v579, %v3053
  %3055 = vmatpush1.msra.mxu0 %v3054
  %3056 = vmatprep.subr.mxu0 0.0
  %v3057 = vand.u32 %v580, 4294901760
  %v3058 = vsub.f32 %v580, %v3057
  %3059 = vmatpush1.msra.mxu0 %v3058
  %3060 = vmatprep.subr.mxu0 0.0
  %v3061 = vand.u32 %v581, 4294901760
  %v3062 = vsub.f32 %v581, %v3061
  %3063 = vmatpush1.msra.mxu0 %v3062
  %3064 = vmatprep.subr.mxu0 0.0
  %v3065 = vand.u32 %v582, 4294901760
  %v3066 = vsub.f32 %v582, %v3065
  %3067 = vmatpush1.msra.mxu0 %v3066
  %3068 = vmatprep.subr.mxu0 0.0
  %v3069 = vand.u32 %v583, 4294901760
  %v3070 = vsub.f32 %v583, %v3069
  %3071 = vmatpush1.msra.mxu0 %v3070
  %3072 = vmatprep.subr.mxu0 0.0
  %v3073 = vand.u32 %v584, 4294901760
  %v3074 = vsub.f32 %v584, %v3073
  %3075 = vmatpush1.msra.mxu0 %v3074
  %3076 = vmatprep.subr.mxu0 0.0
  %v3077 = vand.u32 %v585, 4294901760
  %v3078 = vsub.f32 %v585, %v3077
  %3079 = vmatpush1.msra.mxu0 %v3078
  %3080 = vmatprep.subr.mxu0 0.0
  %3081 = vmatpush1.msra.mxu0 0.0
  %3082 = vmatprep.subr.mxu0 0.0
  %3083 = vmatpush1.msra.mxu0 0.0
  %3084 = vmatprep.subr.mxu0 0.0
  %3085 = vmatpush1.msra.mxu0 0.0
  %3086 = vmatprep.subr.mxu0 0.0
  %3087 = vmatpush1.msra.mxu0 0.0
  %3088 = vmatprep.subr.mxu0 0.0
  %3089 = vmatpush1.msra.mxu0 0.0
  %3090 = vmatprep.subr.mxu0 0.0
  %3091 = vmatpush1.msra.mxu0 0.0
  %3092 = vmatprep.subr.mxu0 0.0
  %3093 = vmatpush1.msra.mxu0 0.0
  %3094 = vmatprep.subr.mxu0 0.0
  %3095 = vmatpush1.msra.mxu0 0.0
  %3096 = vmatprep.subr.mxu0 0.0
  %3097 = vmatpush1.msra.mxu0 0.0
  %3098 = vmatprep.subr.mxu0 0.0
  %3099 = vmatpush1.msra.mxu0 0.0
  %3100 = vmatprep.subr.mxu0 0.0
  %3101 = vmatpush1.msra.mxu0 0.0
  %3102 = vmatprep.subr.mxu0 0.0
  %3103 = vmatpush1.msra.mxu0 0.0
  %3104 = vmatprep.subr.mxu0 0.0
  %3105 = vmatpush1.msra.mxu0 0.0
  %3106 = vmatprep.subr.mxu0 0.0
  %3107 = vmatpush1.msra.mxu0 0.0
  %3108 = vmatprep.subr.mxu0 0.0
  %3109 = vmatpush1.msra.mxu0 0.0
  %3110 = vmatprep.subr.mxu0 0.0
  %3111 = vmatpush1.msra.mxu0 0.0
  %3112 = vmatprep.subr.mxu0 0.0
  %3113 = vmatpush1.msra.mxu0 0.0
  %3114 = vmatprep.subr.mxu0 0.0
  %3115 = vmatpush1.msra.mxu0 0.0
  %3116 = vmatprep.subr.mxu0 0.0
  %3117 = vmatpush1.msra.mxu0 0.0
  %3118 = vmatprep.subr.mxu0 0.0
  %3119 = vmatpush1.msra.mxu0 0.0
  %3120 = vmatprep.mubr.f32.mxu0 0.0
  %v3121 = vand.u32 %v2099, 4294901760
  %v3122 = vsub.f32 %v2099, %v3121
  %3123 = vmatmul.mubr.f32.gmra.mrb[0].mxu0 %v3122
  %v3124 = vpop.f32.mrb[0].mxu0
  %v3125 = vadd.f32 %v3017, %v3124
  %v3126 = vpop.f32.mrb[0].mxu0
  %3127 = vmatprep.mubr.f32.mxu0 0.0
  %v3128 = vand.u32 %v2102, 4294901760
  %v3129 = vsub.f32 %v2102, %v3128
  %3130 = vmatmul.mubr.f32.gmra.mrb[0].mxu0 %v3129
  %v3131 = vpop.f32.mrb[0].mxu0
  %v3132 = vadd.f32 %v3023, %v3131
  %v3133 = vpop.f32.mrb[0].mxu0
  %3134 = vmatprep.mubr.f32.mxu0 0.0
  %v3135 = vand.u32 %v2105, 4294901760
  %v3136 = vsub.f32 %v2105, %v3135
  %3137 = vmatmul.mubr.f32.gmra.mrb[0].mxu0 %v3136
  %v3138 = vpop.f32.mrb[0].mxu0
  %v3139 = vadd.f32 %v3029, %v3138
  %v3140 = vpop.f32.mrb[0].mxu0
  %3141 = vdwg.mxu0
  %3142 = vmatprep.subr.mxu0 0.0
  %v3143 = vand.u32 %v574, 4294901760
  %3144 = vmatpush1.msra.mxu0 %v3143
  %3145 = vmatprep.subr.mxu0 0.0
  %v3146 = vand.u32 %v575, 4294901760
  %3147 = vmatpush1.msra.mxu0 %v3146
  %3148 = vmatprep.subr.mxu0 0.0
  %v3149 = vand.u32 %v576, 4294901760
  %3150 = vmatpush1.msra.mxu0 %v3149
  %3151 = vmatprep.subr.mxu0 0.0
  %v3152 = vand.u32 %v577, 4294901760
  %3153 = vmatpush1.msra.mxu0 %v3152
  %3154 = vmatprep.subr.mxu0 0.0
  %v3155 = vand.u32 %v578, 4294901760
  %3156 = vmatpush1.msra.mxu0 %v3155
  %3157 = vmatprep.subr.mxu0 0.0
  %v3158 = vand.u32 %v579, 4294901760
  %3159 = vmatpush1.msra.mxu0 %v3158
  %3160 = vmatprep.subr.mxu0 0.0
  %v3161 = vand.u32 %v580, 4294901760
  %3162 = vmatpush1.msra.mxu0 %v3161
  %3163 = vmatprep.subr.mxu0 0.0
  %v3164 = vand.u32 %v581, 4294901760
  %3165 = vmatpush1.msra.mxu0 %v3164
  %3166 = vmatprep.subr.mxu0 0.0
  %v3167 = vand.u32 %v582, 4294901760
  %3168 = vmatpush1.msra.mxu0 %v3167
  %3169 = vmatprep.subr.mxu0 0.0
  %v3170 = vand.u32 %v583, 4294901760
  %3171 = vmatpush1.msra.mxu0 %v3170
  %3172 = vmatprep.subr.mxu0 0.0
  %v3173 = vand.u32 %v584, 4294901760
  %3174 = vmatpush1.msra.mxu0 %v3173
  %3175 = vmatprep.subr.mxu0 0.0
  %v3176 = vand.u32 %v585, 4294901760
  %3177 = vmatpush1.msra.mxu0 %v3176
  %3178 = vmatprep.subr.mxu0 0.0
  %3179 = vmatpush1.msra.mxu0 0.0
  %3180 = vmatprep.subr.mxu0 0.0
  %3181 = vmatpush1.msra.mxu0 0.0
  %3182 = vmatprep.subr.mxu0 0.0
  %3183 = vmatpush1.msra.mxu0 0.0
  %3184 = vmatprep.subr.mxu0 0.0
  %3185 = vmatpush1.msra.mxu0 0.0
  %3186 = vmatprep.subr.mxu0 0.0
  %3187 = vmatpush1.msra.mxu0 0.0
  %3188 = vmatprep.subr.mxu0 0.0
  %3189 = vmatpush1.msra.mxu0 0.0
  %3190 = vmatprep.subr.mxu0 0.0
  %3191 = vmatpush1.msra.mxu0 0.0
  %3192 = vmatprep.subr.mxu0 0.0
  %3193 = vmatpush1.msra.mxu0 0.0
  %3194 = vmatprep.subr.mxu0 0.0
  %3195 = vmatpush1.msra.mxu0 0.0
  %3196 = vmatprep.subr.mxu0 0.0
  %3197 = vmatpush1.msra.mxu0 0.0
  %3198 = vmatprep.subr.mxu0 0.0
  %3199 = vmatpush1.msra.mxu0 0.0
  %3200 = vmatprep.subr.mxu0 0.0
  %3201 = vmatpush1.msra.mxu0 0.0
  %3202 = vmatprep.subr.mxu0 0.0
  %3203 = vmatpush1.msra.mxu0 0.0
  %3204 = vmatprep.subr.mxu0 0.0
  %3205 = vmatpush1.msra.mxu0 0.0
  %3206 = vmatprep.subr.mxu0 0.0
  %3207 = vmatpush1.msra.mxu0 0.0
  %3208 = vmatprep.subr.mxu0 0.0
  %3209 = vmatpush1.msra.mxu0 0.0
  %3210 = vmatprep.subr.mxu0 0.0
  %3211 = vmatpush1.msra.mxu0 0.0
  %3212 = vmatprep.subr.mxu0 0.0
  %3213 = vmatpush1.msra.mxu0 0.0
  %3214 = vmatprep.subr.mxu0 0.0
  %3215 = vmatpush1.msra.mxu0 0.0
  %3216 = vmatprep.subr.mxu0 0.0
  %3217 = vmatpush1.msra.mxu0 0.0
  %3218 = vmatprep.mubr.f32.mxu0 0.0
  %v3219 = vand.u32 %v2099, 4294901760
  %v3220 = vsub.f32 %v2099, %v3219
  %v3221 = vand.u32 %v3220, 4294901760
  %3222 = vmatmul.mubr.f32.gmra.mrb[0].mxu0 %v3221
  %v3223 = vpop.f32.mrb[0].mxu0
  %v3224 = vadd.f32 %v3125, %v3223
  %v3225 = vpop.f32.mrb[0].mxu0
  %3226 = vmatprep.mubr.f32.mxu0 0.0
  %v3227 = vand.u32 %v2102, 4294901760
  %v3228 = vsub.f32 %v2102, %v3227
  %v3229 = vand.u32 %v3228, 4294901760
  %3230 = vmatmul.mubr.f32.gmra.mrb[0].mxu0 %v3229
  %v3231 = vpop.f32.mrb[0].mxu0
  %v3232 = vadd.f32 %v3132, %v3231
  %v3233 = vpop.f32.mrb[0].mxu0
  %3234 = vmatprep.mubr.f32.mxu0 0.0
  %v3235 = vand.u32 %v2105, 4294901760
  %v3236 = vsub.f32 %v2105, %v3235
  %v3237 = vand.u32 %v3236, 4294901760
  %3238 = vmatmul.mubr.f32.gmra.mrb[0].mxu0 %v3237
  %v3239 = vpop.f32.mrb[0].mxu0
  %v3240 = vadd.f32 %v3139, %v3239
  %v3241 = vpop.f32.mrb[0].mxu0
  %3242 = vdwg.mxu0
  %3243 = vmatprep.subr.mxu0 0.0
  %v3244 = vand.u32 %v574, 4294901760
  %v3245 = vsub.f32 %v574, %v3244
  %v3246 = vand.u32 %v3245, 4294901760
  %3247 = vmatpush1.msra.mxu0 %v3246
  %3248 = vmatprep.subr.mxu0 0.0
  %v3249 = vand.u32 %v575, 4294901760
  %v3250 = vsub.f32 %v575, %v3249
  %v3251 = vand.u32 %v3250, 4294901760
  %3252 = vmatpush1.msra.mxu0 %v3251
  %3253 = vmatprep.subr.mxu0 0.0
  %v3254 = vand.u32 %v576, 4294901760
  %v3255 = vsub.f32 %v576, %v3254
  %v3256 = vand.u32 %v3255, 4294901760
  %3257 = vmatpush1.msra.mxu0 %v3256
  %3258 = vmatprep.subr.mxu0 0.0
  %v3259 = vand.u32 %v577, 4294901760
  %v3260 = vsub.f32 %v577, %v3259
  %v3261 = vand.u32 %v3260, 4294901760
  %3262 = vmatpush1.msra.mxu0 %v3261
  %3263 = vmatprep.subr.mxu0 0.0
  %v3264 = vand.u32 %v578, 4294901760
  %v3265 = vsub.f32 %v578, %v3264
  %v3266 = vand.u32 %v3265, 4294901760
  %3267 = vmatpush1.msra.mxu0 %v3266
  %3268 = vmatprep.subr.mxu0 0.0
  %v3269 = vand.u32 %v579, 4294901760
  %v3270 = vsub.f32 %v579, %v3269
  %v3271 = vand.u32 %v3270, 4294901760
  %3272 = vmatpush1.msra.mxu0 %v3271
  %3273 = vmatprep.subr.mxu0 0.0
  %v3274 = vand.u32 %v580, 4294901760
  %v3275 = vsub.f32 %v580, %v3274
  %v3276 = vand.u32 %v3275, 4294901760
  %3277 = vmatpush1.msra.mxu0 %v3276
  %3278 = vmatprep.subr.mxu0 0.0
  %v3279 = vand.u32 %v581, 4294901760
  %v3280 = vsub.f32 %v581, %v3279
  %v3281 = vand.u32 %v3280, 4294901760
  %3282 = vmatpush1.msra.mxu0 %v3281
  %3283 = vmatprep.subr.mxu0 0.0
  %v3284 = vand.u32 %v582, 4294901760
  %v3285 = vsub.f32 %v582, %v3284
  %v3286 = vand.u32 %v3285, 4294901760
  %3287 = vmatpush1.msra.mxu0 %v3286
  %3288 = vmatprep.subr.mxu0 0.0
  %v3289 = vand.u32 %v583, 4294901760
  %v3290 = vsub.f32 %v583, %v3289
  %v3291 = vand.u32 %v3290, 4294901760
  %3292 = vmatpush1.msra.mxu0 %v3291
  %3293 = vmatprep.subr.mxu0 0.0
  %v3294 = vand.u32 %v584, 4294901760
  %v3295 = vsub.f32 %v584, %v3294
  %v3296 = vand.u32 %v3295, 4294901760
  %3297 = vmatpush1.msra.mxu0 %v3296
  %3298 = vmatprep.subr.mxu0 0.0
  %v3299 = vand.u32 %v585, 4294901760
  %v3300 = vsub.f32 %v585, %v3299
  %v3301 = vand.u32 %v3300, 4294901760
  %3302 = vmatpush1.msra.mxu0 %v3301
  %3303 = vmatprep.subr.mxu0 0.0
  %3304 = vmatpush1.msra.mxu0 0.0
  %3305 = vmatprep.subr.mxu0 0.0
  %3306 = vmatpush1.msra.mxu0 0.0
  %3307 = vmatprep.subr.mxu0 0.0
  %3308 = vmatpush1.msra.mxu0 0.0
  %3309 = vmatprep.subr.mxu0 0.0
  %3310 = vmatpush1.msra.mxu0 0.0
  %3311 = vmatprep.subr.mxu0 0.0
  %3312 = vmatpush1.msra.mxu0 0.0
  %3313 = vmatprep.subr.mxu0 0.0
  %3314 = vmatpush1.msra.mxu0 0.0
  %3315 = vmatprep.subr.mxu0 0.0
  %3316 = vmatpush1.msra.mxu0 0.0
  %3317 = vmatprep.subr.mxu0 0.0
  %3318 = vmatpush1.msra.mxu0 0.0
  %3319 = vmatprep.subr.mxu0 0.0
  %3320 = vmatpush1.msra.mxu0 0.0
  %3321 = vmatprep.subr.mxu0 0.0
  %3322 = vmatpush1.msra.mxu0 0.0
  %3323 = vmatprep.subr.mxu0 0.0
  %3324 = vmatpush1.msra.mxu0 0.0
  %3325 = vmatprep.subr.mxu0 0.0
  %3326 = vmatpush1.msra.mxu0 0.0
  %3327 = vmatprep.subr.mxu0 0.0
  %3328 = vmatpush1.msra.mxu0 0.0
  %3329 = vmatprep.subr.mxu0 0.0
  %3330 = vmatpush1.msra.mxu0 0.0
  %3331 = vmatprep.subr.mxu0 0.0
  %3332 = vmatpush1.msra.mxu0 0.0
  %3333 = vmatprep.subr.mxu0 0.0
  %3334 = vmatpush1.msra.mxu0 0.0
  %3335 = vmatprep.subr.mxu0 0.0
  %3336 = vmatpush1.msra.mxu0 0.0
  %3337 = vmatprep.subr.mxu0 0.0
  %3338 = vmatpush1.msra.mxu0 0.0
  %3339 = vmatprep.subr.mxu0 0.0
  %3340 = vmatpush1.msra.mxu0 0.0
  %3341 = vmatprep.subr.mxu0 0.0
  %3342 = vmatpush1.msra.mxu0 0.0
  %3343 = vmatprep.mubr.f32.mxu0 0.0
  %v3344 = vand.u32 %v2099, 4294901760
  %3345 = vmatmul.mubr.f32.gmra.mrb[0].mxu0 %v3344
  %v3346 = vpop.f32.mrb[0].mxu0
  %v3347 = vadd.f32 %v3224, %v3346
  %v3348 = vpop.f32.mrb[0].mxu0
  %3349 = vmatprep.mubr.f32.mxu0 0.0
  %v3350 = vand.u32 %v2102, 4294901760
  %3351 = vmatmul.mubr.f32.gmra.mrb[0].mxu0 %v3350
  %v3352 = vpop.f32.mrb[0].mxu0
  %v3353 = vadd.f32 %v3232, %v3352
  %v3354 = vpop.f32.mrb[0].mxu0
  %3355 = vmatprep.mubr.f32.mxu0 0.0
  %v3356 = vand.u32 %v2105, 4294901760
  %3357 = vmatmul.mubr.f32.gmra.mrb[0].mxu0 %v3356
  %v3358 = vpop.f32.mrb[0].mxu0
  %v3359 = vadd.f32 %v3240, %v3358
  %v3360 = vpop.f32.mrb[0].mxu0
  %3361 = vdwg.mxu0
  %3362 = vmatprep.subr.mxu0 0.0
  %v3363 = vand.u32 %v574, 4294901760
  %3364 = vmatpush1.msra.mxu0 %v3363
  %3365 = vmatprep.subr.mxu0 0.0
  %v3366 = vand.u32 %v575, 4294901760
  %3367 = vmatpush1.msra.mxu0 %v3366
  %3368 = vmatprep.subr.mxu0 0.0
  %v3369 = vand.u32 %v576, 4294901760
  %3370 = vmatpush1.msra.mxu0 %v3369
  %3371 = vmatprep.subr.mxu0 0.0
  %v3372 = vand.u32 %v577, 4294901760
  %3373 = vmatpush1.msra.mxu0 %v3372
  %3374 = vmatprep.subr.mxu0 0.0
  %v3375 = vand.u32 %v578, 4294901760
  %3376 = vmatpush1.msra.mxu0 %v3375
  %3377 = vmatprep.subr.mxu0 0.0
  %v3378 = vand.u32 %v579, 4294901760
  %3379 = vmatpush1.msra.mxu0 %v3378
  %3380 = vmatprep.subr.mxu0 0.0
  %v3381 = vand.u32 %v580, 4294901760
  %3382 = vmatpush1.msra.mxu0 %v3381
  %3383 = vmatprep.subr.mxu0 0.0
  %v3384 = vand.u32 %v581, 4294901760
  %3385 = vmatpush1.msra.mxu0 %v3384
  %3386 = vmatprep.subr.mxu0 0.0
  %v3387 = vand.u32 %v582, 4294901760
  %3388 = vmatpush1.msra.mxu0 %v3387
  %3389 = vmatprep.subr.mxu0 0.0
  %v3390 = vand.u32 %v583, 4294901760
  %3391 = vmatpush1.msra.mxu0 %v3390
  %3392 = vmatprep.subr.mxu0 0.0
  %v3393 = vand.u32 %v584, 4294901760
  %3394 = vmatpush1.msra.mxu0 %v3393
  %3395 = vmatprep.subr.mxu0 0.0
  %v3396 = vand.u32 %v585, 4294901760
  %3397 = vmatpush1.msra.mxu0 %v3396
  %3398 = vmatprep.subr.mxu0 0.0
  %3399 = vmatpush1.msra.mxu0 0.0
  %3400 = vmatprep.subr.mxu0 0.0
  %3401 = vmatpush1.msra.mxu0 0.0
  %3402 = vmatprep.subr.mxu0 0.0
  %3403 = vmatpush1.msra.mxu0 0.0
  %3404 = vmatprep.subr.mxu0 0.0
  %3405 = vmatpush1.msra.mxu0 0.0
  %3406 = vmatprep.subr.mxu0 0.0
  %3407 = vmatpush1.msra.mxu0 0.0
  %3408 = vmatprep.subr.mxu0 0.0
  %3409 = vmatpush1.msra.mxu0 0.0
  %3410 = vmatprep.subr.mxu0 0.0
  %3411 = vmatpush1.msra.mxu0 0.0
  %3412 = vmatprep.subr.mxu0 0.0
  %3413 = vmatpush1.msra.mxu0 0.0
  %3414 = vmatprep.subr.mxu0 0.0
  %3415 = vmatpush1.msra.mxu0 0.0
  %3416 = vmatprep.subr.mxu0 0.0
  %3417 = vmatpush1.msra.mxu0 0.0
  %3418 = vmatprep.subr.mxu0 0.0
  %3419 = vmatpush1.msra.mxu0 0.0
  %3420 = vmatprep.subr.mxu0 0.0
  %3421 = vmatpush1.msra.mxu0 0.0
  %3422 = vmatprep.subr.mxu0 0.0
  %3423 = vmatpush1.msra.mxu0 0.0
  %3424 = vmatprep.subr.mxu0 0.0
  %3425 = vmatpush1.msra.mxu0 0.0
  %3426 = vmatprep.subr.mxu0 0.0
  %3427 = vmatpush1.msra.mxu0 0.0
  %3428 = vmatprep.subr.mxu0 0.0
  %3429 = vmatpush1.msra.mxu0 0.0
  %3430 = vmatprep.subr.mxu0 0.0
  %3431 = vmatpush1.msra.mxu0 0.0
  %3432 = vmatprep.subr.mxu0 0.0
  %3433 = vmatpush1.msra.mxu0 0.0
  %3434 = vmatprep.subr.mxu0 0.0
  %3435 = vmatpush1.msra.mxu0 0.0
  %3436 = vmatprep.subr.mxu0 0.0
  %3437 = vmatpush1.msra.mxu0 0.0
  %3438 = vmatprep.mubr.f32.mxu0 0.0
  %v3439 = vand.u32 %v2099, 4294901760
  %3440 = vmatmul.mubr.f32.gmra.mrb[0].mxu0 %v3439
  %v3441 = vpop.f32.mrb[0].mxu0
  %v3442 = vadd.f32 %v3347, %v3441
  %v3443 = vpop.f32.mrb[0].mxu0
  %3444 = vmatprep.mubr.f32.mxu0 0.0
  %v3445 = vand.u32 %v2102, 4294901760
  %3446 = vmatmul.mubr.f32.gmra.mrb[0].mxu0 %v3445
  %v3447 = vpop.f32.mrb[0].mxu0
  %v3448 = vadd.f32 %v3353, %v3447
  %v3449 = vpop.f32.mrb[0].mxu0
  %3450 = vmatprep.mubr.f32.mxu0 0.0
  %v3451 = vand.u32 %v2105, 4294901760
  %3452 = vmatmul.mubr.f32.gmra.mrb[0].mxu0 %v3451
  %v3453 = vpop.f32.mrb[0].mxu0
  %v3454 = vadd.f32 %v3359, %v3453
  %v3455 = vpop.f32.mrb[0].mxu0
  %3456 = vdwg.mxu0
  %v3457 = vrcp.pop %v3442
  %v3458 = vmul.f32 %v2767, %v3457
  %v3459 = vrcp.pop %v3448
  %v3460 = vmul.f32 %v2773, %v3459
  %v3461 = vrcp.pop %v3454
  %v3462 = vmul.f32 %v2779, %v3461
  %v3463 = vld [vmem:[%s1 + $0x100] sm:$0xff]
  %v3464 = vld [vmem:[%s1 + $0x108] sm:$0xff]
  %v3465 = vld [vmem:[%s1 + $0x110] sm:$0xff]
  %v3466 = vld [vmem:[%s1 + $0x118] sm:$0xff]
  %v3467 = vld [vmem:[%s1 + $0x188] sm:$0x1]
  %v3468 = vlaneseq
  %v3469 = vshrl.u32 %v3468, 7
  %v3470 = vsub.s32 0, %v3469
  %v3471 = vrot.slane %v3467, %v3470
  %v3473 = vsel %vm598, %v3458, 0
  %v3476 = vsel %vm598, %v3460, 0
  %v3479 = vsel %vm598, %v3462, 0
  %3481 = vmatprep.subr.mxu0 0.0
  %v3482 = vand.u32 %v3463, 4294901760
  %3483 = vmatpush1.msra.mxu0 %v3482
  %3484 = vmatprep.subr.mxu0 0.0
  %v3485 = vand.u32 %v3464, 4294901760
  %3486 = vmatpush1.msra.mxu0 %v3485
  %3487 = vmatprep.subr.mxu0 0.0
  %v3488 = vand.u32 %v3465, 4294901760
  %3489 = vmatpush1.msra.mxu0 %v3488
  %3490 = vmatprep.subr.mxu0 0.0
  %v3491 = vand.u32 %v3466, 4294901760
  %3492 = vmatpush1.msra.mxu0 %v3491
  %3493 = vmatprep.subr.mxu0 0.0
  %3494 = vmatpush1.msra.mxu0 0.0
  %3495 = vmatprep.subr.mxu0 0.0
  %3496 = vmatpush1.msra.mxu0 0.0
  %3497 = vmatprep.subr.mxu0 0.0
  %3498 = vmatpush1.msra.mxu0 0.0
  %3499 = vmatprep.subr.mxu0 0.0
  %3500 = vmatpush1.msra.mxu0 0.0
  %3501 = vmatprep.subr.mxu0 0.0
  %3502 = vmatpush1.msra.mxu0 0.0
  %3503 = vmatprep.subr.mxu0 0.0
  %3504 = vmatpush1.msra.mxu0 0.0
  %3505 = vmatprep.subr.mxu0 0.0
  %3506 = vmatpush1.msra.mxu0 0.0
  %3507 = vmatprep.subr.mxu0 0.0
  %3508 = vmatpush1.msra.mxu0 0.0
  %3509 = vmatprep.subr.mxu0 0.0
  %3510 = vmatpush1.msra.mxu0 0.0
  %3511 = vmatprep.subr.mxu0 0.0
  %3512 = vmatpush1.msra.mxu0 0.0
  %3513 = vmatprep.subr.mxu0 0.0
  %3514 = vmatpush1.msra.mxu0 0.0
  %3515 = vmatprep.subr.mxu0 0.0
  %3516 = vmatpush1.msra.mxu0 0.0
  %3517 = vmatprep.subr.mxu0 0.0
  %3518 = vmatpush1.msra.mxu0 0.0
  %3519 = vmatprep.subr.mxu0 0.0
  %3520 = vmatpush1.msra.mxu0 0.0
  %3521 = vmatprep.subr.mxu0 0.0
  %3522 = vmatpush1.msra.mxu0 0.0
  %3523 = vmatprep.subr.mxu0 0.0
  %3524 = vmatpush1.msra.mxu0 0.0
  %3525 = vmatprep.subr.mxu0 0.0
  %3526 = vmatpush1.msra.mxu0 0.0
  %3527 = vmatprep.subr.mxu0 0.0
  %3528 = vmatpush1.msra.mxu0 0.0
  %3529 = vmatprep.subr.mxu0 0.0
  %3530 = vmatpush1.msra.mxu0 0.0
  %3531 = vmatprep.subr.mxu0 0.0
  %3532 = vmatpush1.msra.mxu0 0.0
  %3533 = vmatprep.subr.mxu0 0.0
  %3534 = vmatpush1.msra.mxu0 0.0
  %3535 = vmatprep.subr.mxu0 0.0
  %3536 = vmatpush1.msra.mxu0 0.0
  %3537 = vmatprep.subr.mxu0 0.0
  %3538 = vmatpush1.msra.mxu0 0.0
  %3539 = vmatprep.subr.mxu0 0.0
  %3540 = vmatpush1.msra.mxu0 0.0
  %3541 = vmatprep.subr.mxu0 0.0
  %3542 = vmatpush1.msra.mxu0 0.0
  %3543 = vmatprep.subr.mxu0 0.0
  %3544 = vmatpush1.msra.mxu0 0.0
  %3545 = vmatprep.subr.mxu0 0.0
  %3546 = vmatpush1.msra.mxu0 0.0
  %3547 = vmatprep.subr.mxu0 0.0
  %3548 = vmatpush1.msra.mxu0 0.0
  %3549 = vmatprep.mubr.f32.mxu0 0.0
  %v3550 = vand.u32 %v3473, 4294901760
  %v3551 = vsub.f32 %v3473, %v3550
  %v3552 = vand.u32 %v3551, 4294901760
  %v3553 = vsub.f32 %v3551, %v3552
  %v3554 = vand.u32 %v3553, 4294901760
  %3555 = vmatmul.mubr.f32.gmra.mrb[0].mxu0 %v3554
  %v3556 = vpop.f32.mrb[0].mxu0
  %v3557 = vadd.f32 %v3471, %v3556
  %v3558 = vpop.f32.mrb[0].mxu0
  %3559 = vmatprep.mubr.f32.mxu0 0.0
  %v3560 = vand.u32 %v3476, 4294901760
  %v3561 = vsub.f32 %v3476, %v3560
  %v3562 = vand.u32 %v3561, 4294901760
  %v3563 = vsub.f32 %v3561, %v3562
  %v3564 = vand.u32 %v3563, 4294901760
  %3565 = vmatmul.mubr.f32.gmra.mrb[0].mxu0 %v3564
  %v3566 = vpop.f32.mrb[0].mxu0
  %v3567 = vadd.f32 %v3471, %v3566
  %v3568 = vpop.f32.mrb[0].mxu0
  %3569 = vmatprep.mubr.f32.mxu0 0.0
  %v3570 = vand.u32 %v3479, 4294901760
  %v3571 = vsub.f32 %v3479, %v3570
  %v3572 = vand.u32 %v3571, 4294901760
  %v3573 = vsub.f32 %v3571, %v3572
  %v3574 = vand.u32 %v3573, 4294901760
  %3575 = vmatmul.mubr.f32.gmra.mrb[0].mxu0 %v3574
  %v3576 = vpop.f32.mrb[0].mxu0
  %v3577 = vadd.f32 %v3471, %v3576
  %v3578 = vpop.f32.mrb[0].mxu0
  %3579 = vdwg.mxu0
  %3580 = vmatprep.subr.mxu0 0.0
  %v3581 = vand.u32 %v3463, 4294901760
  %v3582 = vsub.f32 %v3463, %v3581
  %v3583 = vand.u32 %v3582, 4294901760
  %v3584 = vsub.f32 %v3582, %v3583
  %v3585 = vand.u32 %v3584, 4294901760
  %3586 = vmatpush1.msra.mxu0 %v3585
  %3587 = vmatprep.subr.mxu0 0.0
  %v3588 = vand.u32 %v3464, 4294901760
  %v3589 = vsub.f32 %v3464, %v3588
  %v3590 = vand.u32 %v3589, 4294901760
  %v3591 = vsub.f32 %v3589, %v3590
  %v3592 = vand.u32 %v3591, 4294901760
  %3593 = vmatpush1.msra.mxu0 %v3592
  %3594 = vmatprep.subr.mxu0 0.0
  %v3595 = vand.u32 %v3465, 4294901760
  %v3596 = vsub.f32 %v3465, %v3595
  %v3597 = vand.u32 %v3596, 4294901760
  %v3598 = vsub.f32 %v3596, %v3597
  %v3599 = vand.u32 %v3598, 4294901760
  %3600 = vmatpush1.msra.mxu0 %v3599
  %3601 = vmatprep.subr.mxu0 0.0
  %v3602 = vand.u32 %v3466, 4294901760
  %v3603 = vsub.f32 %v3466, %v3602
  %v3604 = vand.u32 %v3603, 4294901760
  %v3605 = vsub.f32 %v3603, %v3604
  %v3606 = vand.u32 %v3605, 4294901760
  %3607 = vmatpush1.msra.mxu0 %v3606
  %3608 = vmatprep.subr.mxu0 0.0
  %3609 = vmatpush1.msra.mxu0 0.0
  %3610 = vmatprep.subr.mxu0 0.0
  %3611 = vmatpush1.msra.mxu0 0.0
  %3612 = vmatprep.subr.mxu0 0.0
  %3613 = vmatpush1.msra.mxu0 0.0
  %3614 = vmatprep.subr.mxu0 0.0
  %3615 = vmatpush1.msra.mxu0 0.0
  %3616 = vmatprep.subr.mxu0 0.0
  %3617 = vmatpush1.msra.mxu0 0.0
  %3618 = vmatprep.subr.mxu0 0.0
  %3619 = vmatpush1.msra.mxu0 0.0
  %3620 = vmatprep.subr.mxu0 0.0
  %3621 = vmatpush1.msra.mxu0 0.0
  %3622 = vmatprep.subr.mxu0 0.0
  %3623 = vmatpush1.msra.mxu0 0.0
  %3624 = vmatprep.subr.mxu0 0.0
  %3625 = vmatpush1.msra.mxu0 0.0
  %3626 = vmatprep.subr.mxu0 0.0
  %3627 = vmatpush1.msra.mxu0 0.0
  %3628 = vmatprep.subr.mxu0 0.0
  %3629 = vmatpush1.msra.mxu0 0.0
  %3630 = vmatprep.subr.mxu0 0.0
  %3631 = vmatpush1.msra.mxu0 0.0
  %3632 = vmatprep.subr.mxu0 0.0
  %3633 = vmatpush1.msra.mxu0 0.0
  %3634 = vmatprep.subr.mxu0 0.0
  %3635 = vmatpush1.msra.mxu0 0.0
  %3636 = vmatprep.subr.mxu0 0.0
  %3637 = vmatpush1.msra.mxu0 0.0
  %3638 = vmatprep.subr.mxu0 0.0
  %3639 = vmatpush1.msra.mxu0 0.0
  %3640 = vmatprep.subr.mxu0 0.0
  %3641 = vmatpush1.msra.mxu0 0.0
  %3642 = vmatprep.subr.mxu0 0.0
  %3643 = vmatpush1.msra.mxu0 0.0
  %3644 = vmatprep.subr.mxu0 0.0
  %3645 = vmatpush1.msra.mxu0 0.0
  %3646 = vmatprep.subr.mxu0 0.0
  %3647 = vmatpush1.msra.mxu0 0.0
  %3648 = vmatprep.subr.mxu0 0.0
  %3649 = vmatpush1.msra.mxu0 0.0
  %3650 = vmatprep.subr.mxu0 0.0
  %3651 = vmatpush1.msra.mxu0 0.0
  %3652 = vmatprep.subr.mxu0 0.0
  %3653 = vmatpush1.msra.mxu0 0.0
  %3654 = vmatprep.subr.mxu0 0.0
  %3655 = vmatpush1.msra.mxu0 0.0
  %3656 = vmatprep.subr.mxu0 0.0
  %3657 = vmatpush1.msra.mxu0 0.0
  %3658 = vmatprep.subr.mxu0 0.0
  %3659 = vmatpush1.msra.mxu0 0.0
  %3660 = vmatprep.subr.mxu0 0.0
  %3661 = vmatpush1.msra.mxu0 0.0
  %3662 = vmatprep.subr.mxu0 0.0
  %3663 = vmatpush1.msra.mxu0 0.0
  %3664 = vmatprep.mubr.f32.mxu0 0.0
  %v3665 = vand.u32 %v3473, 4294901760
  %3666 = vmatmul.mubr.f32.gmra.mrb[0].mxu0 %v3665
  %v3667 = vpop.f32.mrb[0].mxu0
  %v3668 = vadd.f32 %v3557, %v3667
  %v3669 = vpop.f32.mrb[0].mxu0
  %3670 = vmatprep.mubr.f32.mxu0 0.0
  %v3671 = vand.u32 %v3476, 4294901760
  %3672 = vmatmul.mubr.f32.gmra.mrb[0].mxu0 %v3671
  %v3673 = vpop.f32.mrb[0].mxu0
  %v3674 = vadd.f32 %v3567, %v3673
  %v3675 = vpop.f32.mrb[0].mxu0
  %3676 = vmatprep.mubr.f32.mxu0 0.0
  %v3677 = vand.u32 %v3479, 4294901760
  %3678 = vmatmul.mubr.f32.gmra.mrb[0].mxu0 %v3677
  %v3679 = vpop.f32.mrb[0].mxu0
  %v3680 = vadd.f32 %v3577, %v3679
  %v3681 = vpop.f32.mrb[0].mxu0
  %3682 = vdwg.mxu0
  %3683 = vmatprep.subr.mxu0 0.0
  %v3684 = vand.u32 %v3463, 4294901760
  %v3685 = vsub.f32 %v3463, %v3684
  %3686 = vmatpush1.msra.mxu0 %v3685
  %3687 = vmatprep.subr.mxu0 0.0
  %v3688 = vand.u32 %v3464, 4294901760
  %v3689 = vsub.f32 %v3464, %v3688
  %3690 = vmatpush1.msra.mxu0 %v3689
  %3691 = vmatprep.subr.mxu0 0.0
  %v3692 = vand.u32 %v3465, 4294901760
  %v3693 = vsub.f32 %v3465, %v3692
  %3694 = vmatpush1.msra.mxu0 %v3693
  %3695 = vmatprep.subr.mxu0 0.0
  %v3696 = vand.u32 %v3466, 4294901760
  %v3697 = vsub.f32 %v3466, %v3696
  %3698 = vmatpush1.msra.mxu0 %v3697
  %3699 = vmatprep.subr.mxu0 0.0
  %3700 = vmatpush1.msra.mxu0 0.0
  %3701 = vmatprep.subr.mxu0 0.0
  %3702 = vmatpush1.msra.mxu0 0.0
  %3703 = vmatprep.subr.mxu0 0.0
  %3704 = vmatpush1.msra.mxu0 0.0
  %3705 = vmatprep.subr.mxu0 0.0
  %3706 = vmatpush1.msra.mxu0 0.0
  %3707 = vmatprep.subr.mxu0 0.0
  %3708 = vmatpush1.msra.mxu0 0.0
  %3709 = vmatprep.subr.mxu0 0.0
  %3710 = vmatpush1.msra.mxu0 0.0
  %3711 = vmatprep.subr.mxu0 0.0
  %3712 = vmatpush1.msra.mxu0 0.0
  %3713 = vmatprep.subr.mxu0 0.0
  %3714 = vmatpush1.msra.mxu0 0.0
  %3715 = vmatprep.subr.mxu0 0.0
  %3716 = vmatpush1.msra.mxu0 0.0
  %3717 = vmatprep.subr.mxu0 0.0
  %3718 = vmatpush1.msra.mxu0 0.0
  %3719 = vmatprep.subr.mxu0 0.0
  %3720 = vmatpush1.msra.mxu0 0.0
  %3721 = vmatprep.subr.mxu0 0.0
  %3722 = vmatpush1.msra.mxu0 0.0
  %3723 = vmatprep.subr.mxu0 0.0
  %3724 = vmatpush1.msra.mxu0 0.0
  %3725 = vmatprep.subr.mxu0 0.0
  %3726 = vmatpush1.msra.mxu0 0.0
  %3727 = vmatprep.subr.mxu0 0.0
  %3728 = vmatpush1.msra.mxu0 0.0
  %3729 = vmatprep.subr.mxu0 0.0
  %3730 = vmatpush1.msra.mxu0 0.0
  %3731 = vmatprep.subr.mxu0 0.0
  %3732 = vmatpush1.msra.mxu0 0.0
  %3733 = vmatprep.subr.mxu0 0.0
  %3734 = vmatpush1.msra.mxu0 0.0
  %3735 = vmatprep.subr.mxu0 0.0
  %3736 = vmatpush1.msra.mxu0 0.0
  %3737 = vmatprep.subr.mxu0 0.0
  %3738 = vmatpush1.msra.mxu0 0.0
  %3739 = vmatprep.subr.mxu0 0.0
  %3740 = vmatpush1.msra.mxu0 0.0
  %3741 = vmatprep.subr.mxu0 0.0
  %3742 = vmatpush1.msra.mxu0 0.0
  %3743 = vmatprep.subr.mxu0 0.0
  %3744 = vmatpush1.msra.mxu0 0.0
  %3745 = vmatprep.subr.mxu0 0.0
  %3746 = vmatpush1.msra.mxu0 0.0
  %3747 = vmatprep.subr.mxu0 0.0
  %3748 = vmatpush1.msra.mxu0 0.0
  %3749 = vmatprep.subr.mxu0 0.0
  %3750 = vmatpush1.msra.mxu0 0.0
  %3751 = vmatprep.subr.mxu0 0.0
  %3752 = vmatpush1.msra.mxu0 0.0
  %3753 = vmatprep.subr.mxu0 0.0
  %3754 = vmatpush1.msra.mxu0 0.0
  %3755 = vmatprep.mubr.f32.mxu0 0.0
  %v3756 = vand.u32 %v3473, 4294901760
  %v3757 = vsub.f32 %v3473, %v3756
  %3758 = vmatmul.mubr.f32.gmra.mrb[0].mxu0 %v3757
  %v3759 = vpop.f32.mrb[0].mxu0
  %v3760 = vadd.f32 %v3668, %v3759
  %v3761 = vpop.f32.mrb[0].mxu0
  %3762 = vmatprep.mubr.f32.mxu0 0.0
  %v3763 = vand.u32 %v3476, 4294901760
  %v3764 = vsub.f32 %v3476, %v3763
  %3765 = vmatmul.mubr.f32.gmra.mrb[0].mxu0 %v3764
  %v3766 = vpop.f32.mrb[0].mxu0
  %v3767 = vadd.f32 %v3674, %v3766
  %v3768 = vpop.f32.mrb[0].mxu0
  %3769 = vmatprep.mubr.f32.mxu0 0.0
  %v3770 = vand.u32 %v3479, 4294901760
  %v3771 = vsub.f32 %v3479, %v3770
  %3772 = vmatmul.mubr.f32.gmra.mrb[0].mxu0 %v3771
  %v3773 = vpop.f32.mrb[0].mxu0
  %v3774 = vadd.f32 %v3680, %v3773
  %v3775 = vpop.f32.mrb[0].mxu0
  %3776 = vdwg.mxu0
  %3777 = vmatprep.subr.mxu0 0.0
  %v3778 = vand.u32 %v3463, 4294901760
  %3779 = vmatpush1.msra.mxu0 %v3778
  %3780 = vmatprep.subr.mxu0 0.0
  %v3781 = vand.u32 %v3464, 4294901760
  %3782 = vmatpush1.msra.mxu0 %v3781
  %3783 = vmatprep.subr.mxu0 0.0
  %v3784 = vand.u32 %v3465, 4294901760
  %3785 = vmatpush1.msra.mxu0 %v3784
  %3786 = vmatprep.subr.mxu0 0.0
  %v3787 = vand.u32 %v3466, 4294901760
  %3788 = vmatpush1.msra.mxu0 %v3787
  %3789 = vmatprep.subr.mxu0 0.0
  %3790 = vmatpush1.msra.mxu0 0.0
  %3791 = vmatprep.subr.mxu0 0.0
  %3792 = vmatpush1.msra.mxu0 0.0
  %3793 = vmatprep.subr.mxu0 0.0
  %3794 = vmatpush1.msra.mxu0 0.0
  %3795 = vmatprep.subr.mxu0 0.0
  %3796 = vmatpush1.msra.mxu0 0.0
  %3797 = vmatprep.subr.mxu0 0.0
  %3798 = vmatpush1.msra.mxu0 0.0
  %3799 = vmatprep.subr.mxu0 0.0
  %3800 = vmatpush1.msra.mxu0 0.0
  %3801 = vmatprep.subr.mxu0 0.0
  %3802 = vmatpush1.msra.mxu0 0.0
  %3803 = vmatprep.subr.mxu0 0.0
  %3804 = vmatpush1.msra.mxu0 0.0
  %3805 = vmatprep.subr.mxu0 0.0
  %3806 = vmatpush1.msra.mxu0 0.0
  %3807 = vmatprep.subr.mxu0 0.0
  %3808 = vmatpush1.msra.mxu0 0.0
  %3809 = vmatprep.subr.mxu0 0.0
  %3810 = vmatpush1.msra.mxu0 0.0
  %3811 = vmatprep.subr.mxu0 0.0
  %3812 = vmatpush1.msra.mxu0 0.0
  %3813 = vmatprep.subr.mxu0 0.0
  %3814 = vmatpush1.msra.mxu0 0.0
  %3815 = vmatprep.subr.mxu0 0.0
  %3816 = vmatpush1.msra.mxu0 0.0
  %3817 = vmatprep.subr.mxu0 0.0
  %3818 = vmatpush1.msra.mxu0 0.0
  %3819 = vmatprep.subr.mxu0 0.0
  %3820 = vmatpush1.msra.mxu0 0.0
  %3821 = vmatprep.subr.mxu0 0.0
  %3822 = vmatpush1.msra.mxu0 0.0
  %3823 = vmatprep.subr.mxu0 0.0
  %3824 = vmatpush1.msra.mxu0 0.0
  %3825 = vmatprep.subr.mxu0 0.0
  %3826 = vmatpush1.msra.mxu0 0.0
  %3827 = vmatprep.subr.mxu0 0.0
  %3828 = vmatpush1.msra.mxu0 0.0
  %3829 = vmatprep.subr.mxu0 0.0
  %3830 = vmatpush1.msra.mxu0 0.0
  %3831 = vmatprep.subr.mxu0 0.0
  %3832 = vmatpush1.msra.mxu0 0.0
  %3833 = vmatprep.subr.mxu0 0.0
  %3834 = vmatpush1.msra.mxu0 0.0
  %3835 = vmatprep.subr.mxu0 0.0
  %3836 = vmatpush1.msra.mxu0 0.0
  %3837 = vmatprep.subr.mxu0 0.0
  %3838 = vmatpush1.msra.mxu0 0.0
  %3839 = vmatprep.subr.mxu0 0.0
  %3840 = vmatpush1.msra.mxu0 0.0
  %3841 = vmatprep.subr.mxu0 0.0
  %3842 = vmatpush1.msra.mxu0 0.0
  %3843 = vmatprep.subr.mxu0 0.0
  %3844 = vmatpush1.msra.mxu0 0.0
  %3845 = vmatprep.mubr.f32.mxu0 0.0
  %v3846 = vand.u32 %v3473, 4294901760
  %v3847 = vsub.f32 %v3473, %v3846
  %v3848 = vand.u32 %v3847, 4294901760
  %3849 = vmatmul.mubr.f32.gmra.mrb[0].mxu0 %v3848
  %v3850 = vpop.f32.mrb[0].mxu0
  %v3851 = vadd.f32 %v3760, %v3850
  %v3852 = vpop.f32.mrb[0].mxu0
  %3853 = vmatprep.mubr.f32.mxu0 0.0
  %v3854 = vand.u32 %v3476, 4294901760
  %v3855 = vsub.f32 %v3476, %v3854
  %v3856 = vand.u32 %v3855, 4294901760
  %3857 = vmatmul.mubr.f32.gmra.mrb[0].mxu0 %v3856
  %v3858 = vpop.f32.mrb[0].mxu0
  %v3859 = vadd.f32 %v3767, %v3858
  %v3860 = vpop.f32.mrb[0].mxu0
  %3861 = vmatprep.mubr.f32.mxu0 0.0
  %v3862 = vand.u32 %v3479, 4294901760
  %v3863 = vsub.f32 %v3479, %v3862
  %v3864 = vand.u32 %v3863, 4294901760
  %3865 = vmatmul.mubr.f32.gmra.mrb[0].mxu0 %v3864
  %v3866 = vpop.f32.mrb[0].mxu0
  %v3867 = vadd.f32 %v3774, %v3866
  %v3868 = vpop.f32.mrb[0].mxu0
  %3869 = vdwg.mxu0
  %3870 = vmatprep.subr.mxu0 0.0
  %v3871 = vand.u32 %v3463, 4294901760
  %v3872 = vsub.f32 %v3463, %v3871
  %v3873 = vand.u32 %v3872, 4294901760
  %3874 = vmatpush1.msra.mxu0 %v3873
  %3875 = vmatprep.subr.mxu0 0.0
  %v3876 = vand.u32 %v3464, 4294901760
  %v3877 = vsub.f32 %v3464, %v3876
  %v3878 = vand.u32 %v3877, 4294901760
  %3879 = vmatpush1.msra.mxu0 %v3878
  %3880 = vmatprep.subr.mxu0 0.0
  %v3881 = vand.u32 %v3465, 4294901760
  %v3882 = vsub.f32 %v3465, %v3881
  %v3883 = vand.u32 %v3882, 4294901760
  %3884 = vmatpush1.msra.mxu0 %v3883
  %3885 = vmatprep.subr.mxu0 0.0
  %v3886 = vand.u32 %v3466, 4294901760
  %v3887 = vsub.f32 %v3466, %v3886
  %v3888 = vand.u32 %v3887, 4294901760
  %3889 = vmatpush1.msra.mxu0 %v3888
  %3890 = vmatprep.subr.mxu0 0.0
  %3891 = vmatpush1.msra.mxu0 0.0
  %3892 = vmatprep.subr.mxu0 0.0
  %3893 = vmatpush1.msra.mxu0 0.0
  %3894 = vmatprep.subr.mxu0 0.0
  %3895 = vmatpush1.msra.mxu0 0.0
  %3896 = vmatprep.subr.mxu0 0.0
  %3897 = vmatpush1.msra.mxu0 0.0
  %3898 = vmatprep.subr.mxu0 0.0
  %3899 = vmatpush1.msra.mxu0 0.0
  %3900 = vmatprep.subr.mxu0 0.0
  %3901 = vmatpush1.msra.mxu0 0.0
  %3902 = vmatprep.subr.mxu0 0.0
  %3903 = vmatpush1.msra.mxu0 0.0
  %3904 = vmatprep.subr.mxu0 0.0
  %3905 = vmatpush1.msra.mxu0 0.0
  %3906 = vmatprep.subr.mxu0 0.0
  %3907 = vmatpush1.msra.mxu0 0.0
  %3908 = vmatprep.subr.mxu0 0.0
  %3909 = vmatpush1.msra.mxu0 0.0
  %3910 = vmatprep.subr.mxu0 0.0
  %3911 = vmatpush1.msra.mxu0 0.0
  %3912 = vmatprep.subr.mxu0 0.0
  %3913 = vmatpush1.msra.mxu0 0.0
  %3914 = vmatprep.subr.mxu0 0.0
  %3915 = vmatpush1.msra.mxu0 0.0
  %3916 = vmatprep.subr.mxu0 0.0
  %3917 = vmatpush1.msra.mxu0 0.0
  %3918 = vmatprep.subr.mxu0 0.0
  %3919 = vmatpush1.msra.mxu0 0.0
  %3920 = vmatprep.subr.mxu0 0.0
  %3921 = vmatpush1.msra.mxu0 0.0
  %3922 = vmatprep.subr.mxu0 0.0
  %3923 = vmatpush1.msra.mxu0 0.0
  %3924 = vmatprep.subr.mxu0 0.0
  %3925 = vmatpush1.msra.mxu0 0.0
  %3926 = vmatprep.subr.mxu0 0.0
  %3927 = vmatpush1.msra.mxu0 0.0
  %3928 = vmatprep.subr.mxu0 0.0
  %3929 = vmatpush1.msra.mxu0 0.0
  %3930 = vmatprep.subr.mxu0 0.0
  %3931 = vmatpush1.msra.mxu0 0.0
  %3932 = vmatprep.subr.mxu0 0.0
  %3933 = vmatpush1.msra.mxu0 0.0
  %3934 = vmatprep.subr.mxu0 0.0
  %3935 = vmatpush1.msra.mxu0 0.0
  %3936 = vmatprep.subr.mxu0 0.0
  %3937 = vmatpush1.msra.mxu0 0.0
  %3938 = vmatprep.subr.mxu0 0.0
  %3939 = vmatpush1.msra.mxu0 0.0
  %3940 = vmatprep.subr.mxu0 0.0
  %3941 = vmatpush1.msra.mxu0 0.0
  %3942 = vmatprep.subr.mxu0 0.0
  %3943 = vmatpush1.msra.mxu0 0.0
  %3944 = vmatprep.subr.mxu0 0.0
  %3945 = vmatpush1.msra.mxu0 0.0
  %3946 = vmatprep.mubr.f32.mxu0 0.0
  %v3947 = vand.u32 %v3473, 4294901760
  %3948 = vmatmul.mubr.f32.gmra.mrb[0].mxu0 %v3947
  %v3949 = vpop.f32.mrb[0].mxu0
  %v3950 = vadd.f32 %v3851, %v3949
  %v3951 = vpop.f32.mrb[0].mxu0
  %3952 = vmatprep.mubr.f32.mxu0 0.0
  %v3953 = vand.u32 %v3476, 4294901760
  %3954 = vmatmul.mubr.f32.gmra.mrb[0].mxu0 %v3953
  %v3955 = vpop.f32.mrb[0].mxu0
  %v3956 = vadd.f32 %v3859, %v3955
  %v3957 = vpop.f32.mrb[0].mxu0
  %3958 = vmatprep.mubr.f32.mxu0 0.0
  %v3959 = vand.u32 %v3479, 4294901760
  %3960 = vmatmul.mubr.f32.gmra.mrb[0].mxu0 %v3959
  %v3961 = vpop.f32.mrb[0].mxu0
  %v3962 = vadd.f32 %v3867, %v3961
  %v3963 = vpop.f32.mrb[0].mxu0
  %3964 = vdwg.mxu0
  %3965 = vmatprep.subr.mxu0 0.0
  %v3966 = vand.u32 %v3463, 4294901760
  %3967 = vmatpush1.msra.mxu0 %v3966
  %3968 = vmatprep.subr.mxu0 0.0
  %v3969 = vand.u32 %v3464, 4294901760
  %3970 = vmatpush1.msra.mxu0 %v3969
  %3971 = vmatprep.subr.mxu0 0.0
  %v3972 = vand.u32 %v3465, 4294901760
  %3973 = vmatpush1.msra.mxu0 %v3972
  %3974 = vmatprep.subr.mxu0 0.0
  %v3975 = vand.u32 %v3466, 4294901760
  %3976 = vmatpush1.msra.mxu0 %v3975
  %3977 = vmatprep.subr.mxu0 0.0
  %3978 = vmatpush1.msra.mxu0 0.0
  %3979 = vmatprep.subr.mxu0 0.0
  %3980 = vmatpush1.msra.mxu0 0.0
  %3981 = vmatprep.subr.mxu0 0.0
  %3982 = vmatpush1.msra.mxu0 0.0
  %3983 = vmatprep.subr.mxu0 0.0
  %3984 = vmatpush1.msra.mxu0 0.0
  %3985 = vmatprep.subr.mxu0 0.0
  %3986 = vmatpush1.msra.mxu0 0.0
  %3987 = vmatprep.subr.mxu0 0.0
  %3988 = vmatpush1.msra.mxu0 0.0
  %3989 = vmatprep.subr.mxu0 0.0
  %3990 = vmatpush1.msra.mxu0 0.0
  %3991 = vmatprep.subr.mxu0 0.0
  %3992 = vmatpush1.msra.mxu0 0.0
  %3993 = vmatprep.subr.mxu0 0.0
  %3994 = vmatpush1.msra.mxu0 0.0
  %3995 = vmatprep.subr.mxu0 0.0
  %3996 = vmatpush1.msra.mxu0 0.0
  %3997 = vmatprep.subr.mxu0 0.0
  %3998 = vmatpush1.msra.mxu0 0.0
  %3999 = vmatprep.subr.mxu0 0.0
  %4000 = vmatpush1.msra.mxu0 0.0
  %4001 = vmatprep.subr.mxu0 0.0
  %4002 = vmatpush1.msra.mxu0 0.0
  %4003 = vmatprep.subr.mxu0 0.0
  %4004 = vmatpush1.msra.mxu0 0.0
  %4005 = vmatprep.subr.mxu0 0.0
  %4006 = vmatpush1.msra.mxu0 0.0
  %4007 = vmatprep.subr.mxu0 0.0
  %4008 = vmatpush1.msra.mxu0 0.0
  %4009 = vmatprep.subr.mxu0 0.0
  %4010 = vmatpush1.msra.mxu0 0.0
  %4011 = vmatprep.subr.mxu0 0.0
  %4012 = vmatpush1.msra.mxu0 0.0
  %4013 = vmatprep.subr.mxu0 0.0
  %4014 = vmatpush1.msra.mxu0 0.0
  %4015 = vmatprep.subr.mxu0 0.0
  %4016 = vmatpush1.msra.mxu0 0.0
  %4017 = vmatprep.subr.mxu0 0.0
  %4018 = vmatpush1.msra.mxu0 0.0
  %4019 = vmatprep.subr.mxu0 0.0
  %4020 = vmatpush1.msra.mxu0 0.0
  %4021 = vmatprep.subr.mxu0 0.0
  %4022 = vmatpush1.msra.mxu0 0.0
  %4023 = vmatprep.subr.mxu0 0.0
  %4024 = vmatpush1.msra.mxu0 0.0
  %4025 = vmatprep.subr.mxu0 0.0
  %4026 = vmatpush1.msra.mxu0 0.0
  %4027 = vmatprep.subr.mxu0 0.0
  %4028 = vmatpush1.msra.mxu0 0.0
  %4029 = vmatprep.subr.mxu0 0.0
  %4030 = vmatpush1.msra.mxu0 0.0
  %4031 = vmatprep.subr.mxu0 0.0
  %4032 = vmatpush1.msra.mxu0 0.0
  %4033 = vmatprep.mubr.f32.mxu0 0.0
  %v4034 = vand.u32 %v3473, 4294901760
  %4035 = vmatmul.mubr.f32.gmra.mrb[0].mxu0 %v4034
  %v4036 = vpop.f32.mrb[0].mxu0
  %v4037 = vadd.f32 %v3950, %v4036
  %v4038 = vpop.f32.mrb[0].mxu0
  %4039 = vmatprep.mubr.f32.mxu0 0.0
  %v4040 = vand.u32 %v3476, 4294901760
  %4041 = vmatmul.mubr.f32.gmra.mrb[0].mxu0 %v4040
  %v4042 = vpop.f32.mrb[0].mxu0
  %v4043 = vadd.f32 %v3956, %v4042
  %v4044 = vpop.f32.mrb[0].mxu0
  %4045 = vmatprep.mubr.f32.mxu0 0.0
  %v4046 = vand.u32 %v3479, 4294901760
  %4047 = vmatmul.mubr.f32.gmra.mrb[0].mxu0 %v4046
  %v4048 = vpop.f32.mrb[0].mxu0
  %v4049 = vadd.f32 %v3962, %v4048
  %v4050 = vpop.f32.mrb[0].mxu0
  %4051 = vdwg.mxu0
  %v4052 = vadd.f32 %v559, %v4037
  %v4053 = vadd.f32 %v565, %v4043
  %v4054 = vadd.f32 %v571, %v4049
  %v4055 = vld [vmem:[%s1 + $0x190] sm:$0x1]
  %v4056 = vld [vmem:[%s1 + $0x198] sm:$0x1]
  %v4057 = vsel %vm598, %v4052, 0.0
  %4058 = vadd.xlane.f32.xlu0 %v4057
  %v4059 = vpop.xlane.xlu0 %4058
  %v4060 = vsel %vm598, %v4053, 0.0
  %4061 = vadd.xlane.f32.xlu0 %v4060
  %v4062 = vpop.xlane.xlu0 %4061
  %v4063 = vsel %vm598, %v4054, 0.0
  %4064 = vadd.xlane.f32.xlu0 %v4063
  %v4065 = vpop.xlane.xlu0 %4064
  %v4066 = vrcp.pop 32.0
  %v4067 = vmul.f32 %v4059, %v4066
  %v4068 = vmul.f32 %v4062, %v4066
  %v4069 = vmul.f32 %v4065, %v4066
  %v4070 = vsub.f32 %v4052, %v4067
  %v4071 = vsub.f32 %v4053, %v4068
  %v4072 = vsub.f32 %v4054, %v4069
  %v4073 = vmul.f32 %v4070, %v4070
  %v4074 = vmul.f32 %v4071, %v4071
  %v4075 = vmul.f32 %v4072, %v4072
  %v4076 = vsel %vm598, %v4073, 0.0
  %4077 = vadd.xlane.f32.xlu0 %v4076
  %v4078 = vpop.xlane.xlu0 %4077
  %v4079 = vsel %vm598, %v4074, 0.0
  %4080 = vadd.xlane.f32.xlu0 %v4079
  %v4081 = vpop.xlane.xlu0 %4080
  %v4082 = vsel %vm598, %v4075, 0.0
  %4083 = vadd.xlane.f32.xlu0 %v4082
  %v4084 = vpop.xlane.xlu0 %4083
  %v4085 = vmul.f32 %v4078, %v4066
  %v4086 = vmul.f32 %v4081, %v4066
  %v4087 = vmul.f32 %v4084, %v4066
  %v4088 = vadd.f32 %v4085, 1e-05
  %v4089 = vadd.f32 %v4086, 1e-05
  %v4090 = vadd.f32 %v4087, 1e-05
  %v4091 = vrsqrt.pop %v4088
  %v4092 = vrsqrt.pop %v4089
  %v4093 = vrsqrt.pop %v4090
  %v4094 = vmul.f32 %v4070, %v4091
  %v4095 = vmul.f32 %v4071, %v4092
  %v4096 = vmul.f32 %v4072, %v4093
  %v4097 = vlaneseq
  %v4098 = vshrl.u32 %v4097, 7
  %v4099 = vsub.s32 0, %v4098
  %v4100 = vrot.slane %v4055, %v4099
  %v4101 = vmul.f32 %v4094, %v4100
  %v4102 = vmul.f32 %v4095, %v4100
  %v4103 = vmul.f32 %v4096, %v4100
  %v4104 = vlaneseq
  %v4105 = vshrl.u32 %v4104, 7
  %v4106 = vsub.s32 0, %v4105
  %v4107 = vrot.slane %v4056, %v4106
  %v4108 = vadd.f32 %v4101, %v4107
  %v4109 = vadd.f32 %v4102, %v4107
  %v4110 = vadd.f32 %v4103, %v4107
  %v4111 = vld [vmem:[%s1 + $0x120] sm:$0xff]
  %v4112 = vld [vmem:[%s1 + $0x128] sm:$0xff]
  %v4113 = vld [vmem:[%s1 + $0x130] sm:$0xff]
  %v4114 = vld [vmem:[%s1 + $0x138] sm:$0xff]
  %v4115 = vld [vmem:[%s1 + $0x1a0] sm:$0x1]
  %v4116 = vlaneseq
  %v4117 = vshrl.u32 %v4116, 7
  %v4118 = vsub.s32 0, %v4117
  %v4119 = vrot.slane %v4115, %v4118
  %v4121 = vsel %vm598, %v4108, 0
  %v4124 = vsel %vm598, %v4109, 0
  %v4127 = vsel %vm598, %v4110, 0
  %4129 = vmatprep.subr.mxu0 0.0
  %v4130 = vand.u32 %v4111, 4294901760
  %4131 = vmatpush1.msra.mxu0 %v4130
  %4132 = vmatprep.subr.mxu0 0.0
  %v4133 = vand.u32 %v4112, 4294901760
  %4134 = vmatpush1.msra.mxu0 %v4133
  %4135 = vmatprep.subr.mxu0 0.0
  %v4136 = vand.u32 %v4113, 4294901760
  %4137 = vmatpush1.msra.mxu0 %v4136
  %4138 = vmatprep.subr.mxu0 0.0
  %v4139 = vand.u32 %v4114, 4294901760
  %4140 = vmatpush1.msra.mxu0 %v4139
  %4141 = vmatprep.subr.mxu0 0.0
  %4142 = vmatpush1.msra.mxu0 0.0
  %4143 = vmatprep.subr.mxu0 0.0
  %4144 = vmatpush1.msra.mxu0 0.0
  %4145 = vmatprep.subr.mxu0 0.0
  %4146 = vmatpush1.msra.mxu0 0.0
  %4147 = vmatprep.subr.mxu0 0.0
  %4148 = vmatpush1.msra.mxu0 0.0
  %4149 = vmatprep.subr.mxu0 0.0
  %4150 = vmatpush1.msra.mxu0 0.0
  %4151 = vmatprep.subr.mxu0 0.0
  %4152 = vmatpush1.msra.mxu0 0.0
  %4153 = vmatprep.subr.mxu0 0.0
  %4154 = vmatpush1.msra.mxu0 0.0
  %4155 = vmatprep.subr.mxu0 0.0
  %4156 = vmatpush1.msra.mxu0 0.0
  %4157 = vmatprep.subr.mxu0 0.0
  %4158 = vmatpush1.msra.mxu0 0.0
  %4159 = vmatprep.subr.mxu0 0.0
  %4160 = vmatpush1.msra.mxu0 0.0
  %4161 = vmatprep.subr.mxu0 0.0
  %4162 = vmatpush1.msra.mxu0 0.0
  %4163 = vmatprep.subr.mxu0 0.0
  %4164 = vmatpush1.msra.mxu0 0.0
  %4165 = vmatprep.subr.mxu0 0.0
  %4166 = vmatpush1.msra.mxu0 0.0
  %4167 = vmatprep.subr.mxu0 0.0
  %4168 = vmatpush1.msra.mxu0 0.0
  %4169 = vmatprep.subr.mxu0 0.0
  %4170 = vmatpush1.msra.mxu0 0.0
  %4171 = vmatprep.subr.mxu0 0.0
  %4172 = vmatpush1.msra.mxu0 0.0
  %4173 = vmatprep.subr.mxu0 0.0
  %4174 = vmatpush1.msra.mxu0 0.0
  %4175 = vmatprep.subr.mxu0 0.0
  %4176 = vmatpush1.msra.mxu0 0.0
  %4177 = vmatprep.subr.mxu0 0.0
  %4178 = vmatpush1.msra.mxu0 0.0
  %4179 = vmatprep.subr.mxu0 0.0
  %4180 = vmatpush1.msra.mxu0 0.0
  %4181 = vmatprep.subr.mxu0 0.0
  %4182 = vmatpush1.msra.mxu0 0.0
  %4183 = vmatprep.subr.mxu0 0.0
  %4184 = vmatpush1.msra.mxu0 0.0
  %4185 = vmatprep.subr.mxu0 0.0
  %4186 = vmatpush1.msra.mxu0 0.0
  %4187 = vmatprep.subr.mxu0 0.0
  %4188 = vmatpush1.msra.mxu0 0.0
  %4189 = vmatprep.subr.mxu0 0.0
  %4190 = vmatpush1.msra.mxu0 0.0
  %4191 = vmatprep.subr.mxu0 0.0
  %4192 = vmatpush1.msra.mxu0 0.0
  %4193 = vmatprep.subr.mxu0 0.0
  %4194 = vmatpush1.msra.mxu0 0.0
  %4195 = vmatprep.subr.mxu0 0.0
  %4196 = vmatpush1.msra.mxu0 0.0
  %4197 = vmatprep.mubr.f32.mxu0 0.0
  %v4198 = vand.u32 %v4121, 4294901760
  %v4199 = vsub.f32 %v4121, %v4198
  %v4200 = vand.u32 %v4199, 4294901760
  %v4201 = vsub.f32 %v4199, %v4200
  %v4202 = vand.u32 %v4201, 4294901760
  %4203 = vmatmul.mubr.f32.gmra.mrb[0].mxu0 %v4202
  %v4204 = vpop.f32.mrb[0].mxu0
  %v4205 = vadd.f32 %v4119, %v4204
  %v4206 = vpop.f32.mrb[0].mxu0
  %4207 = vmatprep.mubr.f32.mxu0 0.0
  %v4208 = vand.u32 %v4124, 4294901760
  %v4209 = vsub.f32 %v4124, %v4208
  %v4210 = vand.u32 %v4209, 4294901760
  %v4211 = vsub.f32 %v4209, %v4210
  %v4212 = vand.u32 %v4211, 4294901760
  %4213 = vmatmul.mubr.f32.gmra.mrb[0].mxu0 %v4212
  %v4214 = vpop.f32.mrb[0].mxu0
  %v4215 = vadd.f32 %v4119, %v4214
  %v4216 = vpop.f32.mrb[0].mxu0
  %4217 = vmatprep.mubr.f32.mxu0 0.0
  %v4218 = vand.u32 %v4127, 4294901760
  %v4219 = vsub.f32 %v4127, %v4218
  %v4220 = vand.u32 %v4219, 4294901760
  %v4221 = vsub.f32 %v4219, %v4220
  %v4222 = vand.u32 %v4221, 4294901760
  %4223 = vmatmul.mubr.f32.gmra.mrb[0].mxu0 %v4222
  %v4224 = vpop.f32.mrb[0].mxu0
  %v4225 = vadd.f32 %v4119, %v4224
  %v4226 = vpop.f32.mrb[0].mxu0
  %4227 = vdwg.mxu0
  %4228 = vmatprep.subr.mxu0 0.0
  %v4229 = vand.u32 %v4111, 4294901760
  %v4230 = vsub.f32 %v4111, %v4229
  %v4231 = vand.u32 %v4230, 4294901760
  %v4232 = vsub.f32 %v4230, %v4231
  %v4233 = vand.u32 %v4232, 4294901760
  %4234 = vmatpush1.msra.mxu0 %v4233
  %4235 = vmatprep.subr.mxu0 0.0
  %v4236 = vand.u32 %v4112, 4294901760
  %v4237 = vsub.f32 %v4112, %v4236
  %v4238 = vand.u32 %v4237, 4294901760
  %v4239 = vsub.f32 %v4237, %v4238
  %v4240 = vand.u32 %v4239, 4294901760
  %4241 = vmatpush1.msra.mxu0 %v4240
  %4242 = vmatprep.subr.mxu0 0.0
  %v4243 = vand.u32 %v4113, 4294901760
  %v4244 = vsub.f32 %v4113, %v4243
  %v4245 = vand.u32 %v4244, 4294901760
  %v4246 = vsub.f32 %v4244, %v4245
  %v4247 = vand.u32 %v4246, 4294901760
  %4248 = vmatpush1.msra.mxu0 %v4247
  %4249 = vmatprep.subr.mxu0 0.0
  %v4250 = vand.u32 %v4114, 4294901760
  %v4251 = vsub.f32 %v4114, %v4250
  %v4252 = vand.u32 %v4251, 4294901760
  %v4253 = vsub.f32 %v4251, %v4252
  %v4254 = vand.u32 %v4253, 4294901760
  %4255 = vmatpush1.msra.mxu0 %v4254
  %4256 = vmatprep.subr.mxu0 0.0
  %4257 = vmatpush1.msra.mxu0 0.0
  %4258 = vmatprep.subr.mxu0 0.0
  %4259 = vmatpush1.msra.mxu0 0.0
  %4260 = vmatprep.subr.mxu0 0.0
  %4261 = vmatpush1.msra.mxu0 0.0
  %4262 = vmatprep.subr.mxu0 0.0
  %4263 = vmatpush1.msra.mxu0 0.0
  %4264 = vmatprep.subr.mxu0 0.0
  %4265 = vmatpush1.msra.mxu0 0.0
  %4266 = vmatprep.subr.mxu0 0.0
  %4267 = vmatpush1.msra.mxu0 0.0
  %4268 = vmatprep.subr.mxu0 0.0
  %4269 = vmatpush1.msra.mxu0 0.0
  %4270 = vmatprep.subr.mxu0 0.0
  %4271 = vmatpush1.msra.mxu0 0.0
  %4272 = vmatprep.subr.mxu0 0.0
  %4273 = vmatpush1.msra.mxu0 0.0
  %4274 = vmatprep.subr.mxu0 0.0
  %4275 = vmatpush1.msra.mxu0 0.0
  %4276 = vmatprep.subr.mxu0 0.0
  %4277 = vmatpush1.msra.mxu0 0.0
  %4278 = vmatprep.subr.mxu0 0.0
  %4279 = vmatpush1.msra.mxu0 0.0
  %4280 = vmatprep.subr.mxu0 0.0
  %4281 = vmatpush1.msra.mxu0 0.0
  %4282 = vmatprep.subr.mxu0 0.0
  %4283 = vmatpush1.msra.mxu0 0.0
  %4284 = vmatprep.subr.mxu0 0.0
  %4285 = vmatpush1.msra.mxu0 0.0
  %4286 = vmatprep.subr.mxu0 0.0
  %4287 = vmatpush1.msra.mxu0 0.0
  %4288 = vmatprep.subr.mxu0 0.0
  %4289 = vmatpush1.msra.mxu0 0.0
  %4290 = vmatprep.subr.mxu0 0.0
  %4291 = vmatpush1.msra.mxu0 0.0
  %4292 = vmatprep.subr.mxu0 0.0
  %4293 = vmatpush1.msra.mxu0 0.0
  %4294 = vmatprep.subr.mxu0 0.0
  %4295 = vmatpush1.msra.mxu0 0.0
  %4296 = vmatprep.subr.mxu0 0.0
  %4297 = vmatpush1.msra.mxu0 0.0
  %4298 = vmatprep.subr.mxu0 0.0
  %4299 = vmatpush1.msra.mxu0 0.0
  %4300 = vmatprep.subr.mxu0 0.0
  %4301 = vmatpush1.msra.mxu0 0.0
  %4302 = vmatprep.subr.mxu0 0.0
  %4303 = vmatpush1.msra.mxu0 0.0
  %4304 = vmatprep.subr.mxu0 0.0
  %4305 = vmatpush1.msra.mxu0 0.0
  %4306 = vmatprep.subr.mxu0 0.0
  %4307 = vmatpush1.msra.mxu0 0.0
  %4308 = vmatprep.subr.mxu0 0.0
  %4309 = vmatpush1.msra.mxu0 0.0
  %4310 = vmatprep.subr.mxu0 0.0
  %4311 = vmatpush1.msra.mxu0 0.0
  %4312 = vmatprep.mubr.f32.mxu0 0.0
  %v4313 = vand.u32 %v4121, 4294901760
  %4314 = vmatmul.mubr.f32.gmra.mrb[0].mxu0 %v4313
  %v4315 = vpop.f32.mrb[0].mxu0
  %v4316 = vadd.f32 %v4205, %v4315
  %v4317 = vpop.f32.mrb[0].mxu0
  %4318 = vmatprep.mubr.f32.mxu0 0.0
  %v4319 = vand.u32 %v4124, 4294901760
  %4320 = vmatmul.mubr.f32.gmra.mrb[0].mxu0 %v4319
  %v4321 = vpop.f32.mrb[0].mxu0
  %v4322 = vadd.f32 %v4215, %v4321
  %v4323 = vpop.f32.mrb[0].mxu0
  %4324 = vmatprep.mubr.f32.mxu0 0.0
  %v4325 = vand.u32 %v4127, 4294901760
  %4326 = vmatmul.mubr.f32.gmra.mrb[0].mxu0 %v4325
  %v4327 = vpop.f32.mrb[0].mxu0
  %v4328 = vadd.f32 %v4225, %v4327
  %v4329 = vpop.f32.mrb[0].mxu0
  %4330 = vdwg.mxu0
  %4331 = vmatprep.subr.mxu0 0.0
  %v4332 = vand.u32 %v4111, 4294901760
  %v4333 = vsub.f32 %v4111, %v4332
  %4334 = vmatpush1.msra.mxu0 %v4333
  %4335 = vmatprep.subr.mxu0 0.0
  %v4336 = vand.u32 %v4112, 4294901760
  %v4337 = vsub.f32 %v4112, %v4336
  %4338 = vmatpush1.msra.mxu0 %v4337
  %4339 = vmatprep.subr.mxu0 0.0
  %v4340 = vand.u32 %v4113, 4294901760
  %v4341 = vsub.f32 %v4113, %v4340
  %4342 = vmatpush1.msra.mxu0 %v4341
  %4343 = vmatprep.subr.mxu0 0.0
  %v4344 = vand.u32 %v4114, 4294901760
  %v4345 = vsub.f32 %v4114, %v4344
  %4346 = vmatpush1.msra.mxu0 %v4345
  %4347 = vmatprep.subr.mxu0 0.0
  %4348 = vmatpush1.msra.mxu0 0.0
  %4349 = vmatprep.subr.mxu0 0.0
  %4350 = vmatpush1.msra.mxu0 0.0
  %4351 = vmatprep.subr.mxu0 0.0
  %4352 = vmatpush1.msra.mxu0 0.0
  %4353 = vmatprep.subr.mxu0 0.0
  %4354 = vmatpush1.msra.mxu0 0.0
  %4355 = vmatprep.subr.mxu0 0.0
  %4356 = vmatpush1.msra.mxu0 0.0
  %4357 = vmatprep.subr.mxu0 0.0
  %4358 = vmatpush1.msra.mxu0 0.0
  %4359 = vmatprep.subr.mxu0 0.0
  %4360 = vmatpush1.msra.mxu0 0.0
  %4361 = vmatprep.subr.mxu0 0.0
  %4362 = vmatpush1.msra.mxu0 0.0
  %4363 = vmatprep.subr.mxu0 0.0
  %4364 = vmatpush1.msra.mxu0 0.0
  %4365 = vmatprep.subr.mxu0 0.0
  %4366 = vmatpush1.msra.mxu0 0.0
  %4367 = vmatprep.subr.mxu0 0.0
  %4368 = vmatpush1.msra.mxu0 0.0
  %4369 = vmatprep.subr.mxu0 0.0
  %4370 = vmatpush1.msra.mxu0 0.0
  %4371 = vmatprep.subr.mxu0 0.0
  %4372 = vmatpush1.msra.mxu0 0.0
  %4373 = vmatprep.subr.mxu0 0.0
  %4374 = vmatpush1.msra.mxu0 0.0
  %4375 = vmatprep.subr.mxu0 0.0
  %4376 = vmatpush1.msra.mxu0 0.0
  %4377 = vmatprep.subr.mxu0 0.0
  %4378 = vmatpush1.msra.mxu0 0.0
  %4379 = vmatprep.subr.mxu0 0.0
  %4380 = vmatpush1.msra.mxu0 0.0
  %4381 = vmatprep.subr.mxu0 0.0
  %4382 = vmatpush1.msra.mxu0 0.0
  %4383 = vmatprep.subr.mxu0 0.0
  %4384 = vmatpush1.msra.mxu0 0.0
  %4385 = vmatprep.subr.mxu0 0.0
  %4386 = vmatpush1.msra.mxu0 0.0
  %4387 = vmatprep.subr.mxu0 0.0
  %4388 = vmatpush1.msra.mxu0 0.0
  %4389 = vmatprep.subr.mxu0 0.0
  %4390 = vmatpush1.msra.mxu0 0.0
  %4391 = vmatprep.subr.mxu0 0.0
  %4392 = vmatpush1.msra.mxu0 0.0
  %4393 = vmatprep.subr.mxu0 0.0
  %4394 = vmatpush1.msra.mxu0 0.0
  %4395 = vmatprep.subr.mxu0 0.0
  %4396 = vmatpush1.msra.mxu0 0.0
  %4397 = vmatprep.subr.mxu0 0.0
  %4398 = vmatpush1.msra.mxu0 0.0
  %4399 = vmatprep.subr.mxu0 0.0
  %4400 = vmatpush1.msra.mxu0 0.0
  %4401 = vmatprep.subr.mxu0 0.0
  %4402 = vmatpush1.msra.mxu0 0.0
  %4403 = vmatprep.mubr.f32.mxu0 0.0
  %v4404 = vand.u32 %v4121, 4294901760
  %v4405 = vsub.f32 %v4121, %v4404
  %4406 = vmatmul.mubr.f32.gmra.mrb[0].mxu0 %v4405
  %v4407 = vpop.f32.mrb[0].mxu0
  %v4408 = vadd.f32 %v4316, %v4407
  %v4409 = vpop.f32.mrb[0].mxu0
  %4410 = vmatprep.mubr.f32.mxu0 0.0
  %v4411 = vand.u32 %v4124, 4294901760
  %v4412 = vsub.f32 %v4124, %v4411
  %4413 = vmatmul.mubr.f32.gmra.mrb[0].mxu0 %v4412
  %v4414 = vpop.f32.mrb[0].mxu0
  %v4415 = vadd.f32 %v4322, %v4414
  %v4416 = vpop.f32.mrb[0].mxu0
  %4417 = vmatprep.mubr.f32.mxu0 0.0
  %v4418 = vand.u32 %v4127, 4294901760
  %v4419 = vsub.f32 %v4127, %v4418
  %4420 = vmatmul.mubr.f32.gmra.mrb[0].mxu0 %v4419
  %v4421 = vpop.f32.mrb[0].mxu0
  %v4422 = vadd.f32 %v4328, %v4421
  %v4423 = vpop.f32.mrb[0].mxu0
  %4424 = vdwg.mxu0
  %4425 = vmatprep.subr.mxu0 0.0
  %v4426 = vand.u32 %v4111, 4294901760
  %4427 = vmatpush1.msra.mxu0 %v4426
  %4428 = vmatprep.subr.mxu0 0.0
  %v4429 = vand.u32 %v4112, 4294901760
  %4430 = vmatpush1.msra.mxu0 %v4429
  %4431 = vmatprep.subr.mxu0 0.0
  %v4432 = vand.u32 %v4113, 4294901760
  %4433 = vmatpush1.msra.mxu0 %v4432
  %4434 = vmatprep.subr.mxu0 0.0
  %v4435 = vand.u32 %v4114, 4294901760
  %4436 = vmatpush1.msra.mxu0 %v4435
  %4437 = vmatprep.subr.mxu0 0.0
  %4438 = vmatpush1.msra.mxu0 0.0
  %4439 = vmatprep.subr.mxu0 0.0
  %4440 = vmatpush1.msra.mxu0 0.0
  %4441 = vmatprep.subr.mxu0 0.0
  %4442 = vmatpush1.msra.mxu0 0.0
  %4443 = vmatprep.subr.mxu0 0.0
  %4444 = vmatpush1.msra.mxu0 0.0
  %4445 = vmatprep.subr.mxu0 0.0
  %4446 = vmatpush1.msra.mxu0 0.0
  %4447 = vmatprep.subr.mxu0 0.0
  %4448 = vmatpush1.msra.mxu0 0.0
  %4449 = vmatprep.subr.mxu0 0.0
  %4450 = vmatpush1.msra.mxu0 0.0
  %4451 = vmatprep.subr.mxu0 0.0
  %4452 = vmatpush1.msra.mxu0 0.0
  %4453 = vmatprep.subr.mxu0 0.0
  %4454 = vmatpush1.msra.mxu0 0.0
  %4455 = vmatprep.subr.mxu0 0.0
  %4456 = vmatpush1.msra.mxu0 0.0
  %4457 = vmatprep.subr.mxu0 0.0
  %4458 = vmatpush1.msra.mxu0 0.0
  %4459 = vmatprep.subr.mxu0 0.0
  %4460 = vmatpush1.msra.mxu0 0.0
  %4461 = vmatprep.subr.mxu0 0.0
  %4462 = vmatpush1.msra.mxu0 0.0
  %4463 = vmatprep.subr.mxu0 0.0
  %4464 = vmatpush1.msra.mxu0 0.0
  %4465 = vmatprep.subr.mxu0 0.0
  %4466 = vmatpush1.msra.mxu0 0.0
  %4467 = vmatprep.subr.mxu0 0.0
  %4468 = vmatpush1.msra.mxu0 0.0
  %4469 = vmatprep.subr.mxu0 0.0
  %4470 = vmatpush1.msra.mxu0 0.0
  %4471 = vmatprep.subr.mxu0 0.0
  %4472 = vmatpush1.msra.mxu0 0.0
  %4473 = vmatprep.subr.mxu0 0.0
  %4474 = vmatpush1.msra.mxu0 0.0
  %4475 = vmatprep.subr.mxu0 0.0
  %4476 = vmatpush1.msra.mxu0 0.0
  %4477 = vmatprep.subr.mxu0 0.0
  %4478 = vmatpush1.msra.mxu0 0.0
  %4479 = vmatprep.subr.mxu0 0.0
  %4480 = vmatpush1.msra.mxu0 0.0
  %4481 = vmatprep.subr.mxu0 0.0
  %4482 = vmatpush1.msra.mxu0 0.0
  %4483 = vmatprep.subr.mxu0 0.0
  %4484 = vmatpush1.msra.mxu0 0.0
  %4485 = vmatprep.subr.mxu0 0.0
  %4486 = vmatpush1.msra.mxu0 0.0
  %4487 = vmatprep.subr.mxu0 0.0
  %4488 = vmatpush1.msra.mxu0 0.0
  %4489 = vmatprep.subr.mxu0 0.0
  %4490 = vmatpush1.msra.mxu0 0.0
  %4491 = vmatprep.subr.mxu0 0.0
  %4492 = vmatpush1.msra.mxu0 0.0
  %4493 = vmatprep.mubr.f32.mxu0 0.0
  %v4494 = vand.u32 %v4121, 4294901760
  %v4495 = vsub.f32 %v4121, %v4494
  %v4496 = vand.u32 %v4495, 4294901760
  %4497 = vmatmul.mubr.f32.gmra.mrb[0].mxu0 %v4496
  %v4498 = vpop.f32.mrb[0].mxu0
  %v4499 = vadd.f32 %v4408, %v4498
  %v4500 = vpop.f32.mrb[0].mxu0
  %4501 = vmatprep.mubr.f32.mxu0 0.0
  %v4502 = vand.u32 %v4124, 4294901760
  %v4503 = vsub.f32 %v4124, %v4502
  %v4504 = vand.u32 %v4503, 4294901760
  %4505 = vmatmul.mubr.f32.gmra.mrb[0].mxu0 %v4504
  %v4506 = vpop.f32.mrb[0].mxu0
  %v4507 = vadd.f32 %v4415, %v4506
  %v4508 = vpop.f32.mrb[0].mxu0
  %4509 = vmatprep.mubr.f32.mxu0 0.0
  %v4510 = vand.u32 %v4127, 4294901760
  %v4511 = vsub.f32 %v4127, %v4510
  %v4512 = vand.u32 %v4511, 4294901760
  %4513 = vmatmul.mubr.f32.gmra.mrb[0].mxu0 %v4512
  %v4514 = vpop.f32.mrb[0].mxu0
  %v4515 = vadd.f32 %v4422, %v4514
  %v4516 = vpop.f32.mrb[0].mxu0
  %4517 = vdwg.mxu0
  %4518 = vmatprep.subr.mxu0 0.0
  %v4519 = vand.u32 %v4111, 4294901760
  %v4520 = vsub.f32 %v4111, %v4519
  %v4521 = vand.u32 %v4520, 4294901760
  %4522 = vmatpush1.msra.mxu0 %v4521
  %4523 = vmatprep.subr.mxu0 0.0
  %v4524 = vand.u32 %v4112, 4294901760
  %v4525 = vsub.f32 %v4112, %v4524
  %v4526 = vand.u32 %v4525, 4294901760
  %4527 = vmatpush1.msra.mxu0 %v4526
  %4528 = vmatprep.subr.mxu0 0.0
  %v4529 = vand.u32 %v4113, 4294901760
  %v4530 = vsub.f32 %v4113, %v4529
  %v4531 = vand.u32 %v4530, 4294901760
  %4532 = vmatpush1.msra.mxu0 %v4531
  %4533 = vmatprep.subr.mxu0 0.0
  %v4534 = vand.u32 %v4114, 4294901760
  %v4535 = vsub.f32 %v4114, %v4534
  %v4536 = vand.u32 %v4535, 4294901760
  %4537 = vmatpush1.msra.mxu0 %v4536
  %4538 = vmatprep.subr.mxu0 0.0
  %4539 = vmatpush1.msra.mxu0 0.0
  %4540 = vmatprep.subr.mxu0 0.0
  %4541 = vmatpush1.msra.mxu0 0.0
  %4542 = vmatprep.subr.mxu0 0.0
  %4543 = vmatpush1.msra.mxu0 0.0
  %4544 = vmatprep.subr.mxu0 0.0
  %4545 = vmatpush1.msra.mxu0 0.0
  %4546 = vmatprep.subr.mxu0 0.0
  %4547 = vmatpush1.msra.mxu0 0.0
  %4548 = vmatprep.subr.mxu0 0.0
  %4549 = vmatpush1.msra.mxu0 0.0
  %4550 = vmatprep.subr.mxu0 0.0
  %4551 = vmatpush1.msra.mxu0 0.0
  %4552 = vmatprep.subr.mxu0 0.0
  %4553 = vmatpush1.msra.mxu0 0.0
  %4554 = vmatprep.subr.mxu0 0.0
  %4555 = vmatpush1.msra.mxu0 0.0
  %4556 = vmatprep.subr.mxu0 0.0
  %4557 = vmatpush1.msra.mxu0 0.0
  %4558 = vmatprep.subr.mxu0 0.0
  %4559 = vmatpush1.msra.mxu0 0.0
  %4560 = vmatprep.subr.mxu0 0.0
  %4561 = vmatpush1.msra.mxu0 0.0
  %4562 = vmatprep.subr.mxu0 0.0
  %4563 = vmatpush1.msra.mxu0 0.0
  %4564 = vmatprep.subr.mxu0 0.0
  %4565 = vmatpush1.msra.mxu0 0.0
  %4566 = vmatprep.subr.mxu0 0.0
  %4567 = vmatpush1.msra.mxu0 0.0
  %4568 = vmatprep.subr.mxu0 0.0
  %4569 = vmatpush1.msra.mxu0 0.0
  %4570 = vmatprep.subr.mxu0 0.0
  %4571 = vmatpush1.msra.mxu0 0.0
  %4572 = vmatprep.subr.mxu0 0.0
  %4573 = vmatpush1.msra.mxu0 0.0
  %4574 = vmatprep.subr.mxu0 0.0
  %4575 = vmatpush1.msra.mxu0 0.0
  %4576 = vmatprep.subr.mxu0 0.0
  %4577 = vmatpush1.msra.mxu0 0.0
  %4578 = vmatprep.subr.mxu0 0.0
  %4579 = vmatpush1.msra.mxu0 0.0
  %4580 = vmatprep.subr.mxu0 0.0
  %4581 = vmatpush1.msra.mxu0 0.0
  %4582 = vmatprep.subr.mxu0 0.0
  %4583 = vmatpush1.msra.mxu0 0.0
  %4584 = vmatprep.subr.mxu0 0.0
  %4585 = vmatpush1.msra.mxu0 0.0
  %4586 = vmatprep.subr.mxu0 0.0
  %4587 = vmatpush1.msra.mxu0 0.0
  %4588 = vmatprep.subr.mxu0 0.0
  %4589 = vmatpush1.msra.mxu0 0.0
  %4590 = vmatprep.subr.mxu0 0.0
  %4591 = vmatpush1.msra.mxu0 0.0
  %4592 = vmatprep.subr.mxu0 0.0
  %4593 = vmatpush1.msra.mxu0 0.0
  %4594 = vmatprep.mubr.f32.mxu0 0.0
  %v4595 = vand.u32 %v4121, 4294901760
  %4596 = vmatmul.mubr.f32.gmra.mrb[0].mxu0 %v4595
  %v4597 = vpop.f32.mrb[0].mxu0
  %v4598 = vadd.f32 %v4499, %v4597
  %v4599 = vpop.f32.mrb[0].mxu0
  %4600 = vmatprep.mubr.f32.mxu0 0.0
  %v4601 = vand.u32 %v4124, 4294901760
  %4602 = vmatmul.mubr.f32.gmra.mrb[0].mxu0 %v4601
  %v4603 = vpop.f32.mrb[0].mxu0
  %v4604 = vadd.f32 %v4507, %v4603
  %v4605 = vpop.f32.mrb[0].mxu0
  %4606 = vmatprep.mubr.f32.mxu0 0.0
  %v4607 = vand.u32 %v4127, 4294901760
  %4608 = vmatmul.mubr.f32.gmra.mrb[0].mxu0 %v4607
  %v4609 = vpop.f32.mrb[0].mxu0
  %v4610 = vadd.f32 %v4515, %v4609
  %v4611 = vpop.f32.mrb[0].mxu0
  %4612 = vdwg.mxu0
  %4613 = vmatprep.subr.mxu0 0.0
  %v4614 = vand.u32 %v4111, 4294901760
  %4615 = vmatpush1.msra.mxu0 %v4614
  %4616 = vmatprep.subr.mxu0 0.0
  %v4617 = vand.u32 %v4112, 4294901760
  %4618 = vmatpush1.msra.mxu0 %v4617
  %4619 = vmatprep.subr.mxu0 0.0
  %v4620 = vand.u32 %v4113, 4294901760
  %4621 = vmatpush1.msra.mxu0 %v4620
  %4622 = vmatprep.subr.mxu0 0.0
  %v4623 = vand.u32 %v4114, 4294901760
  %4624 = vmatpush1.msra.mxu0 %v4623
  %4625 = vmatprep.subr.mxu0 0.0
  %4626 = vmatpush1.msra.mxu0 0.0
  %4627 = vmatprep.subr.mxu0 0.0
  %4628 = vmatpush1.msra.mxu0 0.0
  %4629 = vmatprep.subr.mxu0 0.0
  %4630 = vmatpush1.msra.mxu0 0.0
  %4631 = vmatprep.subr.mxu0 0.0
  %4632 = vmatpush1.msra.mxu0 0.0
  %4633 = vmatprep.subr.mxu0 0.0
  %4634 = vmatpush1.msra.mxu0 0.0
  %4635 = vmatprep.subr.mxu0 0.0
  %4636 = vmatpush1.msra.mxu0 0.0
  %4637 = vmatprep.subr.mxu0 0.0
  %4638 = vmatpush1.msra.mxu0 0.0
  %4639 = vmatprep.subr.mxu0 0.0
  %4640 = vmatpush1.msra.mxu0 0.0
  %4641 = vmatprep.subr.mxu0 0.0
  %4642 = vmatpush1.msra.mxu0 0.0
  %4643 = vmatprep.subr.mxu0 0.0
  %4644 = vmatpush1.msra.mxu0 0.0
  %4645 = vmatprep.subr.mxu0 0.0
  %4646 = vmatpush1.msra.mxu0 0.0
  %4647 = vmatprep.subr.mxu0 0.0
  %4648 = vmatpush1.msra.mxu0 0.0
  %4649 = vmatprep.subr.mxu0 0.0
  %4650 = vmatpush1.msra.mxu0 0.0
  %4651 = vmatprep.subr.mxu0 0.0
  %4652 = vmatpush1.msra.mxu0 0.0
  %4653 = vmatprep.subr.mxu0 0.0
  %4654 = vmatpush1.msra.mxu0 0.0
  %4655 = vmatprep.subr.mxu0 0.0
  %4656 = vmatpush1.msra.mxu0 0.0
  %4657 = vmatprep.subr.mxu0 0.0
  %4658 = vmatpush1.msra.mxu0 0.0
  %4659 = vmatprep.subr.mxu0 0.0
  %4660 = vmatpush1.msra.mxu0 0.0
  %4661 = vmatprep.subr.mxu0 0.0
  %4662 = vmatpush1.msra.mxu0 0.0
  %4663 = vmatprep.subr.mxu0 0.0
  %4664 = vmatpush1.msra.mxu0 0.0
  %4665 = vmatprep.subr.mxu0 0.0
  %4666 = vmatpush1.msra.mxu0 0.0
  %4667 = vmatprep.subr.mxu0 0.0
  %4668 = vmatpush1.msra.mxu0 0.0
  %4669 = vmatprep.subr.mxu0 0.0
  %4670 = vmatpush1.msra.mxu0 0.0
  %4671 = vmatprep.subr.mxu0 0.0
  %4672 = vmatpush1.msra.mxu0 0.0
  %4673 = vmatprep.subr.mxu0 0.0
  %4674 = vmatpush1.msra.mxu0 0.0
  %4675 = vmatprep.subr.mxu0 0.0
  %4676 = vmatpush1.msra.mxu0 0.0
  %4677 = vmatprep.subr.mxu0 0.0
  %4678 = vmatpush1.msra.mxu0 0.0
  %4679 = vmatprep.subr.mxu0 0.0
  %4680 = vmatpush1.msra.mxu0 0.0
  %4681 = vmatprep.mubr.f32.mxu0 0.0
  %v4682 = vand.u32 %v4121, 4294901760
  %4683 = vmatmul.mubr.f32.gmra.mrb[0].mxu0 %v4682
  %v4684 = vpop.f32.mrb[0].mxu0
  %v4685 = vadd.f32 %v4598, %v4684
  %v4686 = vpop.f32.mrb[0].mxu0
  %4687 = vmatprep.mubr.f32.mxu0 0.0
  %v4688 = vand.u32 %v4124, 4294901760
  %4689 = vmatmul.mubr.f32.gmra.mrb[0].mxu0 %v4688
  %v4690 = vpop.f32.mrb[0].mxu0
  %v4691 = vadd.f32 %v4604, %v4690
  %v4692 = vpop.f32.mrb[0].mxu0
  %4693 = vmatprep.mubr.f32.mxu0 0.0
  %v4694 = vand.u32 %v4127, 4294901760
  %4695 = vmatmul.mubr.f32.gmra.mrb[0].mxu0 %v4694
  %v4696 = vpop.f32.mrb[0].mxu0
  %v4697 = vadd.f32 %v4610, %v4696
  %v4698 = vpop.f32.mrb[0].mxu0
  %4699 = vdwg.mxu0
  %v4700 = vmax.f32 %v4685, 0.0
  %v4701 = vmax.f32 %v4691, 0.0
  %v4702 = vmax.f32 %v4697, 0.0
  %v4703 = vld [vmem:[%s1 + $0x140] sm:$0xff]
  %v4704 = vld [vmem:[%s1 + $0x148] sm:$0xff]
  %v4705 = vld [vmem:[%s1 + $0x150] sm:$0xff]
  %v4706 = vld [vmem:[%s1 + $0x158] sm:$0xff]
  %v4707 = vld [vmem:[%s1 + $0x160] sm:$0xff]
  %v4708 = vld [vmem:[%s1 + $0x168] sm:$0xff]
  %v4709 = vld [vmem:[%s1 + $0x170] sm:$0xff]
  %v4710 = vld [vmem:[%s1 + $0x178] sm:$0xff]
  %v4711 = vld [vmem:[%s1 + $0x1a8] sm:$0x1]
  %v4712 = vlaneseq
  %v4713 = vshrl.u32 %v4712, 7
  %v4714 = vsub.s32 0, %v4713
  %v4715 = vrot.slane %v4711, %v4714
  %vm4716 = vcmask 523264
  %v4718 = vsel %vm4716, %v4700, 0
  %v4721 = vsel %vm4716, %v4701, 0
  %v4724 = vsel %vm4716, %v4702, 0
  %4726 = vmatprep.subr.mxu0 0.0
  %v4727 = vand.u32 %v4703, 4294901760
  %4728 = vmatpush1.msra.mxu0 %v4727
  %4729 = vmatprep.subr.mxu0 0.0
  %v4730 = vand.u32 %v4704, 4294901760
  %4731 = vmatpush1.msra.mxu0 %v4730
  %4732 = vmatprep.subr.mxu0 0.0
  %v4733 = vand.u32 %v4705, 4294901760
  %4734 = vmatpush1.msra.mxu0 %v4733
  %4735 = vmatprep.subr.mxu0 0.0
  %v4736 = vand.u32 %v4706, 4294901760
  %4737 = vmatpush1.msra.mxu0 %v4736
  %4738 = vmatprep.subr.mxu0 0.0
  %v4739 = vand.u32 %v4707, 4294901760
  %4740 = vmatpush1.msra.mxu0 %v4739
  %4741 = vmatprep.subr.mxu0 0.0
  %v4742 = vand.u32 %v4708, 4294901760
  %4743 = vmatpush1.msra.mxu0 %v4742
  %4744 = vmatprep.subr.mxu0 0.0
  %v4745 = vand.u32 %v4709, 4294901760
  %4746 = vmatpush1.msra.mxu0 %v4745
  %4747 = vmatprep.subr.mxu0 0.0
  %v4748 = vand.u32 %v4710, 4294901760
  %4749 = vmatpush1.msra.mxu0 %v4748
  %4750 = vmatprep.subr.mxu0 0.0
  %4751 = vmatpush1.msra.mxu0 0.0
  %4752 = vmatprep.subr.mxu0 0.0
  %4753 = vmatpush1.msra.mxu0 0.0
  %4754 = vmatprep.subr.mxu0 0.0
  %4755 = vmatpush1.msra.mxu0 0.0
  %4756 = vmatprep.subr.mxu0 0.0
  %4757 = vmatpush1.msra.mxu0 0.0
  %4758 = vmatprep.subr.mxu0 0.0
  %4759 = vmatpush1.msra.mxu0 0.0
  %4760 = vmatprep.subr.mxu0 0.0
  %4761 = vmatpush1.msra.mxu0 0.0
  %4762 = vmatprep.subr.mxu0 0.0
  %4763 = vmatpush1.msra.mxu0 0.0
  %4764 = vmatprep.subr.mxu0 0.0
  %4765 = vmatpush1.msra.mxu0 0.0
  %4766 = vmatprep.subr.mxu0 0.0
  %4767 = vmatpush1.msra.mxu0 0.0
  %4768 = vmatprep.subr.mxu0 0.0
  %4769 = vmatpush1.msra.mxu0 0.0
  %4770 = vmatprep.subr.mxu0 0.0
  %4771 = vmatpush1.msra.mxu0 0.0
  %4772 = vmatprep.subr.mxu0 0.0
  %4773 = vmatpush1.msra.mxu0 0.0
  %4774 = vmatprep.subr.mxu0 0.0
  %4775 = vmatpush1.msra.mxu0 0.0
  %4776 = vmatprep.subr.mxu0 0.0
  %4777 = vmatpush1.msra.mxu0 0.0
  %4778 = vmatprep.subr.mxu0 0.0
  %4779 = vmatpush1.msra.mxu0 0.0
  %4780 = vmatprep.subr.mxu0 0.0
  %4781 = vmatpush1.msra.mxu0 0.0
  %4782 = vmatprep.subr.mxu0 0.0
  %4783 = vmatpush1.msra.mxu0 0.0
  %4784 = vmatprep.subr.mxu0 0.0
  %4785 = vmatpush1.msra.mxu0 0.0
  %4786 = vmatprep.subr.mxu0 0.0
  %4787 = vmatpush1.msra.mxu0 0.0
  %4788 = vmatprep.subr.mxu0 0.0
  %4789 = vmatpush1.msra.mxu0 0.0
  %4790 = vmatprep.subr.mxu0 0.0
  %4791 = vmatpush1.msra.mxu0 0.0
  %4792 = vmatprep.subr.mxu0 0.0
  %4793 = vmatpush1.msra.mxu0 0.0
  %4794 = vmatprep.subr.mxu0 0.0
  %4795 = vmatpush1.msra.mxu0 0.0
  %4796 = vmatprep.subr.mxu0 0.0
  %4797 = vmatpush1.msra.mxu0 0.0
  %4798 = vmatprep.mubr.f32.mxu0 0.0
  %v4799 = vand.u32 %v4718, 4294901760
  %v4800 = vsub.f32 %v4718, %v4799
  %v4801 = vand.u32 %v4800, 4294901760
  %v4802 = vsub.f32 %v4800, %v4801
  %v4803 = vand.u32 %v4802, 4294901760
  %4804 = vmatmul.mubr.f32.gmra.mrb[0].mxu0 %v4803
  %v4805 = vpop.f32.mrb[0].mxu0
  %v4806 = vadd.f32 %v4715, %v4805
  %v4807 = vpop.f32.mrb[0].mxu0
  %4808 = vmatprep.mubr.f32.mxu0 0.0
  %v4809 = vand.u32 %v4721, 4294901760
  %v4810 = vsub.f32 %v4721, %v4809
  %v4811 = vand.u32 %v4810, 4294901760
  %v4812 = vsub.f32 %v4810, %v4811
  %v4813 = vand.u32 %v4812, 4294901760
  %4814 = vmatmul.mubr.f32.gmra.mrb[0].mxu0 %v4813
  %v4815 = vpop.f32.mrb[0].mxu0
  %v4816 = vadd.f32 %v4715, %v4815
  %v4817 = vpop.f32.mrb[0].mxu0
  %4818 = vmatprep.mubr.f32.mxu0 0.0
  %v4819 = vand.u32 %v4724, 4294901760
  %v4820 = vsub.f32 %v4724, %v4819
  %v4821 = vand.u32 %v4820, 4294901760
  %v4822 = vsub.f32 %v4820, %v4821
  %v4823 = vand.u32 %v4822, 4294901760
  %4824 = vmatmul.mubr.f32.gmra.mrb[0].mxu0 %v4823
  %v4825 = vpop.f32.mrb[0].mxu0
  %v4826 = vadd.f32 %v4715, %v4825
  %v4827 = vpop.f32.mrb[0].mxu0
  %4828 = vdwg.mxu0
  %4829 = vmatprep.subr.mxu0 0.0
  %v4830 = vand.u32 %v4703, 4294901760
  %v4831 = vsub.f32 %v4703, %v4830
  %v4832 = vand.u32 %v4831, 4294901760
  %v4833 = vsub.f32 %v4831, %v4832
  %v4834 = vand.u32 %v4833, 4294901760
  %4835 = vmatpush1.msra.mxu0 %v4834
  %4836 = vmatprep.subr.mxu0 0.0
  %v4837 = vand.u32 %v4704, 4294901760
  %v4838 = vsub.f32 %v4704, %v4837
  %v4839 = vand.u32 %v4838, 4294901760
  %v4840 = vsub.f32 %v4838, %v4839
  %v4841 = vand.u32 %v4840, 4294901760
  %4842 = vmatpush1.msra.mxu0 %v4841
  %4843 = vmatprep.subr.mxu0 0.0
  %v4844 = vand.u32 %v4705, 4294901760
  %v4845 = vsub.f32 %v4705, %v4844
  %v4846 = vand.u32 %v4845, 4294901760
  %v4847 = vsub.f32 %v4845, %v4846
  %v4848 = vand.u32 %v4847, 4294901760
  %4849 = vmatpush1.msra.mxu0 %v4848
  %4850 = vmatprep.subr.mxu0 0.0
  %v4851 = vand.u32 %v4706, 4294901760
  %v4852 = vsub.f32 %v4706, %v4851
  %v4853 = vand.u32 %v4852, 4294901760
  %v4854 = vsub.f32 %v4852, %v4853
  %v4855 = vand.u32 %v4854, 4294901760
  %4856 = vmatpush1.msra.mxu0 %v4855
  %4857 = vmatprep.subr.mxu0 0.0
  %v4858 = vand.u32 %v4707, 4294901760
  %v4859 = vsub.f32 %v4707, %v4858
  %v4860 = vand.u32 %v4859, 4294901760
  %v4861 = vsub.f32 %v4859, %v4860
  %v4862 = vand.u32 %v4861, 4294901760
  %4863 = vmatpush1.msra.mxu0 %v4862
  %4864 = vmatprep.subr.mxu0 0.0
  %v4865 = vand.u32 %v4708, 4294901760
  %v4866 = vsub.f32 %v4708, %v4865
  %v4867 = vand.u32 %v4866, 4294901760
  %v4868 = vsub.f32 %v4866, %v4867
  %v4869 = vand.u32 %v4868, 4294901760
  %4870 = vmatpush1.msra.mxu0 %v4869
  %4871 = vmatprep.subr.mxu0 0.0
  %v4872 = vand.u32 %v4709, 4294901760
  %v4873 = vsub.f32 %v4709, %v4872
  %v4874 = vand.u32 %v4873, 4294901760
  %v4875 = vsub.f32 %v4873, %v4874
  %v4876 = vand.u32 %v4875, 4294901760
  %4877 = vmatpush1.msra.mxu0 %v4876
  %4878 = vmatprep.subr.mxu0 0.0
  %v4879 = vand.u32 %v4710, 4294901760
  %v4880 = vsub.f32 %v4710, %v4879
  %v4881 = vand.u32 %v4880, 4294901760
  %v4882 = vsub.f32 %v4880, %v4881
  %v4883 = vand.u32 %v4882, 4294901760
  %4884 = vmatpush1.msra.mxu0 %v4883
  %4885 = vmatprep.subr.mxu0 0.0
  %4886 = vmatpush1.msra.mxu0 0.0
  %4887 = vmatprep.subr.mxu0 0.0
  %4888 = vmatpush1.msra.mxu0 0.0
  %4889 = vmatprep.subr.mxu0 0.0
  %4890 = vmatpush1.msra.mxu0 0.0
  %4891 = vmatprep.subr.mxu0 0.0
  %4892 = vmatpush1.msra.mxu0 0.0
  %4893 = vmatprep.subr.mxu0 0.0
  %4894 = vmatpush1.msra.mxu0 0.0
  %4895 = vmatprep.subr.mxu0 0.0
  %4896 = vmatpush1.msra.mxu0 0.0
  %4897 = vmatprep.subr.mxu0 0.0
  %4898 = vmatpush1.msra.mxu0 0.0
  %4899 = vmatprep.subr.mxu0 0.0
  %4900 = vmatpush1.msra.mxu0 0.0
  %4901 = vmatprep.subr.mxu0 0.0
  %4902 = vmatpush1.msra.mxu0 0.0
  %4903 = vmatprep.subr.mxu0 0.0
  %4904 = vmatpush1.msra.mxu0 0.0
  %4905 = vmatprep.subr.mxu0 0.0
  %4906 = vmatpush1.msra.mxu0 0.0
  %4907 = vmatprep.subr.mxu0 0.0
  %4908 = vmatpush1.msra.mxu0 0.0
  %4909 = vmatprep.subr.mxu0 0.0
  %4910 = vmatpush1.msra.mxu0 0.0
  %4911 = vmatprep.subr.mxu0 0.0
  %4912 = vmatpush1.msra.mxu0 0.0
  %4913 = vmatprep.subr.mxu0 0.0
  %4914 = vmatpush1.msra.mxu0 0.0
  %4915 = vmatprep.subr.mxu0 0.0
  %4916 = vmatpush1.msra.mxu0 0.0
  %4917 = vmatprep.subr.mxu0 0.0
  %4918 = vmatpush1.msra.mxu0 0.0
  %4919 = vmatprep.subr.mxu0 0.0
  %4920 = vmatpush1.msra.mxu0 0.0
  %4921 = vmatprep.subr.mxu0 0.0
  %4922 = vmatpush1.msra.mxu0 0.0
  %4923 = vmatprep.subr.mxu0 0.0
  %4924 = vmatpush1.msra.mxu0 0.0
  %4925 = vmatprep.subr.mxu0 0.0
  %4926 = vmatpush1.msra.mxu0 0.0
  %4927 = vmatprep.subr.mxu0 0.0
  %4928 = vmatpush1.msra.mxu0 0.0
  %4929 = vmatprep.subr.mxu0 0.0
  %4930 = vmatpush1.msra.mxu0 0.0
  %4931 = vmatprep.subr.mxu0 0.0
  %4932 = vmatpush1.msra.mxu0 0.0
  %4933 = vmatprep.mubr.f32.mxu0 0.0
  %v4934 = vand.u32 %v4718, 4294901760
  %4935 = vmatmul.mubr.f32.gmra.mrb[0].mxu0 %v4934
  %v4936 = vpop.f32.mrb[0].mxu0
  %v4937 = vadd.f32 %v4806, %v4936
  %v4938 = vpop.f32.mrb[0].mxu0
  %4939 = vmatprep.mubr.f32.mxu0 0.0
  %v4940 = vand.u32 %v4721, 4294901760
  %4941 = vmatmul.mubr.f32.gmra.mrb[0].mxu0 %v4940
  %v4942 = vpop.f32.mrb[0].mxu0
  %v4943 = vadd.f32 %v4816, %v4942
  %v4944 = vpop.f32.mrb[0].mxu0
  %4945 = vmatprep.mubr.f32.mxu0 0.0
  %v4946 = vand.u32 %v4724, 4294901760
  %4947 = vmatmul.mubr.f32.gmra.mrb[0].mxu0 %v4946
  %v4948 = vpop.f32.mrb[0].mxu0
  %v4949 = vadd.f32 %v4826, %v4948
  %v4950 = vpop.f32.mrb[0].mxu0
  %4951 = vdwg.mxu0
  %4952 = vmatprep.subr.mxu0 0.0
  %v4953 = vand.u32 %v4703, 4294901760
  %v4954 = vsub.f32 %v4703, %v4953
  %4955 = vmatpush1.msra.mxu0 %v4954
  %4956 = vmatprep.subr.mxu0 0.0
  %v4957 = vand.u32 %v4704, 4294901760
  %v4958 = vsub.f32 %v4704, %v4957
  %4959 = vmatpush1.msra.mxu0 %v4958
  %4960 = vmatprep.subr.mxu0 0.0
  %v4961 = vand.u32 %v4705, 4294901760
  %v4962 = vsub.f32 %v4705, %v4961
  %4963 = vmatpush1.msra.mxu0 %v4962
  %4964 = vmatprep.subr.mxu0 0.0
  %v4965 = vand.u32 %v4706, 4294901760
  %v4966 = vsub.f32 %v4706, %v4965
  %4967 = vmatpush1.msra.mxu0 %v4966
  %4968 = vmatprep.subr.mxu0 0.0
  %v4969 = vand.u32 %v4707, 4294901760
  %v4970 = vsub.f32 %v4707, %v4969
  %4971 = vmatpush1.msra.mxu0 %v4970
  %4972 = vmatprep.subr.mxu0 0.0
  %v4973 = vand.u32 %v4708, 4294901760
  %v4974 = vsub.f32 %v4708, %v4973
  %4975 = vmatpush1.msra.mxu0 %v4974
  %4976 = vmatprep.subr.mxu0 0.0
  %v4977 = vand.u32 %v4709, 4294901760
  %v4978 = vsub.f32 %v4709, %v4977
  %4979 = vmatpush1.msra.mxu0 %v4978
  %4980 = vmatprep.subr.mxu0 0.0
  %v4981 = vand.u32 %v4710, 4294901760
  %v4982 = vsub.f32 %v4710, %v4981
  %4983 = vmatpush1.msra.mxu0 %v4982
  %4984 = vmatprep.subr.mxu0 0.0
  %4985 = vmatpush1.msra.mxu0 0.0
  %4986 = vmatprep.subr.mxu0 0.0
  %4987 = vmatpush1.msra.mxu0 0.0
  %4988 = vmatprep.subr.mxu0 0.0
  %4989 = vmatpush1.msra.mxu0 0.0
  %4990 = vmatprep.subr.mxu0 0.0
  %4991 = vmatpush1.msra.mxu0 0.0
  %4992 = vmatprep.subr.mxu0 0.0
  %4993 = vmatpush1.msra.mxu0 0.0
  %4994 = vmatprep.subr.mxu0 0.0
  %4995 = vmatpush1.msra.mxu0 0.0
  %4996 = vmatprep.subr.mxu0 0.0
  %4997 = vmatpush1.msra.mxu0 0.0
  %4998 = vmatprep.subr.mxu0 0.0
  %4999 = vmatpush1.msra.mxu0 0.0
  %5000 = vmatprep.subr.mxu0 0.0
  %5001 = vmatpush1.msra.mxu0 0.0
  %5002 = vmatprep.subr.mxu0 0.0
  %5003 = vmatpush1.msra.mxu0 0.0
  %5004 = vmatprep.subr.mxu0 0.0
  %5005 = vmatpush1.msra.mxu0 0.0
  %5006 = vmatprep.subr.mxu0 0.0
  %5007 = vmatpush1.msra.mxu0 0.0
  %5008 = vmatprep.subr.mxu0 0.0
  %5009 = vmatpush1.msra.mxu0 0.0
  %5010 = vmatprep.subr.mxu0 0.0
  %5011 = vmatpush1.msra.mxu0 0.0
  %5012 = vmatprep.subr.mxu0 0.0
  %5013 = vmatpush1.msra.mxu0 0.0
  %5014 = vmatprep.subr.mxu0 0.0
  %5015 = vmatpush1.msra.mxu0 0.0
  %5016 = vmatprep.subr.mxu0 0.0
  %5017 = vmatpush1.msra.mxu0 0.0
  %5018 = vmatprep.subr.mxu0 0.0
  %5019 = vmatpush1.msra.mxu0 0.0
  %5020 = vmatprep.subr.mxu0 0.0
  %5021 = vmatpush1.msra.mxu0 0.0
  %5022 = vmatprep.subr.mxu0 0.0
  %5023 = vmatpush1.msra.mxu0 0.0
  %5024 = vmatprep.subr.mxu0 0.0
  %5025 = vmatpush1.msra.mxu0 0.0
  %5026 = vmatprep.subr.mxu0 0.0
  %5027 = vmatpush1.msra.mxu0 0.0
  %5028 = vmatprep.subr.mxu0 0.0
  %5029 = vmatpush1.msra.mxu0 0.0
  %5030 = vmatprep.subr.mxu0 0.0
  %5031 = vmatpush1.msra.mxu0 0.0
  %5032 = vmatprep.mubr.f32.mxu0 0.0
  %v5033 = vand.u32 %v4718, 4294901760
  %v5034 = vsub.f32 %v4718, %v5033
  %5035 = vmatmul.mubr.f32.gmra.mrb[0].mxu0 %v5034
  %v5036 = vpop.f32.mrb[0].mxu0
  %v5037 = vadd.f32 %v4937, %v5036
  %v5038 = vpop.f32.mrb[0].mxu0
  %5039 = vmatprep.mubr.f32.mxu0 0.0
  %v5040 = vand.u32 %v4721, 4294901760
  %v5041 = vsub.f32 %v4721, %v5040
  %5042 = vmatmul.mubr.f32.gmra.mrb[0].mxu0 %v5041
  %v5043 = vpop.f32.mrb[0].mxu0
  %v5044 = vadd.f32 %v4943, %v5043
  %v5045 = vpop.f32.mrb[0].mxu0
  %5046 = vmatprep.mubr.f32.mxu0 0.0
  %v5047 = vand.u32 %v4724, 4294901760
  %v5048 = vsub.f32 %v4724, %v5047
  %5049 = vmatmul.mubr.f32.gmra.mrb[0].mxu0 %v5048
  %v5050 = vpop.f32.mrb[0].mxu0
  %v5051 = vadd.f32 %v4949, %v5050
  %v5052 = vpop.f32.mrb[0].mxu0
  %5053 = vdwg.mxu0
  %5054 = vmatprep.subr.mxu0 0.0
  %v5055 = vand.u32 %v4703, 4294901760
  %5056 = vmatpush1.msra.mxu0 %v5055
  %5057 = vmatprep.subr.mxu0 0.0
  %v5058 = vand.u32 %v4704, 4294901760
  %5059 = vmatpush1.msra.mxu0 %v5058
  %5060 = vmatprep.subr.mxu0 0.0
  %v5061 = vand.u32 %v4705, 4294901760
  %5062 = vmatpush1.msra.mxu0 %v5061
  %5063 = vmatprep.subr.mxu0 0.0
  %v5064 = vand.u32 %v4706, 4294901760
  %5065 = vmatpush1.msra.mxu0 %v5064
  %5066 = vmatprep.subr.mxu0 0.0
  %v5067 = vand.u32 %v4707, 4294901760
  %5068 = vmatpush1.msra.mxu0 %v5067
  %5069 = vmatprep.subr.mxu0 0.0
  %v5070 = vand.u32 %v4708, 4294901760
  %5071 = vmatpush1.msra.mxu0 %v5070
  %5072 = vmatprep.subr.mxu0 0.0
  %v5073 = vand.u32 %v4709, 4294901760
  %5074 = vmatpush1.msra.mxu0 %v5073
  %5075 = vmatprep.subr.mxu0 0.0
  %v5076 = vand.u32 %v4710, 4294901760
  %5077 = vmatpush1.msra.mxu0 %v5076
  %5078 = vmatprep.subr.mxu0 0.0
  %5079 = vmatpush1.msra.mxu0 0.0
  %5080 = vmatprep.subr.mxu0 0.0
  %5081 = vmatpush1.msra.mxu0 0.0
  %5082 = vmatprep.subr.mxu0 0.0
  %5083 = vmatpush1.msra.mxu0 0.0
  %5084 = vmatprep.subr.mxu0 0.0
  %5085 = vmatpush1.msra.mxu0 0.0
  %5086 = vmatprep.subr.mxu0 0.0
  %5087 = vmatpush1.msra.mxu0 0.0
  %5088 = vmatprep.subr.mxu0 0.0
  %5089 = vmatpush1.msra.mxu0 0.0
  %5090 = vmatprep.subr.mxu0 0.0
  %5091 = vmatpush1.msra.mxu0 0.0
  %5092 = vmatprep.subr.mxu0 0.0
  %5093 = vmatpush1.msra.mxu0 0.0
  %5094 = vmatprep.subr.mxu0 0.0
  %5095 = vmatpush1.msra.mxu0 0.0
  %5096 = vmatprep.subr.mxu0 0.0
  %5097 = vmatpush1.msra.mxu0 0.0
  %5098 = vmatprep.subr.mxu0 0.0
  %5099 = vmatpush1.msra.mxu0 0.0
  %5100 = vmatprep.subr.mxu0 0.0
  %5101 = vmatpush1.msra.mxu0 0.0
  %5102 = vmatprep.subr.mxu0 0.0
  %5103 = vmatpush1.msra.mxu0 0.0
  %5104 = vmatprep.subr.mxu0 0.0
  %5105 = vmatpush1.msra.mxu0 0.0
  %5106 = vmatprep.subr.mxu0 0.0
  %5107 = vmatpush1.msra.mxu0 0.0
  %5108 = vmatprep.subr.mxu0 0.0
  %5109 = vmatpush1.msra.mxu0 0.0
  %5110 = vmatprep.subr.mxu0 0.0
  %5111 = vmatpush1.msra.mxu0 0.0
  %5112 = vmatprep.subr.mxu0 0.0
  %5113 = vmatpush1.msra.mxu0 0.0
  %5114 = vmatprep.subr.mxu0 0.0
  %5115 = vmatpush1.msra.mxu0 0.0
  %5116 = vmatprep.subr.mxu0 0.0
  %5117 = vmatpush1.msra.mxu0 0.0
  %5118 = vmatprep.subr.mxu0 0.0
  %5119 = vmatpush1.msra.mxu0 0.0
  %5120 = vmatprep.subr.mxu0 0.0
  %5121 = vmatpush1.msra.mxu0 0.0
  %5122 = vmatprep.subr.mxu0 0.0
  %5123 = vmatpush1.msra.mxu0 0.0
  %5124 = vmatprep.subr.mxu0 0.0
  %5125 = vmatpush1.msra.mxu0 0.0
  %5126 = vmatprep.mubr.f32.mxu0 0.0
  %v5127 = vand.u32 %v4718, 4294901760
  %v5128 = vsub.f32 %v4718, %v5127
  %v5129 = vand.u32 %v5128, 4294901760
  %5130 = vmatmul.mubr.f32.gmra.mrb[0].mxu0 %v5129
  %v5131 = vpop.f32.mrb[0].mxu0
  %v5132 = vadd.f32 %v5037, %v5131
  %v5133 = vpop.f32.mrb[0].mxu0
  %5134 = vmatprep.mubr.f32.mxu0 0.0
  %v5135 = vand.u32 %v4721, 4294901760
  %v5136 = vsub.f32 %v4721, %v5135
  %v5137 = vand.u32 %v5136, 4294901760
  %5138 = vmatmul.mubr.f32.gmra.mrb[0].mxu0 %v5137
  %v5139 = vpop.f32.mrb[0].mxu0
  %v5140 = vadd.f32 %v5044, %v5139
  %v5141 = vpop.f32.mrb[0].mxu0
  %5142 = vmatprep.mubr.f32.mxu0 0.0
  %v5143 = vand.u32 %v4724, 4294901760
  %v5144 = vsub.f32 %v4724, %v5143
  %v5145 = vand.u32 %v5144, 4294901760
  %5146 = vmatmul.mubr.f32.gmra.mrb[0].mxu0 %v5145
  %v5147 = vpop.f32.mrb[0].mxu0
  %v5148 = vadd.f32 %v5051, %v5147
  %v5149 = vpop.f32.mrb[0].mxu0
  %5150 = vdwg.mxu0
  %5151 = vmatprep.subr.mxu0 0.0
  %v5152 = vand.u32 %v4703, 4294901760
  %v5153 = vsub.f32 %v4703, %v5152
  %v5154 = vand.u32 %v5153, 4294901760
  %5155 = vmatpush1.msra.mxu0 %v5154
  %5156 = vmatprep.subr.mxu0 0.0
  %v5157 = vand.u32 %v4704, 4294901760
  %v5158 = vsub.f32 %v4704, %v5157
  %v5159 = vand.u32 %v5158, 4294901760
  %5160 = vmatpush1.msra.mxu0 %v5159
  %5161 = vmatprep.subr.mxu0 0.0
  %v5162 = vand.u32 %v4705, 4294901760
  %v5163 = vsub.f32 %v4705, %v5162
  %v5164 = vand.u32 %v5163, 4294901760
  %5165 = vmatpush1.msra.mxu0 %v5164
  %5166 = vmatprep.subr.mxu0 0.0
  %v5167 = vand.u32 %v4706, 4294901760
  %v5168 = vsub.f32 %v4706, %v5167
  %v5169 = vand.u32 %v5168, 4294901760
  %5170 = vmatpush1.msra.mxu0 %v5169
  %5171 = vmatprep.subr.mxu0 0.0
  %v5172 = vand.u32 %v4707, 4294901760
  %v5173 = vsub.f32 %v4707, %v5172
  %v5174 = vand.u32 %v5173, 4294901760
  %5175 = vmatpush1.msra.mxu0 %v5174
  %5176 = vmatprep.subr.mxu0 0.0
  %v5177 = vand.u32 %v4708, 4294901760
  %v5178 = vsub.f32 %v4708, %v5177
  %v5179 = vand.u32 %v5178, 4294901760
  %5180 = vmatpush1.msra.mxu0 %v5179
  %5181 = vmatprep.subr.mxu0 0.0
  %v5182 = vand.u32 %v4709, 4294901760
  %v5183 = vsub.f32 %v4709, %v5182
  %v5184 = vand.u32 %v5183, 4294901760
  %5185 = vmatpush1.msra.mxu0 %v5184
  %5186 = vmatprep.subr.mxu0 0.0
  %v5187 = vand.u32 %v4710, 4294901760
  %v5188 = vsub.f32 %v4710, %v5187
  %v5189 = vand.u32 %v5188, 4294901760
  %5190 = vmatpush1.msra.mxu0 %v5189
  %5191 = vmatprep.subr.mxu0 0.0
  %5192 = vmatpush1.msra.mxu0 0.0
  %5193 = vmatprep.subr.mxu0 0.0
  %5194 = vmatpush1.msra.mxu0 0.0
  %5195 = vmatprep.subr.mxu0 0.0
  %5196 = vmatpush1.msra.mxu0 0.0
  %5197 = vmatprep.subr.mxu0 0.0
  %5198 = vmatpush1.msra.mxu0 0.0
  %5199 = vmatprep.subr.mxu0 0.0
  %5200 = vmatpush1.msra.mxu0 0.0
  %5201 = vmatprep.subr.mxu0 0.0
  %5202 = vmatpush1.msra.mxu0 0.0
  %5203 = vmatprep.subr.mxu0 0.0
  %5204 = vmatpush1.msra.mxu0 0.0
  %5205 = vmatprep.subr.mxu0 0.0
  %5206 = vmatpush1.msra.mxu0 0.0
  %5207 = vmatprep.subr.mxu0 0.0
  %5208 = vmatpush1.msra.mxu0 0.0
  %5209 = vmatprep.subr.mxu0 0.0
  %5210 = vmatpush1.msra.mxu0 0.0
  %5211 = vmatprep.subr.mxu0 0.0
  %5212 = vmatpush1.msra.mxu0 0.0
  %5213 = vmatprep.subr.mxu0 0.0
  %5214 = vmatpush1.msra.mxu0 0.0
  %5215 = vmatprep.subr.mxu0 0.0
  %5216 = vmatpush1.msra.mxu0 0.0
  %5217 = vmatprep.subr.mxu0 0.0
  %5218 = vmatpush1.msra.mxu0 0.0
  %5219 = vmatprep.subr.mxu0 0.0
  %5220 = vmatpush1.msra.mxu0 0.0
  %5221 = vmatprep.subr.mxu0 0.0
  %5222 = vmatpush1.msra.mxu0 0.0
  %5223 = vmatprep.subr.mxu0 0.0
  %5224 = vmatpush1.msra.mxu0 0.0
  %5225 = vmatprep.subr.mxu0 0.0
  %5226 = vmatpush1.msra.mxu0 0.0
  %5227 = vmatprep.subr.mxu0 0.0
  %5228 = vmatpush1.msra.mxu0 0.0
  %5229 = vmatprep.subr.mxu0 0.0
  %5230 = vmatpush1.msra.mxu0 0.0
  %5231 = vmatprep.subr.mxu0 0.0
  %5232 = vmatpush1.msra.mxu0 0.0
  %5233 = vmatprep.subr.mxu0 0.0
  %5234 = vmatpush1.msra.mxu0 0.0
  %5235 = vmatprep.subr.mxu0 0.0
  %5236 = vmatpush1.msra.mxu0 0.0
  %5237 = vmatprep.subr.mxu0 0.0
  %5238 = vmatpush1.msra.mxu0 0.0
  %5239 = vmatprep.mubr.f32.mxu0 0.0
  %v5240 = vand.u32 %v4718, 4294901760
  %5241 = vmatmul.mubr.f32.gmra.mrb[0].mxu0 %v5240
  %v5242 = vpop.f32.mrb[0].mxu0
  %v5243 = vadd.f32 %v5132, %v5242
  %v5244 = vpop.f32.mrb[0].mxu0
  %5245 = vmatprep.mubr.f32.mxu0 0.0
  %v5246 = vand.u32 %v4721, 4294901760
  %5247 = vmatmul.mubr.f32.gmra.mrb[0].mxu0 %v5246
  %v5248 = vpop.f32.mrb[0].mxu0
  %v5249 = vadd.f32 %v5140, %v5248
  %v5250 = vpop.f32.mrb[0].mxu0
  %5251 = vmatprep.mubr.f32.mxu0 0.0
  %v5252 = vand.u32 %v4724, 4294901760
  %5253 = vmatmul.mubr.f32.gmra.mrb[0].mxu0 %v5252
  %v5254 = vpop.f32.mrb[0].mxu0
  %v5255 = vadd.f32 %v5148, %v5254
  %v5256 = vpop.f32.mrb[0].mxu0
  %5257 = vdwg.mxu0
  %5258 = vmatprep.subr.mxu0 0.0
  %v5259 = vand.u32 %v4703, 4294901760
  %5260 = vmatpush1.msra.mxu0 %v5259
  %5261 = vmatprep.subr.mxu0 0.0
  %v5262 = vand.u32 %v4704, 4294901760
  %5263 = vmatpush1.msra.mxu0 %v5262
  %5264 = vmatprep.subr.mxu0 0.0
  %v5265 = vand.u32 %v4705, 4294901760
  %5266 = vmatpush1.msra.mxu0 %v5265
  %5267 = vmatprep.subr.mxu0 0.0
  %v5268 = vand.u32 %v4706, 4294901760
  %5269 = vmatpush1.msra.mxu0 %v5268
  %5270 = vmatprep.subr.mxu0 0.0
  %v5271 = vand.u32 %v4707, 4294901760
  %5272 = vmatpush1.msra.mxu0 %v5271
  %5273 = vmatprep.subr.mxu0 0.0
  %v5274 = vand.u32 %v4708, 4294901760
  %5275 = vmatpush1.msra.mxu0 %v5274
  %5276 = vmatprep.subr.mxu0 0.0
  %v5277 = vand.u32 %v4709, 4294901760
  %5278 = vmatpush1.msra.mxu0 %v5277
  %5279 = vmatprep.subr.mxu0 0.0
  %v5280 = vand.u32 %v4710, 4294901760
  %5281 = vmatpush1.msra.mxu0 %v5280
  %5282 = vmatprep.subr.mxu0 0.0
  %5283 = vmatpush1.msra.mxu0 0.0
  %5284 = vmatprep.subr.mxu0 0.0
  %5285 = vmatpush1.msra.mxu0 0.0
  %5286 = vmatprep.subr.mxu0 0.0
  %5287 = vmatpush1.msra.mxu0 0.0
  %5288 = vmatprep.subr.mxu0 0.0
  %5289 = vmatpush1.msra.mxu0 0.0
  %5290 = vmatprep.subr.mxu0 0.0
  %5291 = vmatpush1.msra.mxu0 0.0
  %5292 = vmatprep.subr.mxu0 0.0
  %5293 = vmatpush1.msra.mxu0 0.0
  %5294 = vmatprep.subr.mxu0 0.0
  %5295 = vmatpush1.msra.mxu0 0.0
  %5296 = vmatprep.subr.mxu0 0.0
  %5297 = vmatpush1.msra.mxu0 0.0
  %5298 = vmatprep.subr.mxu0 0.0
  %5299 = vmatpush1.msra.mxu0 0.0
  %5300 = vmatprep.subr.mxu0 0.0
  %5301 = vmatpush1.msra.mxu0 0.0
  %5302 = vmatprep.subr.mxu0 0.0
  %5303 = vmatpush1.msra.mxu0 0.0
  %5304 = vmatprep.subr.mxu0 0.0
  %5305 = vmatpush1.msra.mxu0 0.0
  %5306 = vmatprep.subr.mxu0 0.0
  %5307 = vmatpush1.msra.mxu0 0.0
  %5308 = vmatprep.subr.mxu0 0.0
  %5309 = vmatpush1.msra.mxu0 0.0
  %5310 = vmatprep.subr.mxu0 0.0
  %5311 = vmatpush1.msra.mxu0 0.0
  %5312 = vmatprep.subr.mxu0 0.0
  %5313 = vmatpush1.msra.mxu0 0.0
  %5314 = vmatprep.subr.mxu0 0.0
  %5315 = vmatpush1.msra.mxu0 0.0
  %5316 = vmatprep.subr.mxu0 0.0
  %5317 = vmatpush1.msra.mxu0 0.0
  %5318 = vmatprep.subr.mxu0 0.0
  %5319 = vmatpush1.msra.mxu0 0.0
  %5320 = vmatprep.subr.mxu0 0.0
  %5321 = vmatpush1.msra.mxu0 0.0
  %5322 = vmatprep.subr.mxu0 0.0
  %5323 = vmatpush1.msra.mxu0 0.0
  %5324 = vmatprep.subr.mxu0 0.0
  %5325 = vmatpush1.msra.mxu0 0.0
  %5326 = vmatprep.subr.mxu0 0.0
  %5327 = vmatpush1.msra.mxu0 0.0
  %5328 = vmatprep.subr.mxu0 0.0
  %5329 = vmatpush1.msra.mxu0 0.0
  %5330 = vmatprep.mubr.f32.mxu0 0.0
  %v5331 = vand.u32 %v4718, 4294901760
  %5332 = vmatmul.mubr.f32.gmra.mrb[0].mxu0 %v5331
  %v5333 = vpop.f32.mrb[0].mxu0
  %v5334 = vadd.f32 %v5243, %v5333
  %v5335 = vpop.f32.mrb[0].mxu0
  %5336 = vmatprep.mubr.f32.mxu0 0.0
  %v5337 = vand.u32 %v4721, 4294901760
  %5338 = vmatmul.mubr.f32.gmra.mrb[0].mxu0 %v5337
  %v5339 = vpop.f32.mrb[0].mxu0
  %v5340 = vadd.f32 %v5249, %v5339
  %v5341 = vpop.f32.mrb[0].mxu0
  %5342 = vmatprep.mubr.f32.mxu0 0.0
  %v5343 = vand.u32 %v4724, 4294901760
  %5344 = vmatmul.mubr.f32.gmra.mrb[0].mxu0 %v5343
  %v5345 = vpop.f32.mrb[0].mxu0
  %v5346 = vadd.f32 %v5255, %v5345
  %v5347 = vpop.f32.mrb[0].mxu0
  %5348 = vdwg.mxu0
  %v5349 = vadd.f32 %v4108, %v5334
  %v5350 = vadd.f32 %v4109, %v5340
  %v5351 = vadd.f32 %v4110, %v5346
  %v5352 = vld [vmem:[%s1 + $0x1b0] sm:$0x1]
  %v5353 = vld [vmem:[%s1 + $0x1b8] sm:$0x1]
  %v5354 = vsel %vm598, %v5349, 0.0
  %5355 = vadd.xlane.f32.xlu0 %v5354
  %v5356 = vpop.xlane.xlu0 %5355
  %v5357 = vsel %vm598, %v5350, 0.0
  %5358 = vadd.xlane.f32.xlu0 %v5357
  %v5359 = vpop.xlane.xlu0 %5358
  %v5360 = vsel %vm598, %v5351, 0.0
  %5361 = vadd.xlane.f32.xlu0 %v5360
  %v5362 = vpop.xlane.xlu0 %5361
  %v5363 = vmul.f32 %v5356, %v4066
  %v5364 = vmul.f32 %v5359, %v4066
  %v5365 = vmul.f32 %v5362, %v4066
  %v5366 = vsub.f32 %v5349, %v5363
  %v5367 = vsub.f32 %v5350, %v5364
  %v5368 = vsub.f32 %v5351, %v5365
  %v5369 = vmul.f32 %v5366, %v5366
  %v5370 = vmul.f32 %v5367, %v5367
  %v5371 = vmul.f32 %v5368, %v5368
  %v5372 = vsel %vm598, %v5369, 0.0
  %5373 = vadd.xlane.f32.xlu0 %v5372
  %v5374 = vpop.xlane.xlu0 %5373
  %v5375 = vsel %vm598, %v5370, 0.0
  %5376 = vadd.xlane.f32.xlu0 %v5375
  %v5377 = vpop.xlane.xlu0 %5376
  %v5378 = vsel %vm598, %v5371, 0.0
  %5379 = vadd.xlane.f32.xlu0 %v5378
  %v5380 = vpop.xlane.xlu0 %5379
  %v5381 = vmul.f32 %v5374, %v4066
  %v5382 = vmul.f32 %v5377, %v4066
  %v5383 = vmul.f32 %v5380, %v4066
  %v5384 = vadd.f32 %v5381, 1e-05
  %v5385 = vadd.f32 %v5382, 1e-05
  %v5386 = vadd.f32 %v5383, 1e-05
  %v5387 = vrsqrt.pop %v5384
  %v5388 = vrsqrt.pop %v5385
  %v5389 = vrsqrt.pop %v5386
  %v5390 = vmul.f32 %v5366, %v5387
  %v5391 = vmul.f32 %v5367, %v5388
  %v5392 = vmul.f32 %v5368, %v5389
  %v5393 = vlaneseq
  %v5394 = vshrl.u32 %v5393, 7
  %v5395 = vsub.s32 0, %v5394
  %v5396 = vrot.slane %v5352, %v5395
  %v5397 = vmul.f32 %v5390, %v5396
  %v5398 = vmul.f32 %v5391, %v5396
  %v5399 = vmul.f32 %v5392, %v5396
  %v5400 = vlaneseq
  %v5401 = vshrl.u32 %v5400, 7
  %v5402 = vsub.s32 0, %v5401
  %v5403 = vrot.slane %v5353, %v5402
  %v5404 = vadd.f32 %v5397, %v5403
  %v5405 = vadd.f32 %v5398, %v5403
  %v5406 = vadd.f32 %v5399, %v5403
  %v5407 = vld [vmem:[%s1 + $0x1c0] sm:$0xff]
  %v5408 = vld [vmem:[%s1 + $0x1c8] sm:$0xff]
  %v5409 = vld [vmem:[%s1 + $0x1d0] sm:$0xff]
  %v5410 = vld [vmem:[%s1 + $0x1d8] sm:$0xff]
  %v5411 = vld [vmem:[%s1 + $0x260] sm:$0x1]
  %v5412 = vlaneseq
  %v5413 = vshrl.u32 %v5412, 7
  %v5414 = vsub.s32 0, %v5413
  %v5415 = vrot.slane %v5411, %v5414
  %v5417 = vsel %vm598, %v5404, 0
  %v5420 = vsel %vm598, %v5405, 0
  %v5423 = vsel %vm598, %v5406, 0
  %5425 = vmatprep.subr.mxu0 0.0
  %v5426 = vand.u32 %v5407, 4294901760
  %5427 = vmatpush1.msra.mxu0 %v5426
  %5428 = vmatprep.subr.mxu0 0.0
  %v5429 = vand.u32 %v5408, 4294901760
  %5430 = vmatpush1.msra.mxu0 %v5429
  %5431 = vmatprep.subr.mxu0 0.0
  %v5432 = vand.u32 %v5409, 4294901760
  %5433 = vmatpush1.msra.mxu0 %v5432
  %5434 = vmatprep.subr.mxu0 0.0
  %v5435 = vand.u32 %v5410, 4294901760
  %5436 = vmatpush1.msra.mxu0 %v5435
  %5437 = vmatprep.subr.mxu0 0.0
  %5438 = vmatpush1.msra.mxu0 0.0
  %5439 = vmatprep.subr.mxu0 0.0
  %5440 = vmatpush1.msra.mxu0 0.0
  %5441 = vmatprep.subr.mxu0 0.0
  %5442 = vmatpush1.msra.mxu0 0.0
  %5443 = vmatprep.subr.mxu0 0.0
  %5444 = vmatpush1.msra.mxu0 0.0
  %5445 = vmatprep.subr.mxu0 0.0
  %5446 = vmatpush1.msra.mxu0 0.0
  %5447 = vmatprep.subr.mxu0 0.0
  %5448 = vmatpush1.msra.mxu0 0.0
  %5449 = vmatprep.subr.mxu0 0.0
  %5450 = vmatpush1.msra.mxu0 0.0
  %5451 = vmatprep.subr.mxu0 0.0
  %5452 = vmatpush1.msra.mxu0 0.0
  %5453 = vmatprep.subr.mxu0 0.0
  %5454 = vmatpush1.msra.mxu0 0.0
  %5455 = vmatprep.subr.mxu0 0.0
  %5456 = vmatpush1.msra.mxu0 0.0
  %5457 = vmatprep.subr.mxu0 0.0
  %5458 = vmatpush1.msra.mxu0 0.0
  %5459 = vmatprep.subr.mxu0 0.0
  %5460 = vmatpush1.msra.mxu0 0.0
  %5461 = vmatprep.subr.mxu0 0.0
  %5462 = vmatpush1.msra.mxu0 0.0
  %5463 = vmatprep.subr.mxu0 0.0
  %5464 = vmatpush1.msra.mxu0 0.0
  %5465 = vmatprep.subr.mxu0 0.0
  %5466 = vmatpush1.msra.mxu0 0.0
  %5467 = vmatprep.subr.mxu0 0.0
  %5468 = vmatpush1.msra.mxu0 0.0
  %5469 = vmatprep.subr.mxu0 0.0
  %5470 = vmatpush1.msra.mxu0 0.0
  %5471 = vmatprep.subr.mxu0 0.0
  %5472 = vmatpush1.msra.mxu0 0.0
  %5473 = vmatprep.subr.mxu0 0.0
  %5474 = vmatpush1.msra.mxu0 0.0
  %5475 = vmatprep.subr.mxu0 0.0
  %5476 = vmatpush1.msra.mxu0 0.0
  %5477 = vmatprep.subr.mxu0 0.0
  %5478 = vmatpush1.msra.mxu0 0.0
  %5479 = vmatprep.subr.mxu0 0.0
  %5480 = vmatpush1.msra.mxu0 0.0
  %5481 = vmatprep.subr.mxu0 0.0
  %5482 = vmatpush1.msra.mxu0 0.0
  %5483 = vmatprep.subr.mxu0 0.0
  %5484 = vmatpush1.msra.mxu0 0.0
  %5485 = vmatprep.subr.mxu0 0.0
  %5486 = vmatpush1.msra.mxu0 0.0
  %5487 = vmatprep.subr.mxu0 0.0
  %5488 = vmatpush1.msra.mxu0 0.0
  %5489 = vmatprep.subr.mxu0 0.0
  %5490 = vmatpush1.msra.mxu0 0.0
  %5491 = vmatprep.subr.mxu0 0.0
  %5492 = vmatpush1.msra.mxu0 0.0
  %5493 = vmatprep.mubr.f32.mxu0 0.0
  %v5494 = vand.u32 %v5417, 4294901760
  %v5495 = vsub.f32 %v5417, %v5494
  %v5496 = vand.u32 %v5495, 4294901760
  %v5497 = vsub.f32 %v5495, %v5496
  %v5498 = vand.u32 %v5497, 4294901760
  %5499 = vmatmul.mubr.f32.gmra.mrb[0].mxu0 %v5498
  %v5500 = vpop.f32.mrb[0].mxu0
  %v5501 = vadd.f32 %v5415, %v5500
  %v5502 = vpop.f32.mrb[0].mxu0
  %5503 = vmatprep.mubr.f32.mxu0 0.0
  %v5504 = vand.u32 %v5420, 4294901760
  %v5505 = vsub.f32 %v5420, %v5504
  %v5506 = vand.u32 %v5505, 4294901760
  %v5507 = vsub.f32 %v5505, %v5506
  %v5508 = vand.u32 %v5507, 4294901760
  %5509 = vmatmul.mubr.f32.gmra.mrb[0].mxu0 %v5508
  %v5510 = vpop.f32.mrb[0].mxu0
  %v5511 = vadd.f32 %v5415, %v5510
  %v5512 = vpop.f32.mrb[0].mxu0
  %5513 = vmatprep.mubr.f32.mxu0 0.0
  %v5514 = vand.u32 %v5423, 4294901760
  %v5515 = vsub.f32 %v5423, %v5514
  %v5516 = vand.u32 %v5515, 4294901760
  %v5517 = vsub.f32 %v5515, %v5516
  %v5518 = vand.u32 %v5517, 4294901760
  %5519 = vmatmul.mubr.f32.gmra.mrb[0].mxu0 %v5518
  %v5520 = vpop.f32.mrb[0].mxu0
  %v5521 = vadd.f32 %v5415, %v5520
  %v5522 = vpop.f32.mrb[0].mxu0
  %5523 = vdwg.mxu0
  %5524 = vmatprep.subr.mxu0 0.0
  %v5525 = vand.u32 %v5407, 4294901760
  %v5526 = vsub.f32 %v5407, %v5525
  %v5527 = vand.u32 %v5526, 4294901760
  %v5528 = vsub.f32 %v5526, %v5527
  %v5529 = vand.u32 %v5528, 4294901760
  %5530 = vmatpush1.msra.mxu0 %v5529
  %5531 = vmatprep.subr.mxu0 0.0
  %v5532 = vand.u32 %v5408, 4294901760
  %v5533 = vsub.f32 %v5408, %v5532
  %v5534 = vand.u32 %v5533, 4294901760
  %v5535 = vsub.f32 %v5533, %v5534
  %v5536 = vand.u32 %v5535, 4294901760
  %5537 = vmatpush1.msra.mxu0 %v5536
  %5538 = vmatprep.subr.mxu0 0.0
  %v5539 = vand.u32 %v5409, 4294901760
  %v5540 = vsub.f32 %v5409, %v5539
  %v5541 = vand.u32 %v5540, 4294901760
  %v5542 = vsub.f32 %v5540, %v5541
  %v5543 = vand.u32 %v5542, 4294901760
  %5544 = vmatpush1.msra.mxu0 %v5543
  %5545 = vmatprep.subr.mxu0 0.0
  %v5546 = vand.u32 %v5410, 4294901760
  %v5547 = vsub.f32 %v5410, %v5546
  %v5548 = vand.u32 %v5547, 4294901760
  %v5549 = vsub.f32 %v5547, %v5548
  %v5550 = vand.u32 %v5549, 4294901760
  %5551 = vmatpush1.msra.mxu0 %v5550
  %5552 = vmatprep.subr.mxu0 0.0
  %5553 = vmatpush1.msra.mxu0 0.0
  %5554 = vmatprep.subr.mxu0 0.0
  %5555 = vmatpush1.msra.mxu0 0.0
  %5556 = vmatprep.subr.mxu0 0.0
  %5557 = vmatpush1.msra.mxu0 0.0
  %5558 = vmatprep.subr.mxu0 0.0
  %5559 = vmatpush1.msra.mxu0 0.0
  %5560 = vmatprep.subr.mxu0 0.0
  %5561 = vmatpush1.msra.mxu0 0.0
  %5562 = vmatprep.subr.mxu0 0.0
  %5563 = vmatpush1.msra.mxu0 0.0
  %5564 = vmatprep.subr.mxu0 0.0
  %5565 = vmatpush1.msra.mxu0 0.0
  %5566 = vmatprep.subr.mxu0 0.0
  %5567 = vmatpush1.msra.mxu0 0.0
  %5568 = vmatprep.subr.mxu0 0.0
  %5569 = vmatpush1.msra.mxu0 0.0
  %5570 = vmatprep.subr.mxu0 0.0
  %5571 = vmatpush1.msra.mxu0 0.0
  %5572 = vmatprep.subr.mxu0 0.0
  %5573 = vmatpush1.msra.mxu0 0.0
  %5574 = vmatprep.subr.mxu0 0.0
  %5575 = vmatpush1.msra.mxu0 0.0
  %5576 = vmatprep.subr.mxu0 0.0
  %5577 = vmatpush1.msra.mxu0 0.0
  %5578 = vmatprep.subr.mxu0 0.0
  %5579 = vmatpush1.msra.mxu0 0.0
  %5580 = vmatprep.subr.mxu0 0.0
  %5581 = vmatpush1.msra.mxu0 0.0
  %5582 = vmatprep.subr.mxu0 0.0
  %5583 = vmatpush1.msra.mxu0 0.0
  %5584 = vmatprep.subr.mxu0 0.0
  %5585 = vmatpush1.msra.mxu0 0.0
  %5586 = vmatprep.subr.mxu0 0.0
  %5587 = vmatpush1.msra.mxu0 0.0
  %5588 = vmatprep.subr.mxu0 0.0
  %5589 = vmatpush1.msra.mxu0 0.0
  %5590 = vmatprep.subr.mxu0 0.0
  %5591 = vmatpush1.msra.mxu0 0.0
  %5592 = vmatprep.subr.mxu0 0.0
  %5593 = vmatpush1.msra.mxu0 0.0
  %5594 = vmatprep.subr.mxu0 0.0
  %5595 = vmatpush1.msra.mxu0 0.0
  %5596 = vmatprep.subr.mxu0 0.0
  %5597 = vmatpush1.msra.mxu0 0.0
  %5598 = vmatprep.subr.mxu0 0.0
  %5599 = vmatpush1.msra.mxu0 0.0
  %5600 = vmatprep.subr.mxu0 0.0
  %5601 = vmatpush1.msra.mxu0 0.0
  %5602 = vmatprep.subr.mxu0 0.0
  %5603 = vmatpush1.msra.mxu0 0.0
  %5604 = vmatprep.subr.mxu0 0.0
  %5605 = vmatpush1.msra.mxu0 0.0
  %5606 = vmatprep.subr.mxu0 0.0
  %5607 = vmatpush1.msra.mxu0 0.0
  %5608 = vmatprep.mubr.f32.mxu0 0.0
  %v5609 = vand.u32 %v5417, 4294901760
  %5610 = vmatmul.mubr.f32.gmra.mrb[0].mxu0 %v5609
  %v5611 = vpop.f32.mrb[0].mxu0
  %v5612 = vadd.f32 %v5501, %v5611
  %v5613 = vpop.f32.mrb[0].mxu0
  %5614 = vmatprep.mubr.f32.mxu0 0.0
  %v5615 = vand.u32 %v5420, 4294901760
  %5616 = vmatmul.mubr.f32.gmra.mrb[0].mxu0 %v5615
  %v5617 = vpop.f32.mrb[0].mxu0
  %v5618 = vadd.f32 %v5511, %v5617
  %v5619 = vpop.f32.mrb[0].mxu0
  %5620 = vmatprep.mubr.f32.mxu0 0.0
  %v5621 = vand.u32 %v5423, 4294901760
  %5622 = vmatmul.mubr.f32.gmra.mrb[0].mxu0 %v5621
  %v5623 = vpop.f32.mrb[0].mxu0
  %v5624 = vadd.f32 %v5521, %v5623
  %v5625 = vpop.f32.mrb[0].mxu0
  %5626 = vdwg.mxu0
  %5627 = vmatprep.subr.mxu0 0.0
  %v5628 = vand.u32 %v5407, 4294901760
  %v5629 = vsub.f32 %v5407, %v5628
  %5630 = vmatpush1.msra.mxu0 %v5629
  %5631 = vmatprep.subr.mxu0 0.0
  %v5632 = vand.u32 %v5408, 4294901760
  %v5633 = vsub.f32 %v5408, %v5632
  %5634 = vmatpush1.msra.mxu0 %v5633
  %5635 = vmatprep.subr.mxu0 0.0
  %v5636 = vand.u32 %v5409, 4294901760
  %v5637 = vsub.f32 %v5409, %v5636
  %5638 = vmatpush1.msra.mxu0 %v5637
  %5639 = vmatprep.subr.mxu0 0.0
  %v5640 = vand.u32 %v5410, 4294901760
  %v5641 = vsub.f32 %v5410, %v5640
  %5642 = vmatpush1.msra.mxu0 %v5641
  %5643 = vmatprep.subr.mxu0 0.0
  %5644 = vmatpush1.msra.mxu0 0.0
  %5645 = vmatprep.subr.mxu0 0.0
  %5646 = vmatpush1.msra.mxu0 0.0
  %5647 = vmatprep.subr.mxu0 0.0
  %5648 = vmatpush1.msra.mxu0 0.0
  %5649 = vmatprep.subr.mxu0 0.0
  %5650 = vmatpush1.msra.mxu0 0.0
  %5651 = vmatprep.subr.mxu0 0.0
  %5652 = vmatpush1.msra.mxu0 0.0
  %5653 = vmatprep.subr.mxu0 0.0
  %5654 = vmatpush1.msra.mxu0 0.0
  %5655 = vmatprep.subr.mxu0 0.0
  %5656 = vmatpush1.msra.mxu0 0.0
  %5657 = vmatprep.subr.mxu0 0.0
  %5658 = vmatpush1.msra.mxu0 0.0
  %5659 = vmatprep.subr.mxu0 0.0
  %5660 = vmatpush1.msra.mxu0 0.0
  %5661 = vmatprep.subr.mxu0 0.0
  %5662 = vmatpush1.msra.mxu0 0.0
  %5663 = vmatprep.subr.mxu0 0.0
  %5664 = vmatpush1.msra.mxu0 0.0
  %5665 = vmatprep.subr.mxu0 0.0
  %5666 = vmatpush1.msra.mxu0 0.0
  %5667 = vmatprep.subr.mxu0 0.0
  %5668 = vmatpush1.msra.mxu0 0.0
  %5669 = vmatprep.subr.mxu0 0.0
  %5670 = vmatpush1.msra.mxu0 0.0
  %5671 = vmatprep.subr.mxu0 0.0
  %5672 = vmatpush1.msra.mxu0 0.0
  %5673 = vmatprep.subr.mxu0 0.0
  %5674 = vmatpush1.msra.mxu0 0.0
  %5675 = vmatprep.subr.mxu0 0.0
  %5676 = vmatpush1.msra.mxu0 0.0
  %5677 = vmatprep.subr.mxu0 0.0
  %5678 = vmatpush1.msra.mxu0 0.0
  %5679 = vmatprep.subr.mxu0 0.0
  %5680 = vmatpush1.msra.mxu0 0.0
  %5681 = vmatprep.subr.mxu0 0.0
  %5682 = vmatpush1.msra.mxu0 0.0
  %5683 = vmatprep.subr.mxu0 0.0
  %5684 = vmatpush1.msra.mxu0 0.0
  %5685 = vmatprep.subr.mxu0 0.0
  %5686 = vmatpush1.msra.mxu0 0.0
  %5687 = vmatprep.subr.mxu0 0.0
  %5688 = vmatpush1.msra.mxu0 0.0
  %5689 = vmatprep.subr.mxu0 0.0
  %5690 = vmatpush1.msra.mxu0 0.0
  %5691 = vmatprep.subr.mxu0 0.0
  %5692 = vmatpush1.msra.mxu0 0.0
  %5693 = vmatprep.subr.mxu0 0.0
  %5694 = vmatpush1.msra.mxu0 0.0
  %5695 = vmatprep.subr.mxu0 0.0
  %5696 = vmatpush1.msra.mxu0 0.0
  %5697 = vmatprep.subr.mxu0 0.0
  %5698 = vmatpush1.msra.mxu0 0.0
  %5699 = vmatprep.mubr.f32.mxu0 0.0
  %v5700 = vand.u32 %v5417, 4294901760
  %v5701 = vsub.f32 %v5417, %v5700
  %5702 = vmatmul.mubr.f32.gmra.mrb[0].mxu0 %v5701
  %v5703 = vpop.f32.mrb[0].mxu0
  %v5704 = vadd.f32 %v5612, %v5703
  %v5705 = vpop.f32.mrb[0].mxu0
  %5706 = vmatprep.mubr.f32.mxu0 0.0
  %v5707 = vand.u32 %v5420, 4294901760
  %v5708 = vsub.f32 %v5420, %v5707
  %5709 = vmatmul.mubr.f32.gmra.mrb[0].mxu0 %v5708
  %v5710 = vpop.f32.mrb[0].mxu0
  %v5711 = vadd.f32 %v5618, %v5710
  %v5712 = vpop.f32.mrb[0].mxu0
  %5713 = vmatprep.mubr.f32.mxu0 0.0
  %v5714 = vand.u32 %v5423, 4294901760
  %v5715 = vsub.f32 %v5423, %v5714
  %5716 = vmatmul.mubr.f32.gmra.mrb[0].mxu0 %v5715
  %v5717 = vpop.f32.mrb[0].mxu0
  %v5718 = vadd.f32 %v5624, %v5717
  %v5719 = vpop.f32.mrb[0].mxu0
  %5720 = vdwg.mxu0
  %5721 = vmatprep.subr.mxu0 0.0
  %v5722 = vand.u32 %v5407, 4294901760
  %5723 = vmatpush1.msra.mxu0 %v5722
  %5724 = vmatprep.subr.mxu0 0.0
  %v5725 = vand.u32 %v5408, 4294901760
  %5726 = vmatpush1.msra.mxu0 %v5725
  %5727 = vmatprep.subr.mxu0 0.0
  %v5728 = vand.u32 %v5409, 4294901760
  %5729 = vmatpush1.msra.mxu0 %v5728
  %5730 = vmatprep.subr.mxu0 0.0
  %v5731 = vand.u32 %v5410, 4294901760
  %5732 = vmatpush1.msra.mxu0 %v5731
  %5733 = vmatprep.subr.mxu0 0.0
  %5734 = vmatpush1.msra.mxu0 0.0
  %5735 = vmatprep.subr.mxu0 0.0
  %5736 = vmatpush1.msra.mxu0 0.0
  %5737 = vmatprep.subr.mxu0 0.0
  %5738 = vmatpush1.msra.mxu0 0.0
  %5739 = vmatprep.subr.mxu0 0.0
  %5740 = vmatpush1.msra.mxu0 0.0
  %5741 = vmatprep.subr.mxu0 0.0
  %5742 = vmatpush1.msra.mxu0 0.0
  %5743 = vmatprep.subr.mxu0 0.0
  %5744 = vmatpush1.msra.mxu0 0.0
  %5745 = vmatprep.subr.mxu0 0.0
  %5746 = vmatpush1.msra.mxu0 0.0
  %5747 = vmatprep.subr.mxu0 0.0
  %5748 = vmatpush1.msra.mxu0 0.0
  %5749 = vmatprep.subr.mxu0 0.0
  %5750 = vmatpush1.msra.mxu0 0.0
  %5751 = vmatprep.subr.mxu0 0.0
  %5752 = vmatpush1.msra.mxu0 0.0
  %5753 = vmatprep.subr.mxu0 0.0
  %5754 = vmatpush1.msra.mxu0 0.0
  %5755 = vmatprep.subr.mxu0 0.0
  %5756 = vmatpush1.msra.mxu0 0.0
  %5757 = vmatprep.subr.mxu0 0.0
  %5758 = vmatpush1.msra.mxu0 0.0
  %5759 = vmatprep.subr.mxu0 0.0
  %5760 = vmatpush1.msra.mxu0 0.0
  %5761 = vmatprep.subr.mxu0 0.0
  %5762 = vmatpush1.msra.mxu0 0.0
  %5763 = vmatprep.subr.mxu0 0.0
  %5764 = vmatpush1.msra.mxu0 0.0
  %5765 = vmatprep.subr.mxu0 0.0
  %5766 = vmatpush1.msra.mxu0 0.0
  %5767 = vmatprep.subr.mxu0 0.0
  %5768 = vmatpush1.msra.mxu0 0.0
  %5769 = vmatprep.subr.mxu0 0.0
  %5770 = vmatpush1.msra.mxu0 0.0
  %5771 = vmatprep.subr.mxu0 0.0
  %5772 = vmatpush1.msra.mxu0 0.0
  %5773 = vmatprep.subr.mxu0 0.0
  %5774 = vmatpush1.msra.mxu0 0.0
  %5775 = vmatprep.subr.mxu0 0.0
  %5776 = vmatpush1.msra.mxu0 0.0
  %5777 = vmatprep.subr.mxu0 0.0
  %5778 = vmatpush1.msra.mxu0 0.0
  %5779 = vmatprep.subr.mxu0 0.0
  %5780 = vmatpush1.msra.mxu0 0.0
  %5781 = vmatprep.subr.mxu0 0.0
  %5782 = vmatpush1.msra.mxu0 0.0
  %5783 = vmatprep.subr.mxu0 0.0
  %5784 = vmatpush1.msra.mxu0 0.0
  %5785 = vmatprep.subr.mxu0 0.0
  %5786 = vmatpush1.msra.mxu0 0.0
  %5787 = vmatprep.subr.mxu0 0.0
  %5788 = vmatpush1.msra.mxu0 0.0
  %5789 = vmatprep.mubr.f32.mxu0 0.0
  %v5790 = vand.u32 %v5417, 4294901760
  %v5791 = vsub.f32 %v5417, %v5790
  %v5792 = vand.u32 %v5791, 4294901760
  %5793 = vmatmul.mubr.f32.gmra.mrb[0].mxu0 %v5792
  %v5794 = vpop.f32.mrb[0].mxu0
  %v5795 = vadd.f32 %v5704, %v5794
  %v5796 = vpop.f32.mrb[0].mxu0
  %5797 = vmatprep.mubr.f32.mxu0 0.0
  %v5798 = vand.u32 %v5420, 4294901760
  %v5799 = vsub.f32 %v5420, %v5798
  %v5800 = vand.u32 %v5799, 4294901760
  %5801 = vmatmul.mubr.f32.gmra.mrb[0].mxu0 %v5800
  %v5802 = vpop.f32.mrb[0].mxu0
  %v5803 = vadd.f32 %v5711, %v5802
  %v5804 = vpop.f32.mrb[0].mxu0
  %5805 = vmatprep.mubr.f32.mxu0 0.0
  %v5806 = vand.u32 %v5423, 4294901760
  %v5807 = vsub.f32 %v5423, %v5806
  %v5808 = vand.u32 %v5807, 4294901760
  %5809 = vmatmul.mubr.f32.gmra.mrb[0].mxu0 %v5808
  %v5810 = vpop.f32.mrb[0].mxu0
  %v5811 = vadd.f32 %v5718, %v5810
  %v5812 = vpop.f32.mrb[0].mxu0
  %5813 = vdwg.mxu0
  %5814 = vmatprep.subr.mxu0 0.0
  %v5815 = vand.u32 %v5407, 4294901760
  %v5816 = vsub.f32 %v5407, %v5815
  %v5817 = vand.u32 %v5816, 4294901760
  %5818 = vmatpush1.msra.mxu0 %v5817
  %5819 = vmatprep.subr.mxu0 0.0
  %v5820 = vand.u32 %v5408, 4294901760
  %v5821 = vsub.f32 %v5408, %v5820
  %v5822 = vand.u32 %v5821, 4294901760
  %5823 = vmatpush1.msra.mxu0 %v5822
  %5824 = vmatprep.subr.mxu0 0.0
  %v5825 = vand.u32 %v5409, 4294901760
  %v5826 = vsub.f32 %v5409, %v5825
  %v5827 = vand.u32 %v5826, 4294901760
  %5828 = vmatpush1.msra.mxu0 %v5827
  %5829 = vmatprep.subr.mxu0 0.0
  %v5830 = vand.u32 %v5410, 4294901760
  %v5831 = vsub.f32 %v5410, %v5830
  %v5832 = vand.u32 %v5831, 4294901760
  %5833 = vmatpush1.msra.mxu0 %v5832
  %5834 = vmatprep.subr.mxu0 0.0
  %5835 = vmatpush1.msra.mxu0 0.0
  %5836 = vmatprep.subr.mxu0 0.0
  %5837 = vmatpush1.msra.mxu0 0.0
  %5838 = vmatprep.subr.mxu0 0.0
  %5839 = vmatpush1.msra.mxu0 0.0
  %5840 = vmatprep.subr.mxu0 0.0
  %5841 = vmatpush1.msra.mxu0 0.0
  %5842 = vmatprep.subr.mxu0 0.0
  %5843 = vmatpush1.msra.mxu0 0.0
  %5844 = vmatprep.subr.mxu0 0.0
  %5845 = vmatpush1.msra.mxu0 0.0
  %5846 = vmatprep.subr.mxu0 0.0
  %5847 = vmatpush1.msra.mxu0 0.0
  %5848 = vmatprep.subr.mxu0 0.0
  %5849 = vmatpush1.msra.mxu0 0.0
  %5850 = vmatprep.subr.mxu0 0.0
  %5851 = vmatpush1.msra.mxu0 0.0
  %5852 = vmatprep.subr.mxu0 0.0
  %5853 = vmatpush1.msra.mxu0 0.0
  %5854 = vmatprep.subr.mxu0 0.0
  %5855 = vmatpush1.msra.mxu0 0.0
  %5856 = vmatprep.subr.mxu0 0.0
  %5857 = vmatpush1.msra.mxu0 0.0
  %5858 = vmatprep.subr.mxu0 0.0
  %5859 = vmatpush1.msra.mxu0 0.0
  %5860 = vmatprep.subr.mxu0 0.0
  %5861 = vmatpush1.msra.mxu0 0.0
  %5862 = vmatprep.subr.mxu0 0.0
  %5863 = vmatpush1.msra.mxu0 0.0
  %5864 = vmatprep.subr.mxu0 0.0
  %5865 = vmatpush1.msra.mxu0 0.0
  %5866 = vmatprep.subr.mxu0 0.0
  %5867 = vmatpush1.msra.mxu0 0.0
  %5868 = vmatprep.subr.mxu0 0.0
  %5869 = vmatpush1.msra.mxu0 0.0
  %5870 = vmatprep.subr.mxu0 0.0
  %5871 = vmatpush1.msra.mxu0 0.0
  %5872 = vmatprep.subr.mxu0 0.0
  %5873 = vmatpush1.msra.mxu0 0.0
  %5874 = vmatprep.subr.mxu0 0.0
  %5875 = vmatpush1.msra.mxu0 0.0
  %5876 = vmatprep.subr.mxu0 0.0
  %5877 = vmatpush1.msra.mxu0 0.0
  %5878 = vmatprep.subr.mxu0 0.0
  %5879 = vmatpush1.msra.mxu0 0.0
  %5880 = vmatprep.subr.mxu0 0.0
  %5881 = vmatpush1.msra.mxu0 0.0
  %5882 = vmatprep.subr.mxu0 0.0
  %5883 = vmatpush1.msra.mxu0 0.0
  %5884 = vmatprep.subr.mxu0 0.0
  %5885 = vmatpush1.msra.mxu0 0.0
  %5886 = vmatprep.subr.mxu0 0.0
  %5887 = vmatpush1.msra.mxu0 0.0
  %5888 = vmatprep.subr.mxu0 0.0
  %5889 = vmatpush1.msra.mxu0 0.0
  %5890 = vmatprep.mubr.f32.mxu0 0.0
  %v5891 = vand.u32 %v5417, 4294901760
  %5892 = vmatmul.mubr.f32.gmra.mrb[0].mxu0 %v5891
  %v5893 = vpop.f32.mrb[0].mxu0
  %v5894 = vadd.f32 %v5795, %v5893
  %v5895 = vpop.f32.mrb[0].mxu0
  %5896 = vmatprep.mubr.f32.mxu0 0.0
  %v5897 = vand.u32 %v5420, 4294901760
  %5898 = vmatmul.mubr.f32.gmra.mrb[0].mxu0 %v5897
  %v5899 = vpop.f32.mrb[0].mxu0
  %v5900 = vadd.f32 %v5803, %v5899
  %v5901 = vpop.f32.mrb[0].mxu0
  %5902 = vmatprep.mubr.f32.mxu0 0.0
  %v5903 = vand.u32 %v5423, 4294901760
  %5904 = vmatmul.mubr.f32.gmra.mrb[0].mxu0 %v5903
  %v5905 = vpop.f32.mrb[0].mxu0
  %v5906 = vadd.f32 %v5811, %v5905
  %v5907 = vpop.f32.mrb[0].mxu0
  %5908 = vdwg.mxu0
  %5909 = vmatprep.subr.mxu0 0.0
  %v5910 = vand.u32 %v5407, 4294901760
  %5911 = vmatpush1.msra.mxu0 %v5910
  %5912 = vmatprep.subr.mxu0 0.0
  %v5913 = vand.u32 %v5408, 4294901760
  %5914 = vmatpush1.msra.mxu0 %v5913
  %5915 = vmatprep.subr.mxu0 0.0
  %v5916 = vand.u32 %v5409, 4294901760
  %5917 = vmatpush1.msra.mxu0 %v5916
  %5918 = vmatprep.subr.mxu0 0.0
  %v5919 = vand.u32 %v5410, 4294901760
  %5920 = vmatpush1.msra.mxu0 %v5919
  %5921 = vmatprep.subr.mxu0 0.0
  %5922 = vmatpush1.msra.mxu0 0.0
  %5923 = vmatprep.subr.mxu0 0.0
  %5924 = vmatpush1.msra.mxu0 0.0
  %5925 = vmatprep.subr.mxu0 0.0
  %5926 = vmatpush1.msra.mxu0 0.0
  %5927 = vmatprep.subr.mxu0 0.0
  %5928 = vmatpush1.msra.mxu0 0.0
  %5929 = vmatprep.subr.mxu0 0.0
  %5930 = vmatpush1.msra.mxu0 0.0
  %5931 = vmatprep.subr.mxu0 0.0
  %5932 = vmatpush1.msra.mxu0 0.0
  %5933 = vmatprep.subr.mxu0 0.0
  %5934 = vmatpush1.msra.mxu0 0.0
  %5935 = vmatprep.subr.mxu0 0.0
  %5936 = vmatpush1.msra.mxu0 0.0
  %5937 = vmatprep.subr.mxu0 0.0
  %5938 = vmatpush1.msra.mxu0 0.0
  %5939 = vmatprep.subr.mxu0 0.0
  %5940 = vmatpush1.msra.mxu0 0.0
  %5941 = vmatprep.subr.mxu0 0.0
  %5942 = vmatpush1.msra.mxu0 0.0
  %5943 = vmatprep.subr.mxu0 0.0
  %5944 = vmatpush1.msra.mxu0 0.0
  %5945 = vmatprep.subr.mxu0 0.0
  %5946 = vmatpush1.msra.mxu0 0.0
  %5947 = vmatprep.subr.mxu0 0.0
  %5948 = vmatpush1.msra.mxu0 0.0
  %5949 = vmatprep.subr.mxu0 0.0
  %5950 = vmatpush1.msra.mxu0 0.0
  %5951 = vmatprep.subr.mxu0 0.0
  %5952 = vmatpush1.msra.mxu0 0.0
  %5953 = vmatprep.subr.mxu0 0.0
  %5954 = vmatpush1.msra.mxu0 0.0
  %5955 = vmatprep.subr.mxu0 0.0
  %5956 = vmatpush1.msra.mxu0 0.0
  %5957 = vmatprep.subr.mxu0 0.0
  %5958 = vmatpush1.msra.mxu0 0.0
  %5959 = vmatprep.subr.mxu0 0.0
  %5960 = vmatpush1.msra.mxu0 0.0
  %5961 = vmatprep.subr.mxu0 0.0
  %5962 = vmatpush1.msra.mxu0 0.0
  %5963 = vmatprep.subr.mxu0 0.0
  %5964 = vmatpush1.msra.mxu0 0.0
  %5965 = vmatprep.subr.mxu0 0.0
  %5966 = vmatpush1.msra.mxu0 0.0
  %5967 = vmatprep.subr.mxu0 0.0
  %5968 = vmatpush1.msra.mxu0 0.0
  %5969 = vmatprep.subr.mxu0 0.0
  %5970 = vmatpush1.msra.mxu0 0.0
  %5971 = vmatprep.subr.mxu0 0.0
  %5972 = vmatpush1.msra.mxu0 0.0
  %5973 = vmatprep.subr.mxu0 0.0
  %5974 = vmatpush1.msra.mxu0 0.0
  %5975 = vmatprep.subr.mxu0 0.0
  %5976 = vmatpush1.msra.mxu0 0.0
  %5977 = vmatprep.mubr.f32.mxu0 0.0
  %v5978 = vand.u32 %v5417, 4294901760
  %5979 = vmatmul.mubr.f32.gmra.mrb[0].mxu0 %v5978
  %v5980 = vpop.f32.mrb[0].mxu0
  %v5981 = vadd.f32 %v5894, %v5980
  %v5982 = vpop.f32.mrb[0].mxu0
  %5983 = vmatprep.mubr.f32.mxu0 0.0
  %v5984 = vand.u32 %v5420, 4294901760
  %5985 = vmatmul.mubr.f32.gmra.mrb[0].mxu0 %v5984
  %v5986 = vpop.f32.mrb[0].mxu0
  %v5987 = vadd.f32 %v5900, %v5986
  %v5988 = vpop.f32.mrb[0].mxu0
  %5989 = vmatprep.mubr.f32.mxu0 0.0
  %v5990 = vand.u32 %v5423, 4294901760
  %5991 = vmatmul.mubr.f32.gmra.mrb[0].mxu0 %v5990
  %v5992 = vpop.f32.mrb[0].mxu0
  %v5993 = vadd.f32 %v5906, %v5992
  %v5994 = vpop.f32.mrb[0].mxu0
  %5995 = vdwg.mxu0
  %v5996 = vmul.f32 %v5981, %v1192
  %v5997 = vmul.f32 %v5987, %v1194
  %v5998 = vmul.f32 %v5993, %v1196
  %v5999 = vmul.f32 %v5981, %v1198
  %v6000 = vmul.f32 %v5987, %v1200
  %v6001 = vmul.f32 %v5993, %v1202
  %v6002 = vmul.f32 %v5981, %v1204
  %v6003 = vmul.f32 %v5987, %v1206
  %v6004 = vmul.f32 %v5993, %v1208
  %v6005 = vmul.f32 %v5981, %v1210
  %v6006 = vmul.f32 %v5987, %v1212
  %v6007 = vmul.f32 %v5993, %v1214
  %v6008 = vmul.f32 %v5981, %v1240
  %v6009 = vmul.f32 %v5987, %v1242
  %v6010 = vmul.f32 %v5993, %v1244
  %v6011 = vmul.f32 %v5981, %v1246
  %v6012 = vmul.f32 %v5987, %v1248
  %v6013 = vmul.f32 %v5993, %v1250
  %v6014 = vmul.f32 %v5981, %v1252
  %v6015 = vmul.f32 %v5987, %v1254
  %v6016 = vmul.f32 %v5993, %v1256
  %v6017 = vmul.f32 %v5981, %v1258
  %v6018 = vmul.f32 %v5987, %v1260
  %v6019 = vmul.f32 %v5993, %v1262
  %6032 = vrot.lane.b32.xlu0 %v5996, 96
  %v6033 = vpop.permute.xlu0 %6032
  %6034 = vrot.lane.b32.xlu0 %v5997, 96
  %v6035 = vpop.permute.xlu0 %6034
  %6036 = vrot.lane.b32.xlu0 %v5998, 96
  %v6037 = vpop.permute.xlu0 %6036
  %6038 = vrot.lane.b32.xlu0 %v5999, 96
  %v6039 = vpop.permute.xlu0 %6038
  %6040 = vrot.lane.b32.xlu0 %v6000, 96
  %v6041 = vpop.permute.xlu0 %6040
  %6042 = vrot.lane.b32.xlu0 %v6001, 96
  %v6043 = vpop.permute.xlu0 %6042
  %6044 = vrot.lane.b32.xlu0 %v6002, 96
  %v6045 = vpop.permute.xlu0 %6044
  %6046 = vrot.lane.b32.xlu0 %v6003, 96
  %v6047 = vpop.permute.xlu0 %6046
  %6048 = vrot.lane.b32.xlu0 %v6004, 96
  %v6049 = vpop.permute.xlu0 %6048
  %6050 = vrot.lane.b32.xlu0 %v6005, 96
  %v6051 = vpop.permute.xlu0 %6050
  %6052 = vrot.lane.b32.xlu0 %v6006, 96
  %v6053 = vpop.permute.xlu0 %6052
  %6054 = vrot.lane.b32.xlu0 %v6007, 96
  %v6055 = vpop.permute.xlu0 %6054
  %v6057 = vsel %vm598, %v5981, 0
  %v6060 = vsel %vm598, %v5987, 0
  %v6063 = vsel %vm598, %v5993, 0
  %v6065 = vsel %vm598, %v6033, 0
  %v6067 = vsel %vm598, %v6035, 0
  %v6069 = vsel %vm598, %v6037, 0
  %v6071 = vsel %vm598, %v6039, 0
  %v6073 = vsel %vm598, %v6041, 0
  %v6075 = vsel %vm598, %v6043, 0
  %v6077 = vsel %vm598, %v6045, 0
  %v6079 = vsel %vm598, %v6047, 0
  %v6081 = vsel %vm598, %v6049, 0
  %v6083 = vsel %vm598, %v6051, 0
  %v6085 = vsel %vm598, %v6053, 0
  %v6087 = vsel %vm598, %v6055, 0
  %6089 = vmatprep.subr.mxu0 0.0
  %v6090 = vand.u32 %v6065, 4294901760
  %6091 = vmatpush1.xpose.msra.mxu0 %v6090
  %6092 = vmatprep.subr.mxu0 0.0
  %v6093 = vand.u32 %v6067, 4294901760
  %6094 = vmatpush1.xpose.msra.mxu0 %v6093
  %6095 = vmatprep.subr.mxu0 0.0
  %v6096 = vand.u32 %v6069, 4294901760
  %6097 = vmatpush1.xpose.msra.mxu0 %v6096
  %6098 = vmatprep.subr.mxu0 0.0
  %v6099 = vand.u32 %v6071, 4294901760
  %6100 = vmatpush1.xpose.msra.mxu0 %v6099
  %6101 = vmatprep.subr.mxu0 0.0
  %v6102 = vand.u32 %v6073, 4294901760
  %6103 = vmatpush1.xpose.msra.mxu0 %v6102
  %6104 = vmatprep.subr.mxu0 0.0
  %v6105 = vand.u32 %v6075, 4294901760
  %6106 = vmatpush1.xpose.msra.mxu0 %v6105
  %6107 = vmatprep.subr.mxu0 0.0
  %v6108 = vand.u32 %v6077, 4294901760
  %6109 = vmatpush1.xpose.msra.mxu0 %v6108
  %6110 = vmatprep.subr.mxu0 0.0
  %v6111 = vand.u32 %v6079, 4294901760
  %6112 = vmatpush1.xpose.msra.mxu0 %v6111
  %6113 = vmatprep.subr.mxu0 0.0
  %v6114 = vand.u32 %v6081, 4294901760
  %6115 = vmatpush1.xpose.msra.mxu0 %v6114
  %6116 = vmatprep.subr.mxu0 0.0
  %v6117 = vand.u32 %v6083, 4294901760
  %6118 = vmatpush1.xpose.msra.mxu0 %v6117
  %6119 = vmatprep.subr.mxu0 0.0
  %v6120 = vand.u32 %v6085, 4294901760
  %6121 = vmatpush1.xpose.msra.mxu0 %v6120
  %6122 = vmatprep.subr.mxu0 0.0
  %v6123 = vand.u32 %v6087, 4294901760
  %6124 = vmatpush1.xpose.msra.mxu0 %v6123
  %6125 = vmatprep.subr.mxu0 0.0
  %6126 = vmatpush1.xpose.msra.mxu0 0.0
  %6127 = vmatprep.subr.mxu0 0.0
  %6128 = vmatpush1.xpose.msra.mxu0 0.0
  %6129 = vmatprep.subr.mxu0 0.0
  %6130 = vmatpush1.xpose.msra.mxu0 0.0
  %6131 = vmatprep.subr.mxu0 0.0
  %6132 = vmatpush1.xpose.msra.mxu0 0.0
  %6133 = vmatprep.subr.mxu0 0.0
  %6134 = vmatpush1.xpose.msra.mxu0 0.0
  %6135 = vmatprep.subr.mxu0 0.0
  %6136 = vmatpush1.xpose.msra.mxu0 0.0
  %6137 = vmatprep.subr.mxu0 0.0
  %6138 = vmatpush1.xpose.msra.mxu0 0.0
  %6139 = vmatprep.subr.mxu0 0.0
  %6140 = vmatpush1.xpose.msra.mxu0 0.0
  %6141 = vmatprep.subr.mxu0 0.0
  %6142 = vmatpush1.xpose.msra.mxu0 0.0
  %6143 = vmatprep.subr.mxu0 0.0
  %6144 = vmatpush1.xpose.msra.mxu0 0.0
  %6145 = vmatprep.subr.mxu0 0.0
  %6146 = vmatpush1.xpose.msra.mxu0 0.0
  %6147 = vmatprep.subr.mxu0 0.0
  %6148 = vmatpush1.xpose.msra.mxu0 0.0
  %6149 = vmatprep.subr.mxu0 0.0
  %6150 = vmatpush1.xpose.msra.mxu0 0.0
  %6151 = vmatprep.subr.mxu0 0.0
  %6152 = vmatpush1.xpose.msra.mxu0 0.0
  %6153 = vmatprep.subr.mxu0 0.0
  %6154 = vmatpush1.xpose.msra.mxu0 0.0
  %6155 = vmatprep.subr.mxu0 0.0
  %6156 = vmatpush1.xpose.msra.mxu0 0.0
  %6157 = vmatprep.subr.mxu0 0.0
  %6158 = vmatpush1.xpose.msra.mxu0 0.0
  %6159 = vmatprep.subr.mxu0 0.0
  %6160 = vmatpush1.xpose.msra.mxu0 0.0
  %6161 = vmatprep.subr.mxu0 0.0
  %6162 = vmatpush1.xpose.msra.mxu0 0.0
  %6163 = vmatprep.subr.mxu0 0.0
  %6164 = vmatpush1.xpose.msra.mxu0 0.0
  %6165 = vmatprep.mubr.f32.mxu0 0.0
  %v6166 = vand.u32 %v6057, 4294901760
  %v6167 = vsub.f32 %v6057, %v6166
  %v6168 = vand.u32 %v6167, 4294901760
  %v6169 = vsub.f32 %v6167, %v6168
  %v6170 = vand.u32 %v6169, 4294901760
  %6171 = vmatmul.mubr.f32.gmra.mrb[0].mxu0 %v6170
  %v6172 = vpop.f32.mrb[0].mxu0
  %v6173 = vadd.f32 %v586, %v6172
  %v6174 = vpop.f32.mrb[0].mxu0
  %6175 = vmatprep.mubr.f32.mxu0 0.0
  %v6176 = vand.u32 %v6060, 4294901760
  %v6177 = vsub.f32 %v6060, %v6176
  %v6178 = vand.u32 %v6177, 4294901760
  %v6179 = vsub.f32 %v6177, %v6178
  %v6180 = vand.u32 %v6179, 4294901760
  %6181 = vmatmul.mubr.f32.gmra.mrb[0].mxu0 %v6180
  %v6182 = vpop.f32.mrb[0].mxu0
  %v6183 = vadd.f32 %v587, %v6182
  %v6184 = vpop.f32.mrb[0].mxu0
  %6185 = vmatprep.mubr.f32.mxu0 0.0
  %v6186 = vand.u32 %v6063, 4294901760
  %v6187 = vsub.f32 %v6063, %v6186
  %v6188 = vand.u32 %v6187, 4294901760
  %v6189 = vsub.f32 %v6187, %v6188
  %v6190 = vand.u32 %v6189, 4294901760
  %6191 = vmatmul.mubr.f32.gmra.mrb[0].mxu0 %v6190
  %v6192 = vpop.f32.mrb[0].mxu0
  %v6193 = vadd.f32 %v588, %v6192
  %v6194 = vpop.f32.mrb[0].mxu0
  %6195 = vdwg.mxu0
  %6196 = vmatprep.subr.mxu0 0.0
  %v6197 = vand.u32 %v6065, 4294901760
  %v6198 = vsub.f32 %v6065, %v6197
  %v6199 = vand.u32 %v6198, 4294901760
  %v6200 = vsub.f32 %v6198, %v6199
  %v6201 = vand.u32 %v6200, 4294901760
  %6202 = vmatpush1.xpose.msra.mxu0 %v6201
  %6203 = vmatprep.subr.mxu0 0.0
  %v6204 = vand.u32 %v6067, 4294901760
  %v6205 = vsub.f32 %v6067, %v6204
  %v6206 = vand.u32 %v6205, 4294901760
  %v6207 = vsub.f32 %v6205, %v6206
  %v6208 = vand.u32 %v6207, 4294901760
  %6209 = vmatpush1.xpose.msra.mxu0 %v6208
  %6210 = vmatprep.subr.mxu0 0.0
  %v6211 = vand.u32 %v6069, 4294901760
  %v6212 = vsub.f32 %v6069, %v6211
  %v6213 = vand.u32 %v6212, 4294901760
  %v6214 = vsub.f32 %v6212, %v6213
  %v6215 = vand.u32 %v6214, 4294901760
  %6216 = vmatpush1.xpose.msra.mxu0 %v6215
  %6217 = vmatprep.subr.mxu0 0.0
  %v6218 = vand.u32 %v6071, 4294901760
  %v6219 = vsub.f32 %v6071, %v6218
  %v6220 = vand.u32 %v6219, 4294901760
  %v6221 = vsub.f32 %v6219, %v6220
  %v6222 = vand.u32 %v6221, 4294901760
  %6223 = vmatpush1.xpose.msra.mxu0 %v6222
  %6224 = vmatprep.subr.mxu0 0.0
  %v6225 = vand.u32 %v6073, 4294901760
  %v6226 = vsub.f32 %v6073, %v6225
  %v6227 = vand.u32 %v6226, 4294901760
  %v6228 = vsub.f32 %v6226, %v6227
  %v6229 = vand.u32 %v6228, 4294901760
  %6230 = vmatpush1.xpose.msra.mxu0 %v6229
  %6231 = vmatprep.subr.mxu0 0.0
  %v6232 = vand.u32 %v6075, 4294901760
  %v6233 = vsub.f32 %v6075, %v6232
  %v6234 = vand.u32 %v6233, 4294901760
  %v6235 = vsub.f32 %v6233, %v6234
  %v6236 = vand.u32 %v6235, 4294901760
  %6237 = vmatpush1.xpose.msra.mxu0 %v6236
  %6238 = vmatprep.subr.mxu0 0.0
  %v6239 = vand.u32 %v6077, 4294901760
  %v6240 = vsub.f32 %v6077, %v6239
  %v6241 = vand.u32 %v6240, 4294901760
  %v6242 = vsub.f32 %v6240, %v6241
  %v6243 = vand.u32 %v6242, 4294901760
  %6244 = vmatpush1.xpose.msra.mxu0 %v6243
  %6245 = vmatprep.subr.mxu0 0.0
  %v6246 = vand.u32 %v6079, 4294901760
  %v6247 = vsub.f32 %v6079, %v6246
  %v6248 = vand.u32 %v6247, 4294901760
  %v6249 = vsub.f32 %v6247, %v6248
  %v6250 = vand.u32 %v6249, 4294901760
  %6251 = vmatpush1.xpose.msra.mxu0 %v6250
  %6252 = vmatprep.subr.mxu0 0.0
  %v6253 = vand.u32 %v6081, 4294901760
  %v6254 = vsub.f32 %v6081, %v6253
  %v6255 = vand.u32 %v6254, 4294901760
  %v6256 = vsub.f32 %v6254, %v6255
  %v6257 = vand.u32 %v6256, 4294901760
  %6258 = vmatpush1.xpose.msra.mxu0 %v6257
  %6259 = vmatprep.subr.mxu0 0.0
  %v6260 = vand.u32 %v6083, 4294901760
  %v6261 = vsub.f32 %v6083, %v6260
  %v6262 = vand.u32 %v6261, 4294901760
  %v6263 = vsub.f32 %v6261, %v6262
  %v6264 = vand.u32 %v6263, 4294901760
  %6265 = vmatpush1.xpose.msra.mxu0 %v6264
  %6266 = vmatprep.subr.mxu0 0.0
  %v6267 = vand.u32 %v6085, 4294901760
  %v6268 = vsub.f32 %v6085, %v6267
  %v6269 = vand.u32 %v6268, 4294901760
  %v6270 = vsub.f32 %v6268, %v6269
  %v6271 = vand.u32 %v6270, 4294901760
  %6272 = vmatpush1.xpose.msra.mxu0 %v6271
  %6273 = vmatprep.subr.mxu0 0.0
  %v6274 = vand.u32 %v6087, 4294901760
  %v6275 = vsub.f32 %v6087, %v6274
  %v6276 = vand.u32 %v6275, 4294901760
  %v6277 = vsub.f32 %v6275, %v6276
  %v6278 = vand.u32 %v6277, 4294901760
  %6279 = vmatpush1.xpose.msra.mxu0 %v6278
  %6280 = vmatprep.subr.mxu0 0.0
  %6281 = vmatpush1.xpose.msra.mxu0 0.0
  %6282 = vmatprep.subr.mxu0 0.0
  %6283 = vmatpush1.xpose.msra.mxu0 0.0
  %6284 = vmatprep.subr.mxu0 0.0
  %6285 = vmatpush1.xpose.msra.mxu0 0.0
  %6286 = vmatprep.subr.mxu0 0.0
  %6287 = vmatpush1.xpose.msra.mxu0 0.0
  %6288 = vmatprep.subr.mxu0 0.0
  %6289 = vmatpush1.xpose.msra.mxu0 0.0
  %6290 = vmatprep.subr.mxu0 0.0
  %6291 = vmatpush1.xpose.msra.mxu0 0.0
  %6292 = vmatprep.subr.mxu0 0.0
  %6293 = vmatpush1.xpose.msra.mxu0 0.0
  %6294 = vmatprep.subr.mxu0 0.0
  %6295 = vmatpush1.xpose.msra.mxu0 0.0
  %6296 = vmatprep.subr.mxu0 0.0
  %6297 = vmatpush1.xpose.msra.mxu0 0.0
  %6298 = vmatprep.subr.mxu0 0.0
  %6299 = vmatpush1.xpose.msra.mxu0 0.0
  %6300 = vmatprep.subr.mxu0 0.0
  %6301 = vmatpush1.xpose.msra.mxu0 0.0
  %6302 = vmatprep.subr.mxu0 0.0
  %6303 = vmatpush1.xpose.msra.mxu0 0.0
  %6304 = vmatprep.subr.mxu0 0.0
  %6305 = vmatpush1.xpose.msra.mxu0 0.0
  %6306 = vmatprep.subr.mxu0 0.0
  %6307 = vmatpush1.xpose.msra.mxu0 0.0
  %6308 = vmatprep.subr.mxu0 0.0
  %6309 = vmatpush1.xpose.msra.mxu0 0.0
  %6310 = vmatprep.subr.mxu0 0.0
  %6311 = vmatpush1.xpose.msra.mxu0 0.0
  %6312 = vmatprep.subr.mxu0 0.0
  %6313 = vmatpush1.xpose.msra.mxu0 0.0
  %6314 = vmatprep.subr.mxu0 0.0
  %6315 = vmatpush1.xpose.msra.mxu0 0.0
  %6316 = vmatprep.subr.mxu0 0.0
  %6317 = vmatpush1.xpose.msra.mxu0 0.0
  %6318 = vmatprep.subr.mxu0 0.0
  %6319 = vmatpush1.xpose.msra.mxu0 0.0
  %6320 = vmatprep.mubr.f32.mxu0 0.0
  %v6321 = vand.u32 %v6057, 4294901760
  %6322 = vmatmul.mubr.f32.gmra.mrb[0].mxu0 %v6321
  %v6323 = vpop.f32.mrb[0].mxu0
  %v6324 = vadd.f32 %v6173, %v6323
  %v6325 = vpop.f32.mrb[0].mxu0
  %6326 = vmatprep.mubr.f32.mxu0 0.0
  %v6327 = vand.u32 %v6060, 4294901760
  %6328 = vmatmul.mubr.f32.gmra.mrb[0].mxu0 %v6327
  %v6329 = vpop.f32.mrb[0].mxu0
  %v6330 = vadd.f32 %v6183, %v6329
  %v6331 = vpop.f32.mrb[0].mxu0
  %6332 = vmatprep.mubr.f32.mxu0 0.0
  %v6333 = vand.u32 %v6063, 4294901760
  %6334 = vmatmul.mubr.f32.gmra.mrb[0].mxu0 %v6333
  %v6335 = vpop.f32.mrb[0].mxu0
  %v6336 = vadd.f32 %v6193, %v6335
  %v6337 = vpop.f32.mrb[0].mxu0
  %6338 = vdwg.mxu0
  %6339 = vmatprep.subr.mxu0 0.0
  %v6340 = vand.u32 %v6065, 4294901760
  %v6341 = vsub.f32 %v6065, %v6340
  %6342 = vmatpush1.xpose.msra.mxu0 %v6341
  %6343 = vmatprep.subr.mxu0 0.0
  %v6344 = vand.u32 %v6067, 4294901760
  %v6345 = vsub.f32 %v6067, %v6344
  %6346 = vmatpush1.xpose.msra.mxu0 %v6345
  %6347 = vmatprep.subr.mxu0 0.0
  %v6348 = vand.u32 %v6069, 4294901760
  %v6349 = vsub.f32 %v6069, %v6348
  %6350 = vmatpush1.xpose.msra.mxu0 %v6349
  %6351 = vmatprep.subr.mxu0 0.0
  %v6352 = vand.u32 %v6071, 4294901760
  %v6353 = vsub.f32 %v6071, %v6352
  %6354 = vmatpush1.xpose.msra.mxu0 %v6353
  %6355 = vmatprep.subr.mxu0 0.0
  %v6356 = vand.u32 %v6073, 4294901760
  %v6357 = vsub.f32 %v6073, %v6356
  %6358 = vmatpush1.xpose.msra.mxu0 %v6357
  %6359 = vmatprep.subr.mxu0 0.0
  %v6360 = vand.u32 %v6075, 4294901760
  %v6361 = vsub.f32 %v6075, %v6360
  %6362 = vmatpush1.xpose.msra.mxu0 %v6361
  %6363 = vmatprep.subr.mxu0 0.0
  %v6364 = vand.u32 %v6077, 4294901760
  %v6365 = vsub.f32 %v6077, %v6364
  %6366 = vmatpush1.xpose.msra.mxu0 %v6365
  %6367 = vmatprep.subr.mxu0 0.0
  %v6368 = vand.u32 %v6079, 4294901760
  %v6369 = vsub.f32 %v6079, %v6368
  %6370 = vmatpush1.xpose.msra.mxu0 %v6369
  %6371 = vmatprep.subr.mxu0 0.0
  %v6372 = vand.u32 %v6081, 4294901760
  %v6373 = vsub.f32 %v6081, %v6372
  %6374 = vmatpush1.xpose.msra.mxu0 %v6373
  %6375 = vmatprep.subr.mxu0 0.0
  %v6376 = vand.u32 %v6083, 4294901760
  %v6377 = vsub.f32 %v6083, %v6376
  %6378 = vmatpush1.xpose.msra.mxu0 %v6377
  %6379 = vmatprep.subr.mxu0 0.0
  %v6380 = vand.u32 %v6085, 4294901760
  %v6381 = vsub.f32 %v6085, %v6380
  %6382 = vmatpush1.xpose.msra.mxu0 %v6381
  %6383 = vmatprep.subr.mxu0 0.0
  %v6384 = vand.u32 %v6087, 4294901760
  %v6385 = vsub.f32 %v6087, %v6384
  %6386 = vmatpush1.xpose.msra.mxu0 %v6385
  %6387 = vmatprep.subr.mxu0 0.0
  %6388 = vmatpush1.xpose.msra.mxu0 0.0
  %6389 = vmatprep.subr.mxu0 0.0
  %6390 = vmatpush1.xpose.msra.mxu0 0.0
  %6391 = vmatprep.subr.mxu0 0.0
  %6392 = vmatpush1.xpose.msra.mxu0 0.0
  %6393 = vmatprep.subr.mxu0 0.0
  %6394 = vmatpush1.xpose.msra.mxu0 0.0
  %6395 = vmatprep.subr.mxu0 0.0
  %6396 = vmatpush1.xpose.msra.mxu0 0.0
  %6397 = vmatprep.subr.mxu0 0.0
  %6398 = vmatpush1.xpose.msra.mxu0 0.0
  %6399 = vmatprep.subr.mxu0 0.0
  %6400 = vmatpush1.xpose.msra.mxu0 0.0
  %6401 = vmatprep.subr.mxu0 0.0
  %6402 = vmatpush1.xpose.msra.mxu0 0.0
  %6403 = vmatprep.subr.mxu0 0.0
  %6404 = vmatpush1.xpose.msra.mxu0 0.0
  %6405 = vmatprep.subr.mxu0 0.0
  %6406 = vmatpush1.xpose.msra.mxu0 0.0
  %6407 = vmatprep.subr.mxu0 0.0
  %6408 = vmatpush1.xpose.msra.mxu0 0.0
  %6409 = vmatprep.subr.mxu0 0.0
  %6410 = vmatpush1.xpose.msra.mxu0 0.0
  %6411 = vmatprep.subr.mxu0 0.0
  %6412 = vmatpush1.xpose.msra.mxu0 0.0
  %6413 = vmatprep.subr.mxu0 0.0
  %6414 = vmatpush1.xpose.msra.mxu0 0.0
  %6415 = vmatprep.subr.mxu0 0.0
  %6416 = vmatpush1.xpose.msra.mxu0 0.0
  %6417 = vmatprep.subr.mxu0 0.0
  %6418 = vmatpush1.xpose.msra.mxu0 0.0
  %6419 = vmatprep.subr.mxu0 0.0
  %6420 = vmatpush1.xpose.msra.mxu0 0.0
  %6421 = vmatprep.subr.mxu0 0.0
  %6422 = vmatpush1.xpose.msra.mxu0 0.0
  %6423 = vmatprep.subr.mxu0 0.0
  %6424 = vmatpush1.xpose.msra.mxu0 0.0
  %6425 = vmatprep.subr.mxu0 0.0
  %6426 = vmatpush1.xpose.msra.mxu0 0.0
  %6427 = vmatprep.mubr.f32.mxu0 0.0
  %v6428 = vand.u32 %v6057, 4294901760
  %v6429 = vsub.f32 %v6057, %v6428
  %6430 = vmatmul.mubr.f32.gmra.mrb[0].mxu0 %v6429
  %v6431 = vpop.f32.mrb[0].mxu0
  %v6432 = vadd.f32 %v6324, %v6431
  %v6433 = vpop.f32.mrb[0].mxu0
  %6434 = vmatprep.mubr.f32.mxu0 0.0
  %v6435 = vand.u32 %v6060, 4294901760
  %v6436 = vsub.f32 %v6060, %v6435
  %6437 = vmatmul.mubr.f32.gmra.mrb[0].mxu0 %v6436
  %v6438 = vpop.f32.mrb[0].mxu0
  %v6439 = vadd.f32 %v6330, %v6438
  %v6440 = vpop.f32.mrb[0].mxu0
  %6441 = vmatprep.mubr.f32.mxu0 0.0
  %v6442 = vand.u32 %v6063, 4294901760
  %v6443 = vsub.f32 %v6063, %v6442
  %6444 = vmatmul.mubr.f32.gmra.mrb[0].mxu0 %v6443
  %v6445 = vpop.f32.mrb[0].mxu0
  %v6446 = vadd.f32 %v6336, %v6445
  %v6447 = vpop.f32.mrb[0].mxu0
  %6448 = vdwg.mxu0
  %6449 = vmatprep.subr.mxu0 0.0
  %v6450 = vand.u32 %v6065, 4294901760
  %6451 = vmatpush1.xpose.msra.mxu0 %v6450
  %6452 = vmatprep.subr.mxu0 0.0
  %v6453 = vand.u32 %v6067, 4294901760
  %6454 = vmatpush1.xpose.msra.mxu0 %v6453
  %6455 = vmatprep.subr.mxu0 0.0
  %v6456 = vand.u32 %v6069, 4294901760
  %6457 = vmatpush1.xpose.msra.mxu0 %v6456
  %6458 = vmatprep.subr.mxu0 0.0
  %v6459 = vand.u32 %v6071, 4294901760
  %6460 = vmatpush1.xpose.msra.mxu0 %v6459
  %6461 = vmatprep.subr.mxu0 0.0
  %v6462 = vand.u32 %v6073, 4294901760
  %6463 = vmatpush1.xpose.msra.mxu0 %v6462
  %6464 = vmatprep.subr.mxu0 0.0
  %v6465 = vand.u32 %v6075, 4294901760
  %6466 = vmatpush1.xpose.msra.mxu0 %v6465
  %6467 = vmatprep.subr.mxu0 0.0
  %v6468 = vand.u32 %v6077, 4294901760
  %6469 = vmatpush1.xpose.msra.mxu0 %v6468
  %6470 = vmatprep.subr.mxu0 0.0
  %v6471 = vand.u32 %v6079, 4294901760
  %6472 = vmatpush1.xpose.msra.mxu0 %v6471
  %6473 = vmatprep.subr.mxu0 0.0
  %v6474 = vand.u32 %v6081, 4294901760
  %6475 = vmatpush1.xpose.msra.mxu0 %v6474
  %6476 = vmatprep.subr.mxu0 0.0
  %v6477 = vand.u32 %v6083, 4294901760
  %6478 = vmatpush1.xpose.msra.mxu0 %v6477
  %6479 = vmatprep.subr.mxu0 0.0
  %v6480 = vand.u32 %v6085, 4294901760
  %6481 = vmatpush1.xpose.msra.mxu0 %v6480
  %6482 = vmatprep.subr.mxu0 0.0
  %v6483 = vand.u32 %v6087, 4294901760
  %6484 = vmatpush1.xpose.msra.mxu0 %v6483
  %6485 = vmatprep.subr.mxu0 0.0
  %6486 = vmatpush1.xpose.msra.mxu0 0.0
  %6487 = vmatprep.subr.mxu0 0.0
  %6488 = vmatpush1.xpose.msra.mxu0 0.0
  %6489 = vmatprep.subr.mxu0 0.0
  %6490 = vmatpush1.xpose.msra.mxu0 0.0
  %6491 = vmatprep.subr.mxu0 0.0
  %6492 = vmatpush1.xpose.msra.mxu0 0.0
  %6493 = vmatprep.subr.mxu0 0.0
  %6494 = vmatpush1.xpose.msra.mxu0 0.0
  %6495 = vmatprep.subr.mxu0 0.0
  %6496 = vmatpush1.xpose.msra.mxu0 0.0
  %6497 = vmatprep.subr.mxu0 0.0
  %6498 = vmatpush1.xpose.msra.mxu0 0.0
  %6499 = vmatprep.subr.mxu0 0.0
  %6500 = vmatpush1.xpose.msra.mxu0 0.0
  %6501 = vmatprep.subr.mxu0 0.0
  %6502 = vmatpush1.xpose.msra.mxu0 0.0
  %6503 = vmatprep.subr.mxu0 0.0
  %6504 = vmatpush1.xpose.msra.mxu0 0.0
  %6505 = vmatprep.subr.mxu0 0.0
  %6506 = vmatpush1.xpose.msra.mxu0 0.0
  %6507 = vmatprep.subr.mxu0 0.0
  %6508 = vmatpush1.xpose.msra.mxu0 0.0
  %6509 = vmatprep.subr.mxu0 0.0
  %6510 = vmatpush1.xpose.msra.mxu0 0.0
  %6511 = vmatprep.subr.mxu0 0.0
  %6512 = vmatpush1.xpose.msra.mxu0 0.0
  %6513 = vmatprep.subr.mxu0 0.0
  %6514 = vmatpush1.xpose.msra.mxu0 0.0
  %6515 = vmatprep.subr.mxu0 0.0
  %6516 = vmatpush1.xpose.msra.mxu0 0.0
  %6517 = vmatprep.subr.mxu0 0.0
  %6518 = vmatpush1.xpose.msra.mxu0 0.0
  %6519 = vmatprep.subr.mxu0 0.0
  %6520 = vmatpush1.xpose.msra.mxu0 0.0
  %6521 = vmatprep.subr.mxu0 0.0
  %6522 = vmatpush1.xpose.msra.mxu0 0.0
  %6523 = vmatprep.subr.mxu0 0.0
  %6524 = vmatpush1.xpose.msra.mxu0 0.0
  %6525 = vmatprep.mubr.f32.mxu0 0.0
  %v6526 = vand.u32 %v6057, 4294901760
  %v6527 = vsub.f32 %v6057, %v6526
  %v6528 = vand.u32 %v6527, 4294901760
  %6529 = vmatmul.mubr.f32.gmra.mrb[0].mxu0 %v6528
  %v6530 = vpop.f32.mrb[0].mxu0
  %v6531 = vadd.f32 %v6432, %v6530
  %v6532 = vpop.f32.mrb[0].mxu0
  %6533 = vmatprep.mubr.f32.mxu0 0.0
  %v6534 = vand.u32 %v6060, 4294901760
  %v6535 = vsub.f32 %v6060, %v6534
  %v6536 = vand.u32 %v6535, 4294901760
  %6537 = vmatmul.mubr.f32.gmra.mrb[0].mxu0 %v6536
  %v6538 = vpop.f32.mrb[0].mxu0
  %v6539 = vadd.f32 %v6439, %v6538
  %v6540 = vpop.f32.mrb[0].mxu0
  %6541 = vmatprep.mubr.f32.mxu0 0.0
  %v6542 = vand.u32 %v6063, 4294901760
  %v6543 = vsub.f32 %v6063, %v6542
  %v6544 = vand.u32 %v6543, 4294901760
  %6545 = vmatmul.mubr.f32.gmra.mrb[0].mxu0 %v6544
  %v6546 = vpop.f32.mrb[0].mxu0
  %v6547 = vadd.f32 %v6446, %v6546
  %v6548 = vpop.f32.mrb[0].mxu0
  %6549 = vdwg.mxu0
  %6550 = vmatprep.subr.mxu0 0.0
  %v6551 = vand.u32 %v6065, 4294901760
  %v6552 = vsub.f32 %v6065, %v6551
  %v6553 = vand.u32 %v6552, 4294901760
  %6554 = vmatpush1.xpose.msra.mxu0 %v6553
  %6555 = vmatprep.subr.mxu0 0.0
  %v6556 = vand.u32 %v6067, 4294901760
  %v6557 = vsub.f32 %v6067, %v6556
  %v6558 = vand.u32 %v6557, 4294901760
  %6559 = vmatpush1.xpose.msra.mxu0 %v6558
  %6560 = vmatprep.subr.mxu0 0.0
  %v6561 = vand.u32 %v6069, 4294901760
  %v6562 = vsub.f32 %v6069, %v6561
  %v6563 = vand.u32 %v6562, 4294901760
  %6564 = vmatpush1.xpose.msra.mxu0 %v6563
  %6565 = vmatprep.subr.mxu0 0.0
  %v6566 = vand.u32 %v6071, 4294901760
  %v6567 = vsub.f32 %v6071, %v6566
  %v6568 = vand.u32 %v6567, 4294901760
  %6569 = vmatpush1.xpose.msra.mxu0 %v6568
  %6570 = vmatprep.subr.mxu0 0.0
  %v6571 = vand.u32 %v6073, 4294901760
  %v6572 = vsub.f32 %v6073, %v6571
  %v6573 = vand.u32 %v6572, 4294901760
  %6574 = vmatpush1.xpose.msra.mxu0 %v6573
  %6575 = vmatprep.subr.mxu0 0.0
  %v6576 = vand.u32 %v6075, 4294901760
  %v6577 = vsub.f32 %v6075, %v6576
  %v6578 = vand.u32 %v6577, 4294901760
  %6579 = vmatpush1.xpose.msra.mxu0 %v6578
  %6580 = vmatprep.subr.mxu0 0.0
  %v6581 = vand.u32 %v6077, 4294901760
  %v6582 = vsub.f32 %v6077, %v6581
  %v6583 = vand.u32 %v6582, 4294901760
  %6584 = vmatpush1.xpose.msra.mxu0 %v6583
  %6585 = vmatprep.subr.mxu0 0.0
  %v6586 = vand.u32 %v6079, 4294901760
  %v6587 = vsub.f32 %v6079, %v6586
  %v6588 = vand.u32 %v6587, 4294901760
  %6589 = vmatpush1.xpose.msra.mxu0 %v6588
  %6590 = vmatprep.subr.mxu0 0.0
  %v6591 = vand.u32 %v6081, 4294901760
  %v6592 = vsub.f32 %v6081, %v6591
  %v6593 = vand.u32 %v6592, 4294901760
  %6594 = vmatpush1.xpose.msra.mxu0 %v6593
  %6595 = vmatprep.subr.mxu0 0.0
  %v6596 = vand.u32 %v6083, 4294901760
  %v6597 = vsub.f32 %v6083, %v6596
  %v6598 = vand.u32 %v6597, 4294901760
  %6599 = vmatpush1.xpose.msra.mxu0 %v6598
  %6600 = vmatprep.subr.mxu0 0.0
  %v6601 = vand.u32 %v6085, 4294901760
  %v6602 = vsub.f32 %v6085, %v6601
  %v6603 = vand.u32 %v6602, 4294901760
  %6604 = vmatpush1.xpose.msra.mxu0 %v6603
  %6605 = vmatprep.subr.mxu0 0.0
  %v6606 = vand.u32 %v6087, 4294901760
  %v6607 = vsub.f32 %v6087, %v6606
  %v6608 = vand.u32 %v6607, 4294901760
  %6609 = vmatpush1.xpose.msra.mxu0 %v6608
  %6610 = vmatprep.subr.mxu0 0.0
  %6611 = vmatpush1.xpose.msra.mxu0 0.0
  %6612 = vmatprep.subr.mxu0 0.0
  %6613 = vmatpush1.xpose.msra.mxu0 0.0
  %6614 = vmatprep.subr.mxu0 0.0
  %6615 = vmatpush1.xpose.msra.mxu0 0.0
  %6616 = vmatprep.subr.mxu0 0.0
  %6617 = vmatpush1.xpose.msra.mxu0 0.0
  %6618 = vmatprep.subr.mxu0 0.0
  %6619 = vmatpush1.xpose.msra.mxu0 0.0
  %6620 = vmatprep.subr.mxu0 0.0
  %6621 = vmatpush1.xpose.msra.mxu0 0.0
  %6622 = vmatprep.subr.mxu0 0.0
  %6623 = vmatpush1.xpose.msra.mxu0 0.0
  %6624 = vmatprep.subr.mxu0 0.0
  %6625 = vmatpush1.xpose.msra.mxu0 0.0
  %6626 = vmatprep.subr.mxu0 0.0
  %6627 = vmatpush1.xpose.msra.mxu0 0.0
  %6628 = vmatprep.subr.mxu0 0.0
  %6629 = vmatpush1.xpose.msra.mxu0 0.0
  %6630 = vmatprep.subr.mxu0 0.0
  %6631 = vmatpush1.xpose.msra.mxu0 0.0
  %6632 = vmatprep.subr.mxu0 0.0
  %6633 = vmatpush1.xpose.msra.mxu0 0.0
  %6634 = vmatprep.subr.mxu0 0.0
  %6635 = vmatpush1.xpose.msra.mxu0 0.0
  %6636 = vmatprep.subr.mxu0 0.0
  %6637 = vmatpush1.xpose.msra.mxu0 0.0
  %6638 = vmatprep.subr.mxu0 0.0
  %6639 = vmatpush1.xpose.msra.mxu0 0.0
  %6640 = vmatprep.subr.mxu0 0.0
  %6641 = vmatpush1.xpose.msra.mxu0 0.0
  %6642 = vmatprep.subr.mxu0 0.0
  %6643 = vmatpush1.xpose.msra.mxu0 0.0
  %6644 = vmatprep.subr.mxu0 0.0
  %6645 = vmatpush1.xpose.msra.mxu0 0.0
  %6646 = vmatprep.subr.mxu0 0.0
  %6647 = vmatpush1.xpose.msra.mxu0 0.0
  %6648 = vmatprep.subr.mxu0 0.0
  %6649 = vmatpush1.xpose.msra.mxu0 0.0
  %6650 = vmatprep.mubr.f32.mxu0 0.0
  %v6651 = vand.u32 %v6057, 4294901760
  %6652 = vmatmul.mubr.f32.gmra.mrb[0].mxu0 %v6651
  %v6653 = vpop.f32.mrb[0].mxu0
  %v6654 = vadd.f32 %v6531, %v6653
  %v6655 = vpop.f32.mrb[0].mxu0
  %6656 = vmatprep.mubr.f32.mxu0 0.0
  %v6657 = vand.u32 %v6060, 4294901760
  %6658 = vmatmul.mubr.f32.gmra.mrb[0].mxu0 %v6657
  %v6659 = vpop.f32.mrb[0].mxu0
  %v6660 = vadd.f32 %v6539, %v6659
  %v6661 = vpop.f32.mrb[0].mxu0
  %6662 = vmatprep.mubr.f32.mxu0 0.0
  %v6663 = vand.u32 %v6063, 4294901760
  %6664 = vmatmul.mubr.f32.gmra.mrb[0].mxu0 %v6663
  %v6665 = vpop.f32.mrb[0].mxu0
  %v6666 = vadd.f32 %v6547, %v6665
  %v6667 = vpop.f32.mrb[0].mxu0
  %6668 = vdwg.mxu0
  %6669 = vmatprep.subr.mxu0 0.0
  %v6670 = vand.u32 %v6065, 4294901760
  %6671 = vmatpush1.xpose.msra.mxu0 %v6670
  %6672 = vmatprep.subr.mxu0 0.0
  %v6673 = vand.u32 %v6067, 4294901760
  %6674 = vmatpush1.xpose.msra.mxu0 %v6673
  %6675 = vmatprep.subr.mxu0 0.0
  %v6676 = vand.u32 %v6069, 4294901760
  %6677 = vmatpush1.xpose.msra.mxu0 %v6676
  %6678 = vmatprep.subr.mxu0 0.0
  %v6679 = vand.u32 %v6071, 4294901760
  %6680 = vmatpush1.xpose.msra.mxu0 %v6679
  %6681 = vmatprep.subr.mxu0 0.0
  %v6682 = vand.u32 %v6073, 4294901760
  %6683 = vmatpush1.xpose.msra.mxu0 %v6682
  %6684 = vmatprep.subr.mxu0 0.0
  %v6685 = vand.u32 %v6075, 4294901760
  %6686 = vmatpush1.xpose.msra.mxu0 %v6685
  %6687 = vmatprep.subr.mxu0 0.0
  %v6688 = vand.u32 %v6077, 4294901760
  %6689 = vmatpush1.xpose.msra.mxu0 %v6688
  %6690 = vmatprep.subr.mxu0 0.0
  %v6691 = vand.u32 %v6079, 4294901760
  %6692 = vmatpush1.xpose.msra.mxu0 %v6691
  %6693 = vmatprep.subr.mxu0 0.0
  %v6694 = vand.u32 %v6081, 4294901760
  %6695 = vmatpush1.xpose.msra.mxu0 %v6694
  %6696 = vmatprep.subr.mxu0 0.0
  %v6697 = vand.u32 %v6083, 4294901760
  %6698 = vmatpush1.xpose.msra.mxu0 %v6697
  %6699 = vmatprep.subr.mxu0 0.0
  %v6700 = vand.u32 %v6085, 4294901760
  %6701 = vmatpush1.xpose.msra.mxu0 %v6700
  %6702 = vmatprep.subr.mxu0 0.0
  %v6703 = vand.u32 %v6087, 4294901760
  %6704 = vmatpush1.xpose.msra.mxu0 %v6703
  %6705 = vmatprep.subr.mxu0 0.0
  %6706 = vmatpush1.xpose.msra.mxu0 0.0
  %6707 = vmatprep.subr.mxu0 0.0
  %6708 = vmatpush1.xpose.msra.mxu0 0.0
  %6709 = vmatprep.subr.mxu0 0.0
  %6710 = vmatpush1.xpose.msra.mxu0 0.0
  %6711 = vmatprep.subr.mxu0 0.0
  %6712 = vmatpush1.xpose.msra.mxu0 0.0
  %6713 = vmatprep.subr.mxu0 0.0
  %6714 = vmatpush1.xpose.msra.mxu0 0.0
  %6715 = vmatprep.subr.mxu0 0.0
  %6716 = vmatpush1.xpose.msra.mxu0 0.0
  %6717 = vmatprep.subr.mxu0 0.0
  %6718 = vmatpush1.xpose.msra.mxu0 0.0
  %6719 = vmatprep.subr.mxu0 0.0
  %6720 = vmatpush1.xpose.msra.mxu0 0.0
  %6721 = vmatprep.subr.mxu0 0.0
  %6722 = vmatpush1.xpose.msra.mxu0 0.0
  %6723 = vmatprep.subr.mxu0 0.0
  %6724 = vmatpush1.xpose.msra.mxu0 0.0
  %6725 = vmatprep.subr.mxu0 0.0
  %6726 = vmatpush1.xpose.msra.mxu0 0.0
  %6727 = vmatprep.subr.mxu0 0.0
  %6728 = vmatpush1.xpose.msra.mxu0 0.0
  %6729 = vmatprep.subr.mxu0 0.0
  %6730 = vmatpush1.xpose.msra.mxu0 0.0
  %6731 = vmatprep.subr.mxu0 0.0
  %6732 = vmatpush1.xpose.msra.mxu0 0.0
  %6733 = vmatprep.subr.mxu0 0.0
  %6734 = vmatpush1.xpose.msra.mxu0 0.0
  %6735 = vmatprep.subr.mxu0 0.0
  %6736 = vmatpush1.xpose.msra.mxu0 0.0
  %6737 = vmatprep.subr.mxu0 0.0
  %6738 = vmatpush1.xpose.msra.mxu0 0.0
  %6739 = vmatprep.subr.mxu0 0.0
  %6740 = vmatpush1.xpose.msra.mxu0 0.0
  %6741 = vmatprep.subr.mxu0 0.0
  %6742 = vmatpush1.xpose.msra.mxu0 0.0
  %6743 = vmatprep.subr.mxu0 0.0
  %6744 = vmatpush1.xpose.msra.mxu0 0.0
  %6745 = vmatprep.mubr.f32.mxu0 0.0
  %v6746 = vand.u32 %v6057, 4294901760
  %6747 = vmatmul.mubr.f32.gmra.mrb[0].mxu0 %v6746
  %v6748 = vpop.f32.mrb[0].mxu0
  %v6749 = vadd.f32 %v6654, %v6748
  %v6750 = vpop.f32.mrb[0].mxu0
  %6751 = vmatprep.mubr.f32.mxu0 0.0
  %v6752 = vand.u32 %v6060, 4294901760
  %6753 = vmatmul.mubr.f32.gmra.mrb[0].mxu0 %v6752
  %v6754 = vpop.f32.mrb[0].mxu0
  %v6755 = vadd.f32 %v6660, %v6754
  %v6756 = vpop.f32.mrb[0].mxu0
  %6757 = vmatprep.mubr.f32.mxu0 0.0
  %v6758 = vand.u32 %v6063, 4294901760
  %6759 = vmatmul.mubr.f32.gmra.mrb[0].mxu0 %v6758
  %v6760 = vpop.f32.mrb[0].mxu0
  %v6761 = vadd.f32 %v6666, %v6760
  %v6762 = vpop.f32.mrb[0].mxu0
  %6763 = vdwg.mxu0
  %v6764 = vsel %vm2031, %v6749, -inf
  %6765 = vmax.xlane.f32.xlu0 %v6764
  %v6766 = vpop.xlane.xlu0 %6765
  %v6767 = vsel %vm2031, %v6755, -inf
  %6768 = vmax.xlane.f32.xlu0 %v6767
  %v6769 = vpop.xlane.xlu0 %6768
  %v6770 = vsel %vm2031, %v6761, -inf
  %6771 = vmax.xlane.f32.xlu0 %v6770
  %v6772 = vpop.xlane.xlu0 %6771
  %v6773 = vsub.f32 %v6749, %v6766
  %v6774 = vsub.f32 %v6755, %v6769
  %v6775 = vsub.f32 %v6761, %v6772
  %v6776 = vmul.f32 %v6773, 1.442695
  %v6777 = vpow.pop %v6776
  %v6778 = vmul.f32 %v6774, 1.442695
  %v6779 = vpow.pop %v6778
  %v6780 = vmul.f32 %v6775, 1.442695
  %v6781 = vpow.pop %v6780
  %6794 = vrot.lane.b32.xlu0 %v6008, 64
  %v6795 = vpop.permute.xlu0 %6794
  %6796 = vrot.lane.b32.xlu0 %v6009, 64
  %v6797 = vpop.permute.xlu0 %6796
  %6798 = vrot.lane.b32.xlu0 %v6010, 64
  %v6799 = vpop.permute.xlu0 %6798
  %6800 = vrot.lane.b32.xlu0 %v6011, 64
  %v6801 = vpop.permute.xlu0 %6800
  %6802 = vrot.lane.b32.xlu0 %v6012, 64
  %v6803 = vpop.permute.xlu0 %6802
  %6804 = vrot.lane.b32.xlu0 %v6013, 64
  %v6805 = vpop.permute.xlu0 %6804
  %6806 = vrot.lane.b32.xlu0 %v6014, 64
  %v6807 = vpop.permute.xlu0 %6806
  %6808 = vrot.lane.b32.xlu0 %v6015, 64
  %v6809 = vpop.permute.xlu0 %6808
  %6810 = vrot.lane.b32.xlu0 %v6016, 64
  %v6811 = vpop.permute.xlu0 %6810
  %6812 = vrot.lane.b32.xlu0 %v6017, 64
  %v6813 = vpop.permute.xlu0 %6812
  %6814 = vrot.lane.b32.xlu0 %v6018, 64
  %v6815 = vpop.permute.xlu0 %6814
  %6816 = vrot.lane.b32.xlu0 %v6019, 64
  %v6817 = vpop.permute.xlu0 %6816
  %v6831 = vsel %vm2031, %v6777, 0
  %v6834 = vsel %vm2031, %v6779, 0
  %v6837 = vsel %vm2031, %v6781, 0
  %6839 = vmatprep.subr.mxu0 0.0
  %v6840 = vand.u32 %v6795, 4294901760
  %6841 = vmatpush1.msra.mxu0 %v6840
  %6842 = vmatprep.subr.mxu0 0.0
  %v6843 = vand.u32 %v6797, 4294901760
  %6844 = vmatpush1.msra.mxu0 %v6843
  %6845 = vmatprep.subr.mxu0 0.0
  %v6846 = vand.u32 %v6799, 4294901760
  %6847 = vmatpush1.msra.mxu0 %v6846
  %6848 = vmatprep.subr.mxu0 0.0
  %v6849 = vand.u32 %v6801, 4294901760
  %6850 = vmatpush1.msra.mxu0 %v6849
  %6851 = vmatprep.subr.mxu0 0.0
  %v6852 = vand.u32 %v6803, 4294901760
  %6853 = vmatpush1.msra.mxu0 %v6852
  %6854 = vmatprep.subr.mxu0 0.0
  %v6855 = vand.u32 %v6805, 4294901760
  %6856 = vmatpush1.msra.mxu0 %v6855
  %6857 = vmatprep.subr.mxu0 0.0
  %v6858 = vand.u32 %v6807, 4294901760
  %6859 = vmatpush1.msra.mxu0 %v6858
  %6860 = vmatprep.subr.mxu0 0.0
  %v6861 = vand.u32 %v6809, 4294901760
  %6862 = vmatpush1.msra.mxu0 %v6861
  %6863 = vmatprep.subr.mxu0 0.0
  %v6864 = vand.u32 %v6811, 4294901760
  %6865 = vmatpush1.msra.mxu0 %v6864
  %6866 = vmatprep.subr.mxu0 0.0
  %v6867 = vand.u32 %v6813, 4294901760
  %6868 = vmatpush1.msra.mxu0 %v6867
  %6869 = vmatprep.subr.mxu0 0.0
  %v6870 = vand.u32 %v6815, 4294901760
  %6871 = vmatpush1.msra.mxu0 %v6870
  %6872 = vmatprep.subr.mxu0 0.0
  %v6873 = vand.u32 %v6817, 4294901760
  %6874 = vmatpush1.msra.mxu0 %v6873
  %6875 = vmatprep.subr.mxu0 0.0
  %6876 = vmatpush1.msra.mxu0 0.0
  %6877 = vmatprep.subr.mxu0 0.0
  %6878 = vmatpush1.msra.mxu0 0.0
  %6879 = vmatprep.subr.mxu0 0.0
  %6880 = vmatpush1.msra.mxu0 0.0
  %6881 = vmatprep.subr.mxu0 0.0
  %6882 = vmatpush1.msra.mxu0 0.0
  %6883 = vmatprep.subr.mxu0 0.0
  %6884 = vmatpush1.msra.mxu0 0.0
  %6885 = vmatprep.subr.mxu0 0.0
  %6886 = vmatpush1.msra.mxu0 0.0
  %6887 = vmatprep.subr.mxu0 0.0
  %6888 = vmatpush1.msra.mxu0 0.0
  %6889 = vmatprep.subr.mxu0 0.0
  %6890 = vmatpush1.msra.mxu0 0.0
  %6891 = vmatprep.subr.mxu0 0.0
  %6892 = vmatpush1.msra.mxu0 0.0
  %6893 = vmatprep.subr.mxu0 0.0
  %6894 = vmatpush1.msra.mxu0 0.0
  %6895 = vmatprep.subr.mxu0 0.0
  %6896 = vmatpush1.msra.mxu0 0.0
  %6897 = vmatprep.subr.mxu0 0.0
  %6898 = vmatpush1.msra.mxu0 0.0
  %6899 = vmatprep.subr.mxu0 0.0
  %6900 = vmatpush1.msra.mxu0 0.0
  %6901 = vmatprep.subr.mxu0 0.0
  %6902 = vmatpush1.msra.mxu0 0.0
  %6903 = vmatprep.subr.mxu0 0.0
  %6904 = vmatpush1.msra.mxu0 0.0
  %6905 = vmatprep.subr.mxu0 0.0
  %6906 = vmatpush1.msra.mxu0 0.0
  %6907 = vmatprep.subr.mxu0 0.0
  %6908 = vmatpush1.msra.mxu0 0.0
  %6909 = vmatprep.subr.mxu0 0.0
  %6910 = vmatpush1.msra.mxu0 0.0
  %6911 = vmatprep.subr.mxu0 0.0
  %6912 = vmatpush1.msra.mxu0 0.0
  %6913 = vmatprep.subr.mxu0 0.0
  %6914 = vmatpush1.msra.mxu0 0.0
  %6915 = vmatprep.mubr.f32.mxu0 0.0
  %v6916 = vand.u32 %v6831, 4294901760
  %v6917 = vsub.f32 %v6831, %v6916
  %v6918 = vand.u32 %v6917, 4294901760
  %v6919 = vsub.f32 %v6917, %v6918
  %v6920 = vand.u32 %v6919, 4294901760
  %6921 = vmatmul.mubr.f32.gmra.mrb[0].mxu0 %v6920
  %v6922 = vpop.f32.mrb[0].mxu0
  %v6923 = vadd.f32 0.0, %v6922
  %v6924 = vpop.f32.mrb[0].mxu0
  %6925 = vmatprep.mubr.f32.mxu0 0.0
  %v6926 = vand.u32 %v6834, 4294901760
  %v6927 = vsub.f32 %v6834, %v6926
  %v6928 = vand.u32 %v6927, 4294901760
  %v6929 = vsub.f32 %v6927, %v6928
  %v6930 = vand.u32 %v6929, 4294901760
  %6931 = vmatmul.mubr.f32.gmra.mrb[0].mxu0 %v6930
  %v6932 = vpop.f32.mrb[0].mxu0
  %v6933 = vadd.f32 0.0, %v6932
  %v6934 = vpop.f32.mrb[0].mxu0
  %6935 = vmatprep.mubr.f32.mxu0 0.0
  %v6936 = vand.u32 %v6837, 4294901760
  %v6937 = vsub.f32 %v6837, %v6936
  %v6938 = vand.u32 %v6937, 4294901760
  %v6939 = vsub.f32 %v6937, %v6938
  %v6940 = vand.u32 %v6939, 4294901760
  %6941 = vmatmul.mubr.f32.gmra.mrb[0].mxu0 %v6940
  %v6942 = vpop.f32.mrb[0].mxu0
  %v6943 = vadd.f32 0.0, %v6942
  %v6944 = vpop.f32.mrb[0].mxu0
  %6945 = vdwg.mxu0
  %6946 = vmatprep.subr.mxu0 0.0
  %v6947 = vand.u32 %v6795, 4294901760
  %v6948 = vsub.f32 %v6795, %v6947
  %v6949 = vand.u32 %v6948, 4294901760
  %v6950 = vsub.f32 %v6948, %v6949
  %v6951 = vand.u32 %v6950, 4294901760
  %6952 = vmatpush1.msra.mxu0 %v6951
  %6953 = vmatprep.subr.mxu0 0.0
  %v6954 = vand.u32 %v6797, 4294901760
  %v6955 = vsub.f32 %v6797, %v6954
  %v6956 = vand.u32 %v6955, 4294901760
  %v6957 = vsub.f32 %v6955, %v6956
  %v6958 = vand.u32 %v6957, 4294901760
  %6959 = vmatpush1.msra.mxu0 %v6958
  %6960 = vmatprep.subr.mxu0 0.0
  %v6961 = vand.u32 %v6799, 4294901760
  %v6962 = vsub.f32 %v6799, %v6961
  %v6963 = vand.u32 %v6962, 4294901760
  %v6964 = vsub.f32 %v6962, %v6963
  %v6965 = vand.u32 %v6964, 4294901760
  %6966 = vmatpush1.msra.mxu0 %v6965
  %6967 = vmatprep.subr.mxu0 0.0
  %v6968 = vand.u32 %v6801, 4294901760
  %v6969 = vsub.f32 %v6801, %v6968
  %v6970 = vand.u32 %v6969, 4294901760
  %v6971 = vsub.f32 %v6969, %v6970
  %v6972 = vand.u32 %v6971, 4294901760
  %6973 = vmatpush1.msra.mxu0 %v6972
  %6974 = vmatprep.subr.mxu0 0.0
  %v6975 = vand.u32 %v6803, 4294901760
  %v6976 = vsub.f32 %v6803, %v6975
  %v6977 = vand.u32 %v6976, 4294901760
  %v6978 = vsub.f32 %v6976, %v6977
  %v6979 = vand.u32 %v6978, 4294901760
  %6980 = vmatpush1.msra.mxu0 %v6979
  %6981 = vmatprep.subr.mxu0 0.0
  %v6982 = vand.u32 %v6805, 4294901760
  %v6983 = vsub.f32 %v6805, %v6982
  %v6984 = vand.u32 %v6983, 4294901760
  %v6985 = vsub.f32 %v6983, %v6984
  %v6986 = vand.u32 %v6985, 4294901760
  %6987 = vmatpush1.msra.mxu0 %v6986
  %6988 = vmatprep.subr.mxu0 0.0
  %v6989 = vand.u32 %v6807, 4294901760
  %v6990 = vsub.f32 %v6807, %v6989
  %v6991 = vand.u32 %v6990, 4294901760
  %v6992 = vsub.f32 %v6990, %v6991
  %v6993 = vand.u32 %v6992, 4294901760
  %6994 = vmatpush1.msra.mxu0 %v6993
  %6995 = vmatprep.subr.mxu0 0.0
  %v6996 = vand.u32 %v6809, 4294901760
  %v6997 = vsub.f32 %v6809, %v6996
  %v6998 = vand.u32 %v6997, 4294901760
  %v6999 = vsub.f32 %v6997, %v6998
  %v7000 = vand.u32 %v6999, 4294901760
  %7001 = vmatpush1.msra.mxu0 %v7000
  %7002 = vmatprep.subr.mxu0 0.0
  %v7003 = vand.u32 %v6811, 4294901760
  %v7004 = vsub.f32 %v6811, %v7003
  %v7005 = vand.u32 %v7004, 4294901760
  %v7006 = vsub.f32 %v7004, %v7005
  %v7007 = vand.u32 %v7006, 4294901760
  %7008 = vmatpush1.msra.mxu0 %v7007
  %7009 = vmatprep.subr.mxu0 0.0
  %v7010 = vand.u32 %v6813, 4294901760
  %v7011 = vsub.f32 %v6813, %v7010
  %v7012 = vand.u32 %v7011, 4294901760
  %v7013 = vsub.f32 %v7011, %v7012
  %v7014 = vand.u32 %v7013, 4294901760
  %7015 = vmatpush1.msra.mxu0 %v7014
  %7016 = vmatprep.subr.mxu0 0.0
  %v7017 = vand.u32 %v6815, 4294901760
  %v7018 = vsub.f32 %v6815, %v7017
  %v7019 = vand.u32 %v7018, 4294901760
  %v7020 = vsub.f32 %v7018, %v7019
  %v7021 = vand.u32 %v7020, 4294901760
  %7022 = vmatpush1.msra.mxu0 %v7021
  %7023 = vmatprep.subr.mxu0 0.0
  %v7024 = vand.u32 %v6817, 4294901760
  %v7025 = vsub.f32 %v6817, %v7024
  %v7026 = vand.u32 %v7025, 4294901760
  %v7027 = vsub.f32 %v7025, %v7026
  %v7028 = vand.u32 %v7027, 4294901760
  %7029 = vmatpush1.msra.mxu0 %v7028
  %7030 = vmatprep.subr.mxu0 0.0
  %7031 = vmatpush1.msra.mxu0 0.0
  %7032 = vmatprep.subr.mxu0 0.0
  %7033 = vmatpush1.msra.mxu0 0.0
  %7034 = vmatprep.subr.mxu0 0.0
  %7035 = vmatpush1.msra.mxu0 0.0
  %7036 = vmatprep.subr.mxu0 0.0
  %7037 = vmatpush1.msra.mxu0 0.0
  %7038 = vmatprep.subr.mxu0 0.0
  %7039 = vmatpush1.msra.mxu0 0.0
  %7040 = vmatprep.subr.mxu0 0.0
  %7041 = vmatpush1.msra.mxu0 0.0
  %7042 = vmatprep.subr.mxu0 0.0
  %7043 = vmatpush1.msra.mxu0 0.0
  %7044 = vmatprep.subr.mxu0 0.0
  %7045 = vmatpush1.msra.mxu0 0.0
  %7046 = vmatprep.subr.mxu0 0.0
  %7047 = vmatpush1.msra.mxu0 0.0
  %7048 = vmatprep.subr.mxu0 0.0
  %7049 = vmatpush1.msra.mxu0 0.0
  %7050 = vmatprep.subr.mxu0 0.0
  %7051 = vmatpush1.msra.mxu0 0.0
  %7052 = vmatprep.subr.mxu0 0.0
  %7053 = vmatpush1.msra.mxu0 0.0
  %7054 = vmatprep.subr.mxu0 0.0
  %7055 = vmatpush1.msra.mxu0 0.0
  %7056 = vmatprep.subr.mxu0 0.0
  %7057 = vmatpush1.msra.mxu0 0.0
  %7058 = vmatprep.subr.mxu0 0.0
  %7059 = vmatpush1.msra.mxu0 0.0
  %7060 = vmatprep.subr.mxu0 0.0
  %7061 = vmatpush1.msra.mxu0 0.0
  %7062 = vmatprep.subr.mxu0 0.0
  %7063 = vmatpush1.msra.mxu0 0.0
  %7064 = vmatprep.subr.mxu0 0.0
  %7065 = vmatpush1.msra.mxu0 0.0
  %7066 = vmatprep.subr.mxu0 0.0
  %7067 = vmatpush1.msra.mxu0 0.0
  %7068 = vmatprep.subr.mxu0 0.0
  %7069 = vmatpush1.msra.mxu0 0.0
  %7070 = vmatprep.mubr.f32.mxu0 0.0
  %v7071 = vand.u32 %v6831, 4294901760
  %7072 = vmatmul.mubr.f32.gmra.mrb[0].mxu0 %v7071
  %v7073 = vpop.f32.mrb[0].mxu0
  %v7074 = vadd.f32 %v6923, %v7073
  %v7075 = vpop.f32.mrb[0].mxu0
  %7076 = vmatprep.mubr.f32.mxu0 0.0
  %v7077 = vand.u32 %v6834, 4294901760
  %7078 = vmatmul.mubr.f32.gmra.mrb[0].mxu0 %v7077
  %v7079 = vpop.f32.mrb[0].mxu0
  %v7080 = vadd.f32 %v6933, %v7079
  %v7081 = vpop.f32.mrb[0].mxu0
  %7082 = vmatprep.mubr.f32.mxu0 0.0
  %v7083 = vand.u32 %v6837, 4294901760
  %7084 = vmatmul.mubr.f32.gmra.mrb[0].mxu0 %v7083
  %v7085 = vpop.f32.mrb[0].mxu0
  %v7086 = vadd.f32 %v6943, %v7085
  %v7087 = vpop.f32.mrb[0].mxu0
  %7088 = vdwg.mxu0
  %7089 = vmatprep.subr.mxu0 0.0
  %v7090 = vand.u32 %v6795, 4294901760
  %v7091 = vsub.f32 %v6795, %v7090
  %7092 = vmatpush1.msra.mxu0 %v7091
  %7093 = vmatprep.subr.mxu0 0.0
  %v7094 = vand.u32 %v6797, 4294901760
  %v7095 = vsub.f32 %v6797, %v7094
  %7096 = vmatpush1.msra.mxu0 %v7095
  %7097 = vmatprep.subr.mxu0 0.0
  %v7098 = vand.u32 %v6799, 4294901760
  %v7099 = vsub.f32 %v6799, %v7098
  %7100 = vmatpush1.msra.mxu0 %v7099
  %7101 = vmatprep.subr.mxu0 0.0
  %v7102 = vand.u32 %v6801, 4294901760
  %v7103 = vsub.f32 %v6801, %v7102
  %7104 = vmatpush1.msra.mxu0 %v7103
  %7105 = vmatprep.subr.mxu0 0.0
  %v7106 = vand.u32 %v6803, 4294901760
  %v7107 = vsub.f32 %v6803, %v7106
  %7108 = vmatpush1.msra.mxu0 %v7107
  %7109 = vmatprep.subr.mxu0 0.0
  %v7110 = vand.u32 %v6805, 4294901760
  %v7111 = vsub.f32 %v6805, %v7110
  %7112 = vmatpush1.msra.mxu0 %v7111
  %7113 = vmatprep.subr.mxu0 0.0
  %v7114 = vand.u32 %v6807, 4294901760
  %v7115 = vsub.f32 %v6807, %v7114
  %7116 = vmatpush1.msra.mxu0 %v7115
  %7117 = vmatprep.subr.mxu0 0.0
  %v7118 = vand.u32 %v6809, 4294901760
  %v7119 = vsub.f32 %v6809, %v7118
  %7120 = vmatpush1.msra.mxu0 %v7119
  %7121 = vmatprep.subr.mxu0 0.0
  %v7122 = vand.u32 %v6811, 4294901760
  %v7123 = vsub.f32 %v6811, %v7122
  %7124 = vmatpush1.msra.mxu0 %v7123
  %7125 = vmatprep.subr.mxu0 0.0
  %v7126 = vand.u32 %v6813, 4294901760
  %v7127 = vsub.f32 %v6813, %v7126
  %7128 = vmatpush1.msra.mxu0 %v7127
  %7129 = vmatprep.subr.mxu0 0.0
  %v7130 = vand.u32 %v6815, 4294901760
  %v7131 = vsub.f32 %v6815, %v7130
  %7132 = vmatpush1.msra.mxu0 %v7131
  %7133 = vmatprep.subr.mxu0 0.0
  %v7134 = vand.u32 %v6817, 4294901760
  %v7135 = vsub.f32 %v6817, %v7134
  %7136 = vmatpush1.msra.mxu0 %v7135
  %7137 = vmatprep.subr.mxu0 0.0
  %7138 = vmatpush1.msra.mxu0 0.0
  %7139 = vmatprep.subr.mxu0 0.0
  %7140 = vmatpush1.msra.mxu0 0.0
  %7141 = vmatprep.subr.mxu0 0.0
  %7142 = vmatpush1.msra.mxu0 0.0
  %7143 = vmatprep.subr.mxu0 0.0
  %7144 = vmatpush1.msra.mxu0 0.0
  %7145 = vmatprep.subr.mxu0 0.0
  %7146 = vmatpush1.msra.mxu0 0.0
  %7147 = vmatprep.subr.mxu0 0.0
  %7148 = vmatpush1.msra.mxu0 0.0
  %7149 = vmatprep.subr.mxu0 0.0
  %7150 = vmatpush1.msra.mxu0 0.0
  %7151 = vmatprep.subr.mxu0 0.0
  %7152 = vmatpush1.msra.mxu0 0.0
  %7153 = vmatprep.subr.mxu0 0.0
  %7154 = vmatpush1.msra.mxu0 0.0
  %7155 = vmatprep.subr.mxu0 0.0
  %7156 = vmatpush1.msra.mxu0 0.0
  %7157 = vmatprep.subr.mxu0 0.0
  %7158 = vmatpush1.msra.mxu0 0.0
  %7159 = vmatprep.subr.mxu0 0.0
  %7160 = vmatpush1.msra.mxu0 0.0
  %7161 = vmatprep.subr.mxu0 0.0
  %7162 = vmatpush1.msra.mxu0 0.0
  %7163 = vmatprep.subr.mxu0 0.0
  %7164 = vmatpush1.msra.mxu0 0.0
  %7165 = vmatprep.subr.mxu0 0.0
  %7166 = vmatpush1.msra.mxu0 0.0
  %7167 = vmatprep.subr.mxu0 0.0
  %7168 = vmatpush1.msra.mxu0 0.0
  %7169 = vmatprep.subr.mxu0 0.0
  %7170 = vmatpush1.msra.mxu0 0.0
  %7171 = vmatprep.subr.mxu0 0.0
  %7172 = vmatpush1.msra.mxu0 0.0
  %7173 = vmatprep.subr.mxu0 0.0
  %7174 = vmatpush1.msra.mxu0 0.0
  %7175 = vmatprep.subr.mxu0 0.0
  %7176 = vmatpush1.msra.mxu0 0.0
  %7177 = vmatprep.mubr.f32.mxu0 0.0
  %v7178 = vand.u32 %v6831, 4294901760
  %v7179 = vsub.f32 %v6831, %v7178
  %7180 = vmatmul.mubr.f32.gmra.mrb[0].mxu0 %v7179
  %v7181 = vpop.f32.mrb[0].mxu0
  %v7182 = vadd.f32 %v7074, %v7181
  %v7183 = vpop.f32.mrb[0].mxu0
  %7184 = vmatprep.mubr.f32.mxu0 0.0
  %v7185 = vand.u32 %v6834, 4294901760
  %v7186 = vsub.f32 %v6834, %v7185
  %7187 = vmatmul.mubr.f32.gmra.mrb[0].mxu0 %v7186
  %v7188 = vpop.f32.mrb[0].mxu0
  %v7189 = vadd.f32 %v7080, %v7188
  %v7190 = vpop.f32.mrb[0].mxu0
  %7191 = vmatprep.mubr.f32.mxu0 0.0
  %v7192 = vand.u32 %v6837, 4294901760
  %v7193 = vsub.f32 %v6837, %v7192
  %7194 = vmatmul.mubr.f32.gmra.mrb[0].mxu0 %v7193
  %v7195 = vpop.f32.mrb[0].mxu0
  %v7196 = vadd.f32 %v7086, %v7195
  %v7197 = vpop.f32.mrb[0].mxu0
  %7198 = vdwg.mxu0
  %7199 = vmatprep.subr.mxu0 0.0
  %v7200 = vand.u32 %v6795, 4294901760
  %7201 = vmatpush1.msra.mxu0 %v7200
  %7202 = vmatprep.subr.mxu0 0.0
  %v7203 = vand.u32 %v6797, 4294901760
  %7204 = vmatpush1.msra.mxu0 %v7203
  %7205 = vmatprep.subr.mxu0 0.0
  %v7206 = vand.u32 %v6799, 4294901760
  %7207 = vmatpush1.msra.mxu0 %v7206
  %7208 = vmatprep.subr.mxu0 0.0
  %v7209 = vand.u32 %v6801, 4294901760
  %7210 = vmatpush1.msra.mxu0 %v7209
  %7211 = vmatprep.subr.mxu0 0.0
  %v7212 = vand.u32 %v6803, 4294901760
  %7213 = vmatpush1.msra.mxu0 %v7212
  %7214 = vmatprep.subr.mxu0 0.0
  %v7215 = vand.u32 %v6805, 4294901760
  %7216 = vmatpush1.msra.mxu0 %v7215
  %7217 = vmatprep.subr.mxu0 0.0
  %v7218 = vand.u32 %v6807, 4294901760
  %7219 = vmatpush1.msra.mxu0 %v7218
  %7220 = vmatprep.subr.mxu0 0.0
  %v7221 = vand.u32 %v6809, 4294901760
  %7222 = vmatpush1.msra.mxu0 %v7221
  %7223 = vmatprep.subr.mxu0 0.0
  %v7224 = vand.u32 %v6811, 4294901760
  %7225 = vmatpush1.msra.mxu0 %v7224
  %7226 = vmatprep.subr.mxu0 0.0
  %v7227 = vand.u32 %v6813, 4294901760
  %7228 = vmatpush1.msra.mxu0 %v7227
  %7229 = vmatprep.subr.mxu0 0.0
  %v7230 = vand.u32 %v6815, 4294901760
  %7231 = vmatpush1.msra.mxu0 %v7230
  %7232 = vmatprep.subr.mxu0 0.0
  %v7233 = vand.u32 %v6817, 4294901760
  %7234 = vmatpush1.msra.mxu0 %v7233
  %7235 = vmatprep.subr.mxu0 0.0
  %7236 = vmatpush1.msra.mxu0 0.0
  %7237 = vmatprep.subr.mxu0 0.0
  %7238 = vmatpush1.msra.mxu0 0.0
  %7239 = vmatprep.subr.mxu0 0.0
  %7240 = vmatpush1.msra.mxu0 0.0
  %7241 = vmatprep.subr.mxu0 0.0
  %7242 = vmatpush1.msra.mxu0 0.0
  %7243 = vmatprep.subr.mxu0 0.0
  %7244 = vmatpush1.msra.mxu0 0.0
  %7245 = vmatprep.subr.mxu0 0.0
  %7246 = vmatpush1.msra.mxu0 0.0
  %7247 = vmatprep.subr.mxu0 0.0
  %7248 = vmatpush1.msra.mxu0 0.0
  %7249 = vmatprep.subr.mxu0 0.0
  %7250 = vmatpush1.msra.mxu0 0.0
  %7251 = vmatprep.subr.mxu0 0.0
  %7252 = vmatpush1.msra.mxu0 0.0
  %7253 = vmatprep.subr.mxu0 0.0
  %7254 = vmatpush1.msra.mxu0 0.0
  %7255 = vmatprep.subr.mxu0 0.0
  %7256 = vmatpush1.msra.mxu0 0.0
  %7257 = vmatprep.subr.mxu0 0.0
  %7258 = vmatpush1.msra.mxu0 0.0
  %7259 = vmatprep.subr.mxu0 0.0
  %7260 = vmatpush1.msra.mxu0 0.0
  %7261 = vmatprep.subr.mxu0 0.0
  %7262 = vmatpush1.msra.mxu0 0.0
  %7263 = vmatprep.subr.mxu0 0.0
  %7264 = vmatpush1.msra.mxu0 0.0
  %7265 = vmatprep.subr.mxu0 0.0
  %7266 = vmatpush1.msra.mxu0 0.0
  %7267 = vmatprep.subr.mxu0 0.0
  %7268 = vmatpush1.msra.mxu0 0.0
  %7269 = vmatprep.subr.mxu0 0.0
  %7270 = vmatpush1.msra.mxu0 0.0
  %7271 = vmatprep.subr.mxu0 0.0
  %7272 = vmatpush1.msra.mxu0 0.0
  %7273 = vmatprep.subr.mxu0 0.0
  %7274 = vmatpush1.msra.mxu0 0.0
  %7275 = vmatprep.mubr.f32.mxu0 0.0
  %v7276 = vand.u32 %v6831, 4294901760
  %v7277 = vsub.f32 %v6831, %v7276
  %v7278 = vand.u32 %v7277, 4294901760
  %7279 = vmatmul.mubr.f32.gmra.mrb[0].mxu0 %v7278
  %v7280 = vpop.f32.mrb[0].mxu0
  %v7281 = vadd.f32 %v7182, %v7280
  %v7282 = vpop.f32.mrb[0].mxu0
  %7283 = vmatprep.mubr.f32.mxu0 0.0
  %v7284 = vand.u32 %v6834, 4294901760
  %v7285 = vsub.f32 %v6834, %v7284
  %v7286 = vand.u32 %v7285, 4294901760
  %7287 = vmatmul.mubr.f32.gmra.mrb[0].mxu0 %v7286
  %v7288 = vpop.f32.mrb[0].mxu0
  %v7289 = vadd.f32 %v7189, %v7288
  %v7290 = vpop.f32.mrb[0].mxu0
  %7291 = vmatprep.mubr.f32.mxu0 0.0
  %v7292 = vand.u32 %v6837, 4294901760
  %v7293 = vsub.f32 %v6837, %v7292
  %v7294 = vand.u32 %v7293, 4294901760
  %7295 = vmatmul.mubr.f32.gmra.mrb[0].mxu0 %v7294
  %v7296 = vpop.f32.mrb[0].mxu0
  %v7297 = vadd.f32 %v7196, %v7296
  %v7298 = vpop.f32.mrb[0].mxu0
  %7299 = vdwg.mxu0
  %7300 = vmatprep.subr.mxu0 0.0
  %v7301 = vand.u32 %v6795, 4294901760
  %v7302 = vsub.f32 %v6795, %v7301
  %v7303 = vand.u32 %v7302, 4294901760
  %7304 = vmatpush1.msra.mxu0 %v7303
  %7305 = vmatprep.subr.mxu0 0.0
  %v7306 = vand.u32 %v6797, 4294901760
  %v7307 = vsub.f32 %v6797, %v7306
  %v7308 = vand.u32 %v7307, 4294901760
  %7309 = vmatpush1.msra.mxu0 %v7308
  %7310 = vmatprep.subr.mxu0 0.0
  %v7311 = vand.u32 %v6799, 4294901760
  %v7312 = vsub.f32 %v6799, %v7311
  %v7313 = vand.u32 %v7312, 4294901760
  %7314 = vmatpush1.msra.mxu0 %v7313
  %7315 = vmatprep.subr.mxu0 0.0
  %v7316 = vand.u32 %v6801, 4294901760
  %v7317 = vsub.f32 %v6801, %v7316
  %v7318 = vand.u32 %v7317, 4294901760
  %7319 = vmatpush1.msra.mxu0 %v7318
  %7320 = vmatprep.subr.mxu0 0.0
  %v7321 = vand.u32 %v6803, 4294901760
  %v7322 = vsub.f32 %v6803, %v7321
  %v7323 = vand.u32 %v7322, 4294901760
  %7324 = vmatpush1.msra.mxu0 %v7323
  %7325 = vmatprep.subr.mxu0 0.0
  %v7326 = vand.u32 %v6805, 4294901760
  %v7327 = vsub.f32 %v6805, %v7326
  %v7328 = vand.u32 %v7327, 4294901760
  %7329 = vmatpush1.msra.mxu0 %v7328
  %7330 = vmatprep.subr.mxu0 0.0
  %v7331 = vand.u32 %v6807, 4294901760
  %v7332 = vsub.f32 %v6807, %v7331
  %v7333 = vand.u32 %v7332, 4294901760
  %7334 = vmatpush1.msra.mxu0 %v7333
  %7335 = vmatprep.subr.mxu0 0.0
  %v7336 = vand.u32 %v6809, 4294901760
  %v7337 = vsub.f32 %v6809, %v7336
  %v7338 = vand.u32 %v7337, 4294901760
  %7339 = vmatpush1.msra.mxu0 %v7338
  %7340 = vmatprep.subr.mxu0 0.0
  %v7341 = vand.u32 %v6811, 4294901760
  %v7342 = vsub.f32 %v6811, %v7341
  %v7343 = vand.u32 %v7342, 4294901760
  %7344 = vmatpush1.msra.mxu0 %v7343
  %7345 = vmatprep.subr.mxu0 0.0
  %v7346 = vand.u32 %v6813, 4294901760
  %v7347 = vsub.f32 %v6813, %v7346
  %v7348 = vand.u32 %v7347, 4294901760
  %7349 = vmatpush1.msra.mxu0 %v7348
  %7350 = vmatprep.subr.mxu0 0.0
  %v7351 = vand.u32 %v6815, 4294901760
  %v7352 = vsub.f32 %v6815, %v7351
  %v7353 = vand.u32 %v7352, 4294901760
  %7354 = vmatpush1.msra.mxu0 %v7353
  %7355 = vmatprep.subr.mxu0 0.0
  %v7356 = vand.u32 %v6817, 4294901760
  %v7357 = vsub.f32 %v6817, %v7356
  %v7358 = vand.u32 %v7357, 4294901760
  %7359 = vmatpush1.msra.mxu0 %v7358
  %7360 = vmatprep.subr.mxu0 0.0
  %7361 = vmatpush1.msra.mxu0 0.0
  %7362 = vmatprep.subr.mxu0 0.0
  %7363 = vmatpush1.msra.mxu0 0.0
  %7364 = vmatprep.subr.mxu0 0.0
  %7365 = vmatpush1.msra.mxu0 0.0
  %7366 = vmatprep.subr.mxu0 0.0
  %7367 = vmatpush1.msra.mxu0 0.0
  %7368 = vmatprep.subr.mxu0 0.0
  %7369 = vmatpush1.msra.mxu0 0.0
  %7370 = vmatprep.subr.mxu0 0.0
  %7371 = vmatpush1.msra.mxu0 0.0
  %7372 = vmatprep.subr.mxu0 0.0
  %7373 = vmatpush1.msra.mxu0 0.0
  %7374 = vmatprep.subr.mxu0 0.0
  %7375 = vmatpush1.msra.mxu0 0.0
  %7376 = vmatprep.subr.mxu0 0.0
  %7377 = vmatpush1.msra.mxu0 0.0
  %7378 = vmatprep.subr.mxu0 0.0
  %7379 = vmatpush1.msra.mxu0 0.0
  %7380 = vmatprep.subr.mxu0 0.0
  %7381 = vmatpush1.msra.mxu0 0.0
  %7382 = vmatprep.subr.mxu0 0.0
  %7383 = vmatpush1.msra.mxu0 0.0
  %7384 = vmatprep.subr.mxu0 0.0
  %7385 = vmatpush1.msra.mxu0 0.0
  %7386 = vmatprep.subr.mxu0 0.0
  %7387 = vmatpush1.msra.mxu0 0.0
  %7388 = vmatprep.subr.mxu0 0.0
  %7389 = vmatpush1.msra.mxu0 0.0
  %7390 = vmatprep.subr.mxu0 0.0
  %7391 = vmatpush1.msra.mxu0 0.0
  %7392 = vmatprep.subr.mxu0 0.0
  %7393 = vmatpush1.msra.mxu0 0.0
  %7394 = vmatprep.subr.mxu0 0.0
  %7395 = vmatpush1.msra.mxu0 0.0
  %7396 = vmatprep.subr.mxu0 0.0
  %7397 = vmatpush1.msra.mxu0 0.0
  %7398 = vmatprep.subr.mxu0 0.0
  %7399 = vmatpush1.msra.mxu0 0.0
  %7400 = vmatprep.mubr.f32.mxu0 0.0
  %v7401 = vand.u32 %v6831, 4294901760
  %7402 = vmatmul.mubr.f32.gmra.mrb[0].mxu0 %v7401
  %v7403 = vpop.f32.mrb[0].mxu0
  %v7404 = vadd.f32 %v7281, %v7403
  %v7405 = vpop.f32.mrb[0].mxu0
  %7406 = vmatprep.mubr.f32.mxu0 0.0
  %v7407 = vand.u32 %v6834, 4294901760
  %7408 = vmatmul.mubr.f32.gmra.mrb[0].mxu0 %v7407
  %v7409 = vpop.f32.mrb[0].mxu0
  %v7410 = vadd.f32 %v7289, %v7409
  %v7411 = vpop.f32.mrb[0].mxu0
  %7412 = vmatprep.mubr.f32.mxu0 0.0
  %v7413 = vand.u32 %v6837, 4294901760
  %7414 = vmatmul.mubr.f32.gmra.mrb[0].mxu0 %v7413
  %v7415 = vpop.f32.mrb[0].mxu0
  %v7416 = vadd.f32 %v7297, %v7415
  %v7417 = vpop.f32.mrb[0].mxu0
  %7418 = vdwg.mxu0
  %7419 = vmatprep.subr.mxu0 0.0
  %v7420 = vand.u32 %v6795, 4294901760
  %7421 = vmatpush1.msra.mxu0 %v7420
  %7422 = vmatprep.subr.mxu0 0.0
  %v7423 = vand.u32 %v6797, 4294901760
  %7424 = vmatpush1.msra.mxu0 %v7423
  %7425 = vmatprep.subr.mxu0 0.0
  %v7426 = vand.u32 %v6799, 4294901760
  %7427 = vmatpush1.msra.mxu0 %v7426
  %7428 = vmatprep.subr.mxu0 0.0
  %v7429 = vand.u32 %v6801, 4294901760
  %7430 = vmatpush1.msra.mxu0 %v7429
  %7431 = vmatprep.subr.mxu0 0.0
  %v7432 = vand.u32 %v6803, 4294901760
  %7433 = vmatpush1.msra.mxu0 %v7432
  %7434 = vmatprep.subr.mxu0 0.0
  %v7435 = vand.u32 %v6805, 4294901760
  %7436 = vmatpush1.msra.mxu0 %v7435
  %7437 = vmatprep.subr.mxu0 0.0
  %v7438 = vand.u32 %v6807, 4294901760
  %7439 = vmatpush1.msra.mxu0 %v7438
  %7440 = vmatprep.subr.mxu0 0.0
  %v7441 = vand.u32 %v6809, 4294901760
  %7442 = vmatpush1.msra.mxu0 %v7441
  %7443 = vmatprep.subr.mxu0 0.0
  %v7444 = vand.u32 %v6811, 4294901760
  %7445 = vmatpush1.msra.mxu0 %v7444
  %7446 = vmatprep.subr.mxu0 0.0
  %v7447 = vand.u32 %v6813, 4294901760
  %7448 = vmatpush1.msra.mxu0 %v7447
  %7449 = vmatprep.subr.mxu0 0.0
  %v7450 = vand.u32 %v6815, 4294901760
  %7451 = vmatpush1.msra.mxu0 %v7450
  %7452 = vmatprep.subr.mxu0 0.0
  %v7453 = vand.u32 %v6817, 4294901760
  %7454 = vmatpush1.msra.mxu0 %v7453
  %7455 = vmatprep.subr.mxu0 0.0
  %7456 = vmatpush1.msra.mxu0 0.0
  %7457 = vmatprep.subr.mxu0 0.0
  %7458 = vmatpush1.msra.mxu0 0.0
  %7459 = vmatprep.subr.mxu0 0.0
  %7460 = vmatpush1.msra.mxu0 0.0
  %7461 = vmatprep.subr.mxu0 0.0
  %7462 = vmatpush1.msra.mxu0 0.0
  %7463 = vmatprep.subr.mxu0 0.0
  %7464 = vmatpush1.msra.mxu0 0.0
  %7465 = vmatprep.subr.mxu0 0.0
  %7466 = vmatpush1.msra.mxu0 0.0
  %7467 = vmatprep.subr.mxu0 0.0
  %7468 = vmatpush1.msra.mxu0 0.0
  %7469 = vmatprep.subr.mxu0 0.0
  %7470 = vmatpush1.msra.mxu0 0.0
  %7471 = vmatprep.subr.mxu0 0.0
  %7472 = vmatpush1.msra.mxu0 0.0
  %7473 = vmatprep.subr.mxu0 0.0
  %7474 = vmatpush1.msra.mxu0 0.0
  %7475 = vmatprep.subr.mxu0 0.0
  %7476 = vmatpush1.msra.mxu0 0.0
  %7477 = vmatprep.subr.mxu0 0.0
  %7478 = vmatpush1.msra.mxu0 0.0
  %7479 = vmatprep.subr.mxu0 0.0
  %7480 = vmatpush1.msra.mxu0 0.0
  %7481 = vmatprep.subr.mxu0 0.0
  %7482 = vmatpush1.msra.mxu0 0.0
  %7483 = vmatprep.subr.mxu0 0.0
  %7484 = vmatpush1.msra.mxu0 0.0
  %7485 = vmatprep.subr.mxu0 0.0
  %7486 = vmatpush1.msra.mxu0 0.0
  %7487 = vmatprep.subr.mxu0 0.0
  %7488 = vmatpush1.msra.mxu0 0.0
  %7489 = vmatprep.subr.mxu0 0.0
  %7490 = vmatpush1.msra.mxu0 0.0
  %7491 = vmatprep.subr.mxu0 0.0
  %7492 = vmatpush1.msra.mxu0 0.0
  %7493 = vmatprep.subr.mxu0 0.0
  %7494 = vmatpush1.msra.mxu0 0.0
  %7495 = vmatprep.mubr.f32.mxu0 0.0
  %v7496 = vand.u32 %v6831, 4294901760
  %7497 = vmatmul.mubr.f32.gmra.mrb[0].mxu0 %v7496
  %v7498 = vpop.f32.mrb[0].mxu0
  %v7499 = vadd.f32 %v7404, %v7498
  %v7500 = vpop.f32.mrb[0].mxu0
  %7501 = vmatprep.mubr.f32.mxu0 0.0
  %v7502 = vand.u32 %v6834, 4294901760
  %7503 = vmatmul.mubr.f32.gmra.mrb[0].mxu0 %v7502
  %v7504 = vpop.f32.mrb[0].mxu0
  %v7505 = vadd.f32 %v7410, %v7504
  %v7506 = vpop.f32.mrb[0].mxu0
  %7507 = vmatprep.mubr.f32.mxu0 0.0
  %v7508 = vand.u32 %v6837, 4294901760
  %7509 = vmatmul.mubr.f32.gmra.mrb[0].mxu0 %v7508
  %v7510 = vpop.f32.mrb[0].mxu0
  %v7511 = vadd.f32 %v7416, %v7510
  %v7512 = vpop.f32.mrb[0].mxu0
  %7513 = vdwg.mxu0
  %7514 = vmatprep.subr.mxu0 0.0
  %v7515 = vand.u32 %v574, 4294901760
  %7516 = vmatpush1.msra.mxu0 %v7515
  %7517 = vmatprep.subr.mxu0 0.0
  %v7518 = vand.u32 %v575, 4294901760
  %7519 = vmatpush1.msra.mxu0 %v7518
  %7520 = vmatprep.subr.mxu0 0.0
  %v7521 = vand.u32 %v576, 4294901760
  %7522 = vmatpush1.msra.mxu0 %v7521
  %7523 = vmatprep.subr.mxu0 0.0
  %v7524 = vand.u32 %v577, 4294901760
  %7525 = vmatpush1.msra.mxu0 %v7524
  %7526 = vmatprep.subr.mxu0 0.0
  %v7527 = vand.u32 %v578, 4294901760
  %7528 = vmatpush1.msra.mxu0 %v7527
  %7529 = vmatprep.subr.mxu0 0.0
  %v7530 = vand.u32 %v579, 4294901760
  %7531 = vmatpush1.msra.mxu0 %v7530
  %7532 = vmatprep.subr.mxu0 0.0
  %v7533 = vand.u32 %v580, 4294901760
  %7534 = vmatpush1.msra.mxu0 %v7533
  %7535 = vmatprep.subr.mxu0 0.0
  %v7536 = vand.u32 %v581, 4294901760
  %7537 = vmatpush1.msra.mxu0 %v7536
  %7538 = vmatprep.subr.mxu0 0.0
  %v7539 = vand.u32 %v582, 4294901760
  %7540 = vmatpush1.msra.mxu0 %v7539
  %7541 = vmatprep.subr.mxu0 0.0
  %v7542 = vand.u32 %v583, 4294901760
  %7543 = vmatpush1.msra.mxu0 %v7542
  %7544 = vmatprep.subr.mxu0 0.0
  %v7545 = vand.u32 %v584, 4294901760
  %7546 = vmatpush1.msra.mxu0 %v7545
  %7547 = vmatprep.subr.mxu0 0.0
  %v7548 = vand.u32 %v585, 4294901760
  %7549 = vmatpush1.msra.mxu0 %v7548
  %7550 = vmatprep.subr.mxu0 0.0
  %7551 = vmatpush1.msra.mxu0 0.0
  %7552 = vmatprep.subr.mxu0 0.0
  %7553 = vmatpush1.msra.mxu0 0.0
  %7554 = vmatprep.subr.mxu0 0.0
  %7555 = vmatpush1.msra.mxu0 0.0
  %7556 = vmatprep.subr.mxu0 0.0
  %7557 = vmatpush1.msra.mxu0 0.0
  %7558 = vmatprep.subr.mxu0 0.0
  %7559 = vmatpush1.msra.mxu0 0.0
  %7560 = vmatprep.subr.mxu0 0.0
  %7561 = vmatpush1.msra.mxu0 0.0
  %7562 = vmatprep.subr.mxu0 0.0
  %7563 = vmatpush1.msra.mxu0 0.0
  %7564 = vmatprep.subr.mxu0 0.0
  %7565 = vmatpush1.msra.mxu0 0.0
  %7566 = vmatprep.subr.mxu0 0.0
  %7567 = vmatpush1.msra.mxu0 0.0
  %7568 = vmatprep.subr.mxu0 0.0
  %7569 = vmatpush1.msra.mxu0 0.0
  %7570 = vmatprep.subr.mxu0 0.0
  %7571 = vmatpush1.msra.mxu0 0.0
  %7572 = vmatprep.subr.mxu0 0.0
  %7573 = vmatpush1.msra.mxu0 0.0
  %7574 = vmatprep.subr.mxu0 0.0
  %7575 = vmatpush1.msra.mxu0 0.0
  %7576 = vmatprep.subr.mxu0 0.0
  %7577 = vmatpush1.msra.mxu0 0.0
  %7578 = vmatprep.subr.mxu0 0.0
  %7579 = vmatpush1.msra.mxu0 0.0
  %7580 = vmatprep.subr.mxu0 0.0
  %7581 = vmatpush1.msra.mxu0 0.0
  %7582 = vmatprep.subr.mxu0 0.0
  %7583 = vmatpush1.msra.mxu0 0.0
  %7584 = vmatprep.subr.mxu0 0.0
  %7585 = vmatpush1.msra.mxu0 0.0
  %7586 = vmatprep.subr.mxu0 0.0
  %7587 = vmatpush1.msra.mxu0 0.0
  %7588 = vmatprep.subr.mxu0 0.0
  %7589 = vmatpush1.msra.mxu0 0.0
  %7590 = vmatprep.mubr.f32.mxu0 0.0
  %v7591 = vand.u32 %v6831, 4294901760
  %v7592 = vsub.f32 %v6831, %v7591
  %v7593 = vand.u32 %v7592, 4294901760
  %v7594 = vsub.f32 %v7592, %v7593
  %v7595 = vand.u32 %v7594, 4294901760
  %7596 = vmatmul.mubr.f32.gmra.mrb[0].mxu0 %v7595
  %v7597 = vpop.f32.mrb[0].mxu0
  %v7598 = vadd.f32 0.0, %v7597
  %v7599 = vpop.f32.mrb[0].mxu0
  %7600 = vmatprep.mubr.f32.mxu0 0.0
  %v7601 = vand.u32 %v6834, 4294901760
  %v7602 = vsub.f32 %v6834, %v7601
  %v7603 = vand.u32 %v7602, 4294901760
  %v7604 = vsub.f32 %v7602, %v7603
  %v7605 = vand.u32 %v7604, 4294901760
  %7606 = vmatmul.mubr.f32.gmra.mrb[0].mxu0 %v7605
  %v7607 = vpop.f32.mrb[0].mxu0
  %v7608 = vadd.f32 0.0, %v7607
  %v7609 = vpop.f32.mrb[0].mxu0
  %7610 = vmatprep.mubr.f32.mxu0 0.0
  %v7611 = vand.u32 %v6837, 4294901760
  %v7612 = vsub.f32 %v6837, %v7611
  %v7613 = vand.u32 %v7612, 4294901760
  %v7614 = vsub.f32 %v7612, %v7613
  %v7615 = vand.u32 %v7614, 4294901760
  %7616 = vmatmul.mubr.f32.gmra.mrb[0].mxu0 %v7615
  %v7617 = vpop.f32.mrb[0].mxu0
  %v7618 = vadd.f32 0.0, %v7617
  %v7619 = vpop.f32.mrb[0].mxu0
  %7620 = vdwg.mxu0
  %7621 = vmatprep.subr.mxu0 0.0
  %v7622 = vand.u32 %v574, 4294901760
  %v7623 = vsub.f32 %v574, %v7622
  %v7624 = vand.u32 %v7623, 4294901760
  %v7625 = vsub.f32 %v7623, %v7624
  %v7626 = vand.u32 %v7625, 4294901760
  %7627 = vmatpush1.msra.mxu0 %v7626
  %7628 = vmatprep.subr.mxu0 0.0
  %v7629 = vand.u32 %v575, 4294901760
  %v7630 = vsub.f32 %v575, %v7629
  %v7631 = vand.u32 %v7630, 4294901760
  %v7632 = vsub.f32 %v7630, %v7631
  %v7633 = vand.u32 %v7632, 4294901760
  %7634 = vmatpush1.msra.mxu0 %v7633
  %7635 = vmatprep.subr.mxu0 0.0
  %v7636 = vand.u32 %v576, 4294901760
  %v7637 = vsub.f32 %v576, %v7636
  %v7638 = vand.u32 %v7637, 4294901760
  %v7639 = vsub.f32 %v7637, %v7638
  %v7640 = vand.u32 %v7639, 4294901760
  %7641 = vmatpush1.msra.mxu0 %v7640
  %7642 = vmatprep.subr.mxu0 0.0
  %v7643 = vand.u32 %v577, 4294901760
  %v7644 = vsub.f32 %v577, %v7643
  %v7645 = vand.u32 %v7644, 4294901760
  %v7646 = vsub.f32 %v7644, %v7645
  %v7647 = vand.u32 %v7646, 4294901760
  %7648 = vmatpush1.msra.mxu0 %v7647
  %7649 = vmatprep.subr.mxu0 0.0
  %v7650 = vand.u32 %v578, 4294901760
  %v7651 = vsub.f32 %v578, %v7650
  %v7652 = vand.u32 %v7651, 4294901760
  %v7653 = vsub.f32 %v7651, %v7652
  %v7654 = vand.u32 %v7653, 4294901760
  %7655 = vmatpush1.msra.mxu0 %v7654
  %7656 = vmatprep.subr.mxu0 0.0
  %v7657 = vand.u32 %v579, 4294901760
  %v7658 = vsub.f32 %v579, %v7657
  %v7659 = vand.u32 %v7658, 4294901760
  %v7660 = vsub.f32 %v7658, %v7659
  %v7661 = vand.u32 %v7660, 4294901760
  %7662 = vmatpush1.msra.mxu0 %v7661
  %7663 = vmatprep.subr.mxu0 0.0
  %v7664 = vand.u32 %v580, 4294901760
  %v7665 = vsub.f32 %v580, %v7664
  %v7666 = vand.u32 %v7665, 4294901760
  %v7667 = vsub.f32 %v7665, %v7666
  %v7668 = vand.u32 %v7667, 4294901760
  %7669 = vmatpush1.msra.mxu0 %v7668
  %7670 = vmatprep.subr.mxu0 0.0
  %v7671 = vand.u32 %v581, 4294901760
  %v7672 = vsub.f32 %v581, %v7671
  %v7673 = vand.u32 %v7672, 4294901760
  %v7674 = vsub.f32 %v7672, %v7673
  %v7675 = vand.u32 %v7674, 4294901760
  %7676 = vmatpush1.msra.mxu0 %v7675
  %7677 = vmatprep.subr.mxu0 0.0
  %v7678 = vand.u32 %v582, 4294901760
  %v7679 = vsub.f32 %v582, %v7678
  %v7680 = vand.u32 %v7679, 4294901760
  %v7681 = vsub.f32 %v7679, %v7680
  %v7682 = vand.u32 %v7681, 4294901760
  %7683 = vmatpush1.msra.mxu0 %v7682
  %7684 = vmatprep.subr.mxu0 0.0
  %v7685 = vand.u32 %v583, 4294901760
  %v7686 = vsub.f32 %v583, %v7685
  %v7687 = vand.u32 %v7686, 4294901760
  %v7688 = vsub.f32 %v7686, %v7687
  %v7689 = vand.u32 %v7688, 4294901760
  %7690 = vmatpush1.msra.mxu0 %v7689
  %7691 = vmatprep.subr.mxu0 0.0
  %v7692 = vand.u32 %v584, 4294901760
  %v7693 = vsub.f32 %v584, %v7692
  %v7694 = vand.u32 %v7693, 4294901760
  %v7695 = vsub.f32 %v7693, %v7694
  %v7696 = vand.u32 %v7695, 4294901760
  %7697 = vmatpush1.msra.mxu0 %v7696
  %7698 = vmatprep.subr.mxu0 0.0
  %v7699 = vand.u32 %v585, 4294901760
  %v7700 = vsub.f32 %v585, %v7699
  %v7701 = vand.u32 %v7700, 4294901760
  %v7702 = vsub.f32 %v7700, %v7701
  %v7703 = vand.u32 %v7702, 4294901760
  %7704 = vmatpush1.msra.mxu0 %v7703
  %7705 = vmatprep.subr.mxu0 0.0
  %7706 = vmatpush1.msra.mxu0 0.0
  %7707 = vmatprep.subr.mxu0 0.0
  %7708 = vmatpush1.msra.mxu0 0.0
  %7709 = vmatprep.subr.mxu0 0.0
  %7710 = vmatpush1.msra.mxu0 0.0
  %7711 = vmatprep.subr.mxu0 0.0
  %7712 = vmatpush1.msra.mxu0 0.0
  %7713 = vmatprep.subr.mxu0 0.0
  %7714 = vmatpush1.msra.mxu0 0.0
  %7715 = vmatprep.subr.mxu0 0.0
  %7716 = vmatpush1.msra.mxu0 0.0
  %7717 = vmatprep.subr.mxu0 0.0
  %7718 = vmatpush1.msra.mxu0 0.0
  %7719 = vmatprep.subr.mxu0 0.0
  %7720 = vmatpush1.msra.mxu0 0.0
  %7721 = vmatprep.subr.mxu0 0.0
  %7722 = vmatpush1.msra.mxu0 0.0
  %7723 = vmatprep.subr.mxu0 0.0
  %7724 = vmatpush1.msra.mxu0 0.0
  %7725 = vmatprep.subr.mxu0 0.0
  %7726 = vmatpush1.msra.mxu0 0.0
  %7727 = vmatprep.subr.mxu0 0.0
  %7728 = vmatpush1.msra.mxu0 0.0
  %7729 = vmatprep.subr.mxu0 0.0
  %7730 = vmatpush1.msra.mxu0 0.0
  %7731 = vmatprep.subr.mxu0 0.0
  %7732 = vmatpush1.msra.mxu0 0.0
  %7733 = vmatprep.subr.mxu0 0.0
  %7734 = vmatpush1.msra.mxu0 0.0
  %7735 = vmatprep.subr.mxu0 0.0
  %7736 = vmatpush1.msra.mxu0 0.0
  %7737 = vmatprep.subr.mxu0 0.0
  %7738 = vmatpush1.msra.mxu0 0.0
  %7739 = vmatprep.subr.mxu0 0.0
  %7740 = vmatpush1.msra.mxu0 0.0
  %7741 = vmatprep.subr.mxu0 0.0
  %7742 = vmatpush1.msra.mxu0 0.0
  %7743 = vmatprep.subr.mxu0 0.0
  %7744 = vmatpush1.msra.mxu0 0.0
  %7745 = vmatprep.mubr.f32.mxu0 0.0
  %v7746 = vand.u32 %v6831, 4294901760
  %7747 = vmatmul.mubr.f32.gmra.mrb[0].mxu0 %v7746
  %v7748 = vpop.f32.mrb[0].mxu0
  %v7749 = vadd.f32 %v7598, %v7748
  %v7750 = vpop.f32.mrb[0].mxu0
  %7751 = vmatprep.mubr.f32.mxu0 0.0
  %v7752 = vand.u32 %v6834, 4294901760
  %7753 = vmatmul.mubr.f32.gmra.mrb[0].mxu0 %v7752
  %v7754 = vpop.f32.mrb[0].mxu0
  %v7755 = vadd.f32 %v7608, %v7754
  %v7756 = vpop.f32.mrb[0].mxu0
  %7757 = vmatprep.mubr.f32.mxu0 0.0
  %v7758 = vand.u32 %v6837, 4294901760
  %7759 = vmatmul.mubr.f32.gmra.mrb[0].mxu0 %v7758
  %v7760 = vpop.f32.mrb[0].mxu0
  %v7761 = vadd.f32 %v7618, %v7760
  %v7762 = vpop.f32.mrb[0].mxu0
  %7763 = vdwg.mxu0
  %7764 = vmatprep.subr.mxu0 0.0
  %v7765 = vand.u32 %v574, 4294901760
  %v7766 = vsub.f32 %v574, %v7765
  %7767 = vmatpush1.msra.mxu0 %v7766
  %7768 = vmatprep.subr.mxu0 0.0
  %v7769 = vand.u32 %v575, 4294901760
  %v7770 = vsub.f32 %v575, %v7769
  %7771 = vmatpush1.msra.mxu0 %v7770
  %7772 = vmatprep.subr.mxu0 0.0
  %v7773 = vand.u32 %v576, 4294901760
  %v7774 = vsub.f32 %v576, %v7773
  %7775 = vmatpush1.msra.mxu0 %v7774
  %7776 = vmatprep.subr.mxu0 0.0
  %v7777 = vand.u32 %v577, 4294901760
  %v7778 = vsub.f32 %v577, %v7777
  %7779 = vmatpush1.msra.mxu0 %v7778
  %7780 = vmatprep.subr.mxu0 0.0
  %v7781 = vand.u32 %v578, 4294901760
  %v7782 = vsub.f32 %v578, %v7781
  %7783 = vmatpush1.msra.mxu0 %v7782
  %7784 = vmatprep.subr.mxu0 0.0
  %v7785 = vand.u32 %v579, 4294901760
  %v7786 = vsub.f32 %v579, %v7785
  %7787 = vmatpush1.msra.mxu0 %v7786
  %7788 = vmatprep.subr.mxu0 0.0
  %v7789 = vand.u32 %v580, 4294901760
  %v7790 = vsub.f32 %v580, %v7789
  %7791 = vmatpush1.msra.mxu0 %v7790
  %7792 = vmatprep.subr.mxu0 0.0
  %v7793 = vand.u32 %v581, 4294901760
  %v7794 = vsub.f32 %v581, %v7793
  %7795 = vmatpush1.msra.mxu0 %v7794
  %7796 = vmatprep.subr.mxu0 0.0
  %v7797 = vand.u32 %v582, 4294901760
  %v7798 = vsub.f32 %v582, %v7797
  %7799 = vmatpush1.msra.mxu0 %v7798
  %7800 = vmatprep.subr.mxu0 0.0
  %v7801 = vand.u32 %v583, 4294901760
  %v7802 = vsub.f32 %v583, %v7801
  %7803 = vmatpush1.msra.mxu0 %v7802
  %7804 = vmatprep.subr.mxu0 0.0
  %v7805 = vand.u32 %v584, 4294901760
  %v7806 = vsub.f32 %v584, %v7805
  %7807 = vmatpush1.msra.mxu0 %v7806
  %7808 = vmatprep.subr.mxu0 0.0
  %v7809 = vand.u32 %v585, 4294901760
  %v7810 = vsub.f32 %v585, %v7809
  %7811 = vmatpush1.msra.mxu0 %v7810
  %7812 = vmatprep.subr.mxu0 0.0
  %7813 = vmatpush1.msra.mxu0 0.0
  %7814 = vmatprep.subr.mxu0 0.0
  %7815 = vmatpush1.msra.mxu0 0.0
  %7816 = vmatprep.subr.mxu0 0.0
  %7817 = vmatpush1.msra.mxu0 0.0
  %7818 = vmatprep.subr.mxu0 0.0
  %7819 = vmatpush1.msra.mxu0 0.0
  %7820 = vmatprep.subr.mxu0 0.0
  %7821 = vmatpush1.msra.mxu0 0.0
  %7822 = vmatprep.subr.mxu0 0.0
  %7823 = vmatpush1.msra.mxu0 0.0
  %7824 = vmatprep.subr.mxu0 0.0
  %7825 = vmatpush1.msra.mxu0 0.0
  %7826 = vmatprep.subr.mxu0 0.0
  %7827 = vmatpush1.msra.mxu0 0.0
  %7828 = vmatprep.subr.mxu0 0.0
  %7829 = vmatpush1.msra.mxu0 0.0
  %7830 = vmatprep.subr.mxu0 0.0
  %7831 = vmatpush1.msra.mxu0 0.0
  %7832 = vmatprep.subr.mxu0 0.0
  %7833 = vmatpush1.msra.mxu0 0.0
  %7834 = vmatprep.subr.mxu0 0.0
  %7835 = vmatpush1.msra.mxu0 0.0
  %7836 = vmatprep.subr.mxu0 0.0
  %7837 = vmatpush1.msra.mxu0 0.0
  %7838 = vmatprep.subr.mxu0 0.0
  %7839 = vmatpush1.msra.mxu0 0.0
  %7840 = vmatprep.subr.mxu0 0.0
  %7841 = vmatpush1.msra.mxu0 0.0
  %7842 = vmatprep.subr.mxu0 0.0
  %7843 = vmatpush1.msra.mxu0 0.0
  %7844 = vmatprep.subr.mxu0 0.0
  %7845 = vmatpush1.msra.mxu0 0.0
  %7846 = vmatprep.subr.mxu0 0.0
  %7847 = vmatpush1.msra.mxu0 0.0
  %7848 = vmatprep.subr.mxu0 0.0
  %7849 = vmatpush1.msra.mxu0 0.0
  %7850 = vmatprep.subr.mxu0 0.0
  %7851 = vmatpush1.msra.mxu0 0.0
  %7852 = vmatprep.mubr.f32.mxu0 0.0
  %v7853 = vand.u32 %v6831, 4294901760
  %v7854 = vsub.f32 %v6831, %v7853
  %7855 = vmatmul.mubr.f32.gmra.mrb[0].mxu0 %v7854
  %v7856 = vpop.f32.mrb[0].mxu0
  %v7857 = vadd.f32 %v7749, %v7856
  %v7858 = vpop.f32.mrb[0].mxu0
  %7859 = vmatprep.mubr.f32.mxu0 0.0
  %v7860 = vand.u32 %v6834, 4294901760
  %v7861 = vsub.f32 %v6834, %v7860
  %7862 = vmatmul.mubr.f32.gmra.mrb[0].mxu0 %v7861
  %v7863 = vpop.f32.mrb[0].mxu0
  %v7864 = vadd.f32 %v7755, %v7863
  %v7865 = vpop.f32.mrb[0].mxu0
  %7866 = vmatprep.mubr.f32.mxu0 0.0
  %v7867 = vand.u32 %v6837, 4294901760
  %v7868 = vsub.f32 %v6837, %v7867
  %7869 = vmatmul.mubr.f32.gmra.mrb[0].mxu0 %v7868
  %v7870 = vpop.f32.mrb[0].mxu0
  %v7871 = vadd.f32 %v7761, %v7870
  %v7872 = vpop.f32.mrb[0].mxu0
  %7873 = vdwg.mxu0
  %7874 = vmatprep.subr.mxu0 0.0
  %v7875 = vand.u32 %v574, 4294901760
  %7876 = vmatpush1.msra.mxu0 %v7875
  %7877 = vmatprep.subr.mxu0 0.0
  %v7878 = vand.u32 %v575, 4294901760
  %7879 = vmatpush1.msra.mxu0 %v7878
  %7880 = vmatprep.subr.mxu0 0.0
  %v7881 = vand.u32 %v576, 4294901760
  %7882 = vmatpush1.msra.mxu0 %v7881
  %7883 = vmatprep.subr.mxu0 0.0
  %v7884 = vand.u32 %v577, 4294901760
  %7885 = vmatpush1.msra.mxu0 %v7884
  %7886 = vmatprep.subr.mxu0 0.0
  %v7887 = vand.u32 %v578, 4294901760
  %7888 = vmatpush1.msra.mxu0 %v7887
  %7889 = vmatprep.subr.mxu0 0.0
  %v7890 = vand.u32 %v579, 4294901760
  %7891 = vmatpush1.msra.mxu0 %v7890
  %7892 = vmatprep.subr.mxu0 0.0
  %v7893 = vand.u32 %v580, 4294901760
  %7894 = vmatpush1.msra.mxu0 %v7893
  %7895 = vmatprep.subr.mxu0 0.0
  %v7896 = vand.u32 %v581, 4294901760
  %7897 = vmatpush1.msra.mxu0 %v7896
  %7898 = vmatprep.subr.mxu0 0.0
  %v7899 = vand.u32 %v582, 4294901760
  %7900 = vmatpush1.msra.mxu0 %v7899
  %7901 = vmatprep.subr.mxu0 0.0
  %v7902 = vand.u32 %v583, 4294901760
  %7903 = vmatpush1.msra.mxu0 %v7902
  %7904 = vmatprep.subr.mxu0 0.0
  %v7905 = vand.u32 %v584, 4294901760
  %7906 = vmatpush1.msra.mxu0 %v7905
  %7907 = vmatprep.subr.mxu0 0.0
  %v7908 = vand.u32 %v585, 4294901760
  %7909 = vmatpush1.msra.mxu0 %v7908
  %7910 = vmatprep.subr.mxu0 0.0
  %7911 = vmatpush1.msra.mxu0 0.0
  %7912 = vmatprep.subr.mxu0 0.0
  %7913 = vmatpush1.msra.mxu0 0.0
  %7914 = vmatprep.subr.mxu0 0.0
  %7915 = vmatpush1.msra.mxu0 0.0
  %7916 = vmatprep.subr.mxu0 0.0
  %7917 = vmatpush1.msra.mxu0 0.0
  %7918 = vmatprep.subr.mxu0 0.0
  %7919 = vmatpush1.msra.mxu0 0.0
  %7920 = vmatprep.subr.mxu0 0.0
  %7921 = vmatpush1.msra.mxu0 0.0
  %7922 = vmatprep.subr.mxu0 0.0
  %7923 = vmatpush1.msra.mxu0 0.0
  %7924 = vmatprep.subr.mxu0 0.0
  %7925 = vmatpush1.msra.mxu0 0.0
  %7926 = vmatprep.subr.mxu0 0.0
  %7927 = vmatpush1.msra.mxu0 0.0
  %7928 = vmatprep.subr.mxu0 0.0
  %7929 = vmatpush1.msra.mxu0 0.0
  %7930 = vmatprep.subr.mxu0 0.0
  %7931 = vmatpush1.msra.mxu0 0.0
  %7932 = vmatprep.subr.mxu0 0.0
  %7933 = vmatpush1.msra.mxu0 0.0
  %7934 = vmatprep.subr.mxu0 0.0
  %7935 = vmatpush1.msra.mxu0 0.0
  %7936 = vmatprep.subr.mxu0 0.0
  %7937 = vmatpush1.msra.mxu0 0.0
  %7938 = vmatprep.subr.mxu0 0.0
  %7939 = vmatpush1.msra.mxu0 0.0
  %7940 = vmatprep.subr.mxu0 0.0
  %7941 = vmatpush1.msra.mxu0 0.0
  %7942 = vmatprep.subr.mxu0 0.0
  %7943 = vmatpush1.msra.mxu0 0.0
  %7944 = vmatprep.subr.mxu0 0.0
  %7945 = vmatpush1.msra.mxu0 0.0
  %7946 = vmatprep.subr.mxu0 0.0
  %7947 = vmatpush1.msra.mxu0 0.0
  %7948 = vmatprep.subr.mxu0 0.0
  %7949 = vmatpush1.msra.mxu0 0.0
  %7950 = vmatprep.mubr.f32.mxu0 0.0
  %v7951 = vand.u32 %v6831, 4294901760
  %v7952 = vsub.f32 %v6831, %v7951
  %v7953 = vand.u32 %v7952, 4294901760
  %7954 = vmatmul.mubr.f32.gmra.mrb[0].mxu0 %v7953
  %v7955 = vpop.f32.mrb[0].mxu0
  %v7956 = vadd.f32 %v7857, %v7955
  %v7957 = vpop.f32.mrb[0].mxu0
  %7958 = vmatprep.mubr.f32.mxu0 0.0
  %v7959 = vand.u32 %v6834, 4294901760
  %v7960 = vsub.f32 %v6834, %v7959
  %v7961 = vand.u32 %v7960, 4294901760
  %7962 = vmatmul.mubr.f32.gmra.mrb[0].mxu0 %v7961
  %v7963 = vpop.f32.mrb[0].mxu0
  %v7964 = vadd.f32 %v7864, %v7963
  %v7965 = vpop.f32.mrb[0].mxu0
  %7966 = vmatprep.mubr.f32.mxu0 0.0
  %v7967 = vand.u32 %v6837, 4294901760
  %v7968 = vsub.f32 %v6837, %v7967
  %v7969 = vand.u32 %v7968, 4294901760
  %7970 = vmatmul.mubr.f32.gmra.mrb[0].mxu0 %v7969
  %v7971 = vpop.f32.mrb[0].mxu0
  %v7972 = vadd.f32 %v7871, %v7971
  %v7973 = vpop.f32.mrb[0].mxu0
  %7974 = vdwg.mxu0
  %7975 = vmatprep.subr.mxu0 0.0
  %v7976 = vand.u32 %v574, 4294901760
  %v7977 = vsub.f32 %v574, %v7976
  %v7978 = vand.u32 %v7977, 4294901760
  %7979 = vmatpush1.msra.mxu0 %v7978
  %7980 = vmatprep.subr.mxu0 0.0
  %v7981 = vand.u32 %v575, 4294901760
  %v7982 = vsub.f32 %v575, %v7981
  %v7983 = vand.u32 %v7982, 4294901760
  %7984 = vmatpush1.msra.mxu0 %v7983
  %7985 = vmatprep.subr.mxu0 0.0
  %v7986 = vand.u32 %v576, 4294901760
  %v7987 = vsub.f32 %v576, %v7986
  %v7988 = vand.u32 %v7987, 4294901760
  %7989 = vmatpush1.msra.mxu0 %v7988
  %7990 = vmatprep.subr.mxu0 0.0
  %v7991 = vand.u32 %v577, 4294901760
  %v7992 = vsub.f32 %v577, %v7991
  %v7993 = vand.u32 %v7992, 4294901760
  %7994 = vmatpush1.msra.mxu0 %v7993
  %7995 = vmatprep.subr.mxu0 0.0
  %v7996 = vand.u32 %v578, 4294901760
  %v7997 = vsub.f32 %v578, %v7996
  %v7998 = vand.u32 %v7997, 4294901760
  %7999 = vmatpush1.msra.mxu0 %v7998
  %8000 = vmatprep.subr.mxu0 0.0
  %v8001 = vand.u32 %v579, 4294901760
  %v8002 = vsub.f32 %v579, %v8001
  %v8003 = vand.u32 %v8002, 4294901760
  %8004 = vmatpush1.msra.mxu0 %v8003
  %8005 = vmatprep.subr.mxu0 0.0
  %v8006 = vand.u32 %v580, 4294901760
  %v8007 = vsub.f32 %v580, %v8006
  %v8008 = vand.u32 %v8007, 4294901760
  %8009 = vmatpush1.msra.mxu0 %v8008
  %8010 = vmatprep.subr.mxu0 0.0
  %v8011 = vand.u32 %v581, 4294901760
  %v8012 = vsub.f32 %v581, %v8011
  %v8013 = vand.u32 %v8012, 4294901760
  %8014 = vmatpush1.msra.mxu0 %v8013
  %8015 = vmatprep.subr.mxu0 0.0
  %v8016 = vand.u32 %v582, 4294901760
  %v8017 = vsub.f32 %v582, %v8016
  %v8018 = vand.u32 %v8017, 4294901760
  %8019 = vmatpush1.msra.mxu0 %v8018
  %8020 = vmatprep.subr.mxu0 0.0
  %v8021 = vand.u32 %v583, 4294901760
  %v8022 = vsub.f32 %v583, %v8021
  %v8023 = vand.u32 %v8022, 4294901760
  %8024 = vmatpush1.msra.mxu0 %v8023
  %8025 = vmatprep.subr.mxu0 0.0
  %v8026 = vand.u32 %v584, 4294901760
  %v8027 = vsub.f32 %v584, %v8026
  %v8028 = vand.u32 %v8027, 4294901760
  %8029 = vmatpush1.msra.mxu0 %v8028
  %8030 = vmatprep.subr.mxu0 0.0
  %v8031 = vand.u32 %v585, 4294901760
  %v8032 = vsub.f32 %v585, %v8031
  %v8033 = vand.u32 %v8032, 4294901760
  %8034 = vmatpush1.msra.mxu0 %v8033
  %8035 = vmatprep.subr.mxu0 0.0
  %8036 = vmatpush1.msra.mxu0 0.0
  %8037 = vmatprep.subr.mxu0 0.0
  %8038 = vmatpush1.msra.mxu0 0.0
  %8039 = vmatprep.subr.mxu0 0.0
  %8040 = vmatpush1.msra.mxu0 0.0
  %8041 = vmatprep.subr.mxu0 0.0
  %8042 = vmatpush1.msra.mxu0 0.0
  %8043 = vmatprep.subr.mxu0 0.0
  %8044 = vmatpush1.msra.mxu0 0.0
  %8045 = vmatprep.subr.mxu0 0.0
  %8046 = vmatpush1.msra.mxu0 0.0
  %8047 = vmatprep.subr.mxu0 0.0
  %8048 = vmatpush1.msra.mxu0 0.0
  %8049 = vmatprep.subr.mxu0 0.0
  %8050 = vmatpush1.msra.mxu0 0.0
  %8051 = vmatprep.subr.mxu0 0.0
  %8052 = vmatpush1.msra.mxu0 0.0
  %8053 = vmatprep.subr.mxu0 0.0
  %8054 = vmatpush1.msra.mxu0 0.0
  %8055 = vmatprep.subr.mxu0 0.0
  %8056 = vmatpush1.msra.mxu0 0.0
  %8057 = vmatprep.subr.mxu0 0.0
  %8058 = vmatpush1.msra.mxu0 0.0
  %8059 = vmatprep.subr.mxu0 0.0
  %8060 = vmatpush1.msra.mxu0 0.0
  %8061 = vmatprep.subr.mxu0 0.0
  %8062 = vmatpush1.msra.mxu0 0.0
  %8063 = vmatprep.subr.mxu0 0.0
  %8064 = vmatpush1.msra.mxu0 0.0
  %8065 = vmatprep.subr.mxu0 0.0
  %8066 = vmatpush1.msra.mxu0 0.0
  %8067 = vmatprep.subr.mxu0 0.0
  %8068 = vmatpush1.msra.mxu0 0.0
  %8069 = vmatprep.subr.mxu0 0.0
  %8070 = vmatpush1.msra.mxu0 0.0
  %8071 = vmatprep.subr.mxu0 0.0
  %8072 = vmatpush1.msra.mxu0 0.0
  %8073 = vmatprep.subr.mxu0 0.0
  %8074 = vmatpush1.msra.mxu0 0.0
  %8075 = vmatprep.mubr.f32.mxu0 0.0
  %v8076 = vand.u32 %v6831, 4294901760
  %8077 = vmatmul.mubr.f32.gmra.mrb[0].mxu0 %v8076
  %v8078 = vpop.f32.mrb[0].mxu0
  %v8079 = vadd.f32 %v7956, %v8078
  %v8080 = vpop.f32.mrb[0].mxu0
  %8081 = vmatprep.mubr.f32.mxu0 0.0
  %v8082 = vand.u32 %v6834, 4294901760
  %8083 = vmatmul.mubr.f32.gmra.mrb[0].mxu0 %v8082
  %v8084 = vpop.f32.mrb[0].mxu0
  %v8085 = vadd.f32 %v7964, %v8084
  %v8086 = vpop.f32.mrb[0].mxu0
  %8087 = vmatprep.mubr.f32.mxu0 0.0
  %v8088 = vand.u32 %v6837, 4294901760
  %8089 = vmatmul.mubr.f32.gmra.mrb[0].mxu0 %v8088
  %v8090 = vpop.f32.mrb[0].mxu0
  %v8091 = vadd.f32 %v7972, %v8090
  %v8092 = vpop.f32.mrb[0].mxu0
  %8093 = vdwg.mxu0
  %8094 = vmatprep.subr.mxu0 0.0
  %v8095 = vand.u32 %v574, 4294901760
  %8096 = vmatpush1.msra.mxu0 %v8095
  %8097 = vmatprep.subr.mxu0 0.0
  %v8098 = vand.u32 %v575, 4294901760
  %8099 = vmatpush1.msra.mxu0 %v8098
  %8100 = vmatprep.subr.mxu0 0.0
  %v8101 = vand.u32 %v576, 4294901760
  %8102 = vmatpush1.msra.mxu0 %v8101
  %8103 = vmatprep.subr.mxu0 0.0
  %v8104 = vand.u32 %v577, 4294901760
  %8105 = vmatpush1.msra.mxu0 %v8104
  %8106 = vmatprep.subr.mxu0 0.0
  %v8107 = vand.u32 %v578, 4294901760
  %8108 = vmatpush1.msra.mxu0 %v8107
  %8109 = vmatprep.subr.mxu0 0.0
  %v8110 = vand.u32 %v579, 4294901760
  %8111 = vmatpush1.msra.mxu0 %v8110
  %8112 = vmatprep.subr.mxu0 0.0
  %v8113 = vand.u32 %v580, 4294901760
  %8114 = vmatpush1.msra.mxu0 %v8113
  %8115 = vmatprep.subr.mxu0 0.0
  %v8116 = vand.u32 %v581, 4294901760
  %8117 = vmatpush1.msra.mxu0 %v8116
  %8118 = vmatprep.subr.mxu0 0.0
  %v8119 = vand.u32 %v582, 4294901760
  %8120 = vmatpush1.msra.mxu0 %v8119
  %8121 = vmatprep.subr.mxu0 0.0
  %v8122 = vand.u32 %v583, 4294901760
  %8123 = vmatpush1.msra.mxu0 %v8122
  %8124 = vmatprep.subr.mxu0 0.0
  %v8125 = vand.u32 %v584, 4294901760
  %8126 = vmatpush1.msra.mxu0 %v8125
  %8127 = vmatprep.subr.mxu0 0.0
  %v8128 = vand.u32 %v585, 4294901760
  %8129 = vmatpush1.msra.mxu0 %v8128
  %8130 = vmatprep.subr.mxu0 0.0
  %8131 = vmatpush1.msra.mxu0 0.0
  %8132 = vmatprep.subr.mxu0 0.0
  %8133 = vmatpush1.msra.mxu0 0.0
  %8134 = vmatprep.subr.mxu0 0.0
  %8135 = vmatpush1.msra.mxu0 0.0
  %8136 = vmatprep.subr.mxu0 0.0
  %8137 = vmatpush1.msra.mxu0 0.0
  %8138 = vmatprep.subr.mxu0 0.0
  %8139 = vmatpush1.msra.mxu0 0.0
  %8140 = vmatprep.subr.mxu0 0.0
  %8141 = vmatpush1.msra.mxu0 0.0
  %8142 = vmatprep.subr.mxu0 0.0
  %8143 = vmatpush1.msra.mxu0 0.0
  %8144 = vmatprep.subr.mxu0 0.0
  %8145 = vmatpush1.msra.mxu0 0.0
  %8146 = vmatprep.subr.mxu0 0.0
  %8147 = vmatpush1.msra.mxu0 0.0
  %8148 = vmatprep.subr.mxu0 0.0
  %8149 = vmatpush1.msra.mxu0 0.0
  %8150 = vmatprep.subr.mxu0 0.0
  %8151 = vmatpush1.msra.mxu0 0.0
  %8152 = vmatprep.subr.mxu0 0.0
  %8153 = vmatpush1.msra.mxu0 0.0
  %8154 = vmatprep.subr.mxu0 0.0
  %8155 = vmatpush1.msra.mxu0 0.0
  %8156 = vmatprep.subr.mxu0 0.0
  %8157 = vmatpush1.msra.mxu0 0.0
  %8158 = vmatprep.subr.mxu0 0.0
  %8159 = vmatpush1.msra.mxu0 0.0
  %8160 = vmatprep.subr.mxu0 0.0
  %8161 = vmatpush1.msra.mxu0 0.0
  %8162 = vmatprep.subr.mxu0 0.0
  %8163 = vmatpush1.msra.mxu0 0.0
  %8164 = vmatprep.subr.mxu0 0.0
  %8165 = vmatpush1.msra.mxu0 0.0
  %8166 = vmatprep.subr.mxu0 0.0
  %8167 = vmatpush1.msra.mxu0 0.0
  %8168 = vmatprep.subr.mxu0 0.0
  %8169 = vmatpush1.msra.mxu0 0.0
  %8170 = vmatprep.mubr.f32.mxu0 0.0
  %v8171 = vand.u32 %v6831, 4294901760
  %8172 = vmatmul.mubr.f32.gmra.mrb[0].mxu0 %v8171
  %v8173 = vpop.f32.mrb[0].mxu0
  %v8174 = vadd.f32 %v8079, %v8173
  %v8175 = vpop.f32.mrb[0].mxu0
  %8176 = vmatprep.mubr.f32.mxu0 0.0
  %v8177 = vand.u32 %v6834, 4294901760
  %8178 = vmatmul.mubr.f32.gmra.mrb[0].mxu0 %v8177
  %v8179 = vpop.f32.mrb[0].mxu0
  %v8180 = vadd.f32 %v8085, %v8179
  %v8181 = vpop.f32.mrb[0].mxu0
  %8182 = vmatprep.mubr.f32.mxu0 0.0
  %v8183 = vand.u32 %v6837, 4294901760
  %8184 = vmatmul.mubr.f32.gmra.mrb[0].mxu0 %v8183
  %v8185 = vpop.f32.mrb[0].mxu0
  %v8186 = vadd.f32 %v8091, %v8185
  %v8187 = vpop.f32.mrb[0].mxu0
  %8188 = vdwg.mxu0
  %v8189 = vrcp.pop %v8174
  %v8190 = vmul.f32 %v7499, %v8189
  %v8191 = vrcp.pop %v8180
  %v8192 = vmul.f32 %v7505, %v8191
  %v8193 = vrcp.pop %v8186
  %v8194 = vmul.f32 %v7511, %v8193
  %v8195 = vld [vmem:[%s1 + $0x1e0] sm:$0xff]
  %v8196 = vld [vmem:[%s1 + $0x1e8] sm:$0xff]
  %v8197 = vld [vmem:[%s1 + $0x1f0] sm:$0xff]
  %v8198 = vld [vmem:[%s1 + $0x1f8] sm:$0xff]
  %v8199 = vld [vmem:[%s1 + $0x268] sm:$0x1]
  %v8200 = vlaneseq
  %v8201 = vshrl.u32 %v8200, 7
  %v8202 = vsub.s32 0, %v8201
  %v8203 = vrot.slane %v8199, %v8202
  %v8205 = vsel %vm598, %v8190, 0
  %v8208 = vsel %vm598, %v8192, 0
  %v8211 = vsel %vm598, %v8194, 0
  %8213 = vmatprep.subr.mxu0 0.0
  %v8214 = vand.u32 %v8195, 4294901760
  %8215 = vmatpush1.msra.mxu0 %v8214
  %8216 = vmatprep.subr.mxu0 0.0
  %v8217 = vand.u32 %v8196, 4294901760
  %8218 = vmatpush1.msra.mxu0 %v8217
  %8219 = vmatprep.subr.mxu0 0.0
  %v8220 = vand.u32 %v8197, 4294901760
  %8221 = vmatpush1.msra.mxu0 %v8220
  %8222 = vmatprep.subr.mxu0 0.0
  %v8223 = vand.u32 %v8198, 4294901760
  %8224 = vmatpush1.msra.mxu0 %v8223
  %8225 = vmatprep.subr.mxu0 0.0
  %8226 = vmatpush1.msra.mxu0 0.0
  %8227 = vmatprep.subr.mxu0 0.0
  %8228 = vmatpush1.msra.mxu0 0.0
  %8229 = vmatprep.subr.mxu0 0.0
  %8230 = vmatpush1.msra.mxu0 0.0
  %8231 = vmatprep.subr.mxu0 0.0
  %8232 = vmatpush1.msra.mxu0 0.0
  %8233 = vmatprep.subr.mxu0 0.0
  %8234 = vmatpush1.msra.mxu0 0.0
  %8235 = vmatprep.subr.mxu0 0.0
  %8236 = vmatpush1.msra.mxu0 0.0
  %8237 = vmatprep.subr.mxu0 0.0
  %8238 = vmatpush1.msra.mxu0 0.0
  %8239 = vmatprep.subr.mxu0 0.0
  %8240 = vmatpush1.msra.mxu0 0.0
  %8241 = vmatprep.subr.mxu0 0.0
  %8242 = vmatpush1.msra.mxu0 0.0
  %8243 = vmatprep.subr.mxu0 0.0
  %8244 = vmatpush1.msra.mxu0 0.0
  %8245 = vmatprep.subr.mxu0 0.0
  %8246 = vmatpush1.msra.mxu0 0.0
  %8247 = vmatprep.subr.mxu0 0.0
  %8248 = vmatpush1.msra.mxu0 0.0
  %8249 = vmatprep.subr.mxu0 0.0
  %8250 = vmatpush1.msra.mxu0 0.0
  %8251 = vmatprep.subr.mxu0 0.0
  %8252 = vmatpush1.msra.mxu0 0.0
  %8253 = vmatprep.subr.mxu0 0.0
  %8254 = vmatpush1.msra.mxu0 0.0
  %8255 = vmatprep.subr.mxu0 0.0
  %8256 = vmatpush1.msra.mxu0 0.0
  %8257 = vmatprep.subr.mxu0 0.0
  %8258 = vmatpush1.msra.mxu0 0.0
  %8259 = vmatprep.subr.mxu0 0.0
  %8260 = vmatpush1.msra.mxu0 0.0
  %8261 = vmatprep.subr.mxu0 0.0
  %8262 = vmatpush1.msra.mxu0 0.0
  %8263 = vmatprep.subr.mxu0 0.0
  %8264 = vmatpush1.msra.mxu0 0.0
  %8265 = vmatprep.subr.mxu0 0.0
  %8266 = vmatpush1.msra.mxu0 0.0
  %8267 = vmatprep.subr.mxu0 0.0
  %8268 = vmatpush1.msra.mxu0 0.0
  %8269 = vmatprep.subr.mxu0 0.0
  %8270 = vmatpush1.msra.mxu0 0.0
  %8271 = vmatprep.subr.mxu0 0.0
  %8272 = vmatpush1.msra.mxu0 0.0
  %8273 = vmatprep.subr.mxu0 0.0
  %8274 = vmatpush1.msra.mxu0 0.0
  %8275 = vmatprep.subr.mxu0 0.0
  %8276 = vmatpush1.msra.mxu0 0.0
  %8277 = vmatprep.subr.mxu0 0.0
  %8278 = vmatpush1.msra.mxu0 0.0
  %8279 = vmatprep.subr.mxu0 0.0
  %8280 = vmatpush1.msra.mxu0 0.0
  %8281 = vmatprep.mubr.f32.mxu0 0.0
  %v8282 = vand.u32 %v8205, 4294901760
  %v8283 = vsub.f32 %v8205, %v8282
  %v8284 = vand.u32 %v8283, 4294901760
  %v8285 = vsub.f32 %v8283, %v8284
  %v8286 = vand.u32 %v8285, 4294901760
  %8287 = vmatmul.mubr.f32.gmra.mrb[0].mxu0 %v8286
  %v8288 = vpop.f32.mrb[0].mxu0
  %v8289 = vadd.f32 %v8203, %v8288
  %v8290 = vpop.f32.mrb[0].mxu0
  %8291 = vmatprep.mubr.f32.mxu0 0.0
  %v8292 = vand.u32 %v8208, 4294901760
  %v8293 = vsub.f32 %v8208, %v8292
  %v8294 = vand.u32 %v8293, 4294901760
  %v8295 = vsub.f32 %v8293, %v8294
  %v8296 = vand.u32 %v8295, 4294901760
  %8297 = vmatmul.mubr.f32.gmra.mrb[0].mxu0 %v8296
  %v8298 = vpop.f32.mrb[0].mxu0
  %v8299 = vadd.f32 %v8203, %v8298
  %v8300 = vpop.f32.mrb[0].mxu0
  %8301 = vmatprep.mubr.f32.mxu0 0.0
  %v8302 = vand.u32 %v8211, 4294901760
  %v8303 = vsub.f32 %v8211, %v8302
  %v8304 = vand.u32 %v8303, 4294901760
  %v8305 = vsub.f32 %v8303, %v8304
  %v8306 = vand.u32 %v8305, 4294901760
  %8307 = vmatmul.mubr.f32.gmra.mrb[0].mxu0 %v8306
  %v8308 = vpop.f32.mrb[0].mxu0
  %v8309 = vadd.f32 %v8203, %v8308
  %v8310 = vpop.f32.mrb[0].mxu0
  %8311 = vdwg.mxu0
  %8312 = vmatprep.subr.mxu0 0.0
  %v8313 = vand.u32 %v8195, 4294901760
  %v8314 = vsub.f32 %v8195, %v8313
  %v8315 = vand.u32 %v8314, 4294901760
  %v8316 = vsub.f32 %v8314, %v8315
  %v8317 = vand.u32 %v8316, 4294901760
  %8318 = vmatpush1.msra.mxu0 %v8317
  %8319 = vmatprep.subr.mxu0 0.0
  %v8320 = vand.u32 %v8196, 4294901760
  %v8321 = vsub.f32 %v8196, %v8320
  %v8322 = vand.u32 %v8321, 4294901760
  %v8323 = vsub.f32 %v8321, %v8322
  %v8324 = vand.u32 %v8323, 4294901760
  %8325 = vmatpush1.msra.mxu0 %v8324
  %8326 = vmatprep.subr.mxu0 0.0
  %v8327 = vand.u32 %v8197, 4294901760
  %v8328 = vsub.f32 %v8197, %v8327
  %v8329 = vand.u32 %v8328, 4294901760
  %v8330 = vsub.f32 %v8328, %v8329
  %v8331 = vand.u32 %v8330, 4294901760
  %8332 = vmatpush1.msra.mxu0 %v8331
  %8333 = vmatprep.subr.mxu0 0.0
  %v8334 = vand.u32 %v8198, 4294901760
  %v8335 = vsub.f32 %v8198, %v8334
  %v8336 = vand.u32 %v8335, 4294901760
  %v8337 = vsub.f32 %v8335, %v8336
  %v8338 = vand.u32 %v8337, 4294901760
  %8339 = vmatpush1.msra.mxu0 %v8338
  %8340 = vmatprep.subr.mxu0 0.0
  %8341 = vmatpush1.msra.mxu0 0.0
  %8342 = vmatprep.subr.mxu0 0.0
  %8343 = vmatpush1.msra.mxu0 0.0
  %8344 = vmatprep.subr.mxu0 0.0
  %8345 = vmatpush1.msra.mxu0 0.0
  %8346 = vmatprep.subr.mxu0 0.0
  %8347 = vmatpush1.msra.mxu0 0.0
  %8348 = vmatprep.subr.mxu0 0.0
  %8349 = vmatpush1.msra.mxu0 0.0
  %8350 = vmatprep.subr.mxu0 0.0
  %8351 = vmatpush1.msra.mxu0 0.0
  %8352 = vmatprep.subr.mxu0 0.0
  %8353 = vmatpush1.msra.mxu0 0.0
  %8354 = vmatprep.subr.mxu0 0.0
  %8355 = vmatpush1.msra.mxu0 0.0
  %8356 = vmatprep.subr.mxu0 0.0
  %8357 = vmatpush1.msra.mxu0 0.0
  %8358 = vmatprep.subr.mxu0 0.0
  %8359 = vmatpush1.msra.mxu0 0.0
  %8360 = vmatprep.subr.mxu0 0.0
  %8361 = vmatpush1.msra.mxu0 0.0
  %8362 = vmatprep.subr.mxu0 0.0
  %8363 = vmatpush1.msra.mxu0 0.0
  %8364 = vmatprep.subr.mxu0 0.0
  %8365 = vmatpush1.msra.mxu0 0.0
  %8366 = vmatprep.subr.mxu0 0.0
  %8367 = vmatpush1.msra.mxu0 0.0
  %8368 = vmatprep.subr.mxu0 0.0
  %8369 = vmatpush1.msra.mxu0 0.0
  %8370 = vmatprep.subr.mxu0 0.0
  %8371 = vmatpush1.msra.mxu0 0.0
  %8372 = vmatprep.subr.mxu0 0.0
  %8373 = vmatpush1.msra.mxu0 0.0
  %8374 = vmatprep.subr.mxu0 0.0
  %8375 = vmatpush1.msra.mxu0 0.0
  %8376 = vmatprep.subr.mxu0 0.0
  %8377 = vmatpush1.msra.mxu0 0.0
  %8378 = vmatprep.subr.mxu0 0.0
  %8379 = vmatpush1.msra.mxu0 0.0
  %8380 = vmatprep.subr.mxu0 0.0
  %8381 = vmatpush1.msra.mxu0 0.0
  %8382 = vmatprep.subr.mxu0 0.0
  %8383 = vmatpush1.msra.mxu0 0.0
  %8384 = vmatprep.subr.mxu0 0.0
  %8385 = vmatpush1.msra.mxu0 0.0
  %8386 = vmatprep.subr.mxu0 0.0
  %8387 = vmatpush1.msra.mxu0 0.0
  %8388 = vmatprep.subr.mxu0 0.0
  %8389 = vmatpush1.msra.mxu0 0.0
  %8390 = vmatprep.subr.mxu0 0.0
  %8391 = vmatpush1.msra.mxu0 0.0
  %8392 = vmatprep.subr.mxu0 0.0
  %8393 = vmatpush1.msra.mxu0 0.0
  %8394 = vmatprep.subr.mxu0 0.0
  %8395 = vmatpush1.msra.mxu0 0.0
  %8396 = vmatprep.mubr.f32.mxu0 0.0
  %v8397 = vand.u32 %v8205, 4294901760
  %8398 = vmatmul.mubr.f32.gmra.mrb[0].mxu0 %v8397
  %v8399 = vpop.f32.mrb[0].mxu0
  %v8400 = vadd.f32 %v8289, %v8399
  %v8401 = vpop.f32.mrb[0].mxu0
  %8402 = vmatprep.mubr.f32.mxu0 0.0
  %v8403 = vand.u32 %v8208, 4294901760
  %8404 = vmatmul.mubr.f32.gmra.mrb[0].mxu0 %v8403
  %v8405 = vpop.f32.mrb[0].mxu0
  %v8406 = vadd.f32 %v8299, %v8405
  %v8407 = vpop.f32.mrb[0].mxu0
  %8408 = vmatprep.mubr.f32.mxu0 0.0
  %v8409 = vand.u32 %v8211, 4294901760
  %8410 = vmatmul.mubr.f32.gmra.mrb[0].mxu0 %v8409
  %v8411 = vpop.f32.mrb[0].mxu0
  %v8412 = vadd.f32 %v8309, %v8411
  %v8413 = vpop.f32.mrb[0].mxu0
  %8414 = vdwg.mxu0
  %8415 = vmatprep.subr.mxu0 0.0
  %v8416 = vand.u32 %v8195, 4294901760
  %v8417 = vsub.f32 %v8195, %v8416
  %8418 = vmatpush1.msra.mxu0 %v8417
  %8419 = vmatprep.subr.mxu0 0.0
  %v8420 = vand.u32 %v8196, 4294901760
  %v8421 = vsub.f32 %v8196, %v8420
  %8422 = vmatpush1.msra.mxu0 %v8421
  %8423 = vmatprep.subr.mxu0 0.0
  %v8424 = vand.u32 %v8197, 4294901760
  %v8425 = vsub.f32 %v8197, %v8424
  %8426 = vmatpush1.msra.mxu0 %v8425
  %8427 = vmatprep.subr.mxu0 0.0
  %v8428 = vand.u32 %v8198, 4294901760
  %v8429 = vsub.f32 %v8198, %v8428
  %8430 = vmatpush1.msra.mxu0 %v8429
  %8431 = vmatprep.subr.mxu0 0.0
  %8432 = vmatpush1.msra.mxu0 0.0
  %8433 = vmatprep.subr.mxu0 0.0
  %8434 = vmatpush1.msra.mxu0 0.0
  %8435 = vmatprep.subr.mxu0 0.0
  %8436 = vmatpush1.msra.mxu0 0.0
  %8437 = vmatprep.subr.mxu0 0.0
  %8438 = vmatpush1.msra.mxu0 0.0
  %8439 = vmatprep.subr.mxu0 0.0
  %8440 = vmatpush1.msra.mxu0 0.0
  %8441 = vmatprep.subr.mxu0 0.0
  %8442 = vmatpush1.msra.mxu0 0.0
  %8443 = vmatprep.subr.mxu0 0.0
  %8444 = vmatpush1.msra.mxu0 0.0
  %8445 = vmatprep.subr.mxu0 0.0
  %8446 = vmatpush1.msra.mxu0 0.0
  %8447 = vmatprep.subr.mxu0 0.0
  %8448 = vmatpush1.msra.mxu0 0.0
  %8449 = vmatprep.subr.mxu0 0.0
  %8450 = vmatpush1.msra.mxu0 0.0
  %8451 = vmatprep.subr.mxu0 0.0
  %8452 = vmatpush1.msra.mxu0 0.0
  %8453 = vmatprep.subr.mxu0 0.0
  %8454 = vmatpush1.msra.mxu0 0.0
  %8455 = vmatprep.subr.mxu0 0.0
  %8456 = vmatpush1.msra.mxu0 0.0
  %8457 = vmatprep.subr.mxu0 0.0
  %8458 = vmatpush1.msra.mxu0 0.0
  %8459 = vmatprep.subr.mxu0 0.0
  %8460 = vmatpush1.msra.mxu0 0.0
  %8461 = vmatprep.subr.mxu0 0.0
  %8462 = vmatpush1.msra.mxu0 0.0
  %8463 = vmatprep.subr.mxu0 0.0
  %8464 = vmatpush1.msra.mxu0 0.0
  %8465 = vmatprep.subr.mxu0 0.0
  %8466 = vmatpush1.msra.mxu0 0.0
  %8467 = vmatprep.subr.mxu0 0.0
  %8468 = vmatpush1.msra.mxu0 0.0
  %8469 = vmatprep.subr.mxu0 0.0
  %8470 = vmatpush1.msra.mxu0 0.0
  %8471 = vmatprep.subr.mxu0 0.0
  %8472 = vmatpush1.msra.mxu0 0.0
  %8473 = vmatprep.subr.mxu0 0.0
  %8474 = vmatpush1.msra.mxu0 0.0
  %8475 = vmatprep.subr.mxu0 0.0
  %8476 = vmatpush1.msra.mxu0 0.0
  %8477 = vmatprep.subr.mxu0 0.0
  %8478 = vmatpush1.msra.mxu0 0.0
  %8479 = vmatprep.subr.mxu0 0.0
  %8480 = vmatpush1.msra.mxu0 0.0
  %8481 = vmatprep.subr.mxu0 0.0
  %8482 = vmatpush1.msra.mxu0 0.0
  %8483 = vmatprep.subr.mxu0 0.0
  %8484 = vmatpush1.msra.mxu0 0.0
  %8485 = vmatprep.subr.mxu0 0.0
  %8486 = vmatpush1.msra.mxu0 0.0
  %8487 = vmatprep.mubr.f32.mxu0 0.0
  %v8488 = vand.u32 %v8205, 4294901760
  %v8489 = vsub.f32 %v8205, %v8488
  %8490 = vmatmul.mubr.f32.gmra.mrb[0].mxu0 %v8489
  %v8491 = vpop.f32.mrb[0].mxu0
  %v8492 = vadd.f32 %v8400, %v8491
  %v8493 = vpop.f32.mrb[0].mxu0
  %8494 = vmatprep.mubr.f32.mxu0 0.0
  %v8495 = vand.u32 %v8208, 4294901760
  %v8496 = vsub.f32 %v8208, %v8495
  %8497 = vmatmul.mubr.f32.gmra.mrb[0].mxu0 %v8496
  %v8498 = vpop.f32.mrb[0].mxu0
  %v8499 = vadd.f32 %v8406, %v8498
  %v8500 = vpop.f32.mrb[0].mxu0
  %8501 = vmatprep.mubr.f32.mxu0 0.0
  %v8502 = vand.u32 %v8211, 4294901760
  %v8503 = vsub.f32 %v8211, %v8502
  %8504 = vmatmul.mubr.f32.gmra.mrb[0].mxu0 %v8503
  %v8505 = vpop.f32.mrb[0].mxu0
  %v8506 = vadd.f32 %v8412, %v8505
  %v8507 = vpop.f32.mrb[0].mxu0
  %8508 = vdwg.mxu0
  %8509 = vmatprep.subr.mxu0 0.0
  %v8510 = vand.u32 %v8195, 4294901760
  %8511 = vmatpush1.msra.mxu0 %v8510
  %8512 = vmatprep.subr.mxu0 0.0
  %v8513 = vand.u32 %v8196, 4294901760
  %8514 = vmatpush1.msra.mxu0 %v8513
  %8515 = vmatprep.subr.mxu0 0.0
  %v8516 = vand.u32 %v8197, 4294901760
  %8517 = vmatpush1.msra.mxu0 %v8516
  %8518 = vmatprep.subr.mxu0 0.0
  %v8519 = vand.u32 %v8198, 4294901760
  %8520 = vmatpush1.msra.mxu0 %v8519
  %8521 = vmatprep.subr.mxu0 0.0
  %8522 = vmatpush1.msra.mxu0 0.0
  %8523 = vmatprep.subr.mxu0 0.0
  %8524 = vmatpush1.msra.mxu0 0.0
  %8525 = vmatprep.subr.mxu0 0.0
  %8526 = vmatpush1.msra.mxu0 0.0
  %8527 = vmatprep.subr.mxu0 0.0
  %8528 = vmatpush1.msra.mxu0 0.0
  %8529 = vmatprep.subr.mxu0 0.0
  %8530 = vmatpush1.msra.mxu0 0.0
  %8531 = vmatprep.subr.mxu0 0.0
  %8532 = vmatpush1.msra.mxu0 0.0
  %8533 = vmatprep.subr.mxu0 0.0
  %8534 = vmatpush1.msra.mxu0 0.0
  %8535 = vmatprep.subr.mxu0 0.0
  %8536 = vmatpush1.msra.mxu0 0.0
  %8537 = vmatprep.subr.mxu0 0.0
  %8538 = vmatpush1.msra.mxu0 0.0
  %8539 = vmatprep.subr.mxu0 0.0
  %8540 = vmatpush1.msra.mxu0 0.0
  %8541 = vmatprep.subr.mxu0 0.0
  %8542 = vmatpush1.msra.mxu0 0.0
  %8543 = vmatprep.subr.mxu0 0.0
  %8544 = vmatpush1.msra.mxu0 0.0
  %8545 = vmatprep.subr.mxu0 0.0
  %8546 = vmatpush1.msra.mxu0 0.0
  %8547 = vmatprep.subr.mxu0 0.0
  %8548 = vmatpush1.msra.mxu0 0.0
  %8549 = vmatprep.subr.mxu0 0.0
  %8550 = vmatpush1.msra.mxu0 0.0
  %8551 = vmatprep.subr.mxu0 0.0
  %8552 = vmatpush1.msra.mxu0 0.0
  %8553 = vmatprep.subr.mxu0 0.0
  %8554 = vmatpush1.msra.mxu0 0.0
  %8555 = vmatprep.subr.mxu0 0.0
  %8556 = vmatpush1.msra.mxu0 0.0
  %8557 = vmatprep.subr.mxu0 0.0
  %8558 = vmatpush1.msra.mxu0 0.0
  %8559 = vmatprep.subr.mxu0 0.0
  %8560 = vmatpush1.msra.mxu0 0.0
  %8561 = vmatprep.subr.mxu0 0.0
  %8562 = vmatpush1.msra.mxu0 0.0
  %8563 = vmatprep.subr.mxu0 0.0
  %8564 = vmatpush1.msra.mxu0 0.0
  %8565 = vmatprep.subr.mxu0 0.0
  %8566 = vmatpush1.msra.mxu0 0.0
  %8567 = vmatprep.subr.mxu0 0.0
  %8568 = vmatpush1.msra.mxu0 0.0
  %8569 = vmatprep.subr.mxu0 0.0
  %8570 = vmatpush1.msra.mxu0 0.0
  %8571 = vmatprep.subr.mxu0 0.0
  %8572 = vmatpush1.msra.mxu0 0.0
  %8573 = vmatprep.subr.mxu0 0.0
  %8574 = vmatpush1.msra.mxu0 0.0
  %8575 = vmatprep.subr.mxu0 0.0
  %8576 = vmatpush1.msra.mxu0 0.0
  %8577 = vmatprep.mubr.f32.mxu0 0.0
  %v8578 = vand.u32 %v8205, 4294901760
  %v8579 = vsub.f32 %v8205, %v8578
  %v8580 = vand.u32 %v8579, 4294901760
  %8581 = vmatmul.mubr.f32.gmra.mrb[0].mxu0 %v8580
  %v8582 = vpop.f32.mrb[0].mxu0
  %v8583 = vadd.f32 %v8492, %v8582
  %v8584 = vpop.f32.mrb[0].mxu0
  %8585 = vmatprep.mubr.f32.mxu0 0.0
  %v8586 = vand.u32 %v8208, 4294901760
  %v8587 = vsub.f32 %v8208, %v8586
  %v8588 = vand.u32 %v8587, 4294901760
  %8589 = vmatmul.mubr.f32.gmra.mrb[0].mxu0 %v8588
  %v8590 = vpop.f32.mrb[0].mxu0
  %v8591 = vadd.f32 %v8499, %v8590
  %v8592 = vpop.f32.mrb[0].mxu0
  %8593 = vmatprep.mubr.f32.mxu0 0.0
  %v8594 = vand.u32 %v8211, 4294901760
  %v8595 = vsub.f32 %v8211, %v8594
  %v8596 = vand.u32 %v8595, 4294901760
  %8597 = vmatmul.mubr.f32.gmra.mrb[0].mxu0 %v8596
  %v8598 = vpop.f32.mrb[0].mxu0
  %v8599 = vadd.f32 %v8506, %v8598
  %v8600 = vpop.f32.mrb[0].mxu0
  %8601 = vdwg.mxu0
  %8602 = vmatprep.subr.mxu0 0.0
  %v8603 = vand.u32 %v8195, 4294901760
  %v8604 = vsub.f32 %v8195, %v8603
  %v8605 = vand.u32 %v8604, 4294901760
  %8606 = vmatpush1.msra.mxu0 %v8605
  %8607 = vmatprep.subr.mxu0 0.0
  %v8608 = vand.u32 %v8196, 4294901760
  %v8609 = vsub.f32 %v8196, %v8608
  %v8610 = vand.u32 %v8609, 4294901760
  %8611 = vmatpush1.msra.mxu0 %v8610
  %8612 = vmatprep.subr.mxu0 0.0
  %v8613 = vand.u32 %v8197, 4294901760
  %v8614 = vsub.f32 %v8197, %v8613
  %v8615 = vand.u32 %v8614, 4294901760
  %8616 = vmatpush1.msra.mxu0 %v8615
  %8617 = vmatprep.subr.mxu0 0.0
  %v8618 = vand.u32 %v8198, 4294901760
  %v8619 = vsub.f32 %v8198, %v8618
  %v8620 = vand.u32 %v8619, 4294901760
  %8621 = vmatpush1.msra.mxu0 %v8620
  %8622 = vmatprep.subr.mxu0 0.0
  %8623 = vmatpush1.msra.mxu0 0.0
  %8624 = vmatprep.subr.mxu0 0.0
  %8625 = vmatpush1.msra.mxu0 0.0
  %8626 = vmatprep.subr.mxu0 0.0
  %8627 = vmatpush1.msra.mxu0 0.0
  %8628 = vmatprep.subr.mxu0 0.0
  %8629 = vmatpush1.msra.mxu0 0.0
  %8630 = vmatprep.subr.mxu0 0.0
  %8631 = vmatpush1.msra.mxu0 0.0
  %8632 = vmatprep.subr.mxu0 0.0
  %8633 = vmatpush1.msra.mxu0 0.0
  %8634 = vmatprep.subr.mxu0 0.0
  %8635 = vmatpush1.msra.mxu0 0.0
  %8636 = vmatprep.subr.mxu0 0.0
  %8637 = vmatpush1.msra.mxu0 0.0
  %8638 = vmatprep.subr.mxu0 0.0
  %8639 = vmatpush1.msra.mxu0 0.0
  %8640 = vmatprep.subr.mxu0 0.0
  %8641 = vmatpush1.msra.mxu0 0.0
  %8642 = vmatprep.subr.mxu0 0.0
  %8643 = vmatpush1.msra.mxu0 0.0
  %8644 = vmatprep.subr.mxu0 0.0
  %8645 = vmatpush1.msra.mxu0 0.0
  %8646 = vmatprep.subr.mxu0 0.0
  %8647 = vmatpush1.msra.mxu0 0.0
  %8648 = vmatprep.subr.mxu0 0.0
  %8649 = vmatpush1.msra.mxu0 0.0
  %8650 = vmatprep.subr.mxu0 0.0
  %8651 = vmatpush1.msra.mxu0 0.0
  %8652 = vmatprep.subr.mxu0 0.0
  %8653 = vmatpush1.msra.mxu0 0.0
  %8654 = vmatprep.subr.mxu0 0.0
  %8655 = vmatpush1.msra.mxu0 0.0
  %8656 = vmatprep.subr.mxu0 0.0
  %8657 = vmatpush1.msra.mxu0 0.0
  %8658 = vmatprep.subr.mxu0 0.0
  %8659 = vmatpush1.msra.mxu0 0.0
  %8660 = vmatprep.subr.mxu0 0.0
  %8661 = vmatpush1.msra.mxu0 0.0
  %8662 = vmatprep.subr.mxu0 0.0
  %8663 = vmatpush1.msra.mxu0 0.0
  %8664 = vmatprep.subr.mxu0 0.0
  %8665 = vmatpush1.msra.mxu0 0.0
  %8666 = vmatprep.subr.mxu0 0.0
  %8667 = vmatpush1.msra.mxu0 0.0
  %8668 = vmatprep.subr.mxu0 0.0
  %8669 = vmatpush1.msra.mxu0 0.0
  %8670 = vmatprep.subr.mxu0 0.0
  %8671 = vmatpush1.msra.mxu0 0.0
  %8672 = vmatprep.subr.mxu0 0.0
  %8673 = vmatpush1.msra.mxu0 0.0
  %8674 = vmatprep.subr.mxu0 0.0
  %8675 = vmatpush1.msra.mxu0 0.0
  %8676 = vmatprep.subr.mxu0 0.0
  %8677 = vmatpush1.msra.mxu0 0.0
  %8678 = vmatprep.mubr.f32.mxu0 0.0
  %v8679 = vand.u32 %v8205, 4294901760
  %8680 = vmatmul.mubr.f32.gmra.mrb[0].mxu0 %v8679
  %v8681 = vpop.f32.mrb[0].mxu0
  %v8682 = vadd.f32 %v8583, %v8681
  %v8683 = vpop.f32.mrb[0].mxu0
  %8684 = vmatprep.mubr.f32.mxu0 0.0
  %v8685 = vand.u32 %v8208, 4294901760
  %8686 = vmatmul.mubr.f32.gmra.mrb[0].mxu0 %v8685
  %v8687 = vpop.f32.mrb[0].mxu0
  %v8688 = vadd.f32 %v8591, %v8687
  %v8689 = vpop.f32.mrb[0].mxu0
  %8690 = vmatprep.mubr.f32.mxu0 0.0
  %v8691 = vand.u32 %v8211, 4294901760
  %8692 = vmatmul.mubr.f32.gmra.mrb[0].mxu0 %v8691
  %v8693 = vpop.f32.mrb[0].mxu0
  %v8694 = vadd.f32 %v8599, %v8693
  %v8695 = vpop.f32.mrb[0].mxu0
  %8696 = vdwg.mxu0
  %8697 = vmatprep.subr.mxu0 0.0
  %v8698 = vand.u32 %v8195, 4294901760
  %8699 = vmatpush1.msra.mxu0 %v8698
  %8700 = vmatprep.subr.mxu0 0.0
  %v8701 = vand.u32 %v8196, 4294901760
  %8702 = vmatpush1.msra.mxu0 %v8701
  %8703 = vmatprep.subr.mxu0 0.0
  %v8704 = vand.u32 %v8197, 4294901760
  %8705 = vmatpush1.msra.mxu0 %v8704
  %8706 = vmatprep.subr.mxu0 0.0
  %v8707 = vand.u32 %v8198, 4294901760
  %8708 = vmatpush1.msra.mxu0 %v8707
  %8709 = vmatprep.subr.mxu0 0.0
  %8710 = vmatpush1.msra.mxu0 0.0
  %8711 = vmatprep.subr.mxu0 0.0
  %8712 = vmatpush1.msra.mxu0 0.0
  %8713 = vmatprep.subr.mxu0 0.0
  %8714 = vmatpush1.msra.mxu0 0.0
  %8715 = vmatprep.subr.mxu0 0.0
  %8716 = vmatpush1.msra.mxu0 0.0
  %8717 = vmatprep.subr.mxu0 0.0
  %8718 = vmatpush1.msra.mxu0 0.0
  %8719 = vmatprep.subr.mxu0 0.0
  %8720 = vmatpush1.msra.mxu0 0.0
  %8721 = vmatprep.subr.mxu0 0.0
  %8722 = vmatpush1.msra.mxu0 0.0
  %8723 = vmatprep.subr.mxu0 0.0
  %8724 = vmatpush1.msra.mxu0 0.0
  %8725 = vmatprep.subr.mxu0 0.0
  %8726 = vmatpush1.msra.mxu0 0.0
  %8727 = vmatprep.subr.mxu0 0.0
  %8728 = vmatpush1.msra.mxu0 0.0
  %8729 = vmatprep.subr.mxu0 0.0
  %8730 = vmatpush1.msra.mxu0 0.0
  %8731 = vmatprep.subr.mxu0 0.0
  %8732 = vmatpush1.msra.mxu0 0.0
  %8733 = vmatprep.subr.mxu0 0.0
  %8734 = vmatpush1.msra.mxu0 0.0
  %8735 = vmatprep.subr.mxu0 0.0
  %8736 = vmatpush1.msra.mxu0 0.0
  %8737 = vmatprep.subr.mxu0 0.0
  %8738 = vmatpush1.msra.mxu0 0.0
  %8739 = vmatprep.subr.mxu0 0.0
  %8740 = vmatpush1.msra.mxu0 0.0
  %8741 = vmatprep.subr.mxu0 0.0
  %8742 = vmatpush1.msra.mxu0 0.0
  %8743 = vmatprep.subr.mxu0 0.0
  %8744 = vmatpush1.msra.mxu0 0.0
  %8745 = vmatprep.subr.mxu0 0.0
  %8746 = vmatpush1.msra.mxu0 0.0
  %8747 = vmatprep.subr.mxu0 0.0
  %8748 = vmatpush1.msra.mxu0 0.0
  %8749 = vmatprep.subr.mxu0 0.0
  %8750 = vmatpush1.msra.mxu0 0.0
  %8751 = vmatprep.subr.mxu0 0.0
  %8752 = vmatpush1.msra.mxu0 0.0
  %8753 = vmatprep.subr.mxu0 0.0
  %8754 = vmatpush1.msra.mxu0 0.0
  %8755 = vmatprep.subr.mxu0 0.0
  %8756 = vmatpush1.msra.mxu0 0.0
  %8757 = vmatprep.subr.mxu0 0.0
  %8758 = vmatpush1.msra.mxu0 0.0
  %8759 = vmatprep.subr.mxu0 0.0
  %8760 = vmatpush1.msra.mxu0 0.0
  %8761 = vmatprep.subr.mxu0 0.0
  %8762 = vmatpush1.msra.mxu0 0.0
  %8763 = vmatprep.subr.mxu0 0.0
  %8764 = vmatpush1.msra.mxu0 0.0
  %8765 = vmatprep.mubr.f32.mxu0 0.0
  %v8766 = vand.u32 %v8205, 4294901760
  %8767 = vmatmul.mubr.f32.gmra.mrb[0].mxu0 %v8766
  %v8768 = vpop.f32.mrb[0].mxu0
  %v8769 = vadd.f32 %v8682, %v8768
  %v8770 = vpop.f32.mrb[0].mxu0
  %8771 = vmatprep.mubr.f32.mxu0 0.0
  %v8772 = vand.u32 %v8208, 4294901760
  %8773 = vmatmul.mubr.f32.gmra.mrb[0].mxu0 %v8772
  %v8774 = vpop.f32.mrb[0].mxu0
  %v8775 = vadd.f32 %v8688, %v8774
  %v8776 = vpop.f32.mrb[0].mxu0
  %8777 = vmatprep.mubr.f32.mxu0 0.0
  %v8778 = vand.u32 %v8211, 4294901760
  %8779 = vmatmul.mubr.f32.gmra.mrb[0].mxu0 %v8778
  %v8780 = vpop.f32.mrb[0].mxu0
  %v8781 = vadd.f32 %v8694, %v8780
  %v8782 = vpop.f32.mrb[0].mxu0
  %8783 = vdwg.mxu0
  %v8784 = vadd.f32 %v5404, %v8769
  %v8785 = vadd.f32 %v5405, %v8775
  %v8786 = vadd.f32 %v5406, %v8781
  %v8787 = vld [vmem:[%s1 + $0x270] sm:$0x1]
  %v8788 = vld [vmem:[%s1 + $0x278] sm:$0x1]
  %v8789 = vsel %vm598, %v8784, 0.0
  %8790 = vadd.xlane.f32.xlu0 %v8789
  %v8791 = vpop.xlane.xlu0 %8790
  %v8792 = vsel %vm598, %v8785, 0.0
  %8793 = vadd.xlane.f32.xlu0 %v8792
  %v8794 = vpop.xlane.xlu0 %8793
  %v8795 = vsel %vm598, %v8786, 0.0
  %8796 = vadd.xlane.f32.xlu0 %v8795
  %v8797 = vpop.xlane.xlu0 %8796
  %v8798 = vmul.f32 %v8791, %v4066
  %v8799 = vmul.f32 %v8794, %v4066
  %v8800 = vmul.f32 %v8797, %v4066
  %v8801 = vsub.f32 %v8784, %v8798
  %v8802 = vsub.f32 %v8785, %v8799
  %v8803 = vsub.f32 %v8786, %v8800
  %v8804 = vmul.f32 %v8801, %v8801
  %v8805 = vmul.f32 %v8802, %v8802
  %v8806 = vmul.f32 %v8803, %v8803
  %v8807 = vsel %vm598, %v8804, 0.0
  %8808 = vadd.xlane.f32.xlu0 %v8807
  %v8809 = vpop.xlane.xlu0 %8808
  %v8810 = vsel %vm598, %v8805, 0.0
  %8811 = vadd.xlane.f32.xlu0 %v8810
  %v8812 = vpop.xlane.xlu0 %8811
  %v8813 = vsel %vm598, %v8806, 0.0
  %8814 = vadd.xlane.f32.xlu0 %v8813
  %v8815 = vpop.xlane.xlu0 %8814
  %v8816 = vmul.f32 %v8809, %v4066
  %v8817 = vmul.f32 %v8812, %v4066
  %v8818 = vmul.f32 %v8815, %v4066
  %v8819 = vadd.f32 %v8816, 1e-05
  %v8820 = vadd.f32 %v8817, 1e-05
  %v8821 = vadd.f32 %v8818, 1e-05
  %v8822 = vrsqrt.pop %v8819
  %v8823 = vrsqrt.pop %v8820
  %v8824 = vrsqrt.pop %v8821
  %v8825 = vmul.f32 %v8801, %v8822
  %v8826 = vmul.f32 %v8802, %v8823
  %v8827 = vmul.f32 %v8803, %v8824
  %v8828 = vlaneseq
  %v8829 = vshrl.u32 %v8828, 7
  %v8830 = vsub.s32 0, %v8829
  %v8831 = vrot.slane %v8787, %v8830
  %v8832 = vmul.f32 %v8825, %v8831
  %v8833 = vmul.f32 %v8826, %v8831
  %v8834 = vmul.f32 %v8827, %v8831
  %v8835 = vlaneseq
  %v8836 = vshrl.u32 %v8835, 7
  %v8837 = vsub.s32 0, %v8836
  %v8838 = vrot.slane %v8788, %v8837
  %v8839 = vadd.f32 %v8832, %v8838
  %v8840 = vadd.f32 %v8833, %v8838
  %v8841 = vadd.f32 %v8834, %v8838
  %v8842 = vld [vmem:[%s1 + $0x200] sm:$0xff]
  %v8843 = vld [vmem:[%s1 + $0x208] sm:$0xff]
  %v8844 = vld [vmem:[%s1 + $0x210] sm:$0xff]
  %v8845 = vld [vmem:[%s1 + $0x218] sm:$0xff]
  %v8846 = vld [vmem:[%s1 + $0x280] sm:$0x1]
  %v8847 = vlaneseq
  %v8848 = vshrl.u32 %v8847, 7
  %v8849 = vsub.s32 0, %v8848
  %v8850 = vrot.slane %v8846, %v8849
  %v8852 = vsel %vm598, %v8839, 0
  %v8855 = vsel %vm598, %v8840, 0
  %v8858 = vsel %vm598, %v8841, 0
  %8860 = vmatprep.subr.mxu0 0.0
  %v8861 = vand.u32 %v8842, 4294901760
  %8862 = vmatpush1.msra.mxu0 %v8861
  %8863 = vmatprep.subr.mxu0 0.0
  %v8864 = vand.u32 %v8843, 4294901760
  %8865 = vmatpush1.msra.mxu0 %v8864
  %8866 = vmatprep.subr.mxu0 0.0
  %v8867 = vand.u32 %v8844, 4294901760
  %8868 = vmatpush1.msra.mxu0 %v8867
  %8869 = vmatprep.subr.mxu0 0.0
  %v8870 = vand.u32 %v8845, 4294901760
  %8871 = vmatpush1.msra.mxu0 %v8870
  %8872 = vmatprep.subr.mxu0 0.0
  %8873 = vmatpush1.msra.mxu0 0.0
  %8874 = vmatprep.subr.mxu0 0.0
  %8875 = vmatpush1.msra.mxu0 0.0
  %8876 = vmatprep.subr.mxu0 0.0
  %8877 = vmatpush1.msra.mxu0 0.0
  %8878 = vmatprep.subr.mxu0 0.0
  %8879 = vmatpush1.msra.mxu0 0.0
  %8880 = vmatprep.subr.mxu0 0.0
  %8881 = vmatpush1.msra.mxu0 0.0
  %8882 = vmatprep.subr.mxu0 0.0
  %8883 = vmatpush1.msra.mxu0 0.0
  %8884 = vmatprep.subr.mxu0 0.0
  %8885 = vmatpush1.msra.mxu0 0.0
  %8886 = vmatprep.subr.mxu0 0.0
  %8887 = vmatpush1.msra.mxu0 0.0
  %8888 = vmatprep.subr.mxu0 0.0
  %8889 = vmatpush1.msra.mxu0 0.0
  %8890 = vmatprep.subr.mxu0 0.0
  %8891 = vmatpush1.msra.mxu0 0.0
  %8892 = vmatprep.subr.mxu0 0.0
  %8893 = vmatpush1.msra.mxu0 0.0
  %8894 = vmatprep.subr.mxu0 0.0
  %8895 = vmatpush1.msra.mxu0 0.0
  %8896 = vmatprep.subr.mxu0 0.0
  %8897 = vmatpush1.msra.mxu0 0.0
  %8898 = vmatprep.subr.mxu0 0.0
  %8899 = vmatpush1.msra.mxu0 0.0
  %8900 = vmatprep.subr.mxu0 0.0
  %8901 = vmatpush1.msra.mxu0 0.0
  %8902 = vmatprep.subr.mxu0 0.0
  %8903 = vmatpush1.msra.mxu0 0.0
  %8904 = vmatprep.subr.mxu0 0.0
  %8905 = vmatpush1.msra.mxu0 0.0
  %8906 = vmatprep.subr.mxu0 0.0
  %8907 = vmatpush1.msra.mxu0 0.0
  %8908 = vmatprep.subr.mxu0 0.0
  %8909 = vmatpush1.msra.mxu0 0.0
  %8910 = vmatprep.subr.mxu0 0.0
  %8911 = vmatpush1.msra.mxu0 0.0
  %8912 = vmatprep.subr.mxu0 0.0
  %8913 = vmatpush1.msra.mxu0 0.0
  %8914 = vmatprep.subr.mxu0 0.0
  %8915 = vmatpush1.msra.mxu0 0.0
  %8916 = vmatprep.subr.mxu0 0.0
  %8917 = vmatpush1.msra.mxu0 0.0
  %8918 = vmatprep.subr.mxu0 0.0
  %8919 = vmatpush1.msra.mxu0 0.0
  %8920 = vmatprep.subr.mxu0 0.0
  %8921 = vmatpush1.msra.mxu0 0.0
  %8922 = vmatprep.subr.mxu0 0.0
  %8923 = vmatpush1.msra.mxu0 0.0
  %8924 = vmatprep.subr.mxu0 0.0
  %8925 = vmatpush1.msra.mxu0 0.0
  %8926 = vmatprep.subr.mxu0 0.0
  %8927 = vmatpush1.msra.mxu0 0.0
  %8928 = vmatprep.mubr.f32.mxu0 0.0
  %v8929 = vand.u32 %v8852, 4294901760
  %v8930 = vsub.f32 %v8852, %v8929
  %v8931 = vand.u32 %v8930, 4294901760
  %v8932 = vsub.f32 %v8930, %v8931
  %v8933 = vand.u32 %v8932, 4294901760
  %8934 = vmatmul.mubr.f32.gmra.mrb[0].mxu0 %v8933
  %v8935 = vpop.f32.mrb[0].mxu0
  %v8936 = vadd.f32 %v8850, %v8935
  %v8937 = vpop.f32.mrb[0].mxu0
  %8938 = vmatprep.mubr.f32.mxu0 0.0
  %v8939 = vand.u32 %v8855, 4294901760
  %v8940 = vsub.f32 %v8855, %v8939
  %v8941 = vand.u32 %v8940, 4294901760
  %v8942 = vsub.f32 %v8940, %v8941
  %v8943 = vand.u32 %v8942, 4294901760
  %8944 = vmatmul.mubr.f32.gmra.mrb[0].mxu0 %v8943
  %v8945 = vpop.f32.mrb[0].mxu0
  %v8946 = vadd.f32 %v8850, %v8945
  %v8947 = vpop.f32.mrb[0].mxu0
  %8948 = vmatprep.mubr.f32.mxu0 0.0
  %v8949 = vand.u32 %v8858, 4294901760
  %v8950 = vsub.f32 %v8858, %v8949
  %v8951 = vand.u32 %v8950, 4294901760
  %v8952 = vsub.f32 %v8950, %v8951
  %v8953 = vand.u32 %v8952, 4294901760
  %8954 = vmatmul.mubr.f32.gmra.mrb[0].mxu0 %v8953
  %v8955 = vpop.f32.mrb[0].mxu0
  %v8956 = vadd.f32 %v8850, %v8955
  %v8957 = vpop.f32.mrb[0].mxu0
  %8958 = vdwg.mxu0
  %8959 = vmatprep.subr.mxu0 0.0
  %v8960 = vand.u32 %v8842, 4294901760
  %v8961 = vsub.f32 %v8842, %v8960
  %v8962 = vand.u32 %v8961, 4294901760
  %v8963 = vsub.f32 %v8961, %v8962
  %v8964 = vand.u32 %v8963, 4294901760
  %8965 = vmatpush1.msra.mxu0 %v8964
  %8966 = vmatprep.subr.mxu0 0.0
  %v8967 = vand.u32 %v8843, 4294901760
  %v8968 = vsub.f32 %v8843, %v8967
  %v8969 = vand.u32 %v8968, 4294901760
  %v8970 = vsub.f32 %v8968, %v8969
  %v8971 = vand.u32 %v8970, 4294901760
  %8972 = vmatpush1.msra.mxu0 %v8971
  %8973 = vmatprep.subr.mxu0 0.0
  %v8974 = vand.u32 %v8844, 4294901760
  %v8975 = vsub.f32 %v8844, %v8974
  %v8976 = vand.u32 %v8975, 4294901760
  %v8977 = vsub.f32 %v8975, %v8976
  %v8978 = vand.u32 %v8977, 4294901760
  %8979 = vmatpush1.msra.mxu0 %v8978
  %8980 = vmatprep.subr.mxu0 0.0
  %v8981 = vand.u32 %v8845, 4294901760
  %v8982 = vsub.f32 %v8845, %v8981
  %v8983 = vand.u32 %v8982, 4294901760
  %v8984 = vsub.f32 %v8982, %v8983
  %v8985 = vand.u32 %v8984, 4294901760
  %8986 = vmatpush1.msra.mxu0 %v8985
  %8987 = vmatprep.subr.mxu0 0.0
  %8988 = vmatpush1.msra.mxu0 0.0
  %8989 = vmatprep.subr.mxu0 0.0
  %8990 = vmatpush1.msra.mxu0 0.0
  %8991 = vmatprep.subr.mxu0 0.0
  %8992 = vmatpush1.msra.mxu0 0.0
  %8993 = vmatprep.subr.mxu0 0.0
  %8994 = vmatpush1.msra.mxu0 0.0
  %8995 = vmatprep.subr.mxu0 0.0
  %8996 = vmatpush1.msra.mxu0 0.0
  %8997 = vmatprep.subr.mxu0 0.0
  %8998 = vmatpush1.msra.mxu0 0.0
  %8999 = vmatprep.subr.mxu0 0.0
  %9000 = vmatpush1.msra.mxu0 0.0
  %9001 = vmatprep.subr.mxu0 0.0
  %9002 = vmatpush1.msra.mxu0 0.0
  %9003 = vmatprep.subr.mxu0 0.0
  %9004 = vmatpush1.msra.mxu0 0.0
  %9005 = vmatprep.subr.mxu0 0.0
  %9006 = vmatpush1.msra.mxu0 0.0
  %9007 = vmatprep.subr.mxu0 0.0
  %9008 = vmatpush1.msra.mxu0 0.0
  %9009 = vmatprep.subr.mxu0 0.0
  %9010 = vmatpush1.msra.mxu0 0.0
  %9011 = vmatprep.subr.mxu0 0.0
  %9012 = vmatpush1.msra.mxu0 0.0
  %9013 = vmatprep.subr.mxu0 0.0
  %9014 = vmatpush1.msra.mxu0 0.0
  %9015 = vmatprep.subr.mxu0 0.0
  %9016 = vmatpush1.msra.mxu0 0.0
  %9017 = vmatprep.subr.mxu0 0.0
  %9018 = vmatpush1.msra.mxu0 0.0
  %9019 = vmatprep.subr.mxu0 0.0
  %9020 = vmatpush1.msra.mxu0 0.0
  %9021 = vmatprep.subr.mxu0 0.0
  %9022 = vmatpush1.msra.mxu0 0.0
  %9023 = vmatprep.subr.mxu0 0.0
  %9024 = vmatpush1.msra.mxu0 0.0
  %9025 = vmatprep.subr.mxu0 0.0
  %9026 = vmatpush1.msra.mxu0 0.0
  %9027 = vmatprep.subr.mxu0 0.0
  %9028 = vmatpush1.msra.mxu0 0.0
  %9029 = vmatprep.subr.mxu0 0.0
  %9030 = vmatpush1.msra.mxu0 0.0
  %9031 = vmatprep.subr.mxu0 0.0
  %9032 = vmatpush1.msra.mxu0 0.0
  %9033 = vmatprep.subr.mxu0 0.0
  %9034 = vmatpush1.msra.mxu0 0.0
  %9035 = vmatprep.subr.mxu0 0.0
  %9036 = vmatpush1.msra.mxu0 0.0
  %9037 = vmatprep.subr.mxu0 0.0
  %9038 = vmatpush1.msra.mxu0 0.0
  %9039 = vmatprep.subr.mxu0 0.0
  %9040 = vmatpush1.msra.mxu0 0.0
  %9041 = vmatprep.subr.mxu0 0.0
  %9042 = vmatpush1.msra.mxu0 0.0
  %9043 = vmatprep.mubr.f32.mxu0 0.0
  %v9044 = vand.u32 %v8852, 4294901760
  %9045 = vmatmul.mubr.f32.gmra.mrb[0].mxu0 %v9044
  %v9046 = vpop.f32.mrb[0].mxu0
  %v9047 = vadd.f32 %v8936, %v9046
  %v9048 = vpop.f32.mrb[0].mxu0
  %9049 = vmatprep.mubr.f32.mxu0 0.0
  %v9050 = vand.u32 %v8855, 4294901760
  %9051 = vmatmul.mubr.f32.gmra.mrb[0].mxu0 %v9050
  %v9052 = vpop.f32.mrb[0].mxu0
  %v9053 = vadd.f32 %v8946, %v9052
  %v9054 = vpop.f32.mrb[0].mxu0
  %9055 = vmatprep.mubr.f32.mxu0 0.0
  %v9056 = vand.u32 %v8858, 4294901760
  %9057 = vmatmul.mubr.f32.gmra.mrb[0].mxu0 %v9056
  %v9058 = vpop.f32.mrb[0].mxu0
  %v9059 = vadd.f32 %v8956, %v9058
  %v9060 = vpop.f32.mrb[0].mxu0
  %9061 = vdwg.mxu0
  %9062 = vmatprep.subr.mxu0 0.0
  %v9063 = vand.u32 %v8842, 4294901760
  %v9064 = vsub.f32 %v8842, %v9063
  %9065 = vmatpush1.msra.mxu0 %v9064
  %9066 = vmatprep.subr.mxu0 0.0
  %v9067 = vand.u32 %v8843, 4294901760
  %v9068 = vsub.f32 %v8843, %v9067
  %9069 = vmatpush1.msra.mxu0 %v9068
  %9070 = vmatprep.subr.mxu0 0.0
  %v9071 = vand.u32 %v8844, 4294901760
  %v9072 = vsub.f32 %v8844, %v9071
  %9073 = vmatpush1.msra.mxu0 %v9072
  %9074 = vmatprep.subr.mxu0 0.0
  %v9075 = vand.u32 %v8845, 4294901760
  %v9076 = vsub.f32 %v8845, %v9075
  %9077 = vmatpush1.msra.mxu0 %v9076
  %9078 = vmatprep.subr.mxu0 0.0
  %9079 = vmatpush1.msra.mxu0 0.0
  %9080 = vmatprep.subr.mxu0 0.0
  %9081 = vmatpush1.msra.mxu0 0.0
  %9082 = vmatprep.subr.mxu0 0.0
  %9083 = vmatpush1.msra.mxu0 0.0
  %9084 = vmatprep.subr.mxu0 0.0
  %9085 = vmatpush1.msra.mxu0 0.0
  %9086 = vmatprep.subr.mxu0 0.0
  %9087 = vmatpush1.msra.mxu0 0.0
  %9088 = vmatprep.subr.mxu0 0.0
  %9089 = vmatpush1.msra.mxu0 0.0
  %9090 = vmatprep.subr.mxu0 0.0
  %9091 = vmatpush1.msra.mxu0 0.0
  %9092 = vmatprep.subr.mxu0 0.0
  %9093 = vmatpush1.msra.mxu0 0.0
  %9094 = vmatprep.subr.mxu0 0.0
  %9095 = vmatpush1.msra.mxu0 0.0
  %9096 = vmatprep.subr.mxu0 0.0
  %9097 = vmatpush1.msra.mxu0 0.0
  %9098 = vmatprep.subr.mxu0 0.0
  %9099 = vmatpush1.msra.mxu0 0.0
  %9100 = vmatprep.subr.mxu0 0.0
  %9101 = vmatpush1.msra.mxu0 0.0
  %9102 = vmatprep.subr.mxu0 0.0
  %9103 = vmatpush1.msra.mxu0 0.0
  %9104 = vmatprep.subr.mxu0 0.0
  %9105 = vmatpush1.msra.mxu0 0.0
  %9106 = vmatprep.subr.mxu0 0.0
  %9107 = vmatpush1.msra.mxu0 0.0
  %9108 = vmatprep.subr.mxu0 0.0
  %9109 = vmatpush1.msra.mxu0 0.0
  %9110 = vmatprep.subr.mxu0 0.0
  %9111 = vmatpush1.msra.mxu0 0.0
  %9112 = vmatprep.subr.mxu0 0.0
  %9113 = vmatpush1.msra.mxu0 0.0
  %9114 = vmatprep.subr.mxu0 0.0
  %9115 = vmatpush1.msra.mxu0 0.0
  %9116 = vmatprep.subr.mxu0 0.0
  %9117 = vmatpush1.msra.mxu0 0.0
  %9118 = vmatprep.subr.mxu0 0.0
  %9119 = vmatpush1.msra.mxu0 0.0
  %9120 = vmatprep.subr.mxu0 0.0
  %9121 = vmatpush1.msra.mxu0 0.0
  %9122 = vmatprep.subr.mxu0 0.0
  %9123 = vmatpush1.msra.mxu0 0.0
  %9124 = vmatprep.subr.mxu0 0.0
  %9125 = vmatpush1.msra.mxu0 0.0
  %9126 = vmatprep.subr.mxu0 0.0
  %9127 = vmatpush1.msra.mxu0 0.0
  %9128 = vmatprep.subr.mxu0 0.0
  %9129 = vmatpush1.msra.mxu0 0.0
  %9130 = vmatprep.subr.mxu0 0.0
  %9131 = vmatpush1.msra.mxu0 0.0
  %9132 = vmatprep.subr.mxu0 0.0
  %9133 = vmatpush1.msra.mxu0 0.0
  %9134 = vmatprep.mubr.f32.mxu0 0.0
  %v9135 = vand.u32 %v8852, 4294901760
  %v9136 = vsub.f32 %v8852, %v9135
  %9137 = vmatmul.mubr.f32.gmra.mrb[0].mxu0 %v9136
  %v9138 = vpop.f32.mrb[0].mxu0
  %v9139 = vadd.f32 %v9047, %v9138
  %v9140 = vpop.f32.mrb[0].mxu0
  %9141 = vmatprep.mubr.f32.mxu0 0.0
  %v9142 = vand.u32 %v8855, 4294901760
  %v9143 = vsub.f32 %v8855, %v9142
  %9144 = vmatmul.mubr.f32.gmra.mrb[0].mxu0 %v9143
  %v9145 = vpop.f32.mrb[0].mxu0
  %v9146 = vadd.f32 %v9053, %v9145
  %v9147 = vpop.f32.mrb[0].mxu0
  %9148 = vmatprep.mubr.f32.mxu0 0.0
  %v9149 = vand.u32 %v8858, 4294901760
  %v9150 = vsub.f32 %v8858, %v9149
  %9151 = vmatmul.mubr.f32.gmra.mrb[0].mxu0 %v9150
  %v9152 = vpop.f32.mrb[0].mxu0
  %v9153 = vadd.f32 %v9059, %v9152
  %v9154 = vpop.f32.mrb[0].mxu0
  %9155 = vdwg.mxu0
  %9156 = vmatprep.subr.mxu0 0.0
  %v9157 = vand.u32 %v8842, 4294901760
  %9158 = vmatpush1.msra.mxu0 %v9157
  %9159 = vmatprep.subr.mxu0 0.0
  %v9160 = vand.u32 %v8843, 4294901760
  %9161 = vmatpush1.msra.mxu0 %v9160
  %9162 = vmatprep.subr.mxu0 0.0
  %v9163 = vand.u32 %v8844, 4294901760
  %9164 = vmatpush1.msra.mxu0 %v9163
  %9165 = vmatprep.subr.mxu0 0.0
  %v9166 = vand.u32 %v8845, 4294901760
  %9167 = vmatpush1.msra.mxu0 %v9166
  %9168 = vmatprep.subr.mxu0 0.0
  %9169 = vmatpush1.msra.mxu0 0.0
  %9170 = vmatprep.subr.mxu0 0.0
  %9171 = vmatpush1.msra.mxu0 0.0
  %9172 = vmatprep.subr.mxu0 0.0
  %9173 = vmatpush1.msra.mxu0 0.0
  %9174 = vmatprep.subr.mxu0 0.0
  %9175 = vmatpush1.msra.mxu0 0.0
  %9176 = vmatprep.subr.mxu0 0.0
  %9177 = vmatpush1.msra.mxu0 0.0
  %9178 = vmatprep.subr.mxu0 0.0
  %9179 = vmatpush1.msra.mxu0 0.0
  %9180 = vmatprep.subr.mxu0 0.0
  %9181 = vmatpush1.msra.mxu0 0.0
  %9182 = vmatprep.subr.mxu0 0.0
  %9183 = vmatpush1.msra.mxu0 0.0
  %9184 = vmatprep.subr.mxu0 0.0
  %9185 = vmatpush1.msra.mxu0 0.0
  %9186 = vmatprep.subr.mxu0 0.0
  %9187 = vmatpush1.msra.mxu0 0.0
  %9188 = vmatprep.subr.mxu0 0.0
  %9189 = vmatpush1.msra.mxu0 0.0
  %9190 = vmatprep.subr.mxu0 0.0
  %9191 = vmatpush1.msra.mxu0 0.0
  %9192 = vmatprep.subr.mxu0 0.0
  %9193 = vmatpush1.msra.mxu0 0.0
  %9194 = vmatprep.subr.mxu0 0.0
  %9195 = vmatpush1.msra.mxu0 0.0
  %9196 = vmatprep.subr.mxu0 0.0
  %9197 = vmatpush1.msra.mxu0 0.0
  %9198 = vmatprep.subr.mxu0 0.0
  %9199 = vmatpush1.msra.mxu0 0.0
  %9200 = vmatprep.subr.mxu0 0.0
  %9201 = vmatpush1.msra.mxu0 0.0
  %9202 = vmatprep.subr.mxu0 0.0
  %9203 = vmatpush1.msra.mxu0 0.0
  %9204 = vmatprep.subr.mxu0 0.0
  %9205 = vmatpush1.msra.mxu0 0.0
  %9206 = vmatprep.subr.mxu0 0.0
  %9207 = vmatpush1.msra.mxu0 0.0
  %9208 = vmatprep.subr.mxu0 0.0
  %9209 = vmatpush1.msra.mxu0 0.0
  %9210 = vmatprep.subr.mxu0 0.0
  %9211 = vmatpush1.msra.mxu0 0.0
  %9212 = vmatprep.subr.mxu0 0.0
  %9213 = vmatpush1.msra.mxu0 0.0
  %9214 = vmatprep.subr.mxu0 0.0
  %9215 = vmatpush1.msra.mxu0 0.0
  %9216 = vmatprep.subr.mxu0 0.0
  %9217 = vmatpush1.msra.mxu0 0.0
  %9218 = vmatprep.subr.mxu0 0.0
  %9219 = vmatpush1.msra.mxu0 0.0
  %9220 = vmatprep.subr.mxu0 0.0
  %9221 = vmatpush1.msra.mxu0 0.0
  %9222 = vmatprep.subr.mxu0 0.0
  %9223 = vmatpush1.msra.mxu0 0.0
  %9224 = vmatprep.mubr.f32.mxu0 0.0
  %v9225 = vand.u32 %v8852, 4294901760
  %v9226 = vsub.f32 %v8852, %v9225
  %v9227 = vand.u32 %v9226, 4294901760
  %9228 = vmatmul.mubr.f32.gmra.mrb[0].mxu0 %v9227
  %v9229 = vpop.f32.mrb[0].mxu0
  %v9230 = vadd.f32 %v9139, %v9229
  %v9231 = vpop.f32.mrb[0].mxu0
  %9232 = vmatprep.mubr.f32.mxu0 0.0
  %v9233 = vand.u32 %v8855, 4294901760
  %v9234 = vsub.f32 %v8855, %v9233
  %v9235 = vand.u32 %v9234, 4294901760
  %9236 = vmatmul.mubr.f32.gmra.mrb[0].mxu0 %v9235
  %v9237 = vpop.f32.mrb[0].mxu0
  %v9238 = vadd.f32 %v9146, %v9237
  %v9239 = vpop.f32.mrb[0].mxu0
  %9240 = vmatprep.mubr.f32.mxu0 0.0
  %v9241 = vand.u32 %v8858, 4294901760
  %v9242 = vsub.f32 %v8858, %v9241
  %v9243 = vand.u32 %v9242, 4294901760
  %9244 = vmatmul.mubr.f32.gmra.mrb[0].mxu0 %v9243
  %v9245 = vpop.f32.mrb[0].mxu0
  %v9246 = vadd.f32 %v9153, %v9245
  %v9247 = vpop.f32.mrb[0].mxu0
  %9248 = vdwg.mxu0
  %9249 = vmatprep.subr.mxu0 0.0
  %v9250 = vand.u32 %v8842, 4294901760
  %v9251 = vsub.f32 %v8842, %v9250
  %v9252 = vand.u32 %v9251, 4294901760
  %9253 = vmatpush1.msra.mxu0 %v9252
  %9254 = vmatprep.subr.mxu0 0.0
  %v9255 = vand.u32 %v8843, 4294901760
  %v9256 = vsub.f32 %v8843, %v9255
  %v9257 = vand.u32 %v9256, 4294901760
  %9258 = vmatpush1.msra.mxu0 %v9257
  %9259 = vmatprep.subr.mxu0 0.0
  %v9260 = vand.u32 %v8844, 4294901760
  %v9261 = vsub.f32 %v8844, %v9260
  %v9262 = vand.u32 %v9261, 4294901760
  %9263 = vmatpush1.msra.mxu0 %v9262
  %9264 = vmatprep.subr.mxu0 0.0
  %v9265 = vand.u32 %v8845, 4294901760
  %v9266 = vsub.f32 %v8845, %v9265
  %v9267 = vand.u32 %v9266, 4294901760
  %9268 = vmatpush1.msra.mxu0 %v9267
  %9269 = vmatprep.subr.mxu0 0.0
  %9270 = vmatpush1.msra.mxu0 0.0
  %9271 = vmatprep.subr.mxu0 0.0
  %9272 = vmatpush1.msra.mxu0 0.0
  %9273 = vmatprep.subr.mxu0 0.0
  %9274 = vmatpush1.msra.mxu0 0.0
  %9275 = vmatprep.subr.mxu0 0.0
  %9276 = vmatpush1.msra.mxu0 0.0
  %9277 = vmatprep.subr.mxu0 0.0
  %9278 = vmatpush1.msra.mxu0 0.0
  %9279 = vmatprep.subr.mxu0 0.0
  %9280 = vmatpush1.msra.mxu0 0.0
  %9281 = vmatprep.subr.mxu0 0.0
  %9282 = vmatpush1.msra.mxu0 0.0
  %9283 = vmatprep.subr.mxu0 0.0
  %9284 = vmatpush1.msra.mxu0 0.0
  %9285 = vmatprep.subr.mxu0 0.0
  %9286 = vmatpush1.msra.mxu0 0.0
  %9287 = vmatprep.subr.mxu0 0.0
  %9288 = vmatpush1.msra.mxu0 0.0
  %9289 = vmatprep.subr.mxu0 0.0
  %9290 = vmatpush1.msra.mxu0 0.0
  %9291 = vmatprep.subr.mxu0 0.0
  %9292 = vmatpush1.msra.mxu0 0.0
  %9293 = vmatprep.subr.mxu0 0.0
  %9294 = vmatpush1.msra.mxu0 0.0
  %9295 = vmatprep.subr.mxu0 0.0
  %9296 = vmatpush1.msra.mxu0 0.0
  %9297 = vmatprep.subr.mxu0 0.0
  %9298 = vmatpush1.msra.mxu0 0.0
  %9299 = vmatprep.subr.mxu0 0.0
  %9300 = vmatpush1.msra.mxu0 0.0
  %9301 = vmatprep.subr.mxu0 0.0
  %9302 = vmatpush1.msra.mxu0 0.0
  %9303 = vmatprep.subr.mxu0 0.0
  %9304 = vmatpush1.msra.mxu0 0.0
  %9305 = vmatprep.subr.mxu0 0.0
  %9306 = vmatpush1.msra.mxu0 0.0
  %9307 = vmatprep.subr.mxu0 0.0
  %9308 = vmatpush1.msra.mxu0 0.0
  %9309 = vmatprep.subr.mxu0 0.0
  %9310 = vmatpush1.msra.mxu0 0.0
  %9311 = vmatprep.subr.mxu0 0.0
  %9312 = vmatpush1.msra.mxu0 0.0
  %9313 = vmatprep.subr.mxu0 0.0
  %9314 = vmatpush1.msra.mxu0 0.0
  %9315 = vmatprep.subr.mxu0 0.0
  %9316 = vmatpush1.msra.mxu0 0.0
  %9317 = vmatprep.subr.mxu0 0.0
  %9318 = vmatpush1.msra.mxu0 0.0
  %9319 = vmatprep.subr.mxu0 0.0
  %9320 = vmatpush1.msra.mxu0 0.0
  %9321 = vmatprep.subr.mxu0 0.0
  %9322 = vmatpush1.msra.mxu0 0.0
  %9323 = vmatprep.subr.mxu0 0.0
  %9324 = vmatpush1.msra.mxu0 0.0
  %9325 = vmatprep.mubr.f32.mxu0 0.0
  %v9326 = vand.u32 %v8852, 4294901760
  %9327 = vmatmul.mubr.f32.gmra.mrb[0].mxu0 %v9326
  %v9328 = vpop.f32.mrb[0].mxu0
  %v9329 = vadd.f32 %v9230, %v9328
  %v9330 = vpop.f32.mrb[0].mxu0
  %9331 = vmatprep.mubr.f32.mxu0 0.0
  %v9332 = vand.u32 %v8855, 4294901760
  %9333 = vmatmul.mubr.f32.gmra.mrb[0].mxu0 %v9332
  %v9334 = vpop.f32.mrb[0].mxu0
  %v9335 = vadd.f32 %v9238, %v9334
  %v9336 = vpop.f32.mrb[0].mxu0
  %9337 = vmatprep.mubr.f32.mxu0 0.0
  %v9338 = vand.u32 %v8858, 4294901760
  %9339 = vmatmul.mubr.f32.gmra.mrb[0].mxu0 %v9338
  %v9340 = vpop.f32.mrb[0].mxu0
  %v9341 = vadd.f32 %v9246, %v9340
  %v9342 = vpop.f32.mrb[0].mxu0
  %9343 = vdwg.mxu0
  %9344 = vmatprep.subr.mxu0 0.0
  %v9345 = vand.u32 %v8842, 4294901760
  %9346 = vmatpush1.msra.mxu0 %v9345
  %9347 = vmatprep.subr.mxu0 0.0
  %v9348 = vand.u32 %v8843, 4294901760
  %9349 = vmatpush1.msra.mxu0 %v9348
  %9350 = vmatprep.subr.mxu0 0.0
  %v9351 = vand.u32 %v8844, 4294901760
  %9352 = vmatpush1.msra.mxu0 %v9351
  %9353 = vmatprep.subr.mxu0 0.0
  %v9354 = vand.u32 %v8845, 4294901760
  %9355 = vmatpush1.msra.mxu0 %v9354
  %9356 = vmatprep.subr.mxu0 0.0
  %9357 = vmatpush1.msra.mxu0 0.0
  %9358 = vmatprep.subr.mxu0 0.0
  %9359 = vmatpush1.msra.mxu0 0.0
  %9360 = vmatprep.subr.mxu0 0.0
  %9361 = vmatpush1.msra.mxu0 0.0
  %9362 = vmatprep.subr.mxu0 0.0
  %9363 = vmatpush1.msra.mxu0 0.0
  %9364 = vmatprep.subr.mxu0 0.0
  %9365 = vmatpush1.msra.mxu0 0.0
  %9366 = vmatprep.subr.mxu0 0.0
  %9367 = vmatpush1.msra.mxu0 0.0
  %9368 = vmatprep.subr.mxu0 0.0
  %9369 = vmatpush1.msra.mxu0 0.0
  %9370 = vmatprep.subr.mxu0 0.0
  %9371 = vmatpush1.msra.mxu0 0.0
  %9372 = vmatprep.subr.mxu0 0.0
  %9373 = vmatpush1.msra.mxu0 0.0
  %9374 = vmatprep.subr.mxu0 0.0
  %9375 = vmatpush1.msra.mxu0 0.0
  %9376 = vmatprep.subr.mxu0 0.0
  %9377 = vmatpush1.msra.mxu0 0.0
  %9378 = vmatprep.subr.mxu0 0.0
  %9379 = vmatpush1.msra.mxu0 0.0
  %9380 = vmatprep.subr.mxu0 0.0
  %9381 = vmatpush1.msra.mxu0 0.0
  %9382 = vmatprep.subr.mxu0 0.0
  %9383 = vmatpush1.msra.mxu0 0.0
  %9384 = vmatprep.subr.mxu0 0.0
  %9385 = vmatpush1.msra.mxu0 0.0
  %9386 = vmatprep.subr.mxu0 0.0
  %9387 = vmatpush1.msra.mxu0 0.0
  %9388 = vmatprep.subr.mxu0 0.0
  %9389 = vmatpush1.msra.mxu0 0.0
  %9390 = vmatprep.subr.mxu0 0.0
  %9391 = vmatpush1.msra.mxu0 0.0
  %9392 = vmatprep.subr.mxu0 0.0
  %9393 = vmatpush1.msra.mxu0 0.0
  %9394 = vmatprep.subr.mxu0 0.0
  %9395 = vmatpush1.msra.mxu0 0.0
  %9396 = vmatprep.subr.mxu0 0.0
  %9397 = vmatpush1.msra.mxu0 0.0
  %9398 = vmatprep.subr.mxu0 0.0
  %9399 = vmatpush1.msra.mxu0 0.0
  %9400 = vmatprep.subr.mxu0 0.0
  %9401 = vmatpush1.msra.mxu0 0.0
  %9402 = vmatprep.subr.mxu0 0.0
  %9403 = vmatpush1.msra.mxu0 0.0
  %9404 = vmatprep.subr.mxu0 0.0
  %9405 = vmatpush1.msra.mxu0 0.0
  %9406 = vmatprep.subr.mxu0 0.0
  %9407 = vmatpush1.msra.mxu0 0.0
  %9408 = vmatprep.subr.mxu0 0.0
  %9409 = vmatpush1.msra.mxu0 0.0
  %9410 = vmatprep.subr.mxu0 0.0
  %9411 = vmatpush1.msra.mxu0 0.0
  %9412 = vmatprep.mubr.f32.mxu0 0.0
  %v9413 = vand.u32 %v8852, 4294901760
  %9414 = vmatmul.mubr.f32.gmra.mrb[0].mxu0 %v9413
  %v9415 = vpop.f32.mrb[0].mxu0
  %v9416 = vadd.f32 %v9329, %v9415
  %v9417 = vpop.f32.mrb[0].mxu0
  %9418 = vmatprep.mubr.f32.mxu0 0.0
  %v9419 = vand.u32 %v8855, 4294901760
  %9420 = vmatmul.mubr.f32.gmra.mrb[0].mxu0 %v9419
  %v9421 = vpop.f32.mrb[0].mxu0
  %v9422 = vadd.f32 %v9335, %v9421
  %v9423 = vpop.f32.mrb[0].mxu0
  %9424 = vmatprep.mubr.f32.mxu0 0.0
  %v9425 = vand.u32 %v8858, 4294901760
  %9426 = vmatmul.mubr.f32.gmra.mrb[0].mxu0 %v9425
  %v9427 = vpop.f32.mrb[0].mxu0
  %v9428 = vadd.f32 %v9341, %v9427
  %v9429 = vpop.f32.mrb[0].mxu0
  %9430 = vdwg.mxu0
  %v9431 = vmax.f32 %v9416, 0.0
  %v9432 = vmax.f32 %v9422, 0.0
  %v9433 = vmax.f32 %v9428, 0.0
  %v9434 = vld [vmem:[%s1 + $0x220] sm:$0xff]
  %v9435 = vld [vmem:[%s1 + $0x228] sm:$0xff]
  %v9436 = vld [vmem:[%s1 + $0x230] sm:$0xff]
  %v9437 = vld [vmem:[%s1 + $0x238] sm:$0xff]
  %v9438 = vld [vmem:[%s1 + $0x240] sm:$0xff]
  %v9439 = vld [vmem:[%s1 + $0x248] sm:$0xff]
  %v9440 = vld [vmem:[%s1 + $0x250] sm:$0xff]
  %v9441 = vld [vmem:[%s1 + $0x258] sm:$0xff]
  %v9442 = vld [vmem:[%s1 + $0x288] sm:$0x1]
  %v9443 = vlaneseq
  %v9444 = vshrl.u32 %v9443, 7
  %v9445 = vsub.s32 0, %v9444
  %v9446 = vrot.slane %v9442, %v9445
  %v9448 = vsel %vm4716, %v9431, 0
  %v9451 = vsel %vm4716, %v9432, 0
  %v9454 = vsel %vm4716, %v9433, 0
  %9456 = vmatprep.subr.mxu0 0.0
  %v9457 = vand.u32 %v9434, 4294901760
  %9458 = vmatpush1.msra.mxu0 %v9457
  %9459 = vmatprep.subr.mxu0 0.0
  %v9460 = vand.u32 %v9435, 4294901760
  %9461 = vmatpush1.msra.mxu0 %v9460
  %9462 = vmatprep.subr.mxu0 0.0
  %v9463 = vand.u32 %v9436, 4294901760
  %9464 = vmatpush1.msra.mxu0 %v9463
  %9465 = vmatprep.subr.mxu0 0.0
  %v9466 = vand.u32 %v9437, 4294901760
  %9467 = vmatpush1.msra.mxu0 %v9466
  %9468 = vmatprep.subr.mxu0 0.0
  %v9469 = vand.u32 %v9438, 4294901760
  %9470 = vmatpush1.msra.mxu0 %v9469
  %9471 = vmatprep.subr.mxu0 0.0
  %v9472 = vand.u32 %v9439, 4294901760
  %9473 = vmatpush1.msra.mxu0 %v9472
  %9474 = vmatprep.subr.mxu0 0.0
  %v9475 = vand.u32 %v9440, 4294901760
  %9476 = vmatpush1.msra.mxu0 %v9475
  %9477 = vmatprep.subr.mxu0 0.0
  %v9478 = vand.u32 %v9441, 4294901760
  %9479 = vmatpush1.msra.mxu0 %v9478
  %9480 = vmatprep.subr.mxu0 0.0
  %9481 = vmatpush1.msra.mxu0 0.0
  %9482 = vmatprep.subr.mxu0 0.0
  %9483 = vmatpush1.msra.mxu0 0.0
  %9484 = vmatprep.subr.mxu0 0.0
  %9485 = vmatpush1.msra.mxu0 0.0
  %9486 = vmatprep.subr.mxu0 0.0
  %9487 = vmatpush1.msra.mxu0 0.0
  %9488 = vmatprep.subr.mxu0 0.0
  %9489 = vmatpush1.msra.mxu0 0.0
  %9490 = vmatprep.subr.mxu0 0.0
  %9491 = vmatpush1.msra.mxu0 0.0
  %9492 = vmatprep.subr.mxu0 0.0
  %9493 = vmatpush1.msra.mxu0 0.0
  %9494 = vmatprep.subr.mxu0 0.0
  %9495 = vmatpush1.msra.mxu0 0.0
  %9496 = vmatprep.subr.mxu0 0.0
  %9497 = vmatpush1.msra.mxu0 0.0
  %9498 = vmatprep.subr.mxu0 0.0
  %9499 = vmatpush1.msra.mxu0 0.0
  %9500 = vmatprep.subr.mxu0 0.0
  %9501 = vmatpush1.msra.mxu0 0.0
  %9502 = vmatprep.subr.mxu0 0.0
  %9503 = vmatpush1.msra.mxu0 0.0
  %9504 = vmatprep.subr.mxu0 0.0
  %9505 = vmatpush1.msra.mxu0 0.0
  %9506 = vmatprep.subr.mxu0 0.0
  %9507 = vmatpush1.msra.mxu0 0.0
  %9508 = vmatprep.subr.mxu0 0.0
  %9509 = vmatpush1.msra.mxu0 0.0
  %9510 = vmatprep.subr.mxu0 0.0
  %9511 = vmatpush1.msra.mxu0 0.0
  %9512 = vmatprep.subr.mxu0 0.0
  %9513 = vmatpush1.msra.mxu0 0.0
  %9514 = vmatprep.subr.mxu0 0.0
  %9515 = vmatpush1.msra.mxu0 0.0
  %9516 = vmatprep.subr.mxu0 0.0
  %9517 = vmatpush1.msra.mxu0 0.0
  %9518 = vmatprep.subr.mxu0 0.0
  %9519 = vmatpush1.msra.mxu0 0.0
  %9520 = vmatprep.subr.mxu0 0.0
  %9521 = vmatpush1.msra.mxu0 0.0
  %9522 = vmatprep.subr.mxu0 0.0
  %9523 = vmatpush1.msra.mxu0 0.0
  %9524 = vmatprep.subr.mxu0 0.0
  %9525 = vmatpush1.msra.mxu0 0.0
  %9526 = vmatprep.subr.mxu0 0.0
  %9527 = vmatpush1.msra.mxu0 0.0
  %9528 = vmatprep.mubr.f32.mxu0 0.0
  %v9529 = vand.u32 %v9448, 4294901760
  %v9530 = vsub.f32 %v9448, %v9529
  %v9531 = vand.u32 %v9530, 4294901760
  %v9532 = vsub.f32 %v9530, %v9531
  %v9533 = vand.u32 %v9532, 4294901760
  %9534 = vmatmul.mubr.f32.gmra.mrb[0].mxu0 %v9533
  %v9535 = vpop.f32.mrb[0].mxu0
  %v9536 = vadd.f32 %v9446, %v9535
  %v9537 = vpop.f32.mrb[0].mxu0
  %9538 = vmatprep.mubr.f32.mxu0 0.0
  %v9539 = vand.u32 %v9451, 4294901760
  %v9540 = vsub.f32 %v9451, %v9539
  %v9541 = vand.u32 %v9540, 4294901760
  %v9542 = vsub.f32 %v9540, %v9541
  %v9543 = vand.u32 %v9542, 4294901760
  %9544 = vmatmul.mubr.f32.gmra.mrb[0].mxu0 %v9543
  %v9545 = vpop.f32.mrb[0].mxu0
  %v9546 = vadd.f32 %v9446, %v9545
  %v9547 = vpop.f32.mrb[0].mxu0
  %9548 = vmatprep.mubr.f32.mxu0 0.0
  %v9549 = vand.u32 %v9454, 4294901760
  %v9550 = vsub.f32 %v9454, %v9549
  %v9551 = vand.u32 %v9550, 4294901760
  %v9552 = vsub.f32 %v9550, %v9551
  %v9553 = vand.u32 %v9552, 4294901760
  %9554 = vmatmul.mubr.f32.gmra.mrb[0].mxu0 %v9553
  %v9555 = vpop.f32.mrb[0].mxu0
  %v9556 = vadd.f32 %v9446, %v9555
  %v9557 = vpop.f32.mrb[0].mxu0
  %9558 = vdwg.mxu0
  %9559 = vmatprep.subr.mxu0 0.0
  %v9560 = vand.u32 %v9434, 4294901760
  %v9561 = vsub.f32 %v9434, %v9560
  %v9562 = vand.u32 %v9561, 4294901760
  %v9563 = vsub.f32 %v9561, %v9562
  %v9564 = vand.u32 %v9563, 4294901760
  %9565 = vmatpush1.msra.mxu0 %v9564
  %9566 = vmatprep.subr.mxu0 0.0
  %v9567 = vand.u32 %v9435, 4294901760
  %v9568 = vsub.f32 %v9435, %v9567
  %v9569 = vand.u32 %v9568, 4294901760
  %v9570 = vsub.f32 %v9568, %v9569
  %v9571 = vand.u32 %v9570, 4294901760
  %9572 = vmatpush1.msra.mxu0 %v9571
  %9573 = vmatprep.subr.mxu0 0.0
  %v9574 = vand.u32 %v9436, 4294901760
  %v9575 = vsub.f32 %v9436, %v9574
  %v9576 = vand.u32 %v9575, 4294901760
  %v9577 = vsub.f32 %v9575, %v9576
  %v9578 = vand.u32 %v9577, 4294901760
  %9579 = vmatpush1.msra.mxu0 %v9578
  %9580 = vmatprep.subr.mxu0 0.0
  %v9581 = vand.u32 %v9437, 4294901760
  %v9582 = vsub.f32 %v9437, %v9581
  %v9583 = vand.u32 %v9582, 4294901760
  %v9584 = vsub.f32 %v9582, %v9583
  %v9585 = vand.u32 %v9584, 4294901760
  %9586 = vmatpush1.msra.mxu0 %v9585
  %9587 = vmatprep.subr.mxu0 0.0
  %v9588 = vand.u32 %v9438, 4294901760
  %v9589 = vsub.f32 %v9438, %v9588
  %v9590 = vand.u32 %v9589, 4294901760
  %v9591 = vsub.f32 %v9589, %v9590
  %v9592 = vand.u32 %v9591, 4294901760
  %9593 = vmatpush1.msra.mxu0 %v9592
  %9594 = vmatprep.subr.mxu0 0.0
  %v9595 = vand.u32 %v9439, 4294901760
  %v9596 = vsub.f32 %v9439, %v9595
  %v9597 = vand.u32 %v9596, 4294901760
  %v9598 = vsub.f32 %v9596, %v9597
  %v9599 = vand.u32 %v9598, 4294901760
  %9600 = vmatpush1.msra.mxu0 %v9599
  %9601 = vmatprep.subr.mxu0 0.0
  %v9602 = vand.u32 %v9440, 4294901760
  %v9603 = vsub.f32 %v9440, %v9602
  %v9604 = vand.u32 %v9603, 4294901760
  %v9605 = vsub.f32 %v9603, %v9604
  %v9606 = vand.u32 %v9605, 4294901760
  %9607 = vmatpush1.msra.mxu0 %v9606
  %9608 = vmatprep.subr.mxu0 0.0
  %v9609 = vand.u32 %v9441, 4294901760
  %v9610 = vsub.f32 %v9441, %v9609
  %v9611 = vand.u32 %v9610, 4294901760
  %v9612 = vsub.f32 %v9610, %v9611
  %v9613 = vand.u32 %v9612, 4294901760
  %9614 = vmatpush1.msra.mxu0 %v9613
  %9615 = vmatprep.subr.mxu0 0.0
  %9616 = vmatpush1.msra.mxu0 0.0
  %9617 = vmatprep.subr.mxu0 0.0
  %9618 = vmatpush1.msra.mxu0 0.0
  %9619 = vmatprep.subr.mxu0 0.0
  %9620 = vmatpush1.msra.mxu0 0.0
  %9621 = vmatprep.subr.mxu0 0.0
  %9622 = vmatpush1.msra.mxu0 0.0
  %9623 = vmatprep.subr.mxu0 0.0
  %9624 = vmatpush1.msra.mxu0 0.0
  %9625 = vmatprep.subr.mxu0 0.0
  %9626 = vmatpush1.msra.mxu0 0.0
  %9627 = vmatprep.subr.mxu0 0.0
  %9628 = vmatpush1.msra.mxu0 0.0
  %9629 = vmatprep.subr.mxu0 0.0
  %9630 = vmatpush1.msra.mxu0 0.0
  %9631 = vmatprep.subr.mxu0 0.0
  %9632 = vmatpush1.msra.mxu0 0.0
  %9633 = vmatprep.subr.mxu0 0.0
  %9634 = vmatpush1.msra.mxu0 0.0
  %9635 = vmatprep.subr.mxu0 0.0
  %9636 = vmatpush1.msra.mxu0 0.0
  %9637 = vmatprep.subr.mxu0 0.0
  %9638 = vmatpush1.msra.mxu0 0.0
  %9639 = vmatprep.subr.mxu0 0.0
  %9640 = vmatpush1.msra.mxu0 0.0
  %9641 = vmatprep.subr.mxu0 0.0
  %9642 = vmatpush1.msra.mxu0 0.0
  %9643 = vmatprep.subr.mxu0 0.0
  %9644 = vmatpush1.msra.mxu0 0.0
  %9645 = vmatprep.subr.mxu0 0.0
  %9646 = vmatpush1.msra.mxu0 0.0
  %9647 = vmatprep.subr.mxu0 0.0
  %9648 = vmatpush1.msra.mxu0 0.0
  %9649 = vmatprep.subr.mxu0 0.0
  %9650 = vmatpush1.msra.mxu0 0.0
  %9651 = vmatprep.subr.mxu0 0.0
  %9652 = vmatpush1.msra.mxu0 0.0
  %9653 = vmatprep.subr.mxu0 0.0
  %9654 = vmatpush1.msra.mxu0 0.0
  %9655 = vmatprep.subr.mxu0 0.0
  %9656 = vmatpush1.msra.mxu0 0.0
  %9657 = vmatprep.subr.mxu0 0.0
  %9658 = vmatpush1.msra.mxu0 0.0
  %9659 = vmatprep.subr.mxu0 0.0
  %9660 = vmatpush1.msra.mxu0 0.0
  %9661 = vmatprep.subr.mxu0 0.0
  %9662 = vmatpush1.msra.mxu0 0.0
  %9663 = vmatprep.mubr.f32.mxu0 0.0
  %v9664 = vand.u32 %v9448, 4294901760
  %9665 = vmatmul.mubr.f32.gmra.mrb[0].mxu0 %v9664
  %v9666 = vpop.f32.mrb[0].mxu0
  %v9667 = vadd.f32 %v9536, %v9666
  %v9668 = vpop.f32.mrb[0].mxu0
  %9669 = vmatprep.mubr.f32.mxu0 0.0
  %v9670 = vand.u32 %v9451, 4294901760
  %9671 = vmatmul.mubr.f32.gmra.mrb[0].mxu0 %v9670
  %v9672 = vpop.f32.mrb[0].mxu0
  %v9673 = vadd.f32 %v9546, %v9672
  %v9674 = vpop.f32.mrb[0].mxu0
  %9675 = vmatprep.mubr.f32.mxu0 0.0
  %v9676 = vand.u32 %v9454, 4294901760
  %9677 = vmatmul.mubr.f32.gmra.mrb[0].mxu0 %v9676
  %v9678 = vpop.f32.mrb[0].mxu0
  %v9679 = vadd.f32 %v9556, %v9678
  %v9680 = vpop.f32.mrb[0].mxu0
  %9681 = vdwg.mxu0
  %9682 = vmatprep.subr.mxu0 0.0
  %v9683 = vand.u32 %v9434, 4294901760
  %v9684 = vsub.f32 %v9434, %v9683
  %9685 = vmatpush1.msra.mxu0 %v9684
  %9686 = vmatprep.subr.mxu0 0.0
  %v9687 = vand.u32 %v9435, 4294901760
  %v9688 = vsub.f32 %v9435, %v9687
  %9689 = vmatpush1.msra.mxu0 %v9688
  %9690 = vmatprep.subr.mxu0 0.0
  %v9691 = vand.u32 %v9436, 4294901760
  %v9692 = vsub.f32 %v9436, %v9691
  %9693 = vmatpush1.msra.mxu0 %v9692
  %9694 = vmatprep.subr.mxu0 0.0
  %v9695 = vand.u32 %v9437, 4294901760
  %v9696 = vsub.f32 %v9437, %v9695
  %9697 = vmatpush1.msra.mxu0 %v9696
  %9698 = vmatprep.subr.mxu0 0.0
  %v9699 = vand.u32 %v9438, 4294901760
  %v9700 = vsub.f32 %v9438, %v9699
  %9701 = vmatpush1.msra.mxu0 %v9700
  %9702 = vmatprep.subr.mxu0 0.0
  %v9703 = vand.u32 %v9439, 4294901760
  %v9704 = vsub.f32 %v9439, %v9703
  %9705 = vmatpush1.msra.mxu0 %v9704
  %9706 = vmatprep.subr.mxu0 0.0
  %v9707 = vand.u32 %v9440, 4294901760
  %v9708 = vsub.f32 %v9440, %v9707
  %9709 = vmatpush1.msra.mxu0 %v9708
  %9710 = vmatprep.subr.mxu0 0.0
  %v9711 = vand.u32 %v9441, 4294901760
  %v9712 = vsub.f32 %v9441, %v9711
  %9713 = vmatpush1.msra.mxu0 %v9712
  %9714 = vmatprep.subr.mxu0 0.0
  %9715 = vmatpush1.msra.mxu0 0.0
  %9716 = vmatprep.subr.mxu0 0.0
  %9717 = vmatpush1.msra.mxu0 0.0
  %9718 = vmatprep.subr.mxu0 0.0
  %9719 = vmatpush1.msra.mxu0 0.0
  %9720 = vmatprep.subr.mxu0 0.0
  %9721 = vmatpush1.msra.mxu0 0.0
  %9722 = vmatprep.subr.mxu0 0.0
  %9723 = vmatpush1.msra.mxu0 0.0
  %9724 = vmatprep.subr.mxu0 0.0
  %9725 = vmatpush1.msra.mxu0 0.0
  %9726 = vmatprep.subr.mxu0 0.0
  %9727 = vmatpush1.msra.mxu0 0.0
  %9728 = vmatprep.subr.mxu0 0.0
  %9729 = vmatpush1.msra.mxu0 0.0
  %9730 = vmatprep.subr.mxu0 0.0
  %9731 = vmatpush1.msra.mxu0 0.0
  %9732 = vmatprep.subr.mxu0 0.0
  %9733 = vmatpush1.msra.mxu0 0.0
  %9734 = vmatprep.subr.mxu0 0.0
  %9735 = vmatpush1.msra.mxu0 0.0
  %9736 = vmatprep.subr.mxu0 0.0
  %9737 = vmatpush1.msra.mxu0 0.0
  %9738 = vmatprep.subr.mxu0 0.0
  %9739 = vmatpush1.msra.mxu0 0.0
  %9740 = vmatprep.subr.mxu0 0.0
  %9741 = vmatpush1.msra.mxu0 0.0
  %9742 = vmatprep.subr.mxu0 0.0
  %9743 = vmatpush1.msra.mxu0 0.0
  %9744 = vmatprep.subr.mxu0 0.0
  %9745 = vmatpush1.msra.mxu0 0.0
  %9746 = vmatprep.subr.mxu0 0.0
  %9747 = vmatpush1.msra.mxu0 0.0
  %9748 = vmatprep.subr.mxu0 0.0
  %9749 = vmatpush1.msra.mxu0 0.0
  %9750 = vmatprep.subr.mxu0 0.0
  %9751 = vmatpush1.msra.mxu0 0.0
  %9752 = vmatprep.subr.mxu0 0.0
  %9753 = vmatpush1.msra.mxu0 0.0
  %9754 = vmatprep.subr.mxu0 0.0
  %9755 = vmatpush1.msra.mxu0 0.0
  %9756 = vmatprep.subr.mxu0 0.0
  %9757 = vmatpush1.msra.mxu0 0.0
  %9758 = vmatprep.subr.mxu0 0.0
  %9759 = vmatpush1.msra.mxu0 0.0
  %9760 = vmatprep.subr.mxu0 0.0
  %9761 = vmatpush1.msra.mxu0 0.0
  %9762 = vmatprep.mubr.f32.mxu0 0.0
  %v9763 = vand.u32 %v9448, 4294901760
  %v9764 = vsub.f32 %v9448, %v9763
  %9765 = vmatmul.mubr.f32.gmra.mrb[0].mxu0 %v9764
  %v9766 = vpop.f32.mrb[0].mxu0
  %v9767 = vadd.f32 %v9667, %v9766
  %v9768 = vpop.f32.mrb[0].mxu0
  %9769 = vmatprep.mubr.f32.mxu0 0.0
  %v9770 = vand.u32 %v9451, 4294901760
  %v9771 = vsub.f32 %v9451, %v9770
  %9772 = vmatmul.mubr.f32.gmra.mrb[0].mxu0 %v9771
  %v9773 = vpop.f32.mrb[0].mxu0
  %v9774 = vadd.f32 %v9673, %v9773
  %v9775 = vpop.f32.mrb[0].mxu0
  %9776 = vmatprep.mubr.f32.mxu0 0.0
  %v9777 = vand.u32 %v9454, 4294901760
  %v9778 = vsub.f32 %v9454, %v9777
  %9779 = vmatmul.mubr.f32.gmra.mrb[0].mxu0 %v9778
  %v9780 = vpop.f32.mrb[0].mxu0
  %v9781 = vadd.f32 %v9679, %v9780
  %v9782 = vpop.f32.mrb[0].mxu0
  %9783 = vdwg.mxu0
  %9784 = vmatprep.subr.mxu0 0.0
  %v9785 = vand.u32 %v9434, 4294901760
  %9786 = vmatpush1.msra.mxu0 %v9785
  %9787 = vmatprep.subr.mxu0 0.0
  %v9788 = vand.u32 %v9435, 4294901760
  %9789 = vmatpush1.msra.mxu0 %v9788
  %9790 = vmatprep.subr.mxu0 0.0
  %v9791 = vand.u32 %v9436, 4294901760
  %9792 = vmatpush1.msra.mxu0 %v9791
  %9793 = vmatprep.subr.mxu0 0.0
  %v9794 = vand.u32 %v9437, 4294901760
  %9795 = vmatpush1.msra.mxu0 %v9794
  %9796 = vmatprep.subr.mxu0 0.0
  %v9797 = vand.u32 %v9438, 4294901760
  %9798 = vmatpush1.msra.mxu0 %v9797
  %9799 = vmatprep.subr.mxu0 0.0
  %v9800 = vand.u32 %v9439, 4294901760
  %9801 = vmatpush1.msra.mxu0 %v9800
  %9802 = vmatprep.subr.mxu0 0.0
  %v9803 = vand.u32 %v9440, 4294901760
  %9804 = vmatpush1.msra.mxu0 %v9803
  %9805 = vmatprep.subr.mxu0 0.0
  %v9806 = vand.u32 %v9441, 4294901760
  %9807 = vmatpush1.msra.mxu0 %v9806
  %9808 = vmatprep.subr.mxu0 0.0
  %9809 = vmatpush1.msra.mxu0 0.0
  %9810 = vmatprep.subr.mxu0 0.0
  %9811 = vmatpush1.msra.mxu0 0.0
  %9812 = vmatprep.subr.mxu0 0.0
  %9813 = vmatpush1.msra.mxu0 0.0
  %9814 = vmatprep.subr.mxu0 0.0
  %9815 = vmatpush1.msra.mxu0 0.0
  %9816 = vmatprep.subr.mxu0 0.0
  %9817 = vmatpush1.msra.mxu0 0.0
  %9818 = vmatprep.subr.mxu0 0.0
  %9819 = vmatpush1.msra.mxu0 0.0
  %9820 = vmatprep.subr.mxu0 0.0
  %9821 = vmatpush1.msra.mxu0 0.0
  %9822 = vmatprep.subr.mxu0 0.0
  %9823 = vmatpush1.msra.mxu0 0.0
  %9824 = vmatprep.subr.mxu0 0.0
  %9825 = vmatpush1.msra.mxu0 0.0
  %9826 = vmatprep.subr.mxu0 0.0
  %9827 = vmatpush1.msra.mxu0 0.0
  %9828 = vmatprep.subr.mxu0 0.0
  %9829 = vmatpush1.msra.mxu0 0.0
  %9830 = vmatprep.subr.mxu0 0.0
  %9831 = vmatpush1.msra.mxu0 0.0
  %9832 = vmatprep.subr.mxu0 0.0
  %9833 = vmatpush1.msra.mxu0 0.0
  %9834 = vmatprep.subr.mxu0 0.0
  %9835 = vmatpush1.msra.mxu0 0.0
  %9836 = vmatprep.subr.mxu0 0.0
  %9837 = vmatpush1.msra.mxu0 0.0
  %9838 = vmatprep.subr.mxu0 0.0
  %9839 = vmatpush1.msra.mxu0 0.0
  %9840 = vmatprep.subr.mxu0 0.0
  %9841 = vmatpush1.msra.mxu0 0.0
  %9842 = vmatprep.subr.mxu0 0.0
  %9843 = vmatpush1.msra.mxu0 0.0
  %9844 = vmatprep.subr.mxu0 0.0
  %9845 = vmatpush1.msra.mxu0 0.0
  %9846 = vmatprep.subr.mxu0 0.0
  %9847 = vmatpush1.msra.mxu0 0.0
  %9848 = vmatprep.subr.mxu0 0.0
  %9849 = vmatpush1.msra.mxu0 0.0
  %9850 = vmatprep.subr.mxu0 0.0
  %9851 = vmatpush1.msra.mxu0 0.0
  %9852 = vmatprep.subr.mxu0 0.0
  %9853 = vmatpush1.msra.mxu0 0.0
  %9854 = vmatprep.subr.mxu0 0.0
  %9855 = vmatpush1.msra.mxu0 0.0
  %9856 = vmatprep.mubr.f32.mxu0 0.0
  %v9857 = vand.u32 %v9448, 4294901760
  %v9858 = vsub.f32 %v9448, %v9857
  %v9859 = vand.u32 %v9858, 4294901760
  %9860 = vmatmul.mubr.f32.gmra.mrb[0].mxu0 %v9859
  %v9861 = vpop.f32.mrb[0].mxu0
  %v9862 = vadd.f32 %v9767, %v9861
  %v9863 = vpop.f32.mrb[0].mxu0
  %9864 = vmatprep.mubr.f32.mxu0 0.0
  %v9865 = vand.u32 %v9451, 4294901760
  %v9866 = vsub.f32 %v9451, %v9865
  %v9867 = vand.u32 %v9866, 4294901760
  %9868 = vmatmul.mubr.f32.gmra.mrb[0].mxu0 %v9867
  %v9869 = vpop.f32.mrb[0].mxu0
  %v9870 = vadd.f32 %v9774, %v9869
  %v9871 = vpop.f32.mrb[0].mxu0
  %9872 = vmatprep.mubr.f32.mxu0 0.0
  %v9873 = vand.u32 %v9454, 4294901760
  %v9874 = vsub.f32 %v9454, %v9873
  %v9875 = vand.u32 %v9874, 4294901760
  %9876 = vmatmul.mubr.f32.gmra.mrb[0].mxu0 %v9875
  %v9877 = vpop.f32.mrb[0].mxu0
  %v9878 = vadd.f32 %v9781, %v9877
  %v9879 = vpop.f32.mrb[0].mxu0
  %9880 = vdwg.mxu0
  %9881 = vmatprep.subr.mxu0 0.0
  %v9882 = vand.u32 %v9434, 4294901760
  %v9883 = vsub.f32 %v9434, %v9882
  %v9884 = vand.u32 %v9883, 4294901760
  %9885 = vmatpush1.msra.mxu0 %v9884
  %9886 = vmatprep.subr.mxu0 0.0
  %v9887 = vand.u32 %v9435, 4294901760
  %v9888 = vsub.f32 %v9435, %v9887
  %v9889 = vand.u32 %v9888, 4294901760
  %9890 = vmatpush1.msra.mxu0 %v9889
  %9891 = vmatprep.subr.mxu0 0.0
  %v9892 = vand.u32 %v9436, 4294901760
  %v9893 = vsub.f32 %v9436, %v9892
  %v9894 = vand.u32 %v9893, 4294901760
  %9895 = vmatpush1.msra.mxu0 %v9894
  %9896 = vmatprep.subr.mxu0 0.0
  %v9897 = vand.u32 %v9437, 4294901760
  %v9898 = vsub.f32 %v9437, %v9897
  %v9899 = vand.u32 %v9898, 4294901760
  %9900 = vmatpush1.msra.mxu0 %v9899
  %9901 = vmatprep.subr.mxu0 0.0
  %v9902 = vand.u32 %v9438, 4294901760
  %v9903 = vsub.f32 %v9438, %v9902
  %v9904 = vand.u32 %v9903, 4294901760
  %9905 = vmatpush1.msra.mxu0 %v9904
  %9906 = vmatprep.subr.mxu0 0.0
  %v9907 = vand.u32 %v9439, 4294901760
  %v9908 = vsub.f32 %v9439, %v9907
  %v9909 = vand.u32 %v9908, 4294901760
  %9910 = vmatpush1.msra.mxu0 %v9909
  %9911 = vmatprep.subr.mxu0 0.0
  %v9912 = vand.u32 %v9440, 4294901760
  %v9913 = vsub.f32 %v9440, %v9912
  %v9914 = vand.u32 %v9913, 4294901760
  %9915 = vmatpush1.msra.mxu0 %v9914
  %9916 = vmatprep.subr.mxu0 0.0
  %v9917 = vand.u32 %v9441, 4294901760
  %v9918 = vsub.f32 %v9441, %v9917
  %v9919 = vand.u32 %v9918, 4294901760
  %9920 = vmatpush1.msra.mxu0 %v9919
  %9921 = vmatprep.subr.mxu0 0.0
  %9922 = vmatpush1.msra.mxu0 0.0
  %9923 = vmatprep.subr.mxu0 0.0
  %9924 = vmatpush1.msra.mxu0 0.0
  %9925 = vmatprep.subr.mxu0 0.0
  %9926 = vmatpush1.msra.mxu0 0.0
  %9927 = vmatprep.subr.mxu0 0.0
  %9928 = vmatpush1.msra.mxu0 0.0
  %9929 = vmatprep.subr.mxu0 0.0
  %9930 = vmatpush1.msra.mxu0 0.0
  %9931 = vmatprep.subr.mxu0 0.0
  %9932 = vmatpush1.msra.mxu0 0.0
  %9933 = vmatprep.subr.mxu0 0.0
  %9934 = vmatpush1.msra.mxu0 0.0
  %9935 = vmatprep.subr.mxu0 0.0
  %9936 = vmatpush1.msra.mxu0 0.0
  %9937 = vmatprep.subr.mxu0 0.0
  %9938 = vmatpush1.msra.mxu0 0.0
  %9939 = vmatprep.subr.mxu0 0.0
  %9940 = vmatpush1.msra.mxu0 0.0
  %9941 = vmatprep.subr.mxu0 0.0
  %9942 = vmatpush1.msra.mxu0 0.0
  %9943 = vmatprep.subr.mxu0 0.0
  %9944 = vmatpush1.msra.mxu0 0.0
  %9945 = vmatprep.subr.mxu0 0.0
  %9946 = vmatpush1.msra.mxu0 0.0
  %9947 = vmatprep.subr.mxu0 0.0
  %9948 = vmatpush1.msra.mxu0 0.0
  %9949 = vmatprep.subr.mxu0 0.0
  %9950 = vmatpush1.msra.mxu0 0.0
  %9951 = vmatprep.subr.mxu0 0.0
  %9952 = vmatpush1.msra.mxu0 0.0
  %9953 = vmatprep.subr.mxu0 0.0
  %9954 = vmatpush1.msra.mxu0 0.0
  %9955 = vmatprep.subr.mxu0 0.0
  %9956 = vmatpush1.msra.mxu0 0.0
  %9957 = vmatprep.subr.mxu0 0.0
  %9958 = vmatpush1.msra.mxu0 0.0
  %9959 = vmatprep.subr.mxu0 0.0
  %9960 = vmatpush1.msra.mxu0 0.0
  %9961 = vmatprep.subr.mxu0 0.0
  %9962 = vmatpush1.msra.mxu0 0.0
  %9963 = vmatprep.subr.mxu0 0.0
  %9964 = vmatpush1.msra.mxu0 0.0
  %9965 = vmatprep.subr.mxu0 0.0
  %9966 = vmatpush1.msra.mxu0 0.0
  %9967 = vmatprep.subr.mxu0 0.0
  %9968 = vmatpush1.msra.mxu0 0.0
  %9969 = vmatprep.mubr.f32.mxu0 0.0
  %v9970 = vand.u32 %v9448, 4294901760
  %9971 = vmatmul.mubr.f32.gmra.mrb[0].mxu0 %v9970
  %v9972 = vpop.f32.mrb[0].mxu0
  %v9973 = vadd.f32 %v9862, %v9972
  %v9974 = vpop.f32.mrb[0].mxu0
  %9975 = vmatprep.mubr.f32.mxu0 0.0
  %v9976 = vand.u32 %v9451, 4294901760
  %9977 = vmatmul.mubr.f32.gmra.mrb[0].mxu0 %v9976
  %v9978 = vpop.f32.mrb[0].mxu0
  %v9979 = vadd.f32 %v9870, %v9978
  %v9980 = vpop.f32.mrb[0].mxu0
  %9981 = vmatprep.mubr.f32.mxu0 0.0
  %v9982 = vand.u32 %v9454, 4294901760
  %9983 = vmatmul.mubr.f32.gmra.mrb[0].mxu0 %v9982
  %v9984 = vpop.f32.mrb[0].mxu0
  %v9985 = vadd.f32 %v9878, %v9984
  %v9986 = vpop.f32.mrb[0].mxu0
  %9987 = vdwg.mxu0
  %9988 = vmatprep.subr.mxu0 0.0
  %v9989 = vand.u32 %v9434, 4294901760
  %9990 = vmatpush1.msra.mxu0 %v9989
  %9991 = vmatprep.subr.mxu0 0.0
  %v9992 = vand.u32 %v9435, 4294901760
  %9993 = vmatpush1.msra.mxu0 %v9992
  %9994 = vmatprep.subr.mxu0 0.0
  %v9995 = vand.u32 %v9436, 4294901760
  %9996 = vmatpush1.msra.mxu0 %v9995
  %9997 = vmatprep.subr.mxu0 0.0
  %v9998 = vand.u32 %v9437, 4294901760
  %9999 = vmatpush1.msra.mxu0 %v9998
  %10000 = vmatprep.subr.mxu0 0.0
  %v10001 = vand.u32 %v9438, 4294901760
  %10002 = vmatpush1.msra.mxu0 %v10001
  %10003 = vmatprep.subr.mxu0 0.0
  %v10004 = vand.u32 %v9439, 4294901760
  %10005 = vmatpush1.msra.mxu0 %v10004
  %10006 = vmatprep.subr.mxu0 0.0
  %v10007 = vand.u32 %v9440, 4294901760
  %10008 = vmatpush1.msra.mxu0 %v10007
  %10009 = vmatprep.subr.mxu0 0.0
  %v10010 = vand.u32 %v9441, 4294901760
  %10011 = vmatpush1.msra.mxu0 %v10010
  %10012 = vmatprep.subr.mxu0 0.0
  %10013 = vmatpush1.msra.mxu0 0.0
  %10014 = vmatprep.subr.mxu0 0.0
  %10015 = vmatpush1.msra.mxu0 0.0
  %10016 = vmatprep.subr.mxu0 0.0
  %10017 = vmatpush1.msra.mxu0 0.0
  %10018 = vmatprep.subr.mxu0 0.0
  %10019 = vmatpush1.msra.mxu0 0.0
  %10020 = vmatprep.subr.mxu0 0.0
  %10021 = vmatpush1.msra.mxu0 0.0
  %10022 = vmatprep.subr.mxu0 0.0
  %10023 = vmatpush1.msra.mxu0 0.0
  %10024 = vmatprep.subr.mxu0 0.0
  %10025 = vmatpush1.msra.mxu0 0.0
  %10026 = vmatprep.subr.mxu0 0.0
  %10027 = vmatpush1.msra.mxu0 0.0
  %10028 = vmatprep.subr.mxu0 0.0
  %10029 = vmatpush1.msra.mxu0 0.0
  %10030 = vmatprep.subr.mxu0 0.0
  %10031 = vmatpush1.msra.mxu0 0.0
  %10032 = vmatprep.subr.mxu0 0.0
  %10033 = vmatpush1.msra.mxu0 0.0
  %10034 = vmatprep.subr.mxu0 0.0
  %10035 = vmatpush1.msra.mxu0 0.0
  %10036 = vmatprep.subr.mxu0 0.0
  %10037 = vmatpush1.msra.mxu0 0.0
  %10038 = vmatprep.subr.mxu0 0.0
  %10039 = vmatpush1.msra.mxu0 0.0
  %10040 = vmatprep.subr.mxu0 0.0
  %10041 = vmatpush1.msra.mxu0 0.0
  %10042 = vmatprep.subr.mxu0 0.0
  %10043 = vmatpush1.msra.mxu0 0.0
  %10044 = vmatprep.subr.mxu0 0.0
  %10045 = vmatpush1.msra.mxu0 0.0
  %10046 = vmatprep.subr.mxu0 0.0
  %10047 = vmatpush1.msra.mxu0 0.0
  %10048 = vmatprep.subr.mxu0 0.0
  %10049 = vmatpush1.msra.mxu0 0.0
  %10050 = vmatprep.subr.mxu0 0.0
  %10051 = vmatpush1.msra.mxu0 0.0
  %10052 = vmatprep.subr.mxu0 0.0
  %10053 = vmatpush1.msra.mxu0 0.0
  %10054 = vmatprep.subr.mxu0 0.0
  %10055 = vmatpush1.msra.mxu0 0.0
  %10056 = vmatprep.subr.mxu0 0.0
  %10057 = vmatpush1.msra.mxu0 0.0
  %10058 = vmatprep.subr.mxu0 0.0
  %10059 = vmatpush1.msra.mxu0 0.0
  %10060 = vmatprep.mubr.f32.mxu0 0.0
  %v10061 = vand.u32 %v9448, 4294901760
  %10062 = vmatmul.mubr.f32.gmra.mrb[0].mxu0 %v10061
  %v10063 = vpop.f32.mrb[0].mxu0
  %v10064 = vadd.f32 %v9973, %v10063
  %v10065 = vpop.f32.mrb[0].mxu0
  %10066 = vmatprep.mubr.f32.mxu0 0.0
  %v10067 = vand.u32 %v9451, 4294901760
  %10068 = vmatmul.mubr.f32.gmra.mrb[0].mxu0 %v10067
  %v10069 = vpop.f32.mrb[0].mxu0
  %v10070 = vadd.f32 %v9979, %v10069
  %v10071 = vpop.f32.mrb[0].mxu0
  %10072 = vmatprep.mubr.f32.mxu0 0.0
  %v10073 = vand.u32 %v9454, 4294901760
  %10074 = vmatmul.mubr.f32.gmra.mrb[0].mxu0 %v10073
  %v10075 = vpop.f32.mrb[0].mxu0
  %v10076 = vadd.f32 %v9985, %v10075
  %v10077 = vpop.f32.mrb[0].mxu0
  %10078 = vdwg.mxu0
  %v10079 = vadd.f32 %v8839, %v10064
  %v10080 = vadd.f32 %v8840, %v10070
  %v10081 = vadd.f32 %v8841, %v10076
  %v10082 = vld [vmem:[%s1 + $0x290] sm:$0x1]
  %v10083 = vld [vmem:[%s1 + $0x298] sm:$0x1]
  %v10084 = vsel %vm598, %v10079, 0.0
  %10085 = vadd.xlane.f32.xlu0 %v10084
  %v10086 = vpop.xlane.xlu0 %10085
  %v10087 = vsel %vm598, %v10080, 0.0
  %10088 = vadd.xlane.f32.xlu0 %v10087
  %v10089 = vpop.xlane.xlu0 %10088
  %v10090 = vsel %vm598, %v10081, 0.0
  %10091 = vadd.xlane.f32.xlu0 %v10090
  %v10092 = vpop.xlane.xlu0 %10091
  %v10093 = vmul.f32 %v10086, %v4066
  %v10094 = vmul.f32 %v10089, %v4066
  %v10095 = vmul.f32 %v10092, %v4066
  %v10096 = vsub.f32 %v10079, %v10093
  %v10097 = vsub.f32 %v10080, %v10094
  %v10098 = vsub.f32 %v10081, %v10095
  %v10099 = vmul.f32 %v10096, %v10096
  %v10100 = vmul.f32 %v10097, %v10097
  %v10101 = vmul.f32 %v10098, %v10098
  %v10102 = vsel %vm598, %v10099, 0.0
  %10103 = vadd.xlane.f32.xlu0 %v10102
  %v10104 = vpop.xlane.xlu0 %10103
  %v10105 = vsel %vm598, %v10100, 0.0
  %10106 = vadd.xlane.f32.xlu0 %v10105
  %v10107 = vpop.xlane.xlu0 %10106
  %v10108 = vsel %vm598, %v10101, 0.0
  %10109 = vadd.xlane.f32.xlu0 %v10108
  %v10110 = vpop.xlane.xlu0 %10109
  %v10111 = vmul.f32 %v10104, %v4066
  %v10112 = vmul.f32 %v10107, %v4066
  %v10113 = vmul.f32 %v10110, %v4066
  %v10114 = vadd.f32 %v10111, 1e-05
  %v10115 = vadd.f32 %v10112, 1e-05
  %v10116 = vadd.f32 %v10113, 1e-05
  %v10117 = vrsqrt.pop %v10114
  %v10118 = vrsqrt.pop %v10115
  %v10119 = vrsqrt.pop %v10116
  %v10120 = vmul.f32 %v10096, %v10117
  %v10121 = vmul.f32 %v10097, %v10118
  %v10122 = vmul.f32 %v10098, %v10119
  %v10123 = vlaneseq
  %v10124 = vshrl.u32 %v10123, 7
  %v10125 = vsub.s32 0, %v10124
  %v10126 = vrot.slane %v10082, %v10125
  %v10127 = vmul.f32 %v10120, %v10126
  %v10128 = vmul.f32 %v10121, %v10126
  %v10129 = vmul.f32 %v10122, %v10126
  %v10130 = vlaneseq
  %v10131 = vshrl.u32 %v10130, 7
  %v10132 = vsub.s32 0, %v10131
  %v10133 = vrot.slane %v10083, %v10132
  %v10134 = vadd.f32 %v10127, %v10133
  %v10135 = vadd.f32 %v10128, %v10133
  %v10136 = vadd.f32 %v10129, %v10133
  %v10137 = vld [vmem:[%s1 + $0xd0] sm:$0x1]
  %v10138 = vld [vmem:[%s1 + $0xd8] sm:$0x1]
  %v10139 = vsel %vm598, %v10134, 0.0
  %10140 = vadd.xlane.f32.xlu0 %v10139
  %v10141 = vpop.xlane.xlu0 %10140
  %v10142 = vsel %vm598, %v10135, 0.0
  %10143 = vadd.xlane.f32.xlu0 %v10142
  %v10144 = vpop.xlane.xlu0 %10143
  %v10145 = vsel %vm598, %v10136, 0.0
  %10146 = vadd.xlane.f32.xlu0 %v10145
  %v10147 = vpop.xlane.xlu0 %10146
  %v10148 = vmul.f32 %v10141, %v4066
  %v10149 = vmul.f32 %v10144, %v4066
  %v10150 = vmul.f32 %v10147, %v4066
  %v10151 = vsub.f32 %v10134, %v10148
  %v10152 = vsub.f32 %v10135, %v10149
  %v10153 = vsub.f32 %v10136, %v10150
  %v10154 = vmul.f32 %v10151, %v10151
  %v10155 = vmul.f32 %v10152, %v10152
  %v10156 = vmul.f32 %v10153, %v10153
  %v10157 = vsel %vm598, %v10154, 0.0
  %10158 = vadd.xlane.f32.xlu0 %v10157
  %v10159 = vpop.xlane.xlu0 %10158
  %v10160 = vsel %vm598, %v10155, 0.0
  %10161 = vadd.xlane.f32.xlu0 %v10160
  %v10162 = vpop.xlane.xlu0 %10161
  %v10163 = vsel %vm598, %v10156, 0.0
  %10164 = vadd.xlane.f32.xlu0 %v10163
  %v10165 = vpop.xlane.xlu0 %10164
  %v10166 = vmul.f32 %v10159, %v4066
  %v10167 = vmul.f32 %v10162, %v4066
  %v10168 = vmul.f32 %v10165, %v4066
  %v10169 = vadd.f32 %v10166, 1e-05
  %v10170 = vadd.f32 %v10167, 1e-05
  %v10171 = vadd.f32 %v10168, 1e-05
  %v10172 = vrsqrt.pop %v10169
  %v10173 = vrsqrt.pop %v10170
  %v10174 = vrsqrt.pop %v10171
  %v10175 = vmul.f32 %v10151, %v10172
  %v10176 = vmul.f32 %v10152, %v10173
  %v10177 = vmul.f32 %v10153, %v10174
  %v10178 = vlaneseq
  %v10179 = vshrl.u32 %v10178, 7
  %v10180 = vsub.s32 0, %v10179
  %v10181 = vrot.slane %v10137, %v10180
  %v10182 = vmul.f32 %v10175, %v10181
  %v10183 = vmul.f32 %v10176, %v10181
  %v10184 = vmul.f32 %v10177, %v10181
  %v10185 = vlaneseq
  %v10186 = vshrl.u32 %v10185, 7
  %v10187 = vsub.s32 0, %v10186
  %v10188 = vrot.slane %v10138, %v10187
  %v10189 = vadd.f32 %v10182, %v10188
  %v10190 = vadd.f32 %v10183, %v10188
  %v10191 = vadd.f32 %v10184, %v10188
  %v10192 = vld [vmem:[%s1 + $0xa0] sm:$0x3]
  %vm10193 = vcmask 195584
  %v10195 = vsel %vm10193, %v10192, 0
  %10197 = vmatprep.subr.mxu0 0.0
  %v10198 = vand.u32 %v10189, 4294901760
  %10199 = vmatpush1.msra.mxu0 %v10198
  %10200 = vmatprep.subr.mxu0 0.0
  %v10201 = vand.u32 %v10190, 4294901760
  %10202 = vmatpush1.msra.mxu0 %v10201
  %10203 = vmatprep.subr.mxu0 0.0
  %v10204 = vand.u32 %v10191, 4294901760
  %10205 = vmatpush1.msra.mxu0 %v10204
  %10206 = vmatprep.subr.mxu0 0.0
  %10207 = vmatpush1.msra.mxu0 0.0
  %10208 = vmatprep.subr.mxu0 0.0
  %10209 = vmatpush1.msra.mxu0 0.0
  %10210 = vmatprep.subr.mxu0 0.0
  %10211 = vmatpush1.msra.mxu0 0.0
  %10212 = vmatprep.subr.mxu0 0.0
  %10213 = vmatpush1.msra.mxu0 0.0
  %10214 = vmatprep.subr.mxu0 0.0
  %10215 = vmatpush1.msra.mxu0 0.0
  %10216 = vmatprep.subr.mxu0 0.0
  %10217 = vmatpush1.msra.mxu0 0.0
  %10218 = vmatprep.subr.mxu0 0.0
  %10219 = vmatpush1.msra.mxu0 0.0
  %10220 = vmatprep.subr.mxu0 0.0
  %10221 = vmatpush1.msra.mxu0 0.0
  %10222 = vmatprep.subr.mxu0 0.0
  %10223 = vmatpush1.msra.mxu0 0.0
  %10224 = vmatprep.subr.mxu0 0.0
  %10225 = vmatpush1.msra.mxu0 0.0
  %10226 = vmatprep.subr.mxu0 0.0
  %10227 = vmatpush1.msra.mxu0 0.0
  %10228 = vmatprep.subr.mxu0 0.0
  %10229 = vmatpush1.msra.mxu0 0.0
  %10230 = vmatprep.subr.mxu0 0.0
  %10231 = vmatpush1.msra.mxu0 0.0
  %10232 = vmatprep.subr.mxu0 0.0
  %10233 = vmatpush1.msra.mxu0 0.0
  %10234 = vmatprep.subr.mxu0 0.0
  %10235 = vmatpush1.msra.mxu0 0.0
  %10236 = vmatprep.subr.mxu0 0.0
  %10237 = vmatpush1.msra.mxu0 0.0
  %10238 = vmatprep.subr.mxu0 0.0
  %10239 = vmatpush1.msra.mxu0 0.0
  %10240 = vmatprep.subr.mxu0 0.0
  %10241 = vmatpush1.msra.mxu0 0.0
  %10242 = vmatprep.subr.mxu0 0.0
  %10243 = vmatpush1.msra.mxu0 0.0
  %10244 = vmatprep.subr.mxu0 0.0
  %10245 = vmatpush1.msra.mxu0 0.0
  %10246 = vmatprep.subr.mxu0 0.0
  %10247 = vmatpush1.msra.mxu0 0.0
  %10248 = vmatprep.subr.mxu0 0.0
  %10249 = vmatpush1.msra.mxu0 0.0
  %10250 = vmatprep.subr.mxu0 0.0
  %10251 = vmatpush1.msra.mxu0 0.0
  %10252 = vmatprep.subr.mxu0 0.0
  %10253 = vmatpush1.msra.mxu0 0.0
  %10254 = vmatprep.subr.mxu0 0.0
  %10255 = vmatpush1.msra.mxu0 0.0
  %10256 = vmatprep.subr.mxu0 0.0
  %10257 = vmatpush1.msra.mxu0 0.0
  %10258 = vmatprep.subr.mxu0 0.0
  %10259 = vmatpush1.msra.mxu0 0.0
  %10260 = vmatprep.subr.mxu0 0.0
  %10261 = vmatpush1.msra.mxu0 0.0
  %10262 = vmatprep.subr.mxu0 0.0
  %10263 = vmatpush1.msra.mxu0 0.0
  %10264 = vmatprep.mubr.f32.mxu0 0.0
  %v10265 = vand.u32 %v10195, 4294901760
  %v10266 = vsub.f32 %v10195, %v10265
  %v10267 = vand.u32 %v10266, 4294901760
  %v10268 = vsub.f32 %v10266, %v10267
  %v10269 = vand.u32 %v10268, 4294901760
  %10270 = vmatmul.mubr.f32.gmra.mrb[0].mxu0 %v10269
  %v10271 = vpop.f32.mrb[0].mxu0
  %v10272 = vadd.f32 0.0, %v10271
  %v10273 = vpop.f32.mrb[0].mxu0
  %10274 = vdwg.mxu0
  %10275 = vmatprep.subr.mxu0 0.0
  %v10276 = vand.u32 %v10189, 4294901760
  %v10277 = vsub.f32 %v10189, %v10276
  %v10278 = vand.u32 %v10277, 4294901760
  %v10279 = vsub.f32 %v10277, %v10278
  %v10280 = vand.u32 %v10279, 4294901760
  %10281 = vmatpush1.msra.mxu0 %v10280
  %10282 = vmatprep.subr.mxu0 0.0
  %v10283 = vand.u32 %v10190, 4294901760
  %v10284 = vsub.f32 %v10190, %v10283
  %v10285 = vand.u32 %v10284, 4294901760
  %v10286 = vsub.f32 %v10284, %v10285
  %v10287 = vand.u32 %v10286, 4294901760
  %10288 = vmatpush1.msra.mxu0 %v10287
  %10289 = vmatprep.subr.mxu0 0.0
  %v10290 = vand.u32 %v10191, 4294901760
  %v10291 = vsub.f32 %v10191, %v10290
  %v10292 = vand.u32 %v10291, 4294901760
  %v10293 = vsub.f32 %v10291, %v10292
  %v10294 = vand.u32 %v10293, 4294901760
  %10295 = vmatpush1.msra.mxu0 %v10294
  %10296 = vmatprep.subr.mxu0 0.0
  %10297 = vmatpush1.msra.mxu0 0.0
  %10298 = vmatprep.subr.mxu0 0.0
  %10299 = vmatpush1.msra.mxu0 0.0
  %10300 = vmatprep.subr.mxu0 0.0
  %10301 = vmatpush1.msra.mxu0 0.0
  %10302 = vmatprep.subr.mxu0 0.0
  %10303 = vmatpush1.msra.mxu0 0.0
  %10304 = vmatprep.subr.mxu0 0.0
  %10305 = vmatpush1.msra.mxu0 0.0
  %10306 = vmatprep.subr.mxu0 0.0
  %10307 = vmatpush1.msra.mxu0 0.0
  %10308 = vmatprep.subr.mxu0 0.0
  %10309 = vmatpush1.msra.mxu0 0.0
  %10310 = vmatprep.subr.mxu0 0.0
  %10311 = vmatpush1.msra.mxu0 0.0
  %10312 = vmatprep.subr.mxu0 0.0
  %10313 = vmatpush1.msra.mxu0 0.0
  %10314 = vmatprep.subr.mxu0 0.0
  %10315 = vmatpush1.msra.mxu0 0.0
  %10316 = vmatprep.subr.mxu0 0.0
  %10317 = vmatpush1.msra.mxu0 0.0
  %10318 = vmatprep.subr.mxu0 0.0
  %10319 = vmatpush1.msra.mxu0 0.0
  %10320 = vmatprep.subr.mxu0 0.0
  %10321 = vmatpush1.msra.mxu0 0.0
  %10322 = vmatprep.subr.mxu0 0.0
  %10323 = vmatpush1.msra.mxu0 0.0
  %10324 = vmatprep.subr.mxu0 0.0
  %10325 = vmatpush1.msra.mxu0 0.0
  %10326 = vmatprep.subr.mxu0 0.0
  %10327 = vmatpush1.msra.mxu0 0.0
  %10328 = vmatprep.subr.mxu0 0.0
  %10329 = vmatpush1.msra.mxu0 0.0
  %10330 = vmatprep.subr.mxu0 0.0
  %10331 = vmatpush1.msra.mxu0 0.0
  %10332 = vmatprep.subr.mxu0 0.0
  %10333 = vmatpush1.msra.mxu0 0.0
  %10334 = vmatprep.subr.mxu0 0.0
  %10335 = vmatpush1.msra.mxu0 0.0
  %10336 = vmatprep.subr.mxu0 0.0
  %10337 = vmatpush1.msra.mxu0 0.0
  %10338 = vmatprep.subr.mxu0 0.0
  %10339 = vmatpush1.msra.mxu0 0.0
  %10340 = vmatprep.subr.mxu0 0.0
  %10341 = vmatpush1.msra.mxu0 0.0
  %10342 = vmatprep.subr.mxu0 0.0
  %10343 = vmatpush1.msra.mxu0 0.0
  %10344 = vmatprep.subr.mxu0 0.0
  %10345 = vmatpush1.msra.mxu0 0.0
  %10346 = vmatprep.subr.mxu0 0.0
  %10347 = vmatpush1.msra.mxu0 0.0
  %10348 = vmatprep.subr.mxu0 0.0
  %10349 = vmatpush1.msra.mxu0 0.0
  %10350 = vmatprep.subr.mxu0 0.0
  %10351 = vmatpush1.msra.mxu0 0.0
  %10352 = vmatprep.subr.mxu0 0.0
  %10353 = vmatpush1.msra.mxu0 0.0
  %10354 = vmatprep.mubr.f32.mxu0 0.0
  %v10355 = vand.u32 %v10195, 4294901760
  %10356 = vmatmul.mubr.f32.gmra.mrb[0].mxu0 %v10355
  %v10357 = vpop.f32.mrb[0].mxu0
  %v10358 = vadd.f32 %v10272, %v10357
  %v10359 = vpop.f32.mrb[0].mxu0
  %10360 = vdwg.mxu0
  %10361 = vmatprep.subr.mxu0 0.0
  %v10362 = vand.u32 %v10189, 4294901760
  %v10363 = vsub.f32 %v10189, %v10362
  %10364 = vmatpush1.msra.mxu0 %v10363
  %10365 = vmatprep.subr.mxu0 0.0
  %v10366 = vand.u32 %v10190, 4294901760
  %v10367 = vsub.f32 %v10190, %v10366
  %10368 = vmatpush1.msra.mxu0 %v10367
  %10369 = vmatprep.subr.mxu0 0.0
  %v10370 = vand.u32 %v10191, 4294901760
  %v10371 = vsub.f32 %v10191, %v10370
  %10372 = vmatpush1.msra.mxu0 %v10371
  %10373 = vmatprep.subr.mxu0 0.0
  %10374 = vmatpush1.msra.mxu0 0.0
  %10375 = vmatprep.subr.mxu0 0.0
  %10376 = vmatpush1.msra.mxu0 0.0
  %10377 = vmatprep.subr.mxu0 0.0
  %10378 = vmatpush1.msra.mxu0 0.0
  %10379 = vmatprep.subr.mxu0 0.0
  %10380 = vmatpush1.msra.mxu0 0.0
  %10381 = vmatprep.subr.mxu0 0.0
  %10382 = vmatpush1.msra.mxu0 0.0
  %10383 = vmatprep.subr.mxu0 0.0
  %10384 = vmatpush1.msra.mxu0 0.0
  %10385 = vmatprep.subr.mxu0 0.0
  %10386 = vmatpush1.msra.mxu0 0.0
  %10387 = vmatprep.subr.mxu0 0.0
  %10388 = vmatpush1.msra.mxu0 0.0
  %10389 = vmatprep.subr.mxu0 0.0
  %10390 = vmatpush1.msra.mxu0 0.0
  %10391 = vmatprep.subr.mxu0 0.0
  %10392 = vmatpush1.msra.mxu0 0.0
  %10393 = vmatprep.subr.mxu0 0.0
  %10394 = vmatpush1.msra.mxu0 0.0
  %10395 = vmatprep.subr.mxu0 0.0
  %10396 = vmatpush1.msra.mxu0 0.0
  %10397 = vmatprep.subr.mxu0 0.0
  %10398 = vmatpush1.msra.mxu0 0.0
  %10399 = vmatprep.subr.mxu0 0.0
  %10400 = vmatpush1.msra.mxu0 0.0
  %10401 = vmatprep.subr.mxu0 0.0
  %10402 = vmatpush1.msra.mxu0 0.0
  %10403 = vmatprep.subr.mxu0 0.0
  %10404 = vmatpush1.msra.mxu0 0.0
  %10405 = vmatprep.subr.mxu0 0.0
  %10406 = vmatpush1.msra.mxu0 0.0
  %10407 = vmatprep.subr.mxu0 0.0
  %10408 = vmatpush1.msra.mxu0 0.0
  %10409 = vmatprep.subr.mxu0 0.0
  %10410 = vmatpush1.msra.mxu0 0.0
  %10411 = vmatprep.subr.mxu0 0.0
  %10412 = vmatpush1.msra.mxu0 0.0
  %10413 = vmatprep.subr.mxu0 0.0
  %10414 = vmatpush1.msra.mxu0 0.0
  %10415 = vmatprep.subr.mxu0 0.0
  %10416 = vmatpush1.msra.mxu0 0.0
  %10417 = vmatprep.subr.mxu0 0.0
  %10418 = vmatpush1.msra.mxu0 0.0
  %10419 = vmatprep.subr.mxu0 0.0
  %10420 = vmatpush1.msra.mxu0 0.0
  %10421 = vmatprep.subr.mxu0 0.0
  %10422 = vmatpush1.msra.mxu0 0.0
  %10423 = vmatprep.subr.mxu0 0.0
  %10424 = vmatpush1.msra.mxu0 0.0
  %10425 = vmatprep.subr.mxu0 0.0
  %10426 = vmatpush1.msra.mxu0 0.0
  %10427 = vmatprep.subr.mxu0 0.0
  %10428 = vmatpush1.msra.mxu0 0.0
  %10429 = vmatprep.subr.mxu0 0.0
  %10430 = vmatpush1.msra.mxu0 0.0
  %10431 = vmatprep.mubr.f32.mxu0 0.0
  %v10432 = vand.u32 %v10195, 4294901760
  %v10433 = vsub.f32 %v10195, %v10432
  %10434 = vmatmul.mubr.f32.gmra.mrb[0].mxu0 %v10433
  %v10435 = vpop.f32.mrb[0].mxu0
  %v10436 = vadd.f32 %v10358, %v10435
  %v10437 = vpop.f32.mrb[0].mxu0
  %10438 = vdwg.mxu0
  %10439 = vmatprep.subr.mxu0 0.0
  %v10440 = vand.u32 %v10189, 4294901760
  %10441 = vmatpush1.msra.mxu0 %v10440
  %10442 = vmatprep.subr.mxu0 0.0
  %v10443 = vand.u32 %v10190, 4294901760
  %10444 = vmatpush1.msra.mxu0 %v10443
  %10445 = vmatprep.subr.mxu0 0.0
  %v10446 = vand.u32 %v10191, 4294901760
  %10447 = vmatpush1.msra.mxu0 %v10446
  %10448 = vmatprep.subr.mxu0 0.0
  %10449 = vmatpush1.msra.mxu0 0.0
  %10450 = vmatprep.subr.mxu0 0.0
  %10451 = vmatpush1.msra.mxu0 0.0
  %10452 = vmatprep.subr.mxu0 0.0
  %10453 = vmatpush1.msra.mxu0 0.0
  %10454 = vmatprep.subr.mxu0 0.0
  %10455 = vmatpush1.msra.mxu0 0.0
  %10456 = vmatprep.subr.mxu0 0.0
  %10457 = vmatpush1.msra.mxu0 0.0
  %10458 = vmatprep.subr.mxu0 0.0
  %10459 = vmatpush1.msra.mxu0 0.0
  %10460 = vmatprep.subr.mxu0 0.0
  %10461 = vmatpush1.msra.mxu0 0.0
  %10462 = vmatprep.subr.mxu0 0.0
  %10463 = vmatpush1.msra.mxu0 0.0
  %10464 = vmatprep.subr.mxu0 0.0
  %10465 = vmatpush1.msra.mxu0 0.0
  %10466 = vmatprep.subr.mxu0 0.0
  %10467 = vmatpush1.msra.mxu0 0.0
  %10468 = vmatprep.subr.mxu0 0.0
  %10469 = vmatpush1.msra.mxu0 0.0
  %10470 = vmatprep.subr.mxu0 0.0
  %10471 = vmatpush1.msra.mxu0 0.0
  %10472 = vmatprep.subr.mxu0 0.0
  %10473 = vmatpush1.msra.mxu0 0.0
  %10474 = vmatprep.subr.mxu0 0.0
  %10475 = vmatpush1.msra.mxu0 0.0
  %10476 = vmatprep.subr.mxu0 0.0
  %10477 = vmatpush1.msra.mxu0 0.0
  %10478 = vmatprep.subr.mxu0 0.0
  %10479 = vmatpush1.msra.mxu0 0.0
  %10480 = vmatprep.subr.mxu0 0.0
  %10481 = vmatpush1.msra.mxu0 0.0
  %10482 = vmatprep.subr.mxu0 0.0
  %10483 = vmatpush1.msra.mxu0 0.0
  %10484 = vmatprep.subr.mxu0 0.0
  %10485 = vmatpush1.msra.mxu0 0.0
  %10486 = vmatprep.subr.mxu0 0.0
  %10487 = vmatpush1.msra.mxu0 0.0
  %10488 = vmatprep.subr.mxu0 0.0
  %10489 = vmatpush1.msra.mxu0 0.0
  %10490 = vmatprep.subr.mxu0 0.0
  %10491 = vmatpush1.msra.mxu0 0.0
  %10492 = vmatprep.subr.mxu0 0.0
  %10493 = vmatpush1.msra.mxu0 0.0
  %10494 = vmatprep.subr.mxu0 0.0
  %10495 = vmatpush1.msra.mxu0 0.0
  %10496 = vmatprep.subr.mxu0 0.0
  %10497 = vmatpush1.msra.mxu0 0.0
  %10498 = vmatprep.subr.mxu0 0.0
  %10499 = vmatpush1.msra.mxu0 0.0
  %10500 = vmatprep.subr.mxu0 0.0
  %10501 = vmatpush1.msra.mxu0 0.0
  %10502 = vmatprep.subr.mxu0 0.0
  %10503 = vmatpush1.msra.mxu0 0.0
  %10504 = vmatprep.subr.mxu0 0.0
  %10505 = vmatpush1.msra.mxu0 0.0
  %10506 = vmatprep.mubr.f32.mxu0 0.0
  %v10507 = vand.u32 %v10195, 4294901760
  %v10508 = vsub.f32 %v10195, %v10507
  %v10509 = vand.u32 %v10508, 4294901760
  %10510 = vmatmul.mubr.f32.gmra.mrb[0].mxu0 %v10509
  %v10511 = vpop.f32.mrb[0].mxu0
  %v10512 = vadd.f32 %v10436, %v10511
  %v10513 = vpop.f32.mrb[0].mxu0
  %10514 = vdwg.mxu0
  %10515 = vmatprep.subr.mxu0 0.0
  %v10516 = vand.u32 %v10189, 4294901760
  %v10517 = vsub.f32 %v10189, %v10516
  %v10518 = vand.u32 %v10517, 4294901760
  %10519 = vmatpush1.msra.mxu0 %v10518
  %10520 = vmatprep.subr.mxu0 0.0
  %v10521 = vand.u32 %v10190, 4294901760
  %v10522 = vsub.f32 %v10190, %v10521
  %v10523 = vand.u32 %v10522, 4294901760
  %10524 = vmatpush1.msra.mxu0 %v10523
  %10525 = vmatprep.subr.mxu0 0.0
  %v10526 = vand.u32 %v10191, 4294901760
  %v10527 = vsub.f32 %v10191, %v10526
  %v10528 = vand.u32 %v10527, 4294901760
  %10529 = vmatpush1.msra.mxu0 %v10528
  %10530 = vmatprep.subr.mxu0 0.0
  %10531 = vmatpush1.msra.mxu0 0.0
  %10532 = vmatprep.subr.mxu0 0.0
  %10533 = vmatpush1.msra.mxu0 0.0
  %10534 = vmatprep.subr.mxu0 0.0
  %10535 = vmatpush1.msra.mxu0 0.0
  %10536 = vmatprep.subr.mxu0 0.0
  %10537 = vmatpush1.msra.mxu0 0.0
  %10538 = vmatprep.subr.mxu0 0.0
  %10539 = vmatpush1.msra.mxu0 0.0
  %10540 = vmatprep.subr.mxu0 0.0
  %10541 = vmatpush1.msra.mxu0 0.0
  %10542 = vmatprep.subr.mxu0 0.0
  %10543 = vmatpush1.msra.mxu0 0.0
  %10544 = vmatprep.subr.mxu0 0.0
  %10545 = vmatpush1.msra.mxu0 0.0
  %10546 = vmatprep.subr.mxu0 0.0
  %10547 = vmatpush1.msra.mxu0 0.0
  %10548 = vmatprep.subr.mxu0 0.0
  %10549 = vmatpush1.msra.mxu0 0.0
  %10550 = vmatprep.subr.mxu0 0.0
  %10551 = vmatpush1.msra.mxu0 0.0
  %10552 = vmatprep.subr.mxu0 0.0
  %10553 = vmatpush1.msra.mxu0 0.0
  %10554 = vmatprep.subr.mxu0 0.0
  %10555 = vmatpush1.msra.mxu0 0.0
  %10556 = vmatprep.subr.mxu0 0.0
  %10557 = vmatpush1.msra.mxu0 0.0
  %10558 = vmatprep.subr.mxu0 0.0
  %10559 = vmatpush1.msra.mxu0 0.0
  %10560 = vmatprep.subr.mxu0 0.0
  %10561 = vmatpush1.msra.mxu0 0.0
  %10562 = vmatprep.subr.mxu0 0.0
  %10563 = vmatpush1.msra.mxu0 0.0
  %10564 = vmatprep.subr.mxu0 0.0
  %10565 = vmatpush1.msra.mxu0 0.0
  %10566 = vmatprep.subr.mxu0 0.0
  %10567 = vmatpush1.msra.mxu0 0.0
  %10568 = vmatprep.subr.mxu0 0.0
  %10569 = vmatpush1.msra.mxu0 0.0
  %10570 = vmatprep.subr.mxu0 0.0
  %10571 = vmatpush1.msra.mxu0 0.0
  %10572 = vmatprep.subr.mxu0 0.0
  %10573 = vmatpush1.msra.mxu0 0.0
  %10574 = vmatprep.subr.mxu0 0.0
  %10575 = vmatpush1.msra.mxu0 0.0
  %10576 = vmatprep.subr.mxu0 0.0
  %10577 = vmatpush1.msra.mxu0 0.0
  %10578 = vmatprep.subr.mxu0 0.0
  %10579 = vmatpush1.msra.mxu0 0.0
  %10580 = vmatprep.subr.mxu0 0.0
  %10581 = vmatpush1.msra.mxu0 0.0
  %10582 = vmatprep.subr.mxu0 0.0
  %10583 = vmatpush1.msra.mxu0 0.0
  %10584 = vmatprep.subr.mxu0 0.0
  %10585 = vmatpush1.msra.mxu0 0.0
  %10586 = vmatprep.subr.mxu0 0.0
  %10587 = vmatpush1.msra.mxu0 0.0
  %10588 = vmatprep.mubr.f32.mxu0 0.0
  %v10589 = vand.u32 %v10195, 4294901760
  %10590 = vmatmul.mubr.f32.gmra.mrb[0].mxu0 %v10589
  %v10591 = vpop.f32.mrb[0].mxu0
  %v10592 = vadd.f32 %v10512, %v10591
  %v10593 = vpop.f32.mrb[0].mxu0
  %10594 = vdwg.mxu0
  %10595 = vmatprep.subr.mxu0 0.0
  %v10596 = vand.u32 %v10189, 4294901760
  %10597 = vmatpush1.msra.mxu0 %v10596
  %10598 = vmatprep.subr.mxu0 0.0
  %v10599 = vand.u32 %v10190, 4294901760
  %10600 = vmatpush1.msra.mxu0 %v10599
  %10601 = vmatprep.subr.mxu0 0.0
  %v10602 = vand.u32 %v10191, 4294901760
  %10603 = vmatpush1.msra.mxu0 %v10602
  %10604 = vmatprep.subr.mxu0 0.0
  %10605 = vmatpush1.msra.mxu0 0.0
  %10606 = vmatprep.subr.mxu0 0.0
  %10607 = vmatpush1.msra.mxu0 0.0
  %10608 = vmatprep.subr.mxu0 0.0
  %10609 = vmatpush1.msra.mxu0 0.0
  %10610 = vmatprep.subr.mxu0 0.0
  %10611 = vmatpush1.msra.mxu0 0.0
  %10612 = vmatprep.subr.mxu0 0.0
  %10613 = vmatpush1.msra.mxu0 0.0
  %10614 = vmatprep.subr.mxu0 0.0
  %10615 = vmatpush1.msra.mxu0 0.0
  %10616 = vmatprep.subr.mxu0 0.0
  %10617 = vmatpush1.msra.mxu0 0.0
  %10618 = vmatprep.subr.mxu0 0.0
  %10619 = vmatpush1.msra.mxu0 0.0
  %10620 = vmatprep.subr.mxu0 0.0
  %10621 = vmatpush1.msra.mxu0 0.0
  %10622 = vmatprep.subr.mxu0 0.0
  %10623 = vmatpush1.msra.mxu0 0.0
  %10624 = vmatprep.subr.mxu0 0.0
  %10625 = vmatpush1.msra.mxu0 0.0
  %10626 = vmatprep.subr.mxu0 0.0
  %10627 = vmatpush1.msra.mxu0 0.0
  %10628 = vmatprep.subr.mxu0 0.0
  %10629 = vmatpush1.msra.mxu0 0.0
  %10630 = vmatprep.subr.mxu0 0.0
  %10631 = vmatpush1.msra.mxu0 0.0
  %10632 = vmatprep.subr.mxu0 0.0
  %10633 = vmatpush1.msra.mxu0 0.0
  %10634 = vmatprep.subr.mxu0 0.0
  %10635 = vmatpush1.msra.mxu0 0.0
  %10636 = vmatprep.subr.mxu0 0.0
  %10637 = vmatpush1.msra.mxu0 0.0
  %10638 = vmatprep.subr.mxu0 0.0
  %10639 = vmatpush1.msra.mxu0 0.0
  %10640 = vmatprep.subr.mxu0 0.0
  %10641 = vmatpush1.msra.mxu0 0.0
  %10642 = vmatprep.subr.mxu0 0.0
  %10643 = vmatpush1.msra.mxu0 0.0
  %10644 = vmatprep.subr.mxu0 0.0
  %10645 = vmatpush1.msra.mxu0 0.0
  %10646 = vmatprep.subr.mxu0 0.0
  %10647 = vmatpush1.msra.mxu0 0.0
  %10648 = vmatprep.subr.mxu0 0.0
  %10649 = vmatpush1.msra.mxu0 0.0
  %10650 = vmatprep.subr.mxu0 0.0
  %10651 = vmatpush1.msra.mxu0 0.0
  %10652 = vmatprep.subr.mxu0 0.0
  %10653 = vmatpush1.msra.mxu0 0.0
  %10654 = vmatprep.subr.mxu0 0.0
  %10655 = vmatpush1.msra.mxu0 0.0
  %10656 = vmatprep.subr.mxu0 0.0
  %10657 = vmatpush1.msra.mxu0 0.0
  %10658 = vmatprep.subr.mxu0 0.0
  %10659 = vmatpush1.msra.mxu0 0.0
  %10660 = vmatprep.subr.mxu0 0.0
  %10661 = vmatpush1.msra.mxu0 0.0
  %10662 = vmatprep.mubr.f32.mxu0 0.0
  %v10663 = vand.u32 %v10195, 4294901760
  %10664 = vmatmul.mubr.f32.gmra.mrb[0].mxu0 %v10663
  %v10665 = vpop.f32.mrb[0].mxu0
  %v10666 = vadd.f32 %v10592, %v10665
  %v10667 = vpop.f32.mrb[0].mxu0
  %10668 = vdwg.mxu0
  %vm10669 = vcmask 254976
  %v10670 = vsel %vm10669, %v10666, 0.0
  %10671 = vadd.xlane.f32.xlu0 %v10670
  %v10672 = vpop.xlane.xlu0 %10671
  %v10673 = vmul.f32 %v10672, %v4066
  %v10674 = vsub.f32 %v10666, %v10673
  %v10675 = vmul.f32 %v10674, %v10674
  %v10676 = vsel %vm10669, %v10675, 0.0
  %10677 = vadd.xlane.f32.xlu0 %v10676
  %v10678 = vpop.xlane.xlu0 %10677
  %v10679 = vmul.f32 %v10678, %v4066
  %v10680 = vadd.f32 %v10679, 1e-05
  %v10681 = vrsqrt.pop %v10680
  %v10682 = vmul.f32 %v10674, %v10681
  %v10683 = vld [vmem:[%s1 + $0xa8] sm:$0xff]
  %v10684 = vld [vmem:[%s1 + $0xb0] sm:$0xff]
  %v10685 = vld [vmem:[%s1 + $0xb8] sm:$0xff]
  %v10686 = vld [vmem:[%s1 + $0xc0] sm:$0xff]
  %v10687 = vld [vmem:[%s1 + $0xc8] sm:$0x1]
  %v10688 = vlaneseq
  %v10689 = vshrl.u32 %v10688, 7
  %v10690 = vsub.s32 0, %v10689
  %v10691 = vrot.slane %v10687, %v10690
  %v10693 = vsel %vm598, %v10682, 0
  %10695 = vmatprep.subr.mxu0 0.0
  %v10696 = vand.u32 %v10683, 4294901760
  %10697 = vmatpush1.msra.mxu0 %v10696
  %10698 = vmatprep.subr.mxu0 0.0
  %v10699 = vand.u32 %v10684, 4294901760
  %10700 = vmatpush1.msra.mxu0 %v10699
  %10701 = vmatprep.subr.mxu0 0.0
  %v10702 = vand.u32 %v10685, 4294901760
  %10703 = vmatpush1.msra.mxu0 %v10702
  %10704 = vmatprep.subr.mxu0 0.0
  %v10705 = vand.u32 %v10686, 4294901760
  %10706 = vmatpush1.msra.mxu0 %v10705
  %10707 = vmatprep.subr.mxu0 0.0
  %10708 = vmatpush1.msra.mxu0 0.0
  %10709 = vmatprep.subr.mxu0 0.0
  %10710 = vmatpush1.msra.mxu0 0.0
  %10711 = vmatprep.subr.mxu0 0.0
  %10712 = vmatpush1.msra.mxu0 0.0
  %10713 = vmatprep.subr.mxu0 0.0
  %10714 = vmatpush1.msra.mxu0 0.0
  %10715 = vmatprep.subr.mxu0 0.0
  %10716 = vmatpush1.msra.mxu0 0.0
  %10717 = vmatprep.subr.mxu0 0.0
  %10718 = vmatpush1.msra.mxu0 0.0
  %10719 = vmatprep.subr.mxu0 0.0
  %10720 = vmatpush1.msra.mxu0 0.0
  %10721 = vmatprep.subr.mxu0 0.0
  %10722 = vmatpush1.msra.mxu0 0.0
  %10723 = vmatprep.subr.mxu0 0.0
  %10724 = vmatpush1.msra.mxu0 0.0
  %10725 = vmatprep.subr.mxu0 0.0
  %10726 = vmatpush1.msra.mxu0 0.0
  %10727 = vmatprep.subr.mxu0 0.0
  %10728 = vmatpush1.msra.mxu0 0.0
  %10729 = vmatprep.subr.mxu0 0.0
  %10730 = vmatpush1.msra.mxu0 0.0
  %10731 = vmatprep.subr.mxu0 0.0
  %10732 = vmatpush1.msra.mxu0 0.0
  %10733 = vmatprep.subr.mxu0 0.0
  %10734 = vmatpush1.msra.mxu0 0.0
  %10735 = vmatprep.subr.mxu0 0.0
  %10736 = vmatpush1.msra.mxu0 0.0
  %10737 = vmatprep.subr.mxu0 0.0
  %10738 = vmatpush1.msra.mxu0 0.0
  %10739 = vmatprep.subr.mxu0 0.0
  %10740 = vmatpush1.msra.mxu0 0.0
  %10741 = vmatprep.subr.mxu0 0.0
  %10742 = vmatpush1.msra.mxu0 0.0
  %10743 = vmatprep.subr.mxu0 0.0
  %10744 = vmatpush1.msra.mxu0 0.0
  %10745 = vmatprep.subr.mxu0 0.0
  %10746 = vmatpush1.msra.mxu0 0.0
  %10747 = vmatprep.subr.mxu0 0.0
  %10748 = vmatpush1.msra.mxu0 0.0
  %10749 = vmatprep.subr.mxu0 0.0
  %10750 = vmatpush1.msra.mxu0 0.0
  %10751 = vmatprep.subr.mxu0 0.0
  %10752 = vmatpush1.msra.mxu0 0.0
  %10753 = vmatprep.subr.mxu0 0.0
  %10754 = vmatpush1.msra.mxu0 0.0
  %10755 = vmatprep.subr.mxu0 0.0
  %10756 = vmatpush1.msra.mxu0 0.0
  %10757 = vmatprep.subr.mxu0 0.0
  %10758 = vmatpush1.msra.mxu0 0.0
  %10759 = vmatprep.subr.mxu0 0.0
  %10760 = vmatpush1.msra.mxu0 0.0
  %10761 = vmatprep.subr.mxu0 0.0
  %10762 = vmatpush1.msra.mxu0 0.0
  %10763 = vmatprep.mubr.f32.mxu0 0.0
  %v10764 = vand.u32 %v10693, 4294901760
  %v10765 = vsub.f32 %v10693, %v10764
  %v10766 = vand.u32 %v10765, 4294901760
  %v10767 = vsub.f32 %v10765, %v10766
  %v10768 = vand.u32 %v10767, 4294901760
  %10769 = vmatmul.mubr.f32.gmra.mrb[0].mxu0 %v10768
  %v10770 = vpop.f32.mrb[0].mxu0
  %v10771 = vadd.f32 %v10691, %v10770
  %v10772 = vpop.f32.mrb[0].mxu0
  %10773 = vdwg.mxu0
  %10774 = vmatprep.subr.mxu0 0.0
  %v10775 = vand.u32 %v10683, 4294901760
  %v10776 = vsub.f32 %v10683, %v10775
  %v10777 = vand.u32 %v10776, 4294901760
  %v10778 = vsub.f32 %v10776, %v10777
  %v10779 = vand.u32 %v10778, 4294901760
  %10780 = vmatpush1.msra.mxu0 %v10779
  %10781 = vmatprep.subr.mxu0 0.0
  %v10782 = vand.u32 %v10684, 4294901760
  %v10783 = vsub.f32 %v10684, %v10782
  %v10784 = vand.u32 %v10783, 4294901760
  %v10785 = vsub.f32 %v10783, %v10784
  %v10786 = vand.u32 %v10785, 4294901760
  %10787 = vmatpush1.msra.mxu0 %v10786
  %10788 = vmatprep.subr.mxu0 0.0
  %v10789 = vand.u32 %v10685, 4294901760
  %v10790 = vsub.f32 %v10685, %v10789
  %v10791 = vand.u32 %v10790, 4294901760
  %v10792 = vsub.f32 %v10790, %v10791
  %v10793 = vand.u32 %v10792, 4294901760
  %10794 = vmatpush1.msra.mxu0 %v10793
  %10795 = vmatprep.subr.mxu0 0.0
  %v10796 = vand.u32 %v10686, 4294901760
  %v10797 = vsub.f32 %v10686, %v10796
  %v10798 = vand.u32 %v10797, 4294901760
  %v10799 = vsub.f32 %v10797, %v10798
  %v10800 = vand.u32 %v10799, 4294901760
  %10801 = vmatpush1.msra.mxu0 %v10800
  %10802 = vmatprep.subr.mxu0 0.0
  %10803 = vmatpush1.msra.mxu0 0.0
  %10804 = vmatprep.subr.mxu0 0.0
  %10805 = vmatpush1.msra.mxu0 0.0
  %10806 = vmatprep.subr.mxu0 0.0
  %10807 = vmatpush1.msra.mxu0 0.0
  %10808 = vmatprep.subr.mxu0 0.0
  %10809 = vmatpush1.msra.mxu0 0.0
  %10810 = vmatprep.subr.mxu0 0.0
  %10811 = vmatpush1.msra.mxu0 0.0
  %10812 = vmatprep.subr.mxu0 0.0
  %10813 = vmatpush1.msra.mxu0 0.0
  %10814 = vmatprep.subr.mxu0 0.0
  %10815 = vmatpush1.msra.mxu0 0.0
  %10816 = vmatprep.subr.mxu0 0.0
  %10817 = vmatpush1.msra.mxu0 0.0
  %10818 = vmatprep.subr.mxu0 0.0
  %10819 = vmatpush1.msra.mxu0 0.0
  %10820 = vmatprep.subr.mxu0 0.0
  %10821 = vmatpush1.msra.mxu0 0.0
  %10822 = vmatprep.subr.mxu0 0.0
  %10823 = vmatpush1.msra.mxu0 0.0
  %10824 = vmatprep.subr.mxu0 0.0
  %10825 = vmatpush1.msra.mxu0 0.0
  %10826 = vmatprep.subr.mxu0 0.0
  %10827 = vmatpush1.msra.mxu0 0.0
  %10828 = vmatprep.subr.mxu0 0.0
  %10829 = vmatpush1.msra.mxu0 0.0
  %10830 = vmatprep.subr.mxu0 0.0
  %10831 = vmatpush1.msra.mxu0 0.0
  %10832 = vmatprep.subr.mxu0 0.0
  %10833 = vmatpush1.msra.mxu0 0.0
  %10834 = vmatprep.subr.mxu0 0.0
  %10835 = vmatpush1.msra.mxu0 0.0
  %10836 = vmatprep.subr.mxu0 0.0
  %10837 = vmatpush1.msra.mxu0 0.0
  %10838 = vmatprep.subr.mxu0 0.0
  %10839 = vmatpush1.msra.mxu0 0.0
  %10840 = vmatprep.subr.mxu0 0.0
  %10841 = vmatpush1.msra.mxu0 0.0
  %10842 = vmatprep.subr.mxu0 0.0
  %10843 = vmatpush1.msra.mxu0 0.0
  %10844 = vmatprep.subr.mxu0 0.0
  %10845 = vmatpush1.msra.mxu0 0.0
  %10846 = vmatprep.subr.mxu0 0.0
  %10847 = vmatpush1.msra.mxu0 0.0
  %10848 = vmatprep.subr.mxu0 0.0
  %10849 = vmatpush1.msra.mxu0 0.0
  %10850 = vmatprep.subr.mxu0 0.0
  %10851 = vmatpush1.msra.mxu0 0.0
  %10852 = vmatprep.subr.mxu0 0.0
  %10853 = vmatpush1.msra.mxu0 0.0
  %10854 = vmatprep.subr.mxu0 0.0
  %10855 = vmatpush1.msra.mxu0 0.0
  %10856 = vmatprep.subr.mxu0 0.0
  %10857 = vmatpush1.msra.mxu0 0.0
  %10858 = vmatprep.mubr.f32.mxu0 0.0
  %v10859 = vand.u32 %v10693, 4294901760
  %10860 = vmatmul.mubr.f32.gmra.mrb[0].mxu0 %v10859
  %v10861 = vpop.f32.mrb[0].mxu0
  %v10862 = vadd.f32 %v10771, %v10861
  %v10863 = vpop.f32.mrb[0].mxu0
  %10864 = vdwg.mxu0
  %10865 = vmatprep.subr.mxu0 0.0
  %v10866 = vand.u32 %v10683, 4294901760
  %v10867 = vsub.f32 %v10683, %v10866
  %10868 = vmatpush1.msra.mxu0 %v10867
  %10869 = vmatprep.subr.mxu0 0.0
  %v10870 = vand.u32 %v10684, 4294901760
  %v10871 = vsub.f32 %v10684, %v10870
  %10872 = vmatpush1.msra.mxu0 %v10871
  %10873 = vmatprep.subr.mxu0 0.0
  %v10874 = vand.u32 %v10685, 4294901760
  %v10875 = vsub.f32 %v10685, %v10874
  %10876 = vmatpush1.msra.mxu0 %v10875
  %10877 = vmatprep.subr.mxu0 0.0
  %v10878 = vand.u32 %v10686, 4294901760
  %v10879 = vsub.f32 %v10686, %v10878
  %10880 = vmatpush1.msra.mxu0 %v10879
  %10881 = vmatprep.subr.mxu0 0.0
  %10882 = vmatpush1.msra.mxu0 0.0
  %10883 = vmatprep.subr.mxu0 0.0
  %10884 = vmatpush1.msra.mxu0 0.0
  %10885 = vmatprep.subr.mxu0 0.0
  %10886 = vmatpush1.msra.mxu0 0.0
  %10887 = vmatprep.subr.mxu0 0.0
  %10888 = vmatpush1.msra.mxu0 0.0
  %10889 = vmatprep.subr.mxu0 0.0
  %10890 = vmatpush1.msra.mxu0 0.0
  %10891 = vmatprep.subr.mxu0 0.0
  %10892 = vmatpush1.msra.mxu0 0.0
  %10893 = vmatprep.subr.mxu0 0.0
  %10894 = vmatpush1.msra.mxu0 0.0
  %10895 = vmatprep.subr.mxu0 0.0
  %10896 = vmatpush1.msra.mxu0 0.0
  %10897 = vmatprep.subr.mxu0 0.0
  %10898 = vmatpush1.msra.mxu0 0.0
  %10899 = vmatprep.subr.mxu0 0.0
  %10900 = vmatpush1.msra.mxu0 0.0
  %10901 = vmatprep.subr.mxu0 0.0
  %10902 = vmatpush1.msra.mxu0 0.0
  %10903 = vmatprep.subr.mxu0 0.0
  %10904 = vmatpush1.msra.mxu0 0.0
  %10905 = vmatprep.subr.mxu0 0.0
  %10906 = vmatpush1.msra.mxu0 0.0
  %10907 = vmatprep.subr.mxu0 0.0
  %10908 = vmatpush1.msra.mxu0 0.0
  %10909 = vmatprep.subr.mxu0 0.0
  %10910 = vmatpush1.msra.mxu0 0.0
  %10911 = vmatprep.subr.mxu0 0.0
  %10912 = vmatpush1.msra.mxu0 0.0
  %10913 = vmatprep.subr.mxu0 0.0
  %10914 = vmatpush1.msra.mxu0 0.0
  %10915 = vmatprep.subr.mxu0 0.0
  %10916 = vmatpush1.msra.mxu0 0.0
  %10917 = vmatprep.subr.mxu0 0.0
  %10918 = vmatpush1.msra.mxu0 0.0
  %10919 = vmatprep.subr.mxu0 0.0
  %10920 = vmatpush1.msra.mxu0 0.0
  %10921 = vmatprep.subr.mxu0 0.0
  %10922 = vmatpush1.msra.mxu0 0.0
  %10923 = vmatprep.subr.mxu0 0.0
  %10924 = vmatpush1.msra.mxu0 0.0
  %10925 = vmatprep.subr.mxu0 0.0
  %10926 = vmatpush1.msra.mxu0 0.0
  %10927 = vmatprep.subr.mxu0 0.0
  %10928 = vmatpush1.msra.mxu0 0.0
  %10929 = vmatprep.subr.mxu0 0.0
  %10930 = vmatpush1.msra.mxu0 0.0
  %10931 = vmatprep.subr.mxu0 0.0
  %10932 = vmatpush1.msra.mxu0 0.0
  %10933 = vmatprep.subr.mxu0 0.0
  %10934 = vmatpush1.msra.mxu0 0.0
  %10935 = vmatprep.subr.mxu0 0.0
  %10936 = vmatpush1.msra.mxu0 0.0
  %10937 = vmatprep.mubr.f32.mxu0 0.0
  %v10938 = vand.u32 %v10693, 4294901760
  %v10939 = vsub.f32 %v10693, %v10938
  %10940 = vmatmul.mubr.f32.gmra.mrb[0].mxu0 %v10939
  %v10941 = vpop.f32.mrb[0].mxu0
  %v10942 = vadd.f32 %v10862, %v10941
  %v10943 = vpop.f32.mrb[0].mxu0
  %10944 = vdwg.mxu0
  %10945 = vmatprep.subr.mxu0 0.0
  %v10946 = vand.u32 %v10683, 4294901760
  %10947 = vmatpush1.msra.mxu0 %v10946
  %10948 = vmatprep.subr.mxu0 0.0
  %v10949 = vand.u32 %v10684, 4294901760
  %10950 = vmatpush1.msra.mxu0 %v10949
  %10951 = vmatprep.subr.mxu0 0.0
  %v10952 = vand.u32 %v10685, 4294901760
  %10953 = vmatpush1.msra.mxu0 %v10952
  %10954 = vmatprep.subr.mxu0 0.0
  %v10955 = vand.u32 %v10686, 4294901760
  %10956 = vmatpush1.msra.mxu0 %v10955
  %10957 = vmatprep.subr.mxu0 0.0
  %10958 = vmatpush1.msra.mxu0 0.0
  %10959 = vmatprep.subr.mxu0 0.0
  %10960 = vmatpush1.msra.mxu0 0.0
  %10961 = vmatprep.subr.mxu0 0.0
  %10962 = vmatpush1.msra.mxu0 0.0
  %10963 = vmatprep.subr.mxu0 0.0
  %10964 = vmatpush1.msra.mxu0 0.0
  %10965 = vmatprep.subr.mxu0 0.0
  %10966 = vmatpush1.msra.mxu0 0.0
  %10967 = vmatprep.subr.mxu0 0.0
  %10968 = vmatpush1.msra.mxu0 0.0
  %10969 = vmatprep.subr.mxu0 0.0
  %10970 = vmatpush1.msra.mxu0 0.0
  %10971 = vmatprep.subr.mxu0 0.0
  %10972 = vmatpush1.msra.mxu0 0.0
  %10973 = vmatprep.subr.mxu0 0.0
  %10974 = vmatpush1.msra.mxu0 0.0
  %10975 = vmatprep.subr.mxu0 0.0
  %10976 = vmatpush1.msra.mxu0 0.0
  %10977 = vmatprep.subr.mxu0 0.0
  %10978 = vmatpush1.msra.mxu0 0.0
  %10979 = vmatprep.subr.mxu0 0.0
  %10980 = vmatpush1.msra.mxu0 0.0
  %10981 = vmatprep.subr.mxu0 0.0
  %10982 = vmatpush1.msra.mxu0 0.0
  %10983 = vmatprep.subr.mxu0 0.0
  %10984 = vmatpush1.msra.mxu0 0.0
  %10985 = vmatprep.subr.mxu0 0.0
  %10986 = vmatpush1.msra.mxu0 0.0
  %10987 = vmatprep.subr.mxu0 0.0
  %10988 = vmatpush1.msra.mxu0 0.0
  %10989 = vmatprep.subr.mxu0 0.0
  %10990 = vmatpush1.msra.mxu0 0.0
  %10991 = vmatprep.subr.mxu0 0.0
  %10992 = vmatpush1.msra.mxu0 0.0
  %10993 = vmatprep.subr.mxu0 0.0
  %10994 = vmatpush1.msra.mxu0 0.0
  %10995 = vmatprep.subr.mxu0 0.0
  %10996 = vmatpush1.msra.mxu0 0.0
  %10997 = vmatprep.subr.mxu0 0.0
  %10998 = vmatpush1.msra.mxu0 0.0
  %10999 = vmatprep.subr.mxu0 0.0
  %11000 = vmatpush1.msra.mxu0 0.0
  %11001 = vmatprep.subr.mxu0 0.0
  %11002 = vmatpush1.msra.mxu0 0.0
  %11003 = vmatprep.subr.mxu0 0.0
  %11004 = vmatpush1.msra.mxu0 0.0
  %11005 = vmatprep.subr.mxu0 0.0
  %11006 = vmatpush1.msra.mxu0 0.0
  %11007 = vmatprep.subr.mxu0 0.0
  %11008 = vmatpush1.msra.mxu0 0.0
  %11009 = vmatprep.subr.mxu0 0.0
  %11010 = vmatpush1.msra.mxu0 0.0
  %11011 = vmatprep.subr.mxu0 0.0
  %11012 = vmatpush1.msra.mxu0 0.0
  %11013 = vmatprep.mubr.f32.mxu0 0.0
  %v11014 = vand.u32 %v10693, 4294901760
  %v11015 = vsub.f32 %v10693, %v11014
  %v11016 = vand.u32 %v11015, 4294901760
  %11017 = vmatmul.mubr.f32.gmra.mrb[0].mxu0 %v11016
  %v11018 = vpop.f32.mrb[0].mxu0
  %v11019 = vadd.f32 %v10942, %v11018
  %v11020 = vpop.f32.mrb[0].mxu0
  %11021 = vdwg.mxu0
  %11022 = vmatprep.subr.mxu0 0.0
  %v11023 = vand.u32 %v10683, 4294901760
  %v11024 = vsub.f32 %v10683, %v11023
  %v11025 = vand.u32 %v11024, 4294901760
  %11026 = vmatpush1.msra.mxu0 %v11025
  %11027 = vmatprep.subr.mxu0 0.0
  %v11028 = vand.u32 %v10684, 4294901760
  %v11029 = vsub.f32 %v10684, %v11028
  %v11030 = vand.u32 %v11029, 4294901760
  %11031 = vmatpush1.msra.mxu0 %v11030
  %11032 = vmatprep.subr.mxu0 0.0
  %v11033 = vand.u32 %v10685, 4294901760
  %v11034 = vsub.f32 %v10685, %v11033
  %v11035 = vand.u32 %v11034, 4294901760
  %11036 = vmatpush1.msra.mxu0 %v11035
  %11037 = vmatprep.subr.mxu0 0.0
  %v11038 = vand.u32 %v10686, 4294901760
  %v11039 = vsub.f32 %v10686, %v11038
  %v11040 = vand.u32 %v11039, 4294901760
  %11041 = vmatpush1.msra.mxu0 %v11040
  %11042 = vmatprep.subr.mxu0 0.0
  %11043 = vmatpush1.msra.mxu0 0.0
  %11044 = vmatprep.subr.mxu0 0.0
  %11045 = vmatpush1.msra.mxu0 0.0
  %11046 = vmatprep.subr.mxu0 0.0
  %11047 = vmatpush1.msra.mxu0 0.0
  %11048 = vmatprep.subr.mxu0 0.0
  %11049 = vmatpush1.msra.mxu0 0.0
  %11050 = vmatprep.subr.mxu0 0.0
  %11051 = vmatpush1.msra.mxu0 0.0
  %11052 = vmatprep.subr.mxu0 0.0
  %11053 = vmatpush1.msra.mxu0 0.0
  %11054 = vmatprep.subr.mxu0 0.0
  %11055 = vmatpush1.msra.mxu0 0.0
  %11056 = vmatprep.subr.mxu0 0.0
  %11057 = vmatpush1.msra.mxu0 0.0
  %11058 = vmatprep.subr.mxu0 0.0
  %11059 = vmatpush1.msra.mxu0 0.0
  %11060 = vmatprep.subr.mxu0 0.0
  %11061 = vmatpush1.msra.mxu0 0.0
  %11062 = vmatprep.subr.mxu0 0.0
  %11063 = vmatpush1.msra.mxu0 0.0
  %11064 = vmatprep.subr.mxu0 0.0
  %11065 = vmatpush1.msra.mxu0 0.0
  %11066 = vmatprep.subr.mxu0 0.0
  %11067 = vmatpush1.msra.mxu0 0.0
  %11068 = vmatprep.subr.mxu0 0.0
  %11069 = vmatpush1.msra.mxu0 0.0
  %11070 = vmatprep.subr.mxu0 0.0
  %11071 = vmatpush1.msra.mxu0 0.0
  %11072 = vmatprep.subr.mxu0 0.0
  %11073 = vmatpush1.msra.mxu0 0.0
  %11074 = vmatprep.subr.mxu0 0.0
  %11075 = vmatpush1.msra.mxu0 0.0
  %11076 = vmatprep.subr.mxu0 0.0
  %11077 = vmatpush1.msra.mxu0 0.0
  %11078 = vmatprep.subr.mxu0 0.0
  %11079 = vmatpush1.msra.mxu0 0.0
  %11080 = vmatprep.subr.mxu0 0.0
  %11081 = vmatpush1.msra.mxu0 0.0
  %11082 = vmatprep.subr.mxu0 0.0
  %11083 = vmatpush1.msra.mxu0 0.0
  %11084 = vmatprep.subr.mxu0 0.0
  %11085 = vmatpush1.msra.mxu0 0.0
  %11086 = vmatprep.subr.mxu0 0.0
  %11087 = vmatpush1.msra.mxu0 0.0
  %11088 = vmatprep.subr.mxu0 0.0
  %11089 = vmatpush1.msra.mxu0 0.0
  %11090 = vmatprep.subr.mxu0 0.0
  %11091 = vmatpush1.msra.mxu0 0.0
  %11092 = vmatprep.subr.mxu0 0.0
  %11093 = vmatpush1.msra.mxu0 0.0
  %11094 = vmatprep.subr.mxu0 0.0
  %11095 = vmatpush1.msra.mxu0 0.0
  %11096 = vmatprep.subr.mxu0 0.0
  %11097 = vmatpush1.msra.mxu0 0.0
  %11098 = vmatprep.mubr.f32.mxu0 0.0
  %v11099 = vand.u32 %v10693, 4294901760
  %11100 = vmatmul.mubr.f32.gmra.mrb[0].mxu0 %v11099
  %v11101 = vpop.f32.mrb[0].mxu0
  %v11102 = vadd.f32 %v11019, %v11101
  %v11103 = vpop.f32.mrb[0].mxu0
  %11104 = vdwg.mxu0
  %11105 = vmatprep.subr.mxu0 0.0
  %v11106 = vand.u32 %v10683, 4294901760
  %11107 = vmatpush1.msra.mxu0 %v11106
  %11108 = vmatprep.subr.mxu0 0.0
  %v11109 = vand.u32 %v10684, 4294901760
  %11110 = vmatpush1.msra.mxu0 %v11109
  %11111 = vmatprep.subr.mxu0 0.0
  %v11112 = vand.u32 %v10685, 4294901760
  %11113 = vmatpush1.msra.mxu0 %v11112
  %11114 = vmatprep.subr.mxu0 0.0
  %v11115 = vand.u32 %v10686, 4294901760
  %11116 = vmatpush1.msra.mxu0 %v11115
  %11117 = vmatprep.subr.mxu0 0.0
  %11118 = vmatpush1.msra.mxu0 0.0
  %11119 = vmatprep.subr.mxu0 0.0
  %11120 = vmatpush1.msra.mxu0 0.0
  %11121 = vmatprep.subr.mxu0 0.0
  %11122 = vmatpush1.msra.mxu0 0.0
  %11123 = vmatprep.subr.mxu0 0.0
  %11124 = vmatpush1.msra.mxu0 0.0
  %11125 = vmatprep.subr.mxu0 0.0
  %11126 = vmatpush1.msra.mxu0 0.0
  %11127 = vmatprep.subr.mxu0 0.0
  %11128 = vmatpush1.msra.mxu0 0.0
  %11129 = vmatprep.subr.mxu0 0.0
  %11130 = vmatpush1.msra.mxu0 0.0
  %11131 = vmatprep.subr.mxu0 0.0
  %11132 = vmatpush1.msra.mxu0 0.0
  %11133 = vmatprep.subr.mxu0 0.0
  %11134 = vmatpush1.msra.mxu0 0.0
  %11135 = vmatprep.subr.mxu0 0.0
  %11136 = vmatpush1.msra.mxu0 0.0
  %11137 = vmatprep.subr.mxu0 0.0
  %11138 = vmatpush1.msra.mxu0 0.0
  %11139 = vmatprep.subr.mxu0 0.0
  %11140 = vmatpush1.msra.mxu0 0.0
  %11141 = vmatprep.subr.mxu0 0.0
  %11142 = vmatpush1.msra.mxu0 0.0
  %11143 = vmatprep.subr.mxu0 0.0
  %11144 = vmatpush1.msra.mxu0 0.0
  %11145 = vmatprep.subr.mxu0 0.0
  %11146 = vmatpush1.msra.mxu0 0.0
  %11147 = vmatprep.subr.mxu0 0.0
  %11148 = vmatpush1.msra.mxu0 0.0
  %11149 = vmatprep.subr.mxu0 0.0
  %11150 = vmatpush1.msra.mxu0 0.0
  %11151 = vmatprep.subr.mxu0 0.0
  %11152 = vmatpush1.msra.mxu0 0.0
  %11153 = vmatprep.subr.mxu0 0.0
  %11154 = vmatpush1.msra.mxu0 0.0
  %11155 = vmatprep.subr.mxu0 0.0
  %11156 = vmatpush1.msra.mxu0 0.0
  %11157 = vmatprep.subr.mxu0 0.0
  %11158 = vmatpush1.msra.mxu0 0.0
  %11159 = vmatprep.subr.mxu0 0.0
  %11160 = vmatpush1.msra.mxu0 0.0
  %11161 = vmatprep.subr.mxu0 0.0
  %11162 = vmatpush1.msra.mxu0 0.0
  %11163 = vmatprep.subr.mxu0 0.0
  %11164 = vmatpush1.msra.mxu0 0.0
  %11165 = vmatprep.subr.mxu0 0.0
  %11166 = vmatpush1.msra.mxu0 0.0
  %11167 = vmatprep.subr.mxu0 0.0
  %11168 = vmatpush1.msra.mxu0 0.0
  %11169 = vmatprep.subr.mxu0 0.0
  %11170 = vmatpush1.msra.mxu0 0.0
  %11171 = vmatprep.subr.mxu0 0.0
  %11172 = vmatpush1.msra.mxu0 0.0
  %11173 = vmatprep.mubr.f32.mxu0 0.0
  %v11174 = vand.u32 %v10693, 4294901760
  %11175 = vmatmul.mubr.f32.gmra.mrb[0].mxu0 %v11174
  %v11176 = vpop.f32.mrb[0].mxu0
  %v11177 = vadd.f32 %v11102, %v11176
  %v11178 = vpop.f32.mrb[0].mxu0
  %11179 = vdwg.mxu0
  %11181 = vrot.lane.b32.xlu0 %v10666, 24
  %v11182 = vpop.permute.xlu0 %11181
  %v11184 = vsel %vm10193, %v11177, %v11182
  %vm11185 = vcmask 451584
  %11186 = vst.msk [vmem:[%s2] sm:$0x3] %vm11185, %v11184
  // Predicated region
  $region10: #{base_transformer_forward.1} parent=0 // pred_check
    _
  $region11: #{base_transformer_forward.1} parent=0 // pred_check_branch
    %11188 = sbr.rel (0) target = $region13
  $region12: #{base_transformer_forward.1} parent=0 // pred_region
    _
  $region13: #{base_transformer_forward.1} parent=0 // pred_fallthru
    _
  // Predicated region
  $region14: #{base_transformer_forward.1} parent=0 // pred_check
    _
  $region15: #{base_transformer_forward.1} parent=0 // pred_check_branch
    %11190 = sbr.rel (0) target = $region17
  $region16: #{base_transformer_forward.1} parent=0 // pred_region
    _
  $region17: #{base_transformer_forward.1} parent=0 // pred_fallthru
    _

</llo_original>
